<compile_context>
chip_gen: v5e
topology: v5e:2x2
jax: 0.10.0
libtpu: 0.0.40
codegen_flags: <defaults>
</compile_context>

<pallas_src>
import jax
import jax.numpy as jnp
from jax.experimental import pallas as pl
from jax.experimental.pallas import tpu as pltpu

N_EMBD = 384
HIDDEN = 4 * N_EMBD
DROPOUT_P = 0.2
TILE_M = 256  # row tile; multiple of MXU tile height (128 on v5e, 256 on v6e/v7x)

# int() truncates 0.2 * 2**32 = 858993459.2 -> 858993459; keep-prob bias ~2e-10.
# Intentional integer compare — do not "fix" into a float compare.
DROP_THRESHOLD = int(DROPOUT_P * (2 ** 32))
KEEP_SCALE = 1.0 / (1.0 - DROPOUT_P)


def _ffwd_dropout_kernel(x_ref, w1_ref, b1_ref, w2_ref, b2_ref, rbits_ref, o_ref):
    # x: (TILE_M, N_EMBD) f32; w1: (N_EMBD, HIDDEN) bf16; b1: (1, HIDDEN) f32;
    # w2: (HIDDEN, N_EMBD) bf16; b2: (1, N_EMBD) f32; rbits: (TILE_M, N_EMBD) u32.
    x = x_ref[...].astype(jnp.bfloat16)

    # Linear 1 (bf16 MXU matmul, f32 accumulate) + bias + ReLU in f32.
    h = jnp.dot(x, w1_ref[...], preferred_element_type=jnp.float32) + b1_ref[...]
    h = jnp.maximum(h, 0.0)

    # Linear 2 (bf16 MXU matmul, f32 accumulate) + bias in f32.
    y = jnp.dot(h.astype(jnp.bfloat16), w2_ref[...],
                preferred_element_type=jnp.float32) + b2_ref[...]

    # Inverted dropout: P(bits < thr) = p, keep where bits >= thr; one mul + one select.
    keep = rbits_ref[...] >= jnp.uint32(DROP_THRESHOLD)
    o_ref[...] = jnp.where(keep, y * jnp.float32(KEEP_SCALE), 0.0).astype(o_ref.dtype)


def _ffwd_eval_kernel(x_ref, w1_ref, b1_ref, w2_ref, b2_ref, o_ref):
    # Same forward pass without dropout (nn.Dropout is identity in eval mode).
    x = x_ref[...].astype(jnp.bfloat16)
    h = jnp.dot(x, w1_ref[...], preferred_element_type=jnp.float32) + b1_ref[...]
    h = jnp.maximum(h, 0.0)
    y = jnp.dot(h.astype(jnp.bfloat16), w2_ref[...],
                preferred_element_type=jnp.float32) + b2_ref[...]
    o_ref[...] = y.astype(o_ref.dtype)


def feed_forward(x, w1, b1, w2, b2, *, dropout_key=None, training=True,
                 tile_m=TILE_M):
    """x: (B, T, N_EMBD) float32.  Returns (B, T, N_EMBD) float32."""
    B, T, C = x.shape
    assert C == N_EMBD
    M = B * T
    x2 = x.reshape(M, C)

    # Pad token dim up to a full MXU-aligned tile; extra rows are sliced off below.
    n_tiles = pl.cdiv(M, tile_m)
    Mp = n_tiles * tile_m
    if Mp != M:
        x2 = jnp.pad(x2, ((0, Mp - M), (0, 0)))

    # Per-step tiles for activations; resident (constant index_map) weights/biases.
    act_spec = pl.BlockSpec((tile_m, N_EMBD), lambda i: (i, 0))
    w1_spec = pl.BlockSpec((N_EMBD, HIDDEN), lambda i: (0, 0))
    b1_spec = pl.BlockSpec((1, HIDDEN), lambda i: (0, 0))
    w2_spec = pl.BlockSpec((HIDDEN, N_EMBD), lambda i: (0, 0))
    b2_spec = pl.BlockSpec((1, N_EMBD), lambda i: (0, 0))

    compiler_params = pltpu.CompilerParams(
        dimension_semantics=("parallel",),      # shard row tiles across TCs (v7x megacore)
        vmem_limit_bytes=32 * 1024 * 1024,      # ~10 MiB footprint; safe on v5e/v6e/v7x
    )

    if training:
        assert dropout_key is not None, "training=True requires a dropout_key"
        # Dropout randomness generated host/XLA-side (in-kernel TPU PRNG does not
        # lower under CPU interpret), streamed through the same tiled pipeline.
        rbits = jax.random.bits(dropout_key, (Mp, N_EMBD), dtype=jnp.uint32)
        out = pl.pallas_call(
            _ffwd_dropout_kernel,
            out_shape=jax.ShapeDtypeStruct((Mp, C), x.dtype),
            grid=(n_tiles,),
            in_specs=[act_spec, w1_spec, b1_spec, w2_spec, b2_spec, act_spec],
            out_specs=act_spec,
            compiler_params=compiler_params,
        )(x2, w1, b1, w2, b2, rbits)
    else:
        out = pl.pallas_call(
            _ffwd_eval_kernel,
            out_shape=jax.ShapeDtypeStruct((Mp, C), x.dtype),
            grid=(n_tiles,),
            in_specs=[act_spec, w1_spec, b1_spec, w2_spec, b2_spec],
            out_specs=act_spec,
            compiler_params=compiler_params,
        )(x2, w1, b1, w2, b2)

    return out[:M].reshape(B, T, C)


def init_params(key):
    """Mimic nn.Linear init U(-1/sqrt(fan_in), 1/sqrt(fan_in)); weights as (in, out) bf16."""
    k1, k2, k3, k4 = jax.random.split(key, 4)
    bound1 = 1.0 / (N_EMBD ** 0.5)
    bound2 = 1.0 / (HIDDEN ** 0.5)
    w1 = jax.random.uniform(k1, (N_EMBD, HIDDEN), jnp.float32, -bound1, bound1)
    b1 = jax.random.uniform(k2, (1, HIDDEN), jnp.float32, -bound1, bound1)
    w2 = jax.random.uniform(k3, (HIDDEN, N_EMBD), jnp.float32, -bound2, bound2)
    b2 = jax.random.uniform(k4, (1, N_EMBD), jnp.float32, -bound2, bound2)
    # Ship weights as bf16 (MXU-native, halves weight DMA); biases stay f32.
    return w1.astype(jnp.bfloat16), b1, w2.astype(jnp.bfloat16), b2


if __name__ == "__main__":
    key = jax.random.PRNGKey(0)
    k_x, k_p, k_d = jax.random.split(key, 3)

    B, T = 2, 8  # small batch / sequence; n_embd fixed at 384 by the module
    x = jax.random.normal(k_x, (B, T, N_EMBD), dtype=jnp.float32)
    w1, b1, w2, b2 = init_params(k_p)

    out = feed_forward(x, w1, b1, w2, b2, dropout_key=k_d, training=True)
    jax.block_until_ready(out)
    assert out.shape == (B, T, N_EMBD)
    assert bool(jnp.all(jnp.isfinite(out)))

    out_eval = feed_forward(x, w1, b1, w2, b2, training=False)
    jax.block_until_ready(out_eval)
    assert out_eval.shape == (B, T, N_EMBD)

    print("KERNEL_OK")
</pallas_src>

<mosaic_0001>
module attributes {stable_mosaic.version = 11 : i64} {
  func.func @_ffwd_dropout_kernel(%arg0: i32, %arg1: memref<256x384xf32, #tpu.memory_space<vmem>>, %arg2: memref<384x1536xbf16, #tpu.memory_space<vmem>>, %arg3: memref<1x1536xf32, #tpu.memory_space<vmem>>, %arg4: memref<1536x384xbf16, #tpu.memory_space<vmem>>, %arg5: memref<1x384xf32, #tpu.memory_space<vmem>>, %arg6: memref<256x384xi32, #tpu.memory_space<vmem>>, %arg7: memref<256x384xf32, #tpu.memory_space<vmem>>) attributes {dimension_semantics = [#tpu.dimension_semantics<parallel>], iteration_bounds = array<i64: 1>, scalar_prefetch = 0 : i64, scratch_operands = 0 : i64, tpu.core_type = #tpu.core_type<tc>, window_params = [{transform_indices = @transform_0, window_bounds = array<i64: 256, 384>}, {pipeline_mode = #tpu.pipeline_mode<synchronous>, transform_indices = @transform_1, window_bounds = array<i64: 384, 1536>}, {pipeline_mode = #tpu.pipeline_mode<synchronous>, transform_indices = @transform_2, window_bounds = array<i64: 1, 1536>}, {pipeline_mode = #tpu.pipeline_mode<synchronous>, transform_indices = @transform_3, window_bounds = array<i64: 1536, 384>}, {pipeline_mode = #tpu.pipeline_mode<synchronous>, transform_indices = @transform_4, window_bounds = array<i64: 1, 384>}, {transform_indices = @transform_5, window_bounds = array<i64: 256, 384>}, {transform_indices = @transform_6, window_bounds = array<i64: 256, 384>}]} {
    %c0 = arith.constant 0 : index
    %c0_0 = arith.constant 0 : index
    %0 = vector.load %arg1[%c0, %c0_0] : memref<256x384xf32, #tpu.memory_space<vmem>>, vector<256x384xf32>
    %1 = arith.truncf %0 : vector<256x384xf32> to vector<256x384xbf16>
    %c0_1 = arith.constant 0 : index
    %c0_2 = arith.constant 0 : index
    %2 = vector.load %arg2[%c0_1, %c0_2] : memref<384x1536xbf16, #tpu.memory_space<vmem>>, vector<384x1536xbf16>
    %cst = arith.constant dense<0.000000e+00> : vector<256x1536xf32>
    %3 = tpu.matmul %1, %2, %cst {dimension_numbers = #tpu.dot_dimension_numbers<[1], [0], [0], [1], [0, 0, 1, 1], [], []>} : vector<256x384xbf16>, vector<384x1536xbf16>, vector<256x1536xf32> -> vector<256x1536xf32>
    %c0_3 = arith.constant 0 : index
    %c0_4 = arith.constant 0 : index
    %4 = vector.load %arg3[%c0_3, %c0_4] : memref<1x1536xf32, #tpu.memory_space<vmem>>, vector<1x1536xf32>
    %5 = vector.broadcast %4 : vector<1x1536xf32> to vector<256x1536xf32>
    %6 = arith.addf %3, %5 : vector<256x1536xf32>
    %cst_5 = arith.constant 0.000000e+00 : f32
    %7 = vector.broadcast %cst_5 : f32 to vector<256x1536xf32>
    %8 = arith.maximumf %6, %7 : vector<256x1536xf32>
    %9 = arith.truncf %8 : vector<256x1536xf32> to vector<256x1536xbf16>
    %c0_6 = arith.constant 0 : index
    %c0_7 = arith.constant 0 : index
    %10 = vector.load %arg4[%c0_6, %c0_7] : memref<1536x384xbf16, #tpu.memory_space<vmem>>, vector<1536x384xbf16>
    %cst_8 = arith.constant dense<0.000000e+00> : vector<256x384xf32>
    %11 = tpu.matmul %9, %10, %cst_8 {dimension_numbers = #tpu.dot_dimension_numbers<[1], [0], [0], [1], [0, 0, 1, 1], [], []>} : vector<256x1536xbf16>, vector<1536x384xbf16>, vector<256x384xf32> -> vector<256x384xf32>
    %c0_9 = arith.constant 0 : index
    %c0_10 = arith.constant 0 : index
    %12 = vector.load %arg5[%c0_9, %c0_10] : memref<1x384xf32, #tpu.memory_space<vmem>>, vector<1x384xf32>
    %13 = vector.broadcast %12 : vector<1x384xf32> to vector<256x384xf32>
    %14 = arith.addf %11, %13 : vector<256x384xf32>
    %c0_11 = arith.constant 0 : index
    %c0_12 = arith.constant 0 : index
    %15 = vector.load %arg6[%c0_11, %c0_12] : memref<256x384xi32, #tpu.memory_space<vmem>>, vector<256x384xi32>
    %c858993459_i32 = arith.constant 858993459 : i32
    %16 = vector.broadcast %c858993459_i32 : i32 to vector<256x384xi32>
    %17 = arith.cmpi uge, %15, %16 : vector<256x384xi32>
    %cst_13 = arith.constant 1.250000e+00 : f32
    %18 = vector.broadcast %cst_13 : f32 to vector<256x384xf32>
    %19 = arith.mulf %14, %18 : vector<256x384xf32>
    %cst_14 = arith.constant 0.000000e+00 : f32
    %20 = vector.broadcast %cst_14 : f32 to vector<256x384xf32>
    %21 = arith.select %17, %19, %20 : vector<256x384xi1>, vector<256x384xf32>
    %c0_15 = arith.constant 0 : index
    %c0_16 = arith.constant 0 : index
    %22 = vector.load %arg7[%c0_15, %c0_16] : memref<256x384xf32, #tpu.memory_space<vmem>>, vector<256x384xf32>
    tpu.vector_store %arg7[%c0_15, %c0_16], %21 {strides = array<i32>} : memref<256x384xf32, #tpu.memory_space<vmem>>, vector<256x384xf32>,
    return
  }
  func.func @transform_0(%arg0: i32) -> (i32, i32) {
    %c0_i32 = arith.constant 0 : i32
    %c0_i32_0 = arith.constant 0 : i32
    return %arg0, %c0_i32 : i32, i32
  }
  func.func @transform_1(%arg0: i32) -> (i32, i32) {
    %c0_i32 = arith.constant 0 : i32
    %c0_i32_0 = arith.constant 0 : i32
    %c0_i32_1 = arith.constant 0 : i32
    return %c0_i32, %c0_i32_0 : i32, i32
  }
  func.func @transform_2(%arg0: i32) -> (i32, i32) {
    %c0_i32 = arith.constant 0 : i32
    %c0_i32_0 = arith.constant 0 : i32
    %c0_i32_1 = arith.constant 0 : i32
    return %c0_i32, %c0_i32_0 : i32, i32
  }
  func.func @transform_3(%arg0: i32) -> (i32, i32) {
    %c0_i32 = arith.constant 0 : i32
    %c0_i32_0 = arith.constant 0 : i32
    %c0_i32_1 = arith.constant 0 : i32
    return %c0_i32, %c0_i32_0 : i32, i32
  }
  func.func @transform_4(%arg0: i32) -> (i32, i32) {
    %c0_i32 = arith.constant 0 : i32
    %c0_i32_0 = arith.constant 0 : i32
    %c0_i32_1 = arith.constant 0 : i32
    return %c0_i32, %c0_i32_0 : i32, i32
  }
  func.func @transform_5(%arg0: i32) -> (i32, i32) {
    %c0_i32 = arith.constant 0 : i32
    %c0_i32_0 = arith.constant 0 : i32
    return %arg0, %c0_i32 : i32, i32
  }
  func.func @transform_6(%arg0: i32) -> (i32, i32) {
    %c0_i32 = arith.constant 0 : i32
    %c0_i32_0 = arith.constant 0 : i32
    return %arg0, %c0_i32 : i32, i32
  }
}

</mosaic_0001>

<llo_original>
// kernel: tpu_custom_call.1
$region0: #{tpu_custom_call.1}
  #allocation0 [shape = 'u32[]', space=smem, size = 0x4, offset = 0x4, fixed_abs, tag = 'smem constant byte address 0x4 - core index']
  #allocation1 [shape = 'u32[72,128]{1,0:T(1,128)}', space=vmem, size = 0x9000, scoped, tag = 'internal scratch']
  %s0 = inlined_call_operand.hbm [shape: f32[256,384], index: 0, kind: input, shape index: {}]
  %s1 = inlined_call_operand.hbm [shape: bf16[384,1536], index: 1, kind: input, shape index: {}]
  %s2 = inlined_call_operand.hbm [shape: f32[1,1536], index: 2, kind: input, shape index: {}]
  %s3 = inlined_call_operand.hbm [shape: bf16[1536,384], index: 3, kind: input, shape index: {}]
  %s4 = inlined_call_operand.hbm [shape: f32[1,384], index: 4, kind: input, shape index: {}]
  %s5 = inlined_call_operand.hbm [shape: u32[256,384], index: 5, kind: input, shape index: {}]
  %s6 = inlined_call_operand.hbm [shape: f32[256,384], index: 6, kind: output, shape index: {}]
  %s7 = sld [smem:[#allocation0]]
  $region58: #{tpu_custom_call.1} parent=0
    _
  %s9 = ssub.s32 1, %s7
  %s10 = scalar_select 0, %s9, %s7
  $region1: #{tpu_custom_call.1} parent=0
    #allocation2 [shape = 'u8[393216]{0}', space=vmem, size = 0x60000, scoped, tag = 'input window, operand 0, single buffered']
    #allocation3 [shape = 's32[1]{0}', space=sflag, size = 0x4, scoped, tag = 'scoped memory for tpu_custom_call.1']
    #allocation4 [shape = 's32[1]{0}', space=sflag, size = 0x4, scoped, tag = 'scoped memory for tpu_custom_call.1']
    #allocation5 [shape = 'u8[1179648]{0}', space=vmem, size = 0x120000, scoped, tag = 'input window, operand 1, single buffered']
    #allocation6 [shape = 's32[1]{0}', space=sflag, size = 0x4, scoped, tag = 'scoped memory for tpu_custom_call.1']
    #allocation7 [shape = 'u8[6144]{0}', space=vmem, size = 0x1800, scoped, tag = 'input window, operand 2, single buffered']
    #allocation8 [shape = 'u8[1179648]{0}', space=vmem, size = 0x120000, scoped, tag = 'input window, operand 3, single buffered']
    #allocation9 [shape = 's32[1]{0}', space=sflag, size = 0x4, scoped, tag = 'scoped memory for tpu_custom_call.1']
    #allocation10 [shape = 'u8[1536]{0}', space=vmem, size = 0x800, scoped, tag = 'input window, operand 4, single buffered']
    #allocation11 [shape = 'u8[393216]{0}', space=vmem, size = 0x60000, scoped, tag = 'input window, operand 5, single buffered']
    #allocation12 [shape = 's32[1]{0}', space=sflag, size = 0x4, scoped, tag = 'scoped memory for tpu_custom_call.1']
    #allocation13 [shape = 'u8[393216]{0}', space=vmem, size = 0x60000, scoped, tag = 'output window, operand 0, single buffered']
    %11 = vsyncpa [#allocation3], 0
    %12 = vsyncpa [#allocation6], 0
    %13 = vsyncpa [#allocation9], 0
    %14 = vsyncpa [#allocation12], 0
    %15 = vsyncpa [#allocation4], 0
    // Predicated region
    $region2: #{tpu_custom_call.1} parent=1 // pred_check
      _
    $region3: #{tpu_custom_call.1} parent=1 // pred_check_branch
      %17 = sbr.rel (0) target = $region5
    $region4: #{tpu_custom_call.1} parent=1 // pred_region
      %19 = vsyncadd [#allocation3], 0
      %s20 = sshll.u32 %s0, 4
      %s21 = int_to_ptr.hbm [resolvable:$true] %s20
      %s22 = sshll.u32 [#allocation2], 4
      %s23 = int_to_ptr.vmem [resolvable:$true] %s22
      %28 = dma.hbm_to_vmem [thread:$0]  %s21, 12288, %s23, [#allocation3], 384, 384, 24
    $region5: #{tpu_custom_call.1} parent=1 // pred_fallthru
      _
    // Predicated region
    $region6: #{tpu_custom_call.1} parent=1 // pred_check
      _
    $region7: #{tpu_custom_call.1} parent=1 // pred_check_branch
      %30 = sbr.rel (0) target = $region9
    $region8: #{tpu_custom_call.1} parent=1 // pred_region
      %32 = vsyncadd [#allocation6], 0
      %s33 = sshll.u32 %s1, 4
      %s34 = int_to_ptr.hbm [resolvable:$true] %s33
      %s35 = sshll.u32 [#allocation5], 4
      %s36 = int_to_ptr.vmem [resolvable:$true] %s35
      %41 = dma.hbm_to_vmem [thread:$0]  %s34, 36864, %s36, [#allocation6], 768, 768, 48
    $region9: #{tpu_custom_call.1} parent=1 // pred_fallthru
      _
    // Predicated region
    $region10: #{tpu_custom_call.1} parent=1 // pred_check
      _
    $region11: #{tpu_custom_call.1} parent=1 // pred_check_branch
      %43 = sbr.rel (0) target = $region13
    $region12: #{tpu_custom_call.1} parent=1 // pred_region
      %45 = vsyncadd [#allocation6], 0
      %s47 = sshll.u32 %s2, 4
      %s48 = int_to_ptr.hbm [resolvable:$true] %s47
      %s49 = sshll.u32 [#allocation7], 4
      %s50 = int_to_ptr.vmem [resolvable:$true] %s49
      %52 = dma.hbm_to_vmem [thread:$0]  %s48, 192, %s50, [#allocation6]
    $region13: #{tpu_custom_call.1} parent=1 // pred_fallthru
      _
    // Predicated region
    $region14: #{tpu_custom_call.1} parent=1 // pred_check
      _
    $region15: #{tpu_custom_call.1} parent=1 // pred_check_branch
      %54 = sbr.rel (0) target = $region17
    $region16: #{tpu_custom_call.1} parent=1 // pred_region
      %56 = vsyncadd [#allocation9], 0
      %s57 = sshll.u32 %s3, 4
      %s58 = int_to_ptr.hbm [resolvable:$true] %s57
      %s59 = sshll.u32 [#allocation8], 4
      %s60 = int_to_ptr.vmem [resolvable:$true] %s59
      %65 = dma.hbm_to_vmem [thread:$0]  %s58, 36864, %s60, [#allocation9], 192, 192, 12
    $region17: #{tpu_custom_call.1} parent=1 // pred_fallthru
      _
    // Predicated region
    $region18: #{tpu_custom_call.1} parent=1 // pred_check
      _
    $region19: #{tpu_custom_call.1} parent=1 // pred_check_branch
      %67 = sbr.rel (0) target = $region21
    $region20: #{tpu_custom_call.1} parent=1 // pred_region
      %69 = vsyncadd [#allocation9], 0
      %s71 = sshll.u32 %s4, 4
      %s72 = int_to_ptr.hbm [resolvable:$true] %s71
      %s73 = sshll.u32 [#allocation10], 4
      %s74 = int_to_ptr.vmem [resolvable:$true] %s73
      %76 = dma.hbm_to_vmem [thread:$0]  %s72, 48, %s74, [#allocation9]
    $region21: #{tpu_custom_call.1} parent=1 // pred_fallthru
      _
    // Predicated region
    $region22: #{tpu_custom_call.1} parent=1 // pred_check
      _
    $region23: #{tpu_custom_call.1} parent=1 // pred_check_branch
      %78 = sbr.rel (0) target = $region25
    $region24: #{tpu_custom_call.1} parent=1 // pred_region
      %80 = vsyncadd [#allocation12], 0
      %s81 = sshll.u32 %s5, 4
      %s82 = int_to_ptr.hbm [resolvable:$true] %s81
      %s83 = sshll.u32 [#allocation11], 4
      %s84 = int_to_ptr.vmem [resolvable:$true] %s83
      %89 = dma.hbm_to_vmem [thread:$0]  %s82, 12288, %s84, [#allocation12], 384, 384, 24
    $region25: #{tpu_custom_call.1} parent=1 // pred_fallthru
      _
    // Predicated region
    $region26: #{tpu_custom_call.1} parent=1 // pred_check
      _
    $region27: #{tpu_custom_call.1} parent=1 // pred_check_branch
      %91 = sbr.rel (0) target = $region29
    $region28: #{tpu_custom_call.1} parent=1 // pred_region
      %93 = dma.done [#allocation3], 12288
    $region29: #{tpu_custom_call.1} parent=1 // pred_fallthru
      _
    // Predicated region
    $region30: #{tpu_custom_call.1} parent=1 // pred_check
      _
    $region31: #{tpu_custom_call.1} parent=1 // pred_check_branch
      %95 = sbr.rel (0) target = $region33
    $region32: #{tpu_custom_call.1} parent=1 // pred_region
      %97 = dma.done [#allocation6], 36864
    $region33: #{tpu_custom_call.1} parent=1 // pred_fallthru
      _
    // Predicated region
    $region34: #{tpu_custom_call.1} parent=1 // pred_check
      _
    $region35: #{tpu_custom_call.1} parent=1 // pred_check_branch
      %99 = sbr.rel (0) target = $region37
    $region36: #{tpu_custom_call.1} parent=1 // pred_region
      %101 = dma.done [#allocation6], 192
    $region37: #{tpu_custom_call.1} parent=1 // pred_fallthru
      _
    // Predicated region
    $region38: #{tpu_custom_call.1} parent=1 // pred_check
      _
    $region39: #{tpu_custom_call.1} parent=1 // pred_check_branch
      %103 = sbr.rel (0) target = $region41
    $region40: #{tpu_custom_call.1} parent=1 // pred_region
      %105 = dma.done [#allocation9], 36864
    $region41: #{tpu_custom_call.1} parent=1 // pred_fallthru
      _
    // Predicated region
    $region42: #{tpu_custom_call.1} parent=1 // pred_check
      _
    $region43: #{tpu_custom_call.1} parent=1 // pred_check_branch
      %107 = sbr.rel (0) target = $region45
    $region44: #{tpu_custom_call.1} parent=1 // pred_region
      %109 = dma.done [#allocation9], 48
    $region45: #{tpu_custom_call.1} parent=1 // pred_fallthru
      _
    // Predicated region
    $region46: #{tpu_custom_call.1} parent=1 // pred_check
      _
    $region47: #{tpu_custom_call.1} parent=1 // pred_check_branch
      %111 = sbr.rel (0) target = $region49
    $region48: #{tpu_custom_call.1} parent=1 // pred_region
      %113 = dma.done [#allocation12], 12288
    $region49: #{tpu_custom_call.1} parent=1 // pred_fallthru
      _
    %v114 = vld [vmem:[#allocation2] sm:$0xff]
    %v115 = vld [vmem:[#allocation2 + $0x8] sm:$0xff]
    %v116 = vld [vmem:[#allocation2 + $0x10] sm:$0xff]
    %v117 = vld [vmem:[#allocation2 + $0x18] sm:$0xff]
    %v118 = vld [vmem:[#allocation2 + $0x20] sm:$0xff]
    %v119 = vld [vmem:[#allocation2 + $0x28] sm:$0xff]
    %v120 = vld [vmem:[#allocation2 + $0x30] sm:$0xff]
    %v121 = vld [vmem:[#allocation2 + $0x38] sm:$0xff]
    %v122 = vld [vmem:[#allocation2 + $0x40] sm:$0xff]
    %v123 = vld [vmem:[#allocation2 + $0x48] sm:$0xff]
    %v124 = vld [vmem:[#allocation2 + $0x50] sm:$0xff]
    %v125 = vld [vmem:[#allocation2 + $0x58] sm:$0xff]
    %v126 = vld [vmem:[#allocation2 + $0x60] sm:$0xff]
    %v127 = vld [vmem:[#allocation2 + $0x68] sm:$0xff]
    %v128 = vld [vmem:[#allocation2 + $0x70] sm:$0xff]
    %v129 = vld [vmem:[#allocation2 + $0x78] sm:$0xff]
    %v130 = vld [vmem:[#allocation2 + $0x80] sm:$0xff]
    %v131 = vld [vmem:[#allocation2 + $0x88] sm:$0xff]
    %v132 = vld [vmem:[#allocation2 + $0x90] sm:$0xff]
    %v133 = vld [vmem:[#allocation2 + $0x98] sm:$0xff]
    %v134 = vld [vmem:[#allocation2 + $0xa0] sm:$0xff]
    %v135 = vld [vmem:[#allocation2 + $0xa8] sm:$0xff]
    %v136 = vld [vmem:[#allocation2 + $0xb0] sm:$0xff]
    %v137 = vld [vmem:[#allocation2 + $0xb8] sm:$0xff]
    %v138 = vld [vmem:[#allocation2 + $0xc0] sm:$0xff]
    %v139 = vld [vmem:[#allocation2 + $0xc8] sm:$0xff]
    %v140 = vld [vmem:[#allocation2 + $0xd0] sm:$0xff]
    %v141 = vld [vmem:[#allocation2 + $0xd8] sm:$0xff]
    %v142 = vld [vmem:[#allocation2 + $0xe0] sm:$0xff]
    %v143 = vld [vmem:[#allocation2 + $0xe8] sm:$0xff]
    %v144 = vld [vmem:[#allocation2 + $0xf0] sm:$0xff]
    %v145 = vld [vmem:[#allocation2 + $0xf8] sm:$0xff]
    %v146 = vld [vmem:[#allocation2 + $0x100] sm:$0xff]
    %v147 = vld [vmem:[#allocation2 + $0x108] sm:$0xff]
    %v148 = vld [vmem:[#allocation2 + $0x110] sm:$0xff]
    %v149 = vld [vmem:[#allocation2 + $0x118] sm:$0xff]
    %v150 = vld [vmem:[#allocation2 + $0x120] sm:$0xff]
    %v151 = vld [vmem:[#allocation2 + $0x128] sm:$0xff]
    %v152 = vld [vmem:[#allocation2 + $0x130] sm:$0xff]
    %v153 = vld [vmem:[#allocation2 + $0x138] sm:$0xff]
    %v154 = vld [vmem:[#allocation2 + $0x140] sm:$0xff]
    %v155 = vld [vmem:[#allocation2 + $0x148] sm:$0xff]
    %v156 = vld [vmem:[#allocation2 + $0x150] sm:$0xff]
    %v157 = vld [vmem:[#allocation2 + $0x158] sm:$0xff]
    %v158 = vld [vmem:[#allocation2 + $0x160] sm:$0xff]
    %v159 = vld [vmem:[#allocation2 + $0x168] sm:$0xff]
    %v160 = vld [vmem:[#allocation2 + $0x170] sm:$0xff]
    %v161 = vld [vmem:[#allocation2 + $0x178] sm:$0xff]
    %v162 = vld [vmem:[#allocation2 + $0x180] sm:$0xff]
    %v163 = vld [vmem:[#allocation2 + $0x188] sm:$0xff]
    %v164 = vld [vmem:[#allocation2 + $0x190] sm:$0xff]
    %v165 = vld [vmem:[#allocation2 + $0x198] sm:$0xff]
    %v166 = vld [vmem:[#allocation2 + $0x1a0] sm:$0xff]
    %v167 = vld [vmem:[#allocation2 + $0x1a8] sm:$0xff]
    %v168 = vld [vmem:[#allocation2 + $0x1b0] sm:$0xff]
    %v169 = vld [vmem:[#allocation2 + $0x1b8] sm:$0xff]
    %v170 = vld [vmem:[#allocation2 + $0x1c0] sm:$0xff]
    %v171 = vld [vmem:[#allocation2 + $0x1c8] sm:$0xff]
    %v172 = vld [vmem:[#allocation2 + $0x1d0] sm:$0xff]
    %v173 = vld [vmem:[#allocation2 + $0x1d8] sm:$0xff]
    %v174 = vld [vmem:[#allocation2 + $0x1e0] sm:$0xff]
    %v175 = vld [vmem:[#allocation2 + $0x1e8] sm:$0xff]
    %v176 = vld [vmem:[#allocation2 + $0x1f0] sm:$0xff]
    %v177 = vld [vmem:[#allocation2 + $0x1f8] sm:$0xff]
    %v178 = vld [vmem:[#allocation2 + $0x200] sm:$0xff]
    %v179 = vld [vmem:[#allocation2 + $0x208] sm:$0xff]
    %v180 = vld [vmem:[#allocation2 + $0x210] sm:$0xff]
    %v181 = vld [vmem:[#allocation2 + $0x218] sm:$0xff]
    %v182 = vld [vmem:[#allocation2 + $0x220] sm:$0xff]
    %v183 = vld [vmem:[#allocation2 + $0x228] sm:$0xff]
    %v184 = vld [vmem:[#allocation2 + $0x230] sm:$0xff]
    %v185 = vld [vmem:[#allocation2 + $0x238] sm:$0xff]
    %v186 = vld [vmem:[#allocation2 + $0x240] sm:$0xff]
    %v187 = vld [vmem:[#allocation2 + $0x248] sm:$0xff]
    %v188 = vld [vmem:[#allocation2 + $0x250] sm:$0xff]
    %v189 = vld [vmem:[#allocation2 + $0x258] sm:$0xff]
    %v190 = vld [vmem:[#allocation2 + $0x260] sm:$0xff]
    %v191 = vld [vmem:[#allocation2 + $0x268] sm:$0xff]
    %v192 = vld [vmem:[#allocation2 + $0x270] sm:$0xff]
    %v193 = vld [vmem:[#allocation2 + $0x278] sm:$0xff]
    %v194 = vld [vmem:[#allocation2 + $0x280] sm:$0xff]
    %v195 = vld [vmem:[#allocation2 + $0x288] sm:$0xff]
    %v196 = vld [vmem:[#allocation2 + $0x290] sm:$0xff]
    %v197 = vld [vmem:[#allocation2 + $0x298] sm:$0xff]
    %v198 = vld [vmem:[#allocation2 + $0x2a0] sm:$0xff]
    %v199 = vld [vmem:[#allocation2 + $0x2a8] sm:$0xff]
    %v200 = vld [vmem:[#allocation2 + $0x2b0] sm:$0xff]
    %v201 = vld [vmem:[#allocation2 + $0x2b8] sm:$0xff]
    %v202 = vld [vmem:[#allocation2 + $0x2c0] sm:$0xff]
    %v203 = vld [vmem:[#allocation2 + $0x2c8] sm:$0xff]
    %v204 = vld [vmem:[#allocation2 + $0x2d0] sm:$0xff]
    %v205 = vld [vmem:[#allocation2 + $0x2d8] sm:$0xff]
    %v206 = vld [vmem:[#allocation2 + $0x2e0] sm:$0xff]
    %v207 = vld [vmem:[#allocation2 + $0x2e8] sm:$0xff]
    %v208 = vld [vmem:[#allocation2 + $0x2f0] sm:$0xff]
    %v209 = vld [vmem:[#allocation2 + $0x2f8] sm:$0xff]
    %v210 = vpack.c.bf16 %v117, %v114
    %v211 = vpack.c.bf16 %v118, %v115
    %v212 = vpack.c.bf16 %v119, %v116
    %v213 = vpack.c.bf16 %v123, %v120
    %v214 = vpack.c.bf16 %v124, %v121
    %v215 = vpack.c.bf16 %v125, %v122
    %v216 = vpack.c.bf16 %v129, %v126
    %v217 = vpack.c.bf16 %v130, %v127
    %v218 = vpack.c.bf16 %v131, %v128
    %v219 = vpack.c.bf16 %v135, %v132
    %v220 = vpack.c.bf16 %v136, %v133
    %v221 = vpack.c.bf16 %v137, %v134
    %v222 = vpack.c.bf16 %v141, %v138
    %v223 = vpack.c.bf16 %v142, %v139
    %v224 = vpack.c.bf16 %v143, %v140
    %v225 = vpack.c.bf16 %v147, %v144
    %v226 = vpack.c.bf16 %v148, %v145
    %v227 = vpack.c.bf16 %v149, %v146
    %v228 = vpack.c.bf16 %v153, %v150
    %v229 = vpack.c.bf16 %v154, %v151
    %v230 = vpack.c.bf16 %v155, %v152
    %v231 = vpack.c.bf16 %v159, %v156
    %v232 = vpack.c.bf16 %v160, %v157
    %v233 = vpack.c.bf16 %v161, %v158
    %v234 = vpack.c.bf16 %v165, %v162
    %v235 = vpack.c.bf16 %v166, %v163
    %v236 = vpack.c.bf16 %v167, %v164
    %v237 = vpack.c.bf16 %v171, %v168
    %v238 = vpack.c.bf16 %v172, %v169
    %v239 = vpack.c.bf16 %v173, %v170
    %v240 = vpack.c.bf16 %v177, %v174
    %v241 = vpack.c.bf16 %v178, %v175
    %v242 = vpack.c.bf16 %v179, %v176
    %v243 = vpack.c.bf16 %v183, %v180
    %v244 = vpack.c.bf16 %v184, %v181
    %v245 = vpack.c.bf16 %v185, %v182
    %v246 = vpack.c.bf16 %v189, %v186
    %v247 = vpack.c.bf16 %v190, %v187
    %v248 = vpack.c.bf16 %v191, %v188
    %v249 = vpack.c.bf16 %v195, %v192
    %v250 = vpack.c.bf16 %v196, %v193
    %v251 = vpack.c.bf16 %v197, %v194
    %v252 = vpack.c.bf16 %v201, %v198
    %v253 = vpack.c.bf16 %v202, %v199
    %v254 = vpack.c.bf16 %v203, %v200
    %v255 = vpack.c.bf16 %v207, %v204
    %v256 = vpack.c.bf16 %v208, %v205
    %v257 = vpack.c.bf16 %v209, %v206
    %v258 = vld [vmem:[#allocation5] sm:$0xff]
    %v259 = vld [vmem:[#allocation5 + $0x8] sm:$0xff]
    %v260 = vld [vmem:[#allocation5 + $0x10] sm:$0xff]
    %v261 = vld [vmem:[#allocation5 + $0x18] sm:$0xff]
    %v262 = vld [vmem:[#allocation5 + $0x20] sm:$0xff]
    %v263 = vld [vmem:[#allocation5 + $0x28] sm:$0xff]
    %v264 = vld [vmem:[#allocation5 + $0x30] sm:$0xff]
    %v265 = vld [vmem:[#allocation5 + $0x38] sm:$0xff]
    %v266 = vld [vmem:[#allocation5 + $0x40] sm:$0xff]
    %v267 = vld [vmem:[#allocation5 + $0x48] sm:$0xff]
    %v268 = vld [vmem:[#allocation5 + $0x50] sm:$0xff]
    %v269 = vld [vmem:[#allocation5 + $0x58] sm:$0xff]
    %v270 = vld [vmem:[#allocation5 + $0x60] sm:$0xff]
    %v271 = vld [vmem:[#allocation5 + $0x68] sm:$0xff]
    %v272 = vld [vmem:[#allocation5 + $0x70] sm:$0xff]
    %v273 = vld [vmem:[#allocation5 + $0x78] sm:$0xff]
    %v274 = vld [vmem:[#allocation5 + $0x80] sm:$0xff]
    %v275 = vld [vmem:[#allocation5 + $0x88] sm:$0xff]
    %v276 = vld [vmem:[#allocation5 + $0x90] sm:$0xff]
    %v277 = vld [vmem:[#allocation5 + $0x98] sm:$0xff]
    %v278 = vld [vmem:[#allocation5 + $0xa0] sm:$0xff]
    %v279 = vld [vmem:[#allocation5 + $0xa8] sm:$0xff]
    %v280 = vld [vmem:[#allocation5 + $0xb0] sm:$0xff]
    %v281 = vld [vmem:[#allocation5 + $0xb8] sm:$0xff]
    %v282 = vld [vmem:[#allocation5 + $0xc0] sm:$0xff]
    %v283 = vld [vmem:[#allocation5 + $0xc8] sm:$0xff]
    %v284 = vld [vmem:[#allocation5 + $0xd0] sm:$0xff]
    %v285 = vld [vmem:[#allocation5 + $0xd8] sm:$0xff]
    %v286 = vld [vmem:[#allocation5 + $0xe0] sm:$0xff]
    %v287 = vld [vmem:[#allocation5 + $0xe8] sm:$0xff]
    %v288 = vld [vmem:[#allocation5 + $0xf0] sm:$0xff]
    %v289 = vld [vmem:[#allocation5 + $0xf8] sm:$0xff]
    %v290 = vld [vmem:[#allocation5 + $0x100] sm:$0xff]
    %v291 = vld [vmem:[#allocation5 + $0x108] sm:$0xff]
    %v292 = vld [vmem:[#allocation5 + $0x110] sm:$0xff]
    %v293 = vld [vmem:[#allocation5 + $0x118] sm:$0xff]
    %v294 = vld [vmem:[#allocation5 + $0x120] sm:$0xff]
    %v295 = vld [vmem:[#allocation5 + $0x128] sm:$0xff]
    %v296 = vld [vmem:[#allocation5 + $0x130] sm:$0xff]
    %v297 = vld [vmem:[#allocation5 + $0x138] sm:$0xff]
    %v298 = vld [vmem:[#allocation5 + $0x140] sm:$0xff]
    %v299 = vld [vmem:[#allocation5 + $0x148] sm:$0xff]
    %v300 = vld [vmem:[#allocation5 + $0x150] sm:$0xff]
    %v301 = vld [vmem:[#allocation5 + $0x158] sm:$0xff]
    %v302 = vld [vmem:[#allocation5 + $0x160] sm:$0xff]
    %v303 = vld [vmem:[#allocation5 + $0x168] sm:$0xff]
    %v304 = vld [vmem:[#allocation5 + $0x170] sm:$0xff]
    %v305 = vld [vmem:[#allocation5 + $0x178] sm:$0xff]
    %v306 = vld [vmem:[#allocation5 + $0x180] sm:$0xff]
    %v307 = vld [vmem:[#allocation5 + $0x188] sm:$0xff]
    %v308 = vld [vmem:[#allocation5 + $0x190] sm:$0xff]
    %v309 = vld [vmem:[#allocation5 + $0x198] sm:$0xff]
    %v310 = vld [vmem:[#allocation5 + $0x1a0] sm:$0xff]
    %v311 = vld [vmem:[#allocation5 + $0x1a8] sm:$0xff]
    %v312 = vld [vmem:[#allocation5 + $0x1b0] sm:$0xff]
    %v313 = vld [vmem:[#allocation5 + $0x1b8] sm:$0xff]
    %v314 = vld [vmem:[#allocation5 + $0x1c0] sm:$0xff]
    %v315 = vld [vmem:[#allocation5 + $0x1c8] sm:$0xff]
    %v316 = vld [vmem:[#allocation5 + $0x1d0] sm:$0xff]
    %v317 = vld [vmem:[#allocation5 + $0x1d8] sm:$0xff]
    %v318 = vld [vmem:[#allocation5 + $0x1e0] sm:$0xff]
    %v319 = vld [vmem:[#allocation5 + $0x1e8] sm:$0xff]
    %v320 = vld [vmem:[#allocation5 + $0x1f0] sm:$0xff]
    %v321 = vld [vmem:[#allocation5 + $0x1f8] sm:$0xff]
    %v322 = vld [vmem:[#allocation5 + $0x200] sm:$0xff]
    %v323 = vld [vmem:[#allocation5 + $0x208] sm:$0xff]
    %v324 = vld [vmem:[#allocation5 + $0x210] sm:$0xff]
    %v325 = vld [vmem:[#allocation5 + $0x218] sm:$0xff]
    %v326 = vld [vmem:[#allocation5 + $0x220] sm:$0xff]
    %v327 = vld [vmem:[#allocation5 + $0x228] sm:$0xff]
    %v328 = vld [vmem:[#allocation5 + $0x230] sm:$0xff]
    %v329 = vld [vmem:[#allocation5 + $0x238] sm:$0xff]
    %v330 = vld [vmem:[#allocation5 + $0x240] sm:$0xff]
    %v331 = vld [vmem:[#allocation5 + $0x248] sm:$0xff]
    %v332 = vld [vmem:[#allocation5 + $0x250] sm:$0xff]
    %v333 = vld [vmem:[#allocation5 + $0x258] sm:$0xff]
    %v334 = vld [vmem:[#allocation5 + $0x260] sm:$0xff]
    %v335 = vld [vmem:[#allocation5 + $0x268] sm:$0xff]
    %v336 = vld [vmem:[#allocation5 + $0x270] sm:$0xff]
    %v337 = vld [vmem:[#allocation5 + $0x278] sm:$0xff]
    %v338 = vld [vmem:[#allocation5 + $0x280] sm:$0xff]
    %v339 = vld [vmem:[#allocation5 + $0x288] sm:$0xff]
    %v340 = vld [vmem:[#allocation5 + $0x290] sm:$0xff]
    %v341 = vld [vmem:[#allocation5 + $0x298] sm:$0xff]
    %v342 = vld [vmem:[#allocation5 + $0x2a0] sm:$0xff]
    %v343 = vld [vmem:[#allocation5 + $0x2a8] sm:$0xff]
    %v344 = vld [vmem:[#allocation5 + $0x2b0] sm:$0xff]
    %v345 = vld [vmem:[#allocation5 + $0x2b8] sm:$0xff]
    %v346 = vld [vmem:[#allocation5 + $0x2c0] sm:$0xff]
    %v347 = vld [vmem:[#allocation5 + $0x2c8] sm:$0xff]
    %v348 = vld [vmem:[#allocation5 + $0x2d0] sm:$0xff]
    %v349 = vld [vmem:[#allocation5 + $0x2d8] sm:$0xff]
    %v350 = vld [vmem:[#allocation5 + $0x2e0] sm:$0xff]
    %v351 = vld [vmem:[#allocation5 + $0x2e8] sm:$0xff]
    %v352 = vld [vmem:[#allocation5 + $0x2f0] sm:$0xff]
    %v353 = vld [vmem:[#allocation5 + $0x2f8] sm:$0xff]
    %v354 = vld [vmem:[#allocation5 + $0x300] sm:$0xff]
    %v355 = vld [vmem:[#allocation5 + $0x308] sm:$0xff]
    %v356 = vld [vmem:[#allocation5 + $0x310] sm:$0xff]
    %v357 = vld [vmem:[#allocation5 + $0x318] sm:$0xff]
    %v358 = vld [vmem:[#allocation5 + $0x320] sm:$0xff]
    %v359 = vld [vmem:[#allocation5 + $0x328] sm:$0xff]
    %v360 = vld [vmem:[#allocation5 + $0x330] sm:$0xff]
    %v361 = vld [vmem:[#allocation5 + $0x338] sm:$0xff]
    %v362 = vld [vmem:[#allocation5 + $0x340] sm:$0xff]
    %v363 = vld [vmem:[#allocation5 + $0x348] sm:$0xff]
    %v364 = vld [vmem:[#allocation5 + $0x350] sm:$0xff]
    %v365 = vld [vmem:[#allocation5 + $0x358] sm:$0xff]
    %v366 = vld [vmem:[#allocation5 + $0x360] sm:$0xff]
    %v367 = vld [vmem:[#allocation5 + $0x368] sm:$0xff]
    %v368 = vld [vmem:[#allocation5 + $0x370] sm:$0xff]
    %v369 = vld [vmem:[#allocation5 + $0x378] sm:$0xff]
    %v370 = vld [vmem:[#allocation5 + $0x380] sm:$0xff]
    %v371 = vld [vmem:[#allocation5 + $0x388] sm:$0xff]
    %v372 = vld [vmem:[#allocation5 + $0x390] sm:$0xff]
    %v373 = vld [vmem:[#allocation5 + $0x398] sm:$0xff]
    %v374 = vld [vmem:[#allocation5 + $0x3a0] sm:$0xff]
    %v375 = vld [vmem:[#allocation5 + $0x3a8] sm:$0xff]
    %v376 = vld [vmem:[#allocation5 + $0x3b0] sm:$0xff]
    %v377 = vld [vmem:[#allocation5 + $0x3b8] sm:$0xff]
    %v378 = vld [vmem:[#allocation5 + $0x3c0] sm:$0xff]
    %v379 = vld [vmem:[#allocation5 + $0x3c8] sm:$0xff]
    %v380 = vld [vmem:[#allocation5 + $0x3d0] sm:$0xff]
    %v381 = vld [vmem:[#allocation5 + $0x3d8] sm:$0xff]
    %v382 = vld [vmem:[#allocation5 + $0x3e0] sm:$0xff]
    %v383 = vld [vmem:[#allocation5 + $0x3e8] sm:$0xff]
    %v384 = vld [vmem:[#allocation5 + $0x3f0] sm:$0xff]
    %v385 = vld [vmem:[#allocation5 + $0x3f8] sm:$0xff]
    %v386 = vld [vmem:[#allocation5 + $0x400] sm:$0xff]
    %v387 = vld [vmem:[#allocation5 + $0x408] sm:$0xff]
    %v388 = vld [vmem:[#allocation5 + $0x410] sm:$0xff]
    %v389 = vld [vmem:[#allocation5 + $0x418] sm:$0xff]
    %v390 = vld [vmem:[#allocation5 + $0x420] sm:$0xff]
    %v391 = vld [vmem:[#allocation5 + $0x428] sm:$0xff]
    %v392 = vld [vmem:[#allocation5 + $0x430] sm:$0xff]
    %v393 = vld [vmem:[#allocation5 + $0x438] sm:$0xff]
    %v394 = vld [vmem:[#allocation5 + $0x440] sm:$0xff]
    %v395 = vld [vmem:[#allocation5 + $0x448] sm:$0xff]
    %v396 = vld [vmem:[#allocation5 + $0x450] sm:$0xff]
    %v397 = vld [vmem:[#allocation5 + $0x458] sm:$0xff]
    %v398 = vld [vmem:[#allocation5 + $0x460] sm:$0xff]
    %v399 = vld [vmem:[#allocation5 + $0x468] sm:$0xff]
    %v400 = vld [vmem:[#allocation5 + $0x470] sm:$0xff]
    %v401 = vld [vmem:[#allocation5 + $0x478] sm:$0xff]
    %v402 = vld [vmem:[#allocation5 + $0x480] sm:$0xff]
    %v403 = vld [vmem:[#allocation5 + $0x488] sm:$0xff]
    %v404 = vld [vmem:[#allocation5 + $0x490] sm:$0xff]
    %v405 = vld [vmem:[#allocation5 + $0x498] sm:$0xff]
    %v406 = vld [vmem:[#allocation5 + $0x4a0] sm:$0xff]
    %v407 = vld [vmem:[#allocation5 + $0x4a8] sm:$0xff]
    %v408 = vld [vmem:[#allocation5 + $0x4b0] sm:$0xff]
    %v409 = vld [vmem:[#allocation5 + $0x4b8] sm:$0xff]
    %v410 = vld [vmem:[#allocation5 + $0x4c0] sm:$0xff]
    %v411 = vld [vmem:[#allocation5 + $0x4c8] sm:$0xff]
    %v412 = vld [vmem:[#allocation5 + $0x4d0] sm:$0xff]
    %v413 = vld [vmem:[#allocation5 + $0x4d8] sm:$0xff]
    %v414 = vld [vmem:[#allocation5 + $0x4e0] sm:$0xff]
    %v415 = vld [vmem:[#allocation5 + $0x4e8] sm:$0xff]
    %v416 = vld [vmem:[#allocation5 + $0x4f0] sm:$0xff]
    %v417 = vld [vmem:[#allocation5 + $0x4f8] sm:$0xff]
    %v418 = vld [vmem:[#allocation5 + $0x500] sm:$0xff]
    %v419 = vld [vmem:[#allocation5 + $0x508] sm:$0xff]
    %v420 = vld [vmem:[#allocation5 + $0x510] sm:$0xff]
    %v421 = vld [vmem:[#allocation5 + $0x518] sm:$0xff]
    %v422 = vld [vmem:[#allocation5 + $0x520] sm:$0xff]
    %v423 = vld [vmem:[#allocation5 + $0x528] sm:$0xff]
    %v424 = vld [vmem:[#allocation5 + $0x530] sm:$0xff]
    %v425 = vld [vmem:[#allocation5 + $0x538] sm:$0xff]
    %v426 = vld [vmem:[#allocation5 + $0x540] sm:$0xff]
    %v427 = vld [vmem:[#allocation5 + $0x548] sm:$0xff]
    %v428 = vld [vmem:[#allocation5 + $0x550] sm:$0xff]
    %v429 = vld [vmem:[#allocation5 + $0x558] sm:$0xff]
    %v430 = vld [vmem:[#allocation5 + $0x560] sm:$0xff]
    %v431 = vld [vmem:[#allocation5 + $0x568] sm:$0xff]
    %v432 = vld [vmem:[#allocation5 + $0x570] sm:$0xff]
    %v433 = vld [vmem:[#allocation5 + $0x578] sm:$0xff]
    %v434 = vld [vmem:[#allocation5 + $0x580] sm:$0xff]
    %v435 = vld [vmem:[#allocation5 + $0x588] sm:$0xff]
    %v436 = vld [vmem:[#allocation5 + $0x590] sm:$0xff]
    %v437 = vld [vmem:[#allocation5 + $0x598] sm:$0xff]
    %v438 = vld [vmem:[#allocation5 + $0x5a0] sm:$0xff]
    %v439 = vld [vmem:[#allocation5 + $0x5a8] sm:$0xff]
    %v440 = vld [vmem:[#allocation5 + $0x5b0] sm:$0xff]
    %v441 = vld [vmem:[#allocation5 + $0x5b8] sm:$0xff]
    %v442 = vld [vmem:[#allocation5 + $0x5c0] sm:$0xff]
    %v443 = vld [vmem:[#allocation5 + $0x5c8] sm:$0xff]
    %v444 = vld [vmem:[#allocation5 + $0x5d0] sm:$0xff]
    %v445 = vld [vmem:[#allocation5 + $0x5d8] sm:$0xff]
    %v446 = vld [vmem:[#allocation5 + $0x5e0] sm:$0xff]
    %v447 = vld [vmem:[#allocation5 + $0x5e8] sm:$0xff]
    %v448 = vld [vmem:[#allocation5 + $0x5f0] sm:$0xff]
    %v449 = vld [vmem:[#allocation5 + $0x5f8] sm:$0xff]
    %v450 = vld [vmem:[#allocation5 + $0x600] sm:$0xff]
    %v451 = vld [vmem:[#allocation5 + $0x608] sm:$0xff]
    %v452 = vld [vmem:[#allocation5 + $0x610] sm:$0xff]
    %v453 = vld [vmem:[#allocation5 + $0x618] sm:$0xff]
    %v454 = vld [vmem:[#allocation5 + $0x620] sm:$0xff]
    %v455 = vld [vmem:[#allocation5 + $0x628] sm:$0xff]
    %v456 = vld [vmem:[#allocation5 + $0x630] sm:$0xff]
    %v457 = vld [vmem:[#allocation5 + $0x638] sm:$0xff]
    %v458 = vld [vmem:[#allocation5 + $0x640] sm:$0xff]
    %v459 = vld [vmem:[#allocation5 + $0x648] sm:$0xff]
    %v460 = vld [vmem:[#allocation5 + $0x650] sm:$0xff]
    %v461 = vld [vmem:[#allocation5 + $0x658] sm:$0xff]
    %v462 = vld [vmem:[#allocation5 + $0x660] sm:$0xff]
    %v463 = vld [vmem:[#allocation5 + $0x668] sm:$0xff]
    %v464 = vld [vmem:[#allocation5 + $0x670] sm:$0xff]
    %v465 = vld [vmem:[#allocation5 + $0x678] sm:$0xff]
    %v466 = vld [vmem:[#allocation5 + $0x680] sm:$0xff]
    %v467 = vld [vmem:[#allocation5 + $0x688] sm:$0xff]
    %v468 = vld [vmem:[#allocation5 + $0x690] sm:$0xff]
    %v469 = vld [vmem:[#allocation5 + $0x698] sm:$0xff]
    %v470 = vld [vmem:[#allocation5 + $0x6a0] sm:$0xff]
    %v471 = vld [vmem:[#allocation5 + $0x6a8] sm:$0xff]
    %v472 = vld [vmem:[#allocation5 + $0x6b0] sm:$0xff]
    %v473 = vld [vmem:[#allocation5 + $0x6b8] sm:$0xff]
    %v474 = vld [vmem:[#allocation5 + $0x6c0] sm:$0xff]
    %v475 = vld [vmem:[#allocation5 + $0x6c8] sm:$0xff]
    %v476 = vld [vmem:[#allocation5 + $0x6d0] sm:$0xff]
    %v477 = vld [vmem:[#allocation5 + $0x6d8] sm:$0xff]
    %v478 = vld [vmem:[#allocation5 + $0x6e0] sm:$0xff]
    %v479 = vld [vmem:[#allocation5 + $0x6e8] sm:$0xff]
    %v480 = vld [vmem:[#allocation5 + $0x6f0] sm:$0xff]
    %v481 = vld [vmem:[#allocation5 + $0x6f8] sm:$0xff]
    %v482 = vld [vmem:[#allocation5 + $0x700] sm:$0xff]
    %v483 = vld [vmem:[#allocation5 + $0x708] sm:$0xff]
    %v484 = vld [vmem:[#allocation5 + $0x710] sm:$0xff]
    %v485 = vld [vmem:[#allocation5 + $0x718] sm:$0xff]
    %v486 = vld [vmem:[#allocation5 + $0x720] sm:$0xff]
    %v487 = vld [vmem:[#allocation5 + $0x728] sm:$0xff]
    %v488 = vld [vmem:[#allocation5 + $0x730] sm:$0xff]
    %v489 = vld [vmem:[#allocation5 + $0x738] sm:$0xff]
    %v490 = vld [vmem:[#allocation5 + $0x740] sm:$0xff]
    %v491 = vld [vmem:[#allocation5 + $0x748] sm:$0xff]
    %v492 = vld [vmem:[#allocation5 + $0x750] sm:$0xff]
    %v493 = vld [vmem:[#allocation5 + $0x758] sm:$0xff]
    %v494 = vld [vmem:[#allocation5 + $0x760] sm:$0xff]
    %v495 = vld [vmem:[#allocation5 + $0x768] sm:$0xff]
    %v496 = vld [vmem:[#allocation5 + $0x770] sm:$0xff]
    %v497 = vld [vmem:[#allocation5 + $0x778] sm:$0xff]
    %v498 = vld [vmem:[#allocation5 + $0x780] sm:$0xff]
    %v499 = vld [vmem:[#allocation5 + $0x788] sm:$0xff]
    %v500 = vld [vmem:[#allocation5 + $0x790] sm:$0xff]
    %v501 = vld [vmem:[#allocation5 + $0x798] sm:$0xff]
    %v502 = vld [vmem:[#allocation5 + $0x7a0] sm:$0xff]
    %v503 = vld [vmem:[#allocation5 + $0x7a8] sm:$0xff]
    %v504 = vld [vmem:[#allocation5 + $0x7b0] sm:$0xff]
    %v505 = vld [vmem:[#allocation5 + $0x7b8] sm:$0xff]
    %v506 = vld [vmem:[#allocation5 + $0x7c0] sm:$0xff]
    %v507 = vld [vmem:[#allocation5 + $0x7c8] sm:$0xff]
    %v508 = vld [vmem:[#allocation5 + $0x7d0] sm:$0xff]
    %v509 = vld [vmem:[#allocation5 + $0x7d8] sm:$0xff]
    %v510 = vld [vmem:[#allocation5 + $0x7e0] sm:$0xff]
    %v511 = vld [vmem:[#allocation5 + $0x7e8] sm:$0xff]
    %v512 = vld [vmem:[#allocation5 + $0x7f0] sm:$0xff]
    %v513 = vld [vmem:[#allocation5 + $0x7f8] sm:$0xff]
    %v514 = vld [vmem:[#allocation5 + $0x800] sm:$0xff]
    %v515 = vld [vmem:[#allocation5 + $0x808] sm:$0xff]
    %v516 = vld [vmem:[#allocation5 + $0x810] sm:$0xff]
    %v517 = vld [vmem:[#allocation5 + $0x818] sm:$0xff]
    %v518 = vld [vmem:[#allocation5 + $0x820] sm:$0xff]
    %v519 = vld [vmem:[#allocation5 + $0x828] sm:$0xff]
    %v520 = vld [vmem:[#allocation5 + $0x830] sm:$0xff]
    %v521 = vld [vmem:[#allocation5 + $0x838] sm:$0xff]
    %v522 = vld [vmem:[#allocation5 + $0x840] sm:$0xff]
    %v523 = vld [vmem:[#allocation5 + $0x848] sm:$0xff]
    %v524 = vld [vmem:[#allocation5 + $0x850] sm:$0xff]
    %v525 = vld [vmem:[#allocation5 + $0x858] sm:$0xff]
    %v526 = vld [vmem:[#allocation5 + $0x860] sm:$0xff]
    %v527 = vld [vmem:[#allocation5 + $0x868] sm:$0xff]
    %v528 = vld [vmem:[#allocation5 + $0x870] sm:$0xff]
    %v529 = vld [vmem:[#allocation5 + $0x878] sm:$0xff]
    %v530 = vld [vmem:[#allocation5 + $0x880] sm:$0xff]
    %v531 = vld [vmem:[#allocation5 + $0x888] sm:$0xff]
    %v532 = vld [vmem:[#allocation5 + $0x890] sm:$0xff]
    %v533 = vld [vmem:[#allocation5 + $0x898] sm:$0xff]
    %v534 = vld [vmem:[#allocation5 + $0x8a0] sm:$0xff]
    %v535 = vld [vmem:[#allocation5 + $0x8a8] sm:$0xff]
    %v536 = vld [vmem:[#allocation5 + $0x8b0] sm:$0xff]
    %v537 = vld [vmem:[#allocation5 + $0x8b8] sm:$0xff]
    %v538 = vld [vmem:[#allocation5 + $0x8c0] sm:$0xff]
    %v539 = vld [vmem:[#allocation5 + $0x8c8] sm:$0xff]
    %v540 = vld [vmem:[#allocation5 + $0x8d0] sm:$0xff]
    %v541 = vld [vmem:[#allocation5 + $0x8d8] sm:$0xff]
    %v542 = vld [vmem:[#allocation5 + $0x8e0] sm:$0xff]
    %v543 = vld [vmem:[#allocation5 + $0x8e8] sm:$0xff]
    %v544 = vld [vmem:[#allocation5 + $0x8f0] sm:$0xff]
    %v545 = vld [vmem:[#allocation5 + $0x8f8] sm:$0xff]
    %v546 = vld [vmem:[#allocation7] sm:$0xff]
    %v547 = vld [vmem:[#allocation7 + $0x8] sm:$0xf]
    %v550 = vperm.slane %v546, 0
    %v551 = vperm.slane %v546, 1
    %v552 = vperm.slane %v546, 2
    %v553 = vperm.slane %v546, 3
    %v554 = vperm.slane %v546, 4
    %v555 = vperm.slane %v546, 5
    %v556 = vperm.slane %v546, 6
    %v557 = vperm.slane %v546, 7
    %v558 = vperm.slane %v547, 0
    %v559 = vperm.slane %v547, 1
    %v560 = vperm.slane %v547, 2
    %v561 = vperm.slane %v547, 3
    %v862 = vunpack.c.l.b16 %v258
    %v863 = vunpack.c.h.b16 %v258
    %v864 = vunpack.c.l.b16 %v259
    %v865 = vunpack.c.h.b16 %v259
    %v866 = vunpack.c.l.b16 %v260
    %v867 = vunpack.c.h.b16 %v260
    %v868 = vunpack.c.l.b16 %v261
    %v869 = vunpack.c.h.b16 %v261
    %v870 = vunpack.c.l.b16 %v262
    %v871 = vunpack.c.h.b16 %v262
    %v872 = vunpack.c.l.b16 %v263
    %v873 = vunpack.c.h.b16 %v263
    %v874 = vunpack.c.l.b16 %v264
    %v875 = vunpack.c.h.b16 %v264
    %v876 = vunpack.c.l.b16 %v265
    %v877 = vunpack.c.h.b16 %v265
    %v878 = vunpack.c.l.b16 %v266
    %v879 = vunpack.c.h.b16 %v266
    %v880 = vunpack.c.l.b16 %v267
    %v881 = vunpack.c.h.b16 %v267
    %v882 = vunpack.c.l.b16 %v268
    %v883 = vunpack.c.h.b16 %v268
    %v884 = vunpack.c.l.b16 %v269
    %v885 = vunpack.c.h.b16 %v269
    %v886 = vunpack.c.l.b16 %v270
    %v887 = vunpack.c.h.b16 %v270
    %v888 = vunpack.c.l.b16 %v271
    %v889 = vunpack.c.h.b16 %v271
    %v890 = vunpack.c.l.b16 %v272
    %v891 = vunpack.c.h.b16 %v272
    %v892 = vunpack.c.l.b16 %v273
    %v893 = vunpack.c.h.b16 %v273
    %v894 = vunpack.c.l.b16 %v274
    %v895 = vunpack.c.h.b16 %v274
    %v896 = vunpack.c.l.b16 %v275
    %v897 = vunpack.c.h.b16 %v275
    %v898 = vunpack.c.l.b16 %v276
    %v899 = vunpack.c.h.b16 %v276
    %v900 = vunpack.c.l.b16 %v277
    %v901 = vunpack.c.h.b16 %v277
    %v902 = vunpack.c.l.b16 %v278
    %v903 = vunpack.c.h.b16 %v278
    %v904 = vunpack.c.l.b16 %v279
    %v905 = vunpack.c.h.b16 %v279
    %v906 = vunpack.c.l.b16 %v280
    %v907 = vunpack.c.h.b16 %v280
    %v908 = vunpack.c.l.b16 %v281
    %v909 = vunpack.c.h.b16 %v281
    %v910 = vunpack.c.l.b16 %v282
    %v911 = vunpack.c.h.b16 %v282
    %v912 = vunpack.c.l.b16 %v283
    %v913 = vunpack.c.h.b16 %v283
    %v914 = vunpack.c.l.b16 %v284
    %v915 = vunpack.c.h.b16 %v284
    %v916 = vunpack.c.l.b16 %v285
    %v917 = vunpack.c.h.b16 %v285
    %v918 = vunpack.c.l.b16 %v286
    %v919 = vunpack.c.h.b16 %v286
    %v920 = vunpack.c.l.b16 %v287
    %v921 = vunpack.c.h.b16 %v287
    %v922 = vunpack.c.l.b16 %v288
    %v923 = vunpack.c.h.b16 %v288
    %v924 = vunpack.c.l.b16 %v289
    %v925 = vunpack.c.h.b16 %v289
    %v926 = vunpack.c.l.b16 %v290
    %v927 = vunpack.c.h.b16 %v290
    %v928 = vunpack.c.l.b16 %v291
    %v929 = vunpack.c.h.b16 %v291
    %v930 = vunpack.c.l.b16 %v292
    %v931 = vunpack.c.h.b16 %v292
    %v932 = vunpack.c.l.b16 %v293
    %v933 = vunpack.c.h.b16 %v293
    %v934 = vunpack.c.l.b16 %v294
    %v935 = vunpack.c.h.b16 %v294
    %v936 = vunpack.c.l.b16 %v295
    %v937 = vunpack.c.h.b16 %v295
    %v938 = vunpack.c.l.b16 %v296
    %v939 = vunpack.c.h.b16 %v296
    %v940 = vunpack.c.l.b16 %v297
    %v941 = vunpack.c.h.b16 %v297
    %v942 = vunpack.c.l.b16 %v298
    %v943 = vunpack.c.h.b16 %v298
    %v944 = vunpack.c.l.b16 %v299
    %v945 = vunpack.c.h.b16 %v299
    %v946 = vunpack.c.l.b16 %v300
    %v947 = vunpack.c.h.b16 %v300
    %v948 = vunpack.c.l.b16 %v301
    %v949 = vunpack.c.h.b16 %v301
    %v950 = vunpack.c.l.b16 %v302
    %v951 = vunpack.c.h.b16 %v302
    %v952 = vunpack.c.l.b16 %v303
    %v953 = vunpack.c.h.b16 %v303
    %v954 = vunpack.c.l.b16 %v304
    %v955 = vunpack.c.h.b16 %v304
    %v956 = vunpack.c.l.b16 %v305
    %v957 = vunpack.c.h.b16 %v305
    %v958 = vunpack.c.l.b16 %v306
    %v959 = vunpack.c.h.b16 %v306
    %v960 = vunpack.c.l.b16 %v307
    %v961 = vunpack.c.h.b16 %v307
    %v962 = vunpack.c.l.b16 %v308
    %v963 = vunpack.c.h.b16 %v308
    %v964 = vunpack.c.l.b16 %v309
    %v965 = vunpack.c.h.b16 %v309
    %v966 = vunpack.c.l.b16 %v310
    %v967 = vunpack.c.h.b16 %v310
    %v968 = vunpack.c.l.b16 %v311
    %v969 = vunpack.c.h.b16 %v311
    %v970 = vunpack.c.l.b16 %v312
    %v971 = vunpack.c.h.b16 %v312
    %v972 = vunpack.c.l.b16 %v313
    %v973 = vunpack.c.h.b16 %v313
    %v974 = vunpack.c.l.b16 %v314
    %v975 = vunpack.c.h.b16 %v314
    %v976 = vunpack.c.l.b16 %v315
    %v977 = vunpack.c.h.b16 %v315
    %v978 = vunpack.c.l.b16 %v316
    %v979 = vunpack.c.h.b16 %v316
    %v980 = vunpack.c.l.b16 %v317
    %v981 = vunpack.c.h.b16 %v317
    %v982 = vunpack.c.l.b16 %v318
    %v983 = vunpack.c.h.b16 %v318
    %v984 = vunpack.c.l.b16 %v319
    %v985 = vunpack.c.h.b16 %v319
    %v986 = vunpack.c.l.b16 %v320
    %v987 = vunpack.c.h.b16 %v320
    %v988 = vunpack.c.l.b16 %v321
    %v989 = vunpack.c.h.b16 %v321
    %v990 = vunpack.c.l.b16 %v322
    %v991 = vunpack.c.h.b16 %v322
    %v992 = vunpack.c.l.b16 %v323
    %v993 = vunpack.c.h.b16 %v323
    %v994 = vunpack.c.l.b16 %v324
    %v995 = vunpack.c.h.b16 %v324
    %v996 = vunpack.c.l.b16 %v325
    %v997 = vunpack.c.h.b16 %v325
    %v998 = vunpack.c.l.b16 %v326
    %v999 = vunpack.c.h.b16 %v326
    %v1000 = vunpack.c.l.b16 %v327
    %v1001 = vunpack.c.h.b16 %v327
    %v1002 = vunpack.c.l.b16 %v328
    %v1003 = vunpack.c.h.b16 %v328
    %v1004 = vunpack.c.l.b16 %v329
    %v1005 = vunpack.c.h.b16 %v329
    %v1006 = vunpack.c.l.b16 %v330
    %v1007 = vunpack.c.h.b16 %v330
    %v1008 = vunpack.c.l.b16 %v331
    %v1009 = vunpack.c.h.b16 %v331
    %v1010 = vunpack.c.l.b16 %v332
    %v1011 = vunpack.c.h.b16 %v332
    %v1012 = vunpack.c.l.b16 %v333
    %v1013 = vunpack.c.h.b16 %v333
    %v1014 = vunpack.c.l.b16 %v334
    %v1015 = vunpack.c.h.b16 %v334
    %v1016 = vunpack.c.l.b16 %v335
    %v1017 = vunpack.c.h.b16 %v335
    %v1018 = vunpack.c.l.b16 %v336
    %v1019 = vunpack.c.h.b16 %v336
    %v1020 = vunpack.c.l.b16 %v337
    %v1021 = vunpack.c.h.b16 %v337
    %v1022 = vunpack.c.l.b16 %v338
    %v1023 = vunpack.c.h.b16 %v338
    %v1024 = vunpack.c.l.b16 %v339
    %v1025 = vunpack.c.h.b16 %v339
    %v1026 = vunpack.c.l.b16 %v340
    %v1027 = vunpack.c.h.b16 %v340
    %v1028 = vunpack.c.l.b16 %v341
    %v1029 = vunpack.c.h.b16 %v341
    %v1030 = vunpack.c.l.b16 %v342
    %v1031 = vunpack.c.h.b16 %v342
    %v1032 = vunpack.c.l.b16 %v343
    %v1033 = vunpack.c.h.b16 %v343
    %v1034 = vunpack.c.l.b16 %v344
    %v1035 = vunpack.c.h.b16 %v344
    %v1036 = vunpack.c.l.b16 %v345
    %v1037 = vunpack.c.h.b16 %v345
    %v1038 = vunpack.c.l.b16 %v346
    %v1039 = vunpack.c.h.b16 %v346
    %v1040 = vunpack.c.l.b16 %v347
    %v1041 = vunpack.c.h.b16 %v347
    %v1042 = vunpack.c.l.b16 %v348
    %v1043 = vunpack.c.h.b16 %v348
    %v1044 = vunpack.c.l.b16 %v349
    %v1045 = vunpack.c.h.b16 %v349
    %v1046 = vunpack.c.l.b16 %v350
    %v1047 = vunpack.c.h.b16 %v350
    %v1048 = vunpack.c.l.b16 %v351
    %v1049 = vunpack.c.h.b16 %v351
    %v1050 = vunpack.c.l.b16 %v352
    %v1051 = vunpack.c.h.b16 %v352
    %v1052 = vunpack.c.l.b16 %v353
    %v1053 = vunpack.c.h.b16 %v353
    %v1054 = vunpack.c.l.b16 %v354
    %v1055 = vunpack.c.h.b16 %v354
    %v1056 = vunpack.c.l.b16 %v355
    %v1057 = vunpack.c.h.b16 %v355
    %v1058 = vunpack.c.l.b16 %v356
    %v1059 = vunpack.c.h.b16 %v356
    %v1060 = vunpack.c.l.b16 %v357
    %v1061 = vunpack.c.h.b16 %v357
    %v1062 = vunpack.c.l.b16 %v358
    %v1063 = vunpack.c.h.b16 %v358
    %v1064 = vunpack.c.l.b16 %v359
    %v1065 = vunpack.c.h.b16 %v359
    %v1066 = vunpack.c.l.b16 %v360
    %v1067 = vunpack.c.h.b16 %v360
    %v1068 = vunpack.c.l.b16 %v361
    %v1069 = vunpack.c.h.b16 %v361
    %v1070 = vunpack.c.l.b16 %v362
    %v1071 = vunpack.c.h.b16 %v362
    %v1072 = vunpack.c.l.b16 %v363
    %v1073 = vunpack.c.h.b16 %v363
    %v1074 = vunpack.c.l.b16 %v364
    %v1075 = vunpack.c.h.b16 %v364
    %v1076 = vunpack.c.l.b16 %v365
    %v1077 = vunpack.c.h.b16 %v365
    %v1078 = vunpack.c.l.b16 %v366
    %v1079 = vunpack.c.h.b16 %v366
    %v1080 = vunpack.c.l.b16 %v367
    %v1081 = vunpack.c.h.b16 %v367
    %v1082 = vunpack.c.l.b16 %v368
    %v1083 = vunpack.c.h.b16 %v368
    %v1084 = vunpack.c.l.b16 %v369
    %v1085 = vunpack.c.h.b16 %v369
    %v1086 = vunpack.c.l.b16 %v370
    %v1087 = vunpack.c.h.b16 %v370
    %v1088 = vunpack.c.l.b16 %v371
    %v1089 = vunpack.c.h.b16 %v371
    %v1090 = vunpack.c.l.b16 %v372
    %v1091 = vunpack.c.h.b16 %v372
    %v1092 = vunpack.c.l.b16 %v373
    %v1093 = vunpack.c.h.b16 %v373
    %v1094 = vunpack.c.l.b16 %v374
    %v1095 = vunpack.c.h.b16 %v374
    %v1096 = vunpack.c.l.b16 %v375
    %v1097 = vunpack.c.h.b16 %v375
    %v1098 = vunpack.c.l.b16 %v376
    %v1099 = vunpack.c.h.b16 %v376
    %v1100 = vunpack.c.l.b16 %v377
    %v1101 = vunpack.c.h.b16 %v377
    %v1102 = vunpack.c.l.b16 %v378
    %v1103 = vunpack.c.h.b16 %v378
    %v1104 = vunpack.c.l.b16 %v379
    %v1105 = vunpack.c.h.b16 %v379
    %v1106 = vunpack.c.l.b16 %v380
    %v1107 = vunpack.c.h.b16 %v380
    %v1108 = vunpack.c.l.b16 %v381
    %v1109 = vunpack.c.h.b16 %v381
    %v1110 = vunpack.c.l.b16 %v382
    %v1111 = vunpack.c.h.b16 %v382
    %v1112 = vunpack.c.l.b16 %v383
    %v1113 = vunpack.c.h.b16 %v383
    %v1114 = vunpack.c.l.b16 %v384
    %v1115 = vunpack.c.h.b16 %v384
    %v1116 = vunpack.c.l.b16 %v385
    %v1117 = vunpack.c.h.b16 %v385
    %v1118 = vunpack.c.l.b16 %v386
    %v1119 = vunpack.c.h.b16 %v386
    %v1120 = vunpack.c.l.b16 %v387
    %v1121 = vunpack.c.h.b16 %v387
    %v1122 = vunpack.c.l.b16 %v388
    %v1123 = vunpack.c.h.b16 %v388
    %v1124 = vunpack.c.l.b16 %v389
    %v1125 = vunpack.c.h.b16 %v389
    %v1126 = vunpack.c.l.b16 %v390
    %v1127 = vunpack.c.h.b16 %v390
    %v1128 = vunpack.c.l.b16 %v391
    %v1129 = vunpack.c.h.b16 %v391
    %v1130 = vunpack.c.l.b16 %v392
    %v1131 = vunpack.c.h.b16 %v392
    %v1132 = vunpack.c.l.b16 %v393
    %v1133 = vunpack.c.h.b16 %v393
    %v1134 = vunpack.c.l.b16 %v394
    %v1135 = vunpack.c.h.b16 %v394
    %v1136 = vunpack.c.l.b16 %v395
    %v1137 = vunpack.c.h.b16 %v395
    %v1138 = vunpack.c.l.b16 %v396
    %v1139 = vunpack.c.h.b16 %v396
    %v1140 = vunpack.c.l.b16 %v397
    %v1141 = vunpack.c.h.b16 %v397
    %v1142 = vunpack.c.l.b16 %v398
    %v1143 = vunpack.c.h.b16 %v398
    %v1144 = vunpack.c.l.b16 %v399
    %v1145 = vunpack.c.h.b16 %v399
    %v1146 = vunpack.c.l.b16 %v400
    %v1147 = vunpack.c.h.b16 %v400
    %v1148 = vunpack.c.l.b16 %v401
    %v1149 = vunpack.c.h.b16 %v401
    %v1150 = vunpack.c.l.b16 %v402
    %v1151 = vunpack.c.h.b16 %v402
    %v1152 = vunpack.c.l.b16 %v403
    %v1153 = vunpack.c.h.b16 %v403
    %v1154 = vunpack.c.l.b16 %v404
    %v1155 = vunpack.c.h.b16 %v404
    %v1156 = vunpack.c.l.b16 %v405
    %v1157 = vunpack.c.h.b16 %v405
    %v1158 = vunpack.c.l.b16 %v406
    %v1159 = vunpack.c.h.b16 %v406
    %v1160 = vunpack.c.l.b16 %v407
    %v1161 = vunpack.c.h.b16 %v407
    %v1162 = vunpack.c.l.b16 %v408
    %v1163 = vunpack.c.h.b16 %v408
    %v1164 = vunpack.c.l.b16 %v409
    %v1165 = vunpack.c.h.b16 %v409
    %v1166 = vunpack.c.l.b16 %v410
    %v1167 = vunpack.c.h.b16 %v410
    %v1168 = vunpack.c.l.b16 %v411
    %v1169 = vunpack.c.h.b16 %v411
    %v1170 = vunpack.c.l.b16 %v412
    %v1171 = vunpack.c.h.b16 %v412
    %v1172 = vunpack.c.l.b16 %v413
    %v1173 = vunpack.c.h.b16 %v413
    %v1174 = vunpack.c.l.b16 %v414
    %v1175 = vunpack.c.h.b16 %v414
    %v1176 = vunpack.c.l.b16 %v415
    %v1177 = vunpack.c.h.b16 %v415
    %v1178 = vunpack.c.l.b16 %v416
    %v1179 = vunpack.c.h.b16 %v416
    %v1180 = vunpack.c.l.b16 %v417
    %v1181 = vunpack.c.h.b16 %v417
    %v1182 = vunpack.c.l.b16 %v418
    %v1183 = vunpack.c.h.b16 %v418
    %v1184 = vunpack.c.l.b16 %v419
    %v1185 = vunpack.c.h.b16 %v419
    %v1186 = vunpack.c.l.b16 %v420
    %v1187 = vunpack.c.h.b16 %v420
    %v1188 = vunpack.c.l.b16 %v421
    %v1189 = vunpack.c.h.b16 %v421
    %v1190 = vunpack.c.l.b16 %v422
    %v1191 = vunpack.c.h.b16 %v422
    %v1192 = vunpack.c.l.b16 %v423
    %v1193 = vunpack.c.h.b16 %v423
    %v1194 = vunpack.c.l.b16 %v424
    %v1195 = vunpack.c.h.b16 %v424
    %v1196 = vunpack.c.l.b16 %v425
    %v1197 = vunpack.c.h.b16 %v425
    %v1198 = vunpack.c.l.b16 %v426
    %v1199 = vunpack.c.h.b16 %v426
    %v1200 = vunpack.c.l.b16 %v427
    %v1201 = vunpack.c.h.b16 %v427
    %v1202 = vunpack.c.l.b16 %v428
    %v1203 = vunpack.c.h.b16 %v428
    %v1204 = vunpack.c.l.b16 %v429
    %v1205 = vunpack.c.h.b16 %v429
    %v1206 = vunpack.c.l.b16 %v430
    %v1207 = vunpack.c.h.b16 %v430
    %v1208 = vunpack.c.l.b16 %v431
    %v1209 = vunpack.c.h.b16 %v431
    %v1210 = vunpack.c.l.b16 %v432
    %v1211 = vunpack.c.h.b16 %v432
    %v1212 = vunpack.c.l.b16 %v433
    %v1213 = vunpack.c.h.b16 %v433
    %v1214 = vunpack.c.l.b16 %v434
    %v1215 = vunpack.c.h.b16 %v434
    %v1216 = vunpack.c.l.b16 %v435
    %v1217 = vunpack.c.h.b16 %v435
    %v1218 = vunpack.c.l.b16 %v436
    %v1219 = vunpack.c.h.b16 %v436
    %v1220 = vunpack.c.l.b16 %v437
    %v1221 = vunpack.c.h.b16 %v437
    %v1222 = vunpack.c.l.b16 %v438
    %v1223 = vunpack.c.h.b16 %v438
    %v1224 = vunpack.c.l.b16 %v439
    %v1225 = vunpack.c.h.b16 %v439
    %v1226 = vunpack.c.l.b16 %v440
    %v1227 = vunpack.c.h.b16 %v440
    %v1228 = vunpack.c.l.b16 %v441
    %v1229 = vunpack.c.h.b16 %v441
    %v1230 = vunpack.c.l.b16 %v442
    %v1231 = vunpack.c.h.b16 %v442
    %v1232 = vunpack.c.l.b16 %v443
    %v1233 = vunpack.c.h.b16 %v443
    %v1234 = vunpack.c.l.b16 %v444
    %v1235 = vunpack.c.h.b16 %v444
    %v1236 = vunpack.c.l.b16 %v445
    %v1237 = vunpack.c.h.b16 %v445
    %v1238 = vunpack.c.l.b16 %v446
    %v1239 = vunpack.c.h.b16 %v446
    %v1240 = vunpack.c.l.b16 %v447
    %v1241 = vunpack.c.h.b16 %v447
    %v1242 = vunpack.c.l.b16 %v448
    %v1243 = vunpack.c.h.b16 %v448
    %v1244 = vunpack.c.l.b16 %v449
    %v1245 = vunpack.c.h.b16 %v449
    %v1246 = vunpack.c.l.b16 %v450
    %v1247 = vunpack.c.h.b16 %v450
    %v1248 = vunpack.c.l.b16 %v451
    %v1249 = vunpack.c.h.b16 %v451
    %v1250 = vunpack.c.l.b16 %v452
    %v1251 = vunpack.c.h.b16 %v452
    %v1252 = vunpack.c.l.b16 %v453
    %v1253 = vunpack.c.h.b16 %v453
    %v1254 = vunpack.c.l.b16 %v454
    %v1255 = vunpack.c.h.b16 %v454
    %v1256 = vunpack.c.l.b16 %v455
    %v1257 = vunpack.c.h.b16 %v455
    %v1258 = vunpack.c.l.b16 %v456
    %v1259 = vunpack.c.h.b16 %v456
    %v1260 = vunpack.c.l.b16 %v457
    %v1261 = vunpack.c.h.b16 %v457
    %v1262 = vunpack.c.l.b16 %v458
    %v1263 = vunpack.c.h.b16 %v458
    %v1264 = vunpack.c.l.b16 %v459
    %v1265 = vunpack.c.h.b16 %v459
    %v1266 = vunpack.c.l.b16 %v460
    %v1267 = vunpack.c.h.b16 %v460
    %v1268 = vunpack.c.l.b16 %v461
    %v1269 = vunpack.c.h.b16 %v461
    %v1270 = vunpack.c.l.b16 %v462
    %v1271 = vunpack.c.h.b16 %v462
    %v1272 = vunpack.c.l.b16 %v463
    %v1273 = vunpack.c.h.b16 %v463
    %v1274 = vunpack.c.l.b16 %v464
    %v1275 = vunpack.c.h.b16 %v464
    %v1276 = vunpack.c.l.b16 %v465
    %v1277 = vunpack.c.h.b16 %v465
    %v1278 = vunpack.c.l.b16 %v466
    %v1279 = vunpack.c.h.b16 %v466
    %v1280 = vunpack.c.l.b16 %v467
    %v1281 = vunpack.c.h.b16 %v467
    %v1282 = vunpack.c.l.b16 %v468
    %v1283 = vunpack.c.h.b16 %v468
    %v1284 = vunpack.c.l.b16 %v469
    %v1285 = vunpack.c.h.b16 %v469
    %v1286 = vunpack.c.l.b16 %v470
    %v1287 = vunpack.c.h.b16 %v470
    %v1288 = vunpack.c.l.b16 %v471
    %v1289 = vunpack.c.h.b16 %v471
    %v1290 = vunpack.c.l.b16 %v472
    %v1291 = vunpack.c.h.b16 %v472
    %v1292 = vunpack.c.l.b16 %v473
    %v1293 = vunpack.c.h.b16 %v473
    %v1294 = vunpack.c.l.b16 %v474
    %v1295 = vunpack.c.h.b16 %v474
    %v1296 = vunpack.c.l.b16 %v475
    %v1297 = vunpack.c.h.b16 %v475
    %v1298 = vunpack.c.l.b16 %v476
    %v1299 = vunpack.c.h.b16 %v476
    %v1300 = vunpack.c.l.b16 %v477
    %v1301 = vunpack.c.h.b16 %v477
    %v1302 = vunpack.c.l.b16 %v478
    %v1303 = vunpack.c.h.b16 %v478
    %v1304 = vunpack.c.l.b16 %v479
    %v1305 = vunpack.c.h.b16 %v479
    %v1306 = vunpack.c.l.b16 %v480
    %v1307 = vunpack.c.h.b16 %v480
    %v1308 = vunpack.c.l.b16 %v481
    %v1309 = vunpack.c.h.b16 %v481
    %v1310 = vunpack.c.l.b16 %v482
    %v1311 = vunpack.c.h.b16 %v482
    %v1312 = vunpack.c.l.b16 %v483
    %v1313 = vunpack.c.h.b16 %v483
    %v1314 = vunpack.c.l.b16 %v484
    %v1315 = vunpack.c.h.b16 %v484
    %v1316 = vunpack.c.l.b16 %v485
    %v1317 = vunpack.c.h.b16 %v485
    %v1318 = vunpack.c.l.b16 %v486
    %v1319 = vunpack.c.h.b16 %v486
    %v1320 = vunpack.c.l.b16 %v487
    %v1321 = vunpack.c.h.b16 %v487
    %v1322 = vunpack.c.l.b16 %v488
    %v1323 = vunpack.c.h.b16 %v488
    %v1324 = vunpack.c.l.b16 %v489
    %v1325 = vunpack.c.h.b16 %v489
    %v1326 = vunpack.c.l.b16 %v490
    %v1327 = vunpack.c.h.b16 %v490
    %v1328 = vunpack.c.l.b16 %v491
    %v1329 = vunpack.c.h.b16 %v491
    %v1330 = vunpack.c.l.b16 %v492
    %v1331 = vunpack.c.h.b16 %v492
    %v1332 = vunpack.c.l.b16 %v493
    %v1333 = vunpack.c.h.b16 %v493
    %v1334 = vunpack.c.l.b16 %v494
    %v1335 = vunpack.c.h.b16 %v494
    %v1336 = vunpack.c.l.b16 %v495
    %v1337 = vunpack.c.h.b16 %v495
    %v1338 = vunpack.c.l.b16 %v496
    %v1339 = vunpack.c.h.b16 %v496
    %v1340 = vunpack.c.l.b16 %v497
    %v1341 = vunpack.c.h.b16 %v497
    %v1342 = vunpack.c.l.b16 %v498
    %v1343 = vunpack.c.h.b16 %v498
    %v1344 = vunpack.c.l.b16 %v499
    %v1345 = vunpack.c.h.b16 %v499
    %v1346 = vunpack.c.l.b16 %v500
    %v1347 = vunpack.c.h.b16 %v500
    %v1348 = vunpack.c.l.b16 %v501
    %v1349 = vunpack.c.h.b16 %v501
    %v1350 = vunpack.c.l.b16 %v502
    %v1351 = vunpack.c.h.b16 %v502
    %v1352 = vunpack.c.l.b16 %v503
    %v1353 = vunpack.c.h.b16 %v503
    %v1354 = vunpack.c.l.b16 %v504
    %v1355 = vunpack.c.h.b16 %v504
    %v1356 = vunpack.c.l.b16 %v505
    %v1357 = vunpack.c.h.b16 %v505
    %v1358 = vunpack.c.l.b16 %v506
    %v1359 = vunpack.c.h.b16 %v506
    %v1360 = vunpack.c.l.b16 %v507
    %v1361 = vunpack.c.h.b16 %v507
    %v1362 = vunpack.c.l.b16 %v508
    %v1363 = vunpack.c.h.b16 %v508
    %v1364 = vunpack.c.l.b16 %v509
    %v1365 = vunpack.c.h.b16 %v509
    %v1366 = vunpack.c.l.b16 %v510
    %v1367 = vunpack.c.h.b16 %v510
    %v1368 = vunpack.c.l.b16 %v511
    %v1369 = vunpack.c.h.b16 %v511
    %v1370 = vunpack.c.l.b16 %v512
    %v1371 = vunpack.c.h.b16 %v512
    %v1372 = vunpack.c.l.b16 %v513
    %v1373 = vunpack.c.h.b16 %v513
    %v1374 = vunpack.c.l.b16 %v514
    %v1375 = vunpack.c.h.b16 %v514
    %v1376 = vunpack.c.l.b16 %v515
    %v1377 = vunpack.c.h.b16 %v515
    %v1378 = vunpack.c.l.b16 %v516
    %v1379 = vunpack.c.h.b16 %v516
    %v1380 = vunpack.c.l.b16 %v517
    %v1381 = vunpack.c.h.b16 %v517
    %v1382 = vunpack.c.l.b16 %v518
    %v1383 = vunpack.c.h.b16 %v518
    %v1384 = vunpack.c.l.b16 %v519
    %v1385 = vunpack.c.h.b16 %v519
    %v1386 = vunpack.c.l.b16 %v520
    %v1387 = vunpack.c.h.b16 %v520
    %v1388 = vunpack.c.l.b16 %v521
    %v1389 = vunpack.c.h.b16 %v521
    %v1390 = vunpack.c.l.b16 %v522
    %v1391 = vunpack.c.h.b16 %v522
    %v1392 = vunpack.c.l.b16 %v523
    %v1393 = vunpack.c.h.b16 %v523
    %v1394 = vunpack.c.l.b16 %v524
    %v1395 = vunpack.c.h.b16 %v524
    %v1396 = vunpack.c.l.b16 %v525
    %v1397 = vunpack.c.h.b16 %v525
    %v1398 = vunpack.c.l.b16 %v526
    %v1399 = vunpack.c.h.b16 %v526
    %v1400 = vunpack.c.l.b16 %v527
    %v1401 = vunpack.c.h.b16 %v527
    %v1402 = vunpack.c.l.b16 %v528
    %v1403 = vunpack.c.h.b16 %v528
    %v1404 = vunpack.c.l.b16 %v529
    %v1405 = vunpack.c.h.b16 %v529
    %v1406 = vunpack.c.l.b16 %v530
    %v1407 = vunpack.c.h.b16 %v530
    %v1408 = vunpack.c.l.b16 %v531
    %v1409 = vunpack.c.h.b16 %v531
    %v1410 = vunpack.c.l.b16 %v532
    %v1411 = vunpack.c.h.b16 %v532
    %v1412 = vunpack.c.l.b16 %v533
    %v1413 = vunpack.c.h.b16 %v533
    %v1414 = vunpack.c.l.b16 %v534
    %v1415 = vunpack.c.h.b16 %v534
    %v1416 = vunpack.c.l.b16 %v535
    %v1417 = vunpack.c.h.b16 %v535
    %v1418 = vunpack.c.l.b16 %v536
    %v1419 = vunpack.c.h.b16 %v536
    %v1420 = vunpack.c.l.b16 %v537
    %v1421 = vunpack.c.h.b16 %v537
    %v1422 = vunpack.c.l.b16 %v538
    %v1423 = vunpack.c.h.b16 %v538
    %v1424 = vunpack.c.l.b16 %v539
    %v1425 = vunpack.c.h.b16 %v539
    %v1426 = vunpack.c.l.b16 %v540
    %v1427 = vunpack.c.h.b16 %v540
    %v1428 = vunpack.c.l.b16 %v541
    %v1429 = vunpack.c.h.b16 %v541
    %v1430 = vunpack.c.l.b16 %v542
    %v1431 = vunpack.c.h.b16 %v542
    %v1432 = vunpack.c.l.b16 %v543
    %v1433 = vunpack.c.h.b16 %v543
    %v1434 = vunpack.c.l.b16 %v544
    %v1435 = vunpack.c.h.b16 %v544
    %v1436 = vunpack.c.l.b16 %v545
    %v1437 = vunpack.c.h.b16 %v545
    %v1438 = vpack.c.b16 %v874, %v862
    %v1439 = vpack.c.b16 %v875, %v863
    %v1440 = vpack.c.b16 %v876, %v864
    %v1441 = vpack.c.b16 %v877, %v865
    %v1442 = vpack.c.b16 %v878, %v866
    %v1443 = vpack.c.b16 %v879, %v867
    %v1444 = vpack.c.b16 %v880, %v868
    %v1445 = vpack.c.b16 %v881, %v869
    %v1446 = vpack.c.b16 %v882, %v870
    %v1447 = vpack.c.b16 %v883, %v871
    %v1448 = vpack.c.b16 %v884, %v872
    %v1449 = vpack.c.b16 %v885, %v873
    %v1450 = vpack.c.b16 %v898, %v886
    %v1451 = vpack.c.b16 %v899, %v887
    %v1452 = vpack.c.b16 %v900, %v888
    %v1453 = vpack.c.b16 %v901, %v889
    %v1454 = vpack.c.b16 %v902, %v890
    %v1455 = vpack.c.b16 %v903, %v891
    %v1456 = vpack.c.b16 %v904, %v892
    %v1457 = vpack.c.b16 %v905, %v893
    %v1458 = vpack.c.b16 %v906, %v894
    %v1459 = vpack.c.b16 %v907, %v895
    %v1460 = vpack.c.b16 %v908, %v896
    %v1461 = vpack.c.b16 %v909, %v897
    %v1462 = vpack.c.b16 %v922, %v910
    %v1463 = vpack.c.b16 %v923, %v911
    %v1464 = vpack.c.b16 %v924, %v912
    %v1465 = vpack.c.b16 %v925, %v913
    %v1466 = vpack.c.b16 %v926, %v914
    %v1467 = vpack.c.b16 %v927, %v915
    %v1468 = vpack.c.b16 %v928, %v916
    %v1469 = vpack.c.b16 %v929, %v917
    %v1470 = vpack.c.b16 %v930, %v918
    %v1471 = vpack.c.b16 %v931, %v919
    %v1472 = vpack.c.b16 %v932, %v920
    %v1473 = vpack.c.b16 %v933, %v921
    %v1474 = vpack.c.b16 %v946, %v934
    %v1475 = vpack.c.b16 %v947, %v935
    %v1476 = vpack.c.b16 %v948, %v936
    %v1477 = vpack.c.b16 %v949, %v937
    %v1478 = vpack.c.b16 %v950, %v938
    %v1479 = vpack.c.b16 %v951, %v939
    %v1480 = vpack.c.b16 %v952, %v940
    %v1481 = vpack.c.b16 %v953, %v941
    %v1482 = vpack.c.b16 %v954, %v942
    %v1483 = vpack.c.b16 %v955, %v943
    %v1484 = vpack.c.b16 %v956, %v944
    %v1485 = vpack.c.b16 %v957, %v945
    %v1486 = vpack.c.b16 %v970, %v958
    %v1487 = vpack.c.b16 %v971, %v959
    %v1488 = vpack.c.b16 %v972, %v960
    %v1489 = vpack.c.b16 %v973, %v961
    %v1490 = vpack.c.b16 %v974, %v962
    %v1491 = vpack.c.b16 %v975, %v963
    %v1492 = vpack.c.b16 %v976, %v964
    %v1493 = vpack.c.b16 %v977, %v965
    %v1494 = vpack.c.b16 %v978, %v966
    %v1495 = vpack.c.b16 %v979, %v967
    %v1496 = vpack.c.b16 %v980, %v968
    %v1497 = vpack.c.b16 %v981, %v969
    %v1498 = vpack.c.b16 %v994, %v982
    %v1499 = vpack.c.b16 %v995, %v983
    %v1500 = vpack.c.b16 %v996, %v984
    %v1501 = vpack.c.b16 %v997, %v985
    %v1502 = vpack.c.b16 %v998, %v986
    %v1503 = vpack.c.b16 %v999, %v987
    %v1504 = vpack.c.b16 %v1000, %v988
    %v1505 = vpack.c.b16 %v1001, %v989
    %v1506 = vpack.c.b16 %v1002, %v990
    %v1507 = vpack.c.b16 %v1003, %v991
    %v1508 = vpack.c.b16 %v1004, %v992
    %v1509 = vpack.c.b16 %v1005, %v993
    %v1510 = vpack.c.b16 %v1018, %v1006
    %v1511 = vpack.c.b16 %v1019, %v1007
    %v1512 = vpack.c.b16 %v1020, %v1008
    %v1513 = vpack.c.b16 %v1021, %v1009
    %v1514 = vpack.c.b16 %v1022, %v1010
    %v1515 = vpack.c.b16 %v1023, %v1011
    %v1516 = vpack.c.b16 %v1024, %v1012
    %v1517 = vpack.c.b16 %v1025, %v1013
    %v1518 = vpack.c.b16 %v1026, %v1014
    %v1519 = vpack.c.b16 %v1027, %v1015
    %v1520 = vpack.c.b16 %v1028, %v1016
    %v1521 = vpack.c.b16 %v1029, %v1017
    %v1522 = vpack.c.b16 %v1042, %v1030
    %v1523 = vpack.c.b16 %v1043, %v1031
    %v1524 = vpack.c.b16 %v1044, %v1032
    %v1525 = vpack.c.b16 %v1045, %v1033
    %v1526 = vpack.c.b16 %v1046, %v1034
    %v1527 = vpack.c.b16 %v1047, %v1035
    %v1528 = vpack.c.b16 %v1048, %v1036
    %v1529 = vpack.c.b16 %v1049, %v1037
    %v1530 = vpack.c.b16 %v1050, %v1038
    %v1531 = vpack.c.b16 %v1051, %v1039
    %v1532 = vpack.c.b16 %v1052, %v1040
    %v1533 = vpack.c.b16 %v1053, %v1041
    %v1534 = vpack.c.b16 %v1066, %v1054
    %v1535 = vpack.c.b16 %v1067, %v1055
    %v1536 = vpack.c.b16 %v1068, %v1056
    %v1537 = vpack.c.b16 %v1069, %v1057
    %v1538 = vpack.c.b16 %v1070, %v1058
    %v1539 = vpack.c.b16 %v1071, %v1059
    %v1540 = vpack.c.b16 %v1072, %v1060
    %v1541 = vpack.c.b16 %v1073, %v1061
    %v1542 = vpack.c.b16 %v1074, %v1062
    %v1543 = vpack.c.b16 %v1075, %v1063
    %v1544 = vpack.c.b16 %v1076, %v1064
    %v1545 = vpack.c.b16 %v1077, %v1065
    %v1546 = vpack.c.b16 %v1090, %v1078
    %v1547 = vpack.c.b16 %v1091, %v1079
    %v1548 = vpack.c.b16 %v1092, %v1080
    %v1549 = vpack.c.b16 %v1093, %v1081
    %v1550 = vpack.c.b16 %v1094, %v1082
    %v1551 = vpack.c.b16 %v1095, %v1083
    %v1552 = vpack.c.b16 %v1096, %v1084
    %v1553 = vpack.c.b16 %v1097, %v1085
    %v1554 = vpack.c.b16 %v1098, %v1086
    %v1555 = vpack.c.b16 %v1099, %v1087
    %v1556 = vpack.c.b16 %v1100, %v1088
    %v1557 = vpack.c.b16 %v1101, %v1089
    %v1558 = vpack.c.b16 %v1114, %v1102
    %v1559 = vpack.c.b16 %v1115, %v1103
    %v1560 = vpack.c.b16 %v1116, %v1104
    %v1561 = vpack.c.b16 %v1117, %v1105
    %v1562 = vpack.c.b16 %v1118, %v1106
    %v1563 = vpack.c.b16 %v1119, %v1107
    %v1564 = vpack.c.b16 %v1120, %v1108
    %v1565 = vpack.c.b16 %v1121, %v1109
    %v1566 = vpack.c.b16 %v1122, %v1110
    %v1567 = vpack.c.b16 %v1123, %v1111
    %v1568 = vpack.c.b16 %v1124, %v1112
    %v1569 = vpack.c.b16 %v1125, %v1113
    %v1570 = vpack.c.b16 %v1138, %v1126
    %v1571 = vpack.c.b16 %v1139, %v1127
    %v1572 = vpack.c.b16 %v1140, %v1128
    %v1573 = vpack.c.b16 %v1141, %v1129
    %v1574 = vpack.c.b16 %v1142, %v1130
    %v1575 = vpack.c.b16 %v1143, %v1131
    %v1576 = vpack.c.b16 %v1144, %v1132
    %v1577 = vpack.c.b16 %v1145, %v1133
    %v1578 = vpack.c.b16 %v1146, %v1134
    %v1579 = vpack.c.b16 %v1147, %v1135
    %v1580 = vpack.c.b16 %v1148, %v1136
    %v1581 = vpack.c.b16 %v1149, %v1137
    %v1582 = vpack.c.b16 %v1162, %v1150
    %v1583 = vpack.c.b16 %v1163, %v1151
    %v1584 = vpack.c.b16 %v1164, %v1152
    %v1585 = vpack.c.b16 %v1165, %v1153
    %v1586 = vpack.c.b16 %v1166, %v1154
    %v1587 = vpack.c.b16 %v1167, %v1155
    %v1588 = vpack.c.b16 %v1168, %v1156
    %v1589 = vpack.c.b16 %v1169, %v1157
    %v1590 = vpack.c.b16 %v1170, %v1158
    %v1591 = vpack.c.b16 %v1171, %v1159
    %v1592 = vpack.c.b16 %v1172, %v1160
    %v1593 = vpack.c.b16 %v1173, %v1161
    %v1594 = vpack.c.b16 %v1186, %v1174
    %v1595 = vpack.c.b16 %v1187, %v1175
    %v1596 = vpack.c.b16 %v1188, %v1176
    %v1597 = vpack.c.b16 %v1189, %v1177
    %v1598 = vpack.c.b16 %v1190, %v1178
    %v1599 = vpack.c.b16 %v1191, %v1179
    %v1600 = vpack.c.b16 %v1192, %v1180
    %v1601 = vpack.c.b16 %v1193, %v1181
    %v1602 = vpack.c.b16 %v1194, %v1182
    %v1603 = vpack.c.b16 %v1195, %v1183
    %v1604 = vpack.c.b16 %v1196, %v1184
    %v1605 = vpack.c.b16 %v1197, %v1185
    %v1606 = vpack.c.b16 %v1210, %v1198
    %v1607 = vpack.c.b16 %v1211, %v1199
    %v1608 = vpack.c.b16 %v1212, %v1200
    %v1609 = vpack.c.b16 %v1213, %v1201
    %v1610 = vpack.c.b16 %v1214, %v1202
    %v1611 = vpack.c.b16 %v1215, %v1203
    %v1612 = vpack.c.b16 %v1216, %v1204
    %v1613 = vpack.c.b16 %v1217, %v1205
    %v1614 = vpack.c.b16 %v1218, %v1206
    %v1615 = vpack.c.b16 %v1219, %v1207
    %v1616 = vpack.c.b16 %v1220, %v1208
    %v1617 = vpack.c.b16 %v1221, %v1209
    %v1618 = vpack.c.b16 %v1234, %v1222
    %v1619 = vpack.c.b16 %v1235, %v1223
    %v1620 = vpack.c.b16 %v1236, %v1224
    %v1621 = vpack.c.b16 %v1237, %v1225
    %v1622 = vpack.c.b16 %v1238, %v1226
    %v1623 = vpack.c.b16 %v1239, %v1227
    %v1624 = vpack.c.b16 %v1240, %v1228
    %v1625 = vpack.c.b16 %v1241, %v1229
    %v1626 = vpack.c.b16 %v1242, %v1230
    %v1627 = vpack.c.b16 %v1243, %v1231
    %v1628 = vpack.c.b16 %v1244, %v1232
    %v1629 = vpack.c.b16 %v1245, %v1233
    %v1630 = vpack.c.b16 %v1258, %v1246
    %v1631 = vpack.c.b16 %v1259, %v1247
    %v1632 = vpack.c.b16 %v1260, %v1248
    %v1633 = vpack.c.b16 %v1261, %v1249
    %v1634 = vpack.c.b16 %v1262, %v1250
    %v1635 = vpack.c.b16 %v1263, %v1251
    %v1636 = vpack.c.b16 %v1264, %v1252
    %v1637 = vpack.c.b16 %v1265, %v1253
    %v1638 = vpack.c.b16 %v1266, %v1254
    %v1639 = vpack.c.b16 %v1267, %v1255
    %v1640 = vpack.c.b16 %v1268, %v1256
    %v1641 = vpack.c.b16 %v1269, %v1257
    %v1642 = vpack.c.b16 %v1282, %v1270
    %v1643 = vpack.c.b16 %v1283, %v1271
    %v1644 = vpack.c.b16 %v1284, %v1272
    %v1645 = vpack.c.b16 %v1285, %v1273
    %v1646 = vpack.c.b16 %v1286, %v1274
    %v1647 = vpack.c.b16 %v1287, %v1275
    %v1648 = vpack.c.b16 %v1288, %v1276
    %v1649 = vpack.c.b16 %v1289, %v1277
    %v1650 = vpack.c.b16 %v1290, %v1278
    %v1651 = vpack.c.b16 %v1291, %v1279
    %v1652 = vpack.c.b16 %v1292, %v1280
    %v1653 = vpack.c.b16 %v1293, %v1281
    %v1654 = vpack.c.b16 %v1306, %v1294
    %v1655 = vpack.c.b16 %v1307, %v1295
    %v1656 = vpack.c.b16 %v1308, %v1296
    %v1657 = vpack.c.b16 %v1309, %v1297
    %v1658 = vpack.c.b16 %v1310, %v1298
    %v1659 = vpack.c.b16 %v1311, %v1299
    %v1660 = vpack.c.b16 %v1312, %v1300
    %v1661 = vpack.c.b16 %v1313, %v1301
    %v1662 = vpack.c.b16 %v1314, %v1302
    %v1663 = vpack.c.b16 %v1315, %v1303
    %v1664 = vpack.c.b16 %v1316, %v1304
    %v1665 = vpack.c.b16 %v1317, %v1305
    %v1666 = vpack.c.b16 %v1330, %v1318
    %v1667 = vpack.c.b16 %v1331, %v1319
    %v1668 = vpack.c.b16 %v1332, %v1320
    %v1669 = vpack.c.b16 %v1333, %v1321
    %v1670 = vpack.c.b16 %v1334, %v1322
    %v1671 = vpack.c.b16 %v1335, %v1323
    %v1672 = vpack.c.b16 %v1336, %v1324
    %v1673 = vpack.c.b16 %v1337, %v1325
    %v1674 = vpack.c.b16 %v1338, %v1326
    %v1675 = vpack.c.b16 %v1339, %v1327
    %v1676 = vpack.c.b16 %v1340, %v1328
    %v1677 = vpack.c.b16 %v1341, %v1329
    %v1678 = vpack.c.b16 %v1354, %v1342
    %v1679 = vpack.c.b16 %v1355, %v1343
    %v1680 = vpack.c.b16 %v1356, %v1344
    %v1681 = vpack.c.b16 %v1357, %v1345
    %v1682 = vpack.c.b16 %v1358, %v1346
    %v1683 = vpack.c.b16 %v1359, %v1347
    %v1684 = vpack.c.b16 %v1360, %v1348
    %v1685 = vpack.c.b16 %v1361, %v1349
    %v1686 = vpack.c.b16 %v1362, %v1350
    %v1687 = vpack.c.b16 %v1363, %v1351
    %v1688 = vpack.c.b16 %v1364, %v1352
    %v1689 = vpack.c.b16 %v1365, %v1353
    %v1690 = vpack.c.b16 %v1378, %v1366
    %v1691 = vpack.c.b16 %v1379, %v1367
    %v1692 = vpack.c.b16 %v1380, %v1368
    %v1693 = vpack.c.b16 %v1381, %v1369
    %v1694 = vpack.c.b16 %v1382, %v1370
    %v1695 = vpack.c.b16 %v1383, %v1371
    %v1696 = vpack.c.b16 %v1384, %v1372
    %v1697 = vpack.c.b16 %v1385, %v1373
    %v1698 = vpack.c.b16 %v1386, %v1374
    %v1699 = vpack.c.b16 %v1387, %v1375
    %v1700 = vpack.c.b16 %v1388, %v1376
    %v1701 = vpack.c.b16 %v1389, %v1377
    %v1702 = vpack.c.b16 %v1402, %v1390
    %v1703 = vpack.c.b16 %v1403, %v1391
    %v1704 = vpack.c.b16 %v1404, %v1392
    %v1705 = vpack.c.b16 %v1405, %v1393
    %v1706 = vpack.c.b16 %v1406, %v1394
    %v1707 = vpack.c.b16 %v1407, %v1395
    %v1708 = vpack.c.b16 %v1408, %v1396
    %v1709 = vpack.c.b16 %v1409, %v1397
    %v1710 = vpack.c.b16 %v1410, %v1398
    %v1711 = vpack.c.b16 %v1411, %v1399
    %v1712 = vpack.c.b16 %v1412, %v1400
    %v1713 = vpack.c.b16 %v1413, %v1401
    %v1714 = vpack.c.b16 %v1426, %v1414
    %v1715 = vpack.c.b16 %v1427, %v1415
    %v1716 = vpack.c.b16 %v1428, %v1416
    %v1717 = vpack.c.b16 %v1429, %v1417
    %v1718 = vpack.c.b16 %v1430, %v1418
    %v1719 = vpack.c.b16 %v1431, %v1419
    %v1720 = vpack.c.b16 %v1432, %v1420
    %v1721 = vpack.c.b16 %v1433, %v1421
    %v1722 = vpack.c.b16 %v1434, %v1422
    %v1723 = vpack.c.b16 %v1435, %v1423
    %v1724 = vpack.c.b16 %v1436, %v1424
    %v1725 = vpack.c.b16 %v1437, %v1425
    %2014 = vmatpush.bf16.msra.mxu0 %v1522
    %2015 = vmatpush.bf16.msra.mxu0 %v1510
    %2016 = vmatpush.bf16.msra.mxu0 %v1498
    %2017 = vmatpush.bf16.msra.mxu0 %v1486
    %2018 = vmatpush.bf16.msra.mxu0 %v1474
    %2019 = vmatpush.bf16.msra.mxu0 %v1462
    %2020 = vmatpush.bf16.msra.mxu0 %v1450
    %2021 = vmatpush.bf16.msra.mxu0 %v1438
    %2022 = vmatmul.bf16.gmra.mxu0 %v210
    %v2023 = vpop.f32.mrf.mxu0
    %v2024 = vadd.f32 %v550, %v2023
    %v2025 = vpop.f32.mrf.mxu0
    %v2026 = vadd.f32 %v550, %v2025
    %2027 = vmatmul.bf16.gmra.mxu0 %v213
    %v2028 = vpop.f32.mrf.mxu0
    %v2029 = vadd.f32 %v550, %v2028
    %v2030 = vpop.f32.mrf.mxu0
    %v2031 = vadd.f32 %v550, %v2030
    %2032 = vmatmul.bf16.gmra.mxu0 %v216
    %v2033 = vpop.f32.mrf.mxu0
    %v2034 = vadd.f32 %v550, %v2033
    %v2035 = vpop.f32.mrf.mxu0
    %v2036 = vadd.f32 %v550, %v2035
    %2037 = vmatmul.bf16.gmra.mxu0 %v219
    %v2038 = vpop.f32.mrf.mxu0
    %v2039 = vadd.f32 %v550, %v2038
    %v2040 = vpop.f32.mrf.mxu0
    %v2041 = vadd.f32 %v550, %v2040
    %2042 = vmatmul.bf16.gmra.mxu0 %v222
    %v2043 = vpop.f32.mrf.mxu0
    %v2044 = vadd.f32 %v550, %v2043
    %v2045 = vpop.f32.mrf.mxu0
    %v2046 = vadd.f32 %v550, %v2045
    %2047 = vmatmul.bf16.gmra.mxu0 %v225
    %v2048 = vpop.f32.mrf.mxu0
    %v2049 = vadd.f32 %v550, %v2048
    %v2050 = vpop.f32.mrf.mxu0
    %v2051 = vadd.f32 %v550, %v2050
    %2052 = vmatmul.bf16.gmra.mxu0 %v228
    %v2053 = vpop.f32.mrf.mxu0
    %v2054 = vadd.f32 %v550, %v2053
    %v2055 = vpop.f32.mrf.mxu0
    %v2056 = vadd.f32 %v550, %v2055
    %2057 = vmatmul.bf16.gmra.mxu0 %v231
    %v2058 = vpop.f32.mrf.mxu0
    %v2059 = vadd.f32 %v550, %v2058
    %v2060 = vpop.f32.mrf.mxu0
    %v2061 = vadd.f32 %v550, %v2060
    %2062 = vmatmul.bf16.gmra.mxu0 %v234
    %v2063 = vpop.f32.mrf.mxu0
    %v2064 = vadd.f32 %v550, %v2063
    %v2065 = vpop.f32.mrf.mxu0
    %v2066 = vadd.f32 %v550, %v2065
    %2067 = vmatmul.bf16.gmra.mxu0 %v237
    %v2068 = vpop.f32.mrf.mxu0
    %v2069 = vadd.f32 %v550, %v2068
    %v2070 = vpop.f32.mrf.mxu0
    %v2071 = vadd.f32 %v550, %v2070
    %2072 = vmatmul.bf16.gmra.mxu0 %v240
    %v2073 = vpop.f32.mrf.mxu0
    %v2074 = vadd.f32 %v550, %v2073
    %v2075 = vpop.f32.mrf.mxu0
    %v2076 = vadd.f32 %v550, %v2075
    %2077 = vmatmul.bf16.gmra.mxu0 %v243
    %v2078 = vpop.f32.mrf.mxu0
    %v2079 = vadd.f32 %v550, %v2078
    %v2080 = vpop.f32.mrf.mxu0
    %v2081 = vadd.f32 %v550, %v2080
    %2082 = vmatmul.bf16.gmra.mxu0 %v246
    %v2083 = vpop.f32.mrf.mxu0
    %v2084 = vadd.f32 %v550, %v2083
    %v2085 = vpop.f32.mrf.mxu0
    %v2086 = vadd.f32 %v550, %v2085
    %2087 = vmatmul.bf16.gmra.mxu0 %v249
    %v2088 = vpop.f32.mrf.mxu0
    %v2089 = vadd.f32 %v550, %v2088
    %v2090 = vpop.f32.mrf.mxu0
    %v2091 = vadd.f32 %v550, %v2090
    %2092 = vmatmul.bf16.gmra.mxu0 %v252
    %v2093 = vpop.f32.mrf.mxu0
    %v2094 = vadd.f32 %v550, %v2093
    %v2095 = vpop.f32.mrf.mxu0
    %v2096 = vadd.f32 %v550, %v2095
    %2097 = vmatmul.bf16.gmra.mxu0 %v255
    %v2098 = vpop.f32.mrf.mxu0
    %v2099 = vadd.f32 %v550, %v2098
    %v2100 = vpop.f32.mrf.mxu0
    %v2101 = vadd.f32 %v550, %v2100
    %2102 = vdwg.mxu0
    %2103 = vmatpush.bf16.msra.mxu0 %v1618
    %2104 = vmatpush.bf16.msra.mxu0 %v1606
    %2105 = vmatpush.bf16.msra.mxu0 %v1594
    %2106 = vmatpush.bf16.msra.mxu0 %v1582
    %2107 = vmatpush.bf16.msra.mxu0 %v1570
    %2108 = vmatpush.bf16.msra.mxu0 %v1558
    %2109 = vmatpush.bf16.msra.mxu0 %v1546
    %2110 = vmatpush.bf16.msra.mxu0 %v1534
    %2111 = vmatmul.bf16.gmra.mxu0 %v211
    %v2112 = vpop.f32.mrf.mxu0
    %v2113 = vadd.f32 %v2024, %v2112
    %v2114 = vpop.f32.mrf.mxu0
    %v2115 = vadd.f32 %v2026, %v2114
    %2116 = vmatmul.bf16.gmra.mxu0 %v214
    %v2117 = vpop.f32.mrf.mxu0
    %v2118 = vadd.f32 %v2029, %v2117
    %v2119 = vpop.f32.mrf.mxu0
    %v2120 = vadd.f32 %v2031, %v2119
    %2121 = vmatmul.bf16.gmra.mxu0 %v217
    %v2122 = vpop.f32.mrf.mxu0
    %v2123 = vadd.f32 %v2034, %v2122
    %v2124 = vpop.f32.mrf.mxu0
    %v2125 = vadd.f32 %v2036, %v2124
    %2126 = vmatmul.bf16.gmra.mxu0 %v220
    %v2127 = vpop.f32.mrf.mxu0
    %v2128 = vadd.f32 %v2039, %v2127
    %v2129 = vpop.f32.mrf.mxu0
    %v2130 = vadd.f32 %v2041, %v2129
    %2131 = vmatmul.bf16.gmra.mxu0 %v223
    %v2132 = vpop.f32.mrf.mxu0
    %v2133 = vadd.f32 %v2044, %v2132
    %v2134 = vpop.f32.mrf.mxu0
    %v2135 = vadd.f32 %v2046, %v2134
    %2136 = vmatmul.bf16.gmra.mxu0 %v226
    %v2137 = vpop.f32.mrf.mxu0
    %v2138 = vadd.f32 %v2049, %v2137
    %v2139 = vpop.f32.mrf.mxu0
    %v2140 = vadd.f32 %v2051, %v2139
    %2141 = vmatmul.bf16.gmra.mxu0 %v229
    %v2142 = vpop.f32.mrf.mxu0
    %v2143 = vadd.f32 %v2054, %v2142
    %v2144 = vpop.f32.mrf.mxu0
    %v2145 = vadd.f32 %v2056, %v2144
    %2146 = vmatmul.bf16.gmra.mxu0 %v232
    %v2147 = vpop.f32.mrf.mxu0
    %v2148 = vadd.f32 %v2059, %v2147
    %v2149 = vpop.f32.mrf.mxu0
    %v2150 = vadd.f32 %v2061, %v2149
    %2151 = vmatmul.bf16.gmra.mxu0 %v235
    %v2152 = vpop.f32.mrf.mxu0
    %v2153 = vadd.f32 %v2064, %v2152
    %v2154 = vpop.f32.mrf.mxu0
    %v2155 = vadd.f32 %v2066, %v2154
    %2156 = vmatmul.bf16.gmra.mxu0 %v238
    %v2157 = vpop.f32.mrf.mxu0
    %v2158 = vadd.f32 %v2069, %v2157
    %v2159 = vpop.f32.mrf.mxu0
    %v2160 = vadd.f32 %v2071, %v2159
    %2161 = vmatmul.bf16.gmra.mxu0 %v241
    %v2162 = vpop.f32.mrf.mxu0
    %v2163 = vadd.f32 %v2074, %v2162
    %v2164 = vpop.f32.mrf.mxu0
    %v2165 = vadd.f32 %v2076, %v2164
    %2166 = vmatmul.bf16.gmra.mxu0 %v244
    %v2167 = vpop.f32.mrf.mxu0
    %v2168 = vadd.f32 %v2079, %v2167
    %v2169 = vpop.f32.mrf.mxu0
    %v2170 = vadd.f32 %v2081, %v2169
    %2171 = vmatmul.bf16.gmra.mxu0 %v247
    %v2172 = vpop.f32.mrf.mxu0
    %v2173 = vadd.f32 %v2084, %v2172
    %v2174 = vpop.f32.mrf.mxu0
    %v2175 = vadd.f32 %v2086, %v2174
    %2176 = vmatmul.bf16.gmra.mxu0 %v250
    %v2177 = vpop.f32.mrf.mxu0
    %v2178 = vadd.f32 %v2089, %v2177
    %v2179 = vpop.f32.mrf.mxu0
    %v2180 = vadd.f32 %v2091, %v2179
    %2181 = vmatmul.bf16.gmra.mxu0 %v253
    %v2182 = vpop.f32.mrf.mxu0
    %v2183 = vadd.f32 %v2094, %v2182
    %v2184 = vpop.f32.mrf.mxu0
    %v2185 = vadd.f32 %v2096, %v2184
    %2186 = vmatmul.bf16.gmra.mxu0 %v256
    %v2187 = vpop.f32.mrf.mxu0
    %v2188 = vadd.f32 %v2099, %v2187
    %v2189 = vpop.f32.mrf.mxu0
    %v2190 = vadd.f32 %v2101, %v2189
    %2191 = vdwg.mxu0
    %2192 = vmatpush.bf16.msra.mxu0 %v1714
    %2193 = vmatpush.bf16.msra.mxu0 %v1702
    %2194 = vmatpush.bf16.msra.mxu0 %v1690
    %2195 = vmatpush.bf16.msra.mxu0 %v1678
    %2196 = vmatpush.bf16.msra.mxu0 %v1666
    %2197 = vmatpush.bf16.msra.mxu0 %v1654
    %2198 = vmatpush.bf16.msra.mxu0 %v1642
    %2199 = vmatpush.bf16.msra.mxu0 %v1630
    %2200 = vmatmul.bf16.gmra.mxu0 %v212
    %v2201 = vpop.f32.mrf.mxu0
    %v2202 = vadd.f32 %v2113, %v2201
    %v2203 = vpop.f32.mrf.mxu0
    %v2204 = vadd.f32 %v2115, %v2203
    %2205 = vmatmul.bf16.gmra.mxu0 %v215
    %v2206 = vpop.f32.mrf.mxu0
    %v2207 = vadd.f32 %v2118, %v2206
    %v2208 = vpop.f32.mrf.mxu0
    %v2209 = vadd.f32 %v2120, %v2208
    %2210 = vmatmul.bf16.gmra.mxu0 %v218
    %v2211 = vpop.f32.mrf.mxu0
    %v2212 = vadd.f32 %v2123, %v2211
    %v2213 = vpop.f32.mrf.mxu0
    %v2214 = vadd.f32 %v2125, %v2213
    %2215 = vmatmul.bf16.gmra.mxu0 %v221
    %v2216 = vpop.f32.mrf.mxu0
    %v2217 = vadd.f32 %v2128, %v2216
    %v2218 = vpop.f32.mrf.mxu0
    %v2219 = vadd.f32 %v2130, %v2218
    %2220 = vmatmul.bf16.gmra.mxu0 %v224
    %v2221 = vpop.f32.mrf.mxu0
    %v2222 = vadd.f32 %v2133, %v2221
    %v2223 = vpop.f32.mrf.mxu0
    %v2224 = vadd.f32 %v2135, %v2223
    %2225 = vmatmul.bf16.gmra.mxu0 %v227
    %v2226 = vpop.f32.mrf.mxu0
    %v2227 = vadd.f32 %v2138, %v2226
    %v2228 = vpop.f32.mrf.mxu0
    %v2229 = vadd.f32 %v2140, %v2228
    %2230 = vmatmul.bf16.gmra.mxu0 %v230
    %v2231 = vpop.f32.mrf.mxu0
    %v2232 = vadd.f32 %v2143, %v2231
    %v2233 = vpop.f32.mrf.mxu0
    %v2234 = vadd.f32 %v2145, %v2233
    %2235 = vmatmul.bf16.gmra.mxu0 %v233
    %v2236 = vpop.f32.mrf.mxu0
    %v2237 = vadd.f32 %v2148, %v2236
    %v2238 = vpop.f32.mrf.mxu0
    %v2239 = vadd.f32 %v2150, %v2238
    %2240 = vmatmul.bf16.gmra.mxu0 %v236
    %v2241 = vpop.f32.mrf.mxu0
    %v2242 = vadd.f32 %v2153, %v2241
    %v2243 = vpop.f32.mrf.mxu0
    %v2244 = vadd.f32 %v2155, %v2243
    %2245 = vmatmul.bf16.gmra.mxu0 %v239
    %v2246 = vpop.f32.mrf.mxu0
    %v2247 = vadd.f32 %v2158, %v2246
    %v2248 = vpop.f32.mrf.mxu0
    %v2249 = vadd.f32 %v2160, %v2248
    %2250 = vmatmul.bf16.gmra.mxu0 %v242
    %v2251 = vpop.f32.mrf.mxu0
    %v2252 = vadd.f32 %v2163, %v2251
    %v2253 = vpop.f32.mrf.mxu0
    %v2254 = vadd.f32 %v2165, %v2253
    %2255 = vmatmul.bf16.gmra.mxu0 %v245
    %v2256 = vpop.f32.mrf.mxu0
    %v2257 = vadd.f32 %v2168, %v2256
    %v2258 = vpop.f32.mrf.mxu0
    %v2259 = vadd.f32 %v2170, %v2258
    %2260 = vmatmul.bf16.gmra.mxu0 %v248
    %v2261 = vpop.f32.mrf.mxu0
    %v2262 = vadd.f32 %v2173, %v2261
    %v2263 = vpop.f32.mrf.mxu0
    %v2264 = vadd.f32 %v2175, %v2263
    %2265 = vmatmul.bf16.gmra.mxu0 %v251
    %v2266 = vpop.f32.mrf.mxu0
    %v2267 = vadd.f32 %v2178, %v2266
    %v2268 = vpop.f32.mrf.mxu0
    %v2269 = vadd.f32 %v2180, %v2268
    %2270 = vmatmul.bf16.gmra.mxu0 %v254
    %v2271 = vpop.f32.mrf.mxu0
    %v2272 = vadd.f32 %v2183, %v2271
    %v2273 = vpop.f32.mrf.mxu0
    %v2274 = vadd.f32 %v2185, %v2273
    %2275 = vmatmul.bf16.gmra.mxu0 %v257
    %v2276 = vpop.f32.mrf.mxu0
    %v2277 = vadd.f32 %v2188, %v2276
    %v2278 = vpop.f32.mrf.mxu0
    %v2279 = vadd.f32 %v2190, %v2278
    %2280 = vdwg.mxu0
    %2281 = vmatpush.bf16.msra.mxu0 %v1523
    %2282 = vmatpush.bf16.msra.mxu0 %v1511
    %2283 = vmatpush.bf16.msra.mxu0 %v1499
    %2284 = vmatpush.bf16.msra.mxu0 %v1487
    %2285 = vmatpush.bf16.msra.mxu0 %v1475
    %2286 = vmatpush.bf16.msra.mxu0 %v1463
    %2287 = vmatpush.bf16.msra.mxu0 %v1451
    %2288 = vmatpush.bf16.msra.mxu0 %v1439
    %2289 = vmatmul.bf16.gmra.mxu0 %v210
    %v2290 = vpop.f32.mrf.mxu0
    %v2291 = vadd.f32 %v551, %v2290
    %v2292 = vpop.f32.mrf.mxu0
    %v2293 = vadd.f32 %v551, %v2292
    %2294 = vmatmul.bf16.gmra.mxu0 %v213
    %v2295 = vpop.f32.mrf.mxu0
    %v2296 = vadd.f32 %v551, %v2295
    %v2297 = vpop.f32.mrf.mxu0
    %v2298 = vadd.f32 %v551, %v2297
    %2299 = vmatmul.bf16.gmra.mxu0 %v216
    %v2300 = vpop.f32.mrf.mxu0
    %v2301 = vadd.f32 %v551, %v2300
    %v2302 = vpop.f32.mrf.mxu0
    %v2303 = vadd.f32 %v551, %v2302
    %2304 = vmatmul.bf16.gmra.mxu0 %v219
    %v2305 = vpop.f32.mrf.mxu0
    %v2306 = vadd.f32 %v551, %v2305
    %v2307 = vpop.f32.mrf.mxu0
    %v2308 = vadd.f32 %v551, %v2307
    %2309 = vmatmul.bf16.gmra.mxu0 %v222
    %v2310 = vpop.f32.mrf.mxu0
    %v2311 = vadd.f32 %v551, %v2310
    %v2312 = vpop.f32.mrf.mxu0
    %v2313 = vadd.f32 %v551, %v2312
    %2314 = vmatmul.bf16.gmra.mxu0 %v225
    %v2315 = vpop.f32.mrf.mxu0
    %v2316 = vadd.f32 %v551, %v2315
    %v2317 = vpop.f32.mrf.mxu0
    %v2318 = vadd.f32 %v551, %v2317
    %2319 = vmatmul.bf16.gmra.mxu0 %v228
    %v2320 = vpop.f32.mrf.mxu0
    %v2321 = vadd.f32 %v551, %v2320
    %v2322 = vpop.f32.mrf.mxu0
    %v2323 = vadd.f32 %v551, %v2322
    %2324 = vmatmul.bf16.gmra.mxu0 %v231
    %v2325 = vpop.f32.mrf.mxu0
    %v2326 = vadd.f32 %v551, %v2325
    %v2327 = vpop.f32.mrf.mxu0
    %v2328 = vadd.f32 %v551, %v2327
    %2329 = vmatmul.bf16.gmra.mxu0 %v234
    %v2330 = vpop.f32.mrf.mxu0
    %v2331 = vadd.f32 %v551, %v2330
    %v2332 = vpop.f32.mrf.mxu0
    %v2333 = vadd.f32 %v551, %v2332
    %2334 = vmatmul.bf16.gmra.mxu0 %v237
    %v2335 = vpop.f32.mrf.mxu0
    %v2336 = vadd.f32 %v551, %v2335
    %v2337 = vpop.f32.mrf.mxu0
    %v2338 = vadd.f32 %v551, %v2337
    %2339 = vmatmul.bf16.gmra.mxu0 %v240
    %v2340 = vpop.f32.mrf.mxu0
    %v2341 = vadd.f32 %v551, %v2340
    %v2342 = vpop.f32.mrf.mxu0
    %v2343 = vadd.f32 %v551, %v2342
    %2344 = vmatmul.bf16.gmra.mxu0 %v243
    %v2345 = vpop.f32.mrf.mxu0
    %v2346 = vadd.f32 %v551, %v2345
    %v2347 = vpop.f32.mrf.mxu0
    %v2348 = vadd.f32 %v551, %v2347
    %2349 = vmatmul.bf16.gmra.mxu0 %v246
    %v2350 = vpop.f32.mrf.mxu0
    %v2351 = vadd.f32 %v551, %v2350
    %v2352 = vpop.f32.mrf.mxu0
    %v2353 = vadd.f32 %v551, %v2352
    %2354 = vmatmul.bf16.gmra.mxu0 %v249
    %v2355 = vpop.f32.mrf.mxu0
    %v2356 = vadd.f32 %v551, %v2355
    %v2357 = vpop.f32.mrf.mxu0
    %v2358 = vadd.f32 %v551, %v2357
    %2359 = vmatmul.bf16.gmra.mxu0 %v252
    %v2360 = vpop.f32.mrf.mxu0
    %v2361 = vadd.f32 %v551, %v2360
    %v2362 = vpop.f32.mrf.mxu0
    %v2363 = vadd.f32 %v551, %v2362
    %2364 = vmatmul.bf16.gmra.mxu0 %v255
    %v2365 = vpop.f32.mrf.mxu0
    %v2366 = vadd.f32 %v551, %v2365
    %v2367 = vpop.f32.mrf.mxu0
    %v2368 = vadd.f32 %v551, %v2367
    %2369 = vdwg.mxu0
    %2370 = vmatpush.bf16.msra.mxu0 %v1619
    %2371 = vmatpush.bf16.msra.mxu0 %v1607
    %2372 = vmatpush.bf16.msra.mxu0 %v1595
    %2373 = vmatpush.bf16.msra.mxu0 %v1583
    %2374 = vmatpush.bf16.msra.mxu0 %v1571
    %2375 = vmatpush.bf16.msra.mxu0 %v1559
    %2376 = vmatpush.bf16.msra.mxu0 %v1547
    %2377 = vmatpush.bf16.msra.mxu0 %v1535
    %2378 = vmatmul.bf16.gmra.mxu0 %v211
    %v2379 = vpop.f32.mrf.mxu0
    %v2380 = vadd.f32 %v2291, %v2379
    %v2381 = vpop.f32.mrf.mxu0
    %v2382 = vadd.f32 %v2293, %v2381
    %2383 = vmatmul.bf16.gmra.mxu0 %v214
    %v2384 = vpop.f32.mrf.mxu0
    %v2385 = vadd.f32 %v2296, %v2384
    %v2386 = vpop.f32.mrf.mxu0
    %v2387 = vadd.f32 %v2298, %v2386
    %2388 = vmatmul.bf16.gmra.mxu0 %v217
    %v2389 = vpop.f32.mrf.mxu0
    %v2390 = vadd.f32 %v2301, %v2389
    %v2391 = vpop.f32.mrf.mxu0
    %v2392 = vadd.f32 %v2303, %v2391
    %2393 = vmatmul.bf16.gmra.mxu0 %v220
    %v2394 = vpop.f32.mrf.mxu0
    %v2395 = vadd.f32 %v2306, %v2394
    %v2396 = vpop.f32.mrf.mxu0
    %v2397 = vadd.f32 %v2308, %v2396
    %2398 = vmatmul.bf16.gmra.mxu0 %v223
    %v2399 = vpop.f32.mrf.mxu0
    %v2400 = vadd.f32 %v2311, %v2399
    %v2401 = vpop.f32.mrf.mxu0
    %v2402 = vadd.f32 %v2313, %v2401
    %2403 = vmatmul.bf16.gmra.mxu0 %v226
    %v2404 = vpop.f32.mrf.mxu0
    %v2405 = vadd.f32 %v2316, %v2404
    %v2406 = vpop.f32.mrf.mxu0
    %v2407 = vadd.f32 %v2318, %v2406
    %2408 = vmatmul.bf16.gmra.mxu0 %v229
    %v2409 = vpop.f32.mrf.mxu0
    %v2410 = vadd.f32 %v2321, %v2409
    %v2411 = vpop.f32.mrf.mxu0
    %v2412 = vadd.f32 %v2323, %v2411
    %2413 = vmatmul.bf16.gmra.mxu0 %v232
    %v2414 = vpop.f32.mrf.mxu0
    %v2415 = vadd.f32 %v2326, %v2414
    %v2416 = vpop.f32.mrf.mxu0
    %v2417 = vadd.f32 %v2328, %v2416
    %2418 = vmatmul.bf16.gmra.mxu0 %v235
    %v2419 = vpop.f32.mrf.mxu0
    %v2420 = vadd.f32 %v2331, %v2419
    %v2421 = vpop.f32.mrf.mxu0
    %v2422 = vadd.f32 %v2333, %v2421
    %2423 = vmatmul.bf16.gmra.mxu0 %v238
    %v2424 = vpop.f32.mrf.mxu0
    %v2425 = vadd.f32 %v2336, %v2424
    %v2426 = vpop.f32.mrf.mxu0
    %v2427 = vadd.f32 %v2338, %v2426
    %2428 = vmatmul.bf16.gmra.mxu0 %v241
    %v2429 = vpop.f32.mrf.mxu0
    %v2430 = vadd.f32 %v2341, %v2429
    %v2431 = vpop.f32.mrf.mxu0
    %v2432 = vadd.f32 %v2343, %v2431
    %2433 = vmatmul.bf16.gmra.mxu0 %v244
    %v2434 = vpop.f32.mrf.mxu0
    %v2435 = vadd.f32 %v2346, %v2434
    %v2436 = vpop.f32.mrf.mxu0
    %v2437 = vadd.f32 %v2348, %v2436
    %2438 = vmatmul.bf16.gmra.mxu0 %v247
    %v2439 = vpop.f32.mrf.mxu0
    %v2440 = vadd.f32 %v2351, %v2439
    %v2441 = vpop.f32.mrf.mxu0
    %v2442 = vadd.f32 %v2353, %v2441
    %2443 = vmatmul.bf16.gmra.mxu0 %v250
    %v2444 = vpop.f32.mrf.mxu0
    %v2445 = vadd.f32 %v2356, %v2444
    %v2446 = vpop.f32.mrf.mxu0
    %v2447 = vadd.f32 %v2358, %v2446
    %2448 = vmatmul.bf16.gmra.mxu0 %v253
    %v2449 = vpop.f32.mrf.mxu0
    %v2450 = vadd.f32 %v2361, %v2449
    %v2451 = vpop.f32.mrf.mxu0
    %v2452 = vadd.f32 %v2363, %v2451
    %2453 = vmatmul.bf16.gmra.mxu0 %v256
    %v2454 = vpop.f32.mrf.mxu0
    %v2455 = vadd.f32 %v2366, %v2454
    %v2456 = vpop.f32.mrf.mxu0
    %v2457 = vadd.f32 %v2368, %v2456
    %2458 = vdwg.mxu0
    %2459 = vmatpush.bf16.msra.mxu0 %v1715
    %2460 = vmatpush.bf16.msra.mxu0 %v1703
    %2461 = vmatpush.bf16.msra.mxu0 %v1691
    %2462 = vmatpush.bf16.msra.mxu0 %v1679
    %2463 = vmatpush.bf16.msra.mxu0 %v1667
    %2464 = vmatpush.bf16.msra.mxu0 %v1655
    %2465 = vmatpush.bf16.msra.mxu0 %v1643
    %2466 = vmatpush.bf16.msra.mxu0 %v1631
    %2467 = vmatmul.bf16.gmra.mxu0 %v212
    %v2468 = vpop.f32.mrf.mxu0
    %v2469 = vadd.f32 %v2380, %v2468
    %v2470 = vpop.f32.mrf.mxu0
    %v2471 = vadd.f32 %v2382, %v2470
    %2472 = vmatmul.bf16.gmra.mxu0 %v215
    %v2473 = vpop.f32.mrf.mxu0
    %v2474 = vadd.f32 %v2385, %v2473
    %v2475 = vpop.f32.mrf.mxu0
    %v2476 = vadd.f32 %v2387, %v2475
    %2477 = vmatmul.bf16.gmra.mxu0 %v218
    %v2478 = vpop.f32.mrf.mxu0
    %v2479 = vadd.f32 %v2390, %v2478
    %v2480 = vpop.f32.mrf.mxu0
    %v2481 = vadd.f32 %v2392, %v2480
    %2482 = vmatmul.bf16.gmra.mxu0 %v221
    %v2483 = vpop.f32.mrf.mxu0
    %v2484 = vadd.f32 %v2395, %v2483
    %v2485 = vpop.f32.mrf.mxu0
    %v2486 = vadd.f32 %v2397, %v2485
    %2487 = vmatmul.bf16.gmra.mxu0 %v224
    %v2488 = vpop.f32.mrf.mxu0
    %v2489 = vadd.f32 %v2400, %v2488
    %v2490 = vpop.f32.mrf.mxu0
    %v2491 = vadd.f32 %v2402, %v2490
    %2492 = vmatmul.bf16.gmra.mxu0 %v227
    %v2493 = vpop.f32.mrf.mxu0
    %v2494 = vadd.f32 %v2405, %v2493
    %v2495 = vpop.f32.mrf.mxu0
    %v2496 = vadd.f32 %v2407, %v2495
    %2497 = vmatmul.bf16.gmra.mxu0 %v230
    %v2498 = vpop.f32.mrf.mxu0
    %v2499 = vadd.f32 %v2410, %v2498
    %v2500 = vpop.f32.mrf.mxu0
    %v2501 = vadd.f32 %v2412, %v2500
    %2502 = vmatmul.bf16.gmra.mxu0 %v233
    %v2503 = vpop.f32.mrf.mxu0
    %v2504 = vadd.f32 %v2415, %v2503
    %v2505 = vpop.f32.mrf.mxu0
    %v2506 = vadd.f32 %v2417, %v2505
    %2507 = vmatmul.bf16.gmra.mxu0 %v236
    %v2508 = vpop.f32.mrf.mxu0
    %v2509 = vadd.f32 %v2420, %v2508
    %v2510 = vpop.f32.mrf.mxu0
    %v2511 = vadd.f32 %v2422, %v2510
    %2512 = vmatmul.bf16.gmra.mxu0 %v239
    %v2513 = vpop.f32.mrf.mxu0
    %v2514 = vadd.f32 %v2425, %v2513
    %v2515 = vpop.f32.mrf.mxu0
    %v2516 = vadd.f32 %v2427, %v2515
    %2517 = vmatmul.bf16.gmra.mxu0 %v242
    %v2518 = vpop.f32.mrf.mxu0
    %v2519 = vadd.f32 %v2430, %v2518
    %v2520 = vpop.f32.mrf.mxu0
    %v2521 = vadd.f32 %v2432, %v2520
    %2522 = vmatmul.bf16.gmra.mxu0 %v245
    %v2523 = vpop.f32.mrf.mxu0
    %v2524 = vadd.f32 %v2435, %v2523
    %v2525 = vpop.f32.mrf.mxu0
    %v2526 = vadd.f32 %v2437, %v2525
    %2527 = vmatmul.bf16.gmra.mxu0 %v248
    %v2528 = vpop.f32.mrf.mxu0
    %v2529 = vadd.f32 %v2440, %v2528
    %v2530 = vpop.f32.mrf.mxu0
    %v2531 = vadd.f32 %v2442, %v2530
    %2532 = vmatmul.bf16.gmra.mxu0 %v251
    %v2533 = vpop.f32.mrf.mxu0
    %v2534 = vadd.f32 %v2445, %v2533
    %v2535 = vpop.f32.mrf.mxu0
    %v2536 = vadd.f32 %v2447, %v2535
    %2537 = vmatmul.bf16.gmra.mxu0 %v254
    %v2538 = vpop.f32.mrf.mxu0
    %v2539 = vadd.f32 %v2450, %v2538
    %v2540 = vpop.f32.mrf.mxu0
    %v2541 = vadd.f32 %v2452, %v2540
    %2542 = vmatmul.bf16.gmra.mxu0 %v257
    %v2543 = vpop.f32.mrf.mxu0
    %v2544 = vadd.f32 %v2455, %v2543
    %v2545 = vpop.f32.mrf.mxu0
    %v2546 = vadd.f32 %v2457, %v2545
    %2547 = vdwg.mxu0
    %2548 = vmatpush.bf16.msra.mxu0 %v1524
    %2549 = vmatpush.bf16.msra.mxu0 %v1512
    %2550 = vmatpush.bf16.msra.mxu0 %v1500
    %2551 = vmatpush.bf16.msra.mxu0 %v1488
    %2552 = vmatpush.bf16.msra.mxu0 %v1476
    %2553 = vmatpush.bf16.msra.mxu0 %v1464
    %2554 = vmatpush.bf16.msra.mxu0 %v1452
    %2555 = vmatpush.bf16.msra.mxu0 %v1440
    %2556 = vmatmul.bf16.gmra.mxu0 %v210
    %v2557 = vpop.f32.mrf.mxu0
    %v2558 = vadd.f32 %v552, %v2557
    %v2559 = vpop.f32.mrf.mxu0
    %v2560 = vadd.f32 %v552, %v2559
    %2561 = vmatmul.bf16.gmra.mxu0 %v213
    %v2562 = vpop.f32.mrf.mxu0
    %v2563 = vadd.f32 %v552, %v2562
    %v2564 = vpop.f32.mrf.mxu0
    %v2565 = vadd.f32 %v552, %v2564
    %2566 = vmatmul.bf16.gmra.mxu0 %v216
    %v2567 = vpop.f32.mrf.mxu0
    %v2568 = vadd.f32 %v552, %v2567
    %v2569 = vpop.f32.mrf.mxu0
    %v2570 = vadd.f32 %v552, %v2569
    %2571 = vmatmul.bf16.gmra.mxu0 %v219
    %v2572 = vpop.f32.mrf.mxu0
    %v2573 = vadd.f32 %v552, %v2572
    %v2574 = vpop.f32.mrf.mxu0
    %v2575 = vadd.f32 %v552, %v2574
    %2576 = vmatmul.bf16.gmra.mxu0 %v222
    %v2577 = vpop.f32.mrf.mxu0
    %v2578 = vadd.f32 %v552, %v2577
    %v2579 = vpop.f32.mrf.mxu0
    %v2580 = vadd.f32 %v552, %v2579
    %2581 = vmatmul.bf16.gmra.mxu0 %v225
    %v2582 = vpop.f32.mrf.mxu0
    %v2583 = vadd.f32 %v552, %v2582
    %v2584 = vpop.f32.mrf.mxu0
    %v2585 = vadd.f32 %v552, %v2584
    %2586 = vmatmul.bf16.gmra.mxu0 %v228
    %v2587 = vpop.f32.mrf.mxu0
    %v2588 = vadd.f32 %v552, %v2587
    %v2589 = vpop.f32.mrf.mxu0
    %v2590 = vadd.f32 %v552, %v2589
    %2591 = vmatmul.bf16.gmra.mxu0 %v231
    %v2592 = vpop.f32.mrf.mxu0
    %v2593 = vadd.f32 %v552, %v2592
    %v2594 = vpop.f32.mrf.mxu0
    %v2595 = vadd.f32 %v552, %v2594
    %2596 = vmatmul.bf16.gmra.mxu0 %v234
    %v2597 = vpop.f32.mrf.mxu0
    %v2598 = vadd.f32 %v552, %v2597
    %v2599 = vpop.f32.mrf.mxu0
    %v2600 = vadd.f32 %v552, %v2599
    %2601 = vmatmul.bf16.gmra.mxu0 %v237
    %v2602 = vpop.f32.mrf.mxu0
    %v2603 = vadd.f32 %v552, %v2602
    %v2604 = vpop.f32.mrf.mxu0
    %v2605 = vadd.f32 %v552, %v2604
    %2606 = vmatmul.bf16.gmra.mxu0 %v240
    %v2607 = vpop.f32.mrf.mxu0
    %v2608 = vadd.f32 %v552, %v2607
    %v2609 = vpop.f32.mrf.mxu0
    %v2610 = vadd.f32 %v552, %v2609
    %2611 = vmatmul.bf16.gmra.mxu0 %v243
    %v2612 = vpop.f32.mrf.mxu0
    %v2613 = vadd.f32 %v552, %v2612
    %v2614 = vpop.f32.mrf.mxu0
    %v2615 = vadd.f32 %v552, %v2614
    %2616 = vmatmul.bf16.gmra.mxu0 %v246
    %v2617 = vpop.f32.mrf.mxu0
    %v2618 = vadd.f32 %v552, %v2617
    %v2619 = vpop.f32.mrf.mxu0
    %v2620 = vadd.f32 %v552, %v2619
    %2621 = vmatmul.bf16.gmra.mxu0 %v249
    %v2622 = vpop.f32.mrf.mxu0
    %v2623 = vadd.f32 %v552, %v2622
    %v2624 = vpop.f32.mrf.mxu0
    %v2625 = vadd.f32 %v552, %v2624
    %2626 = vmatmul.bf16.gmra.mxu0 %v252
    %v2627 = vpop.f32.mrf.mxu0
    %v2628 = vadd.f32 %v552, %v2627
    %v2629 = vpop.f32.mrf.mxu0
    %v2630 = vadd.f32 %v552, %v2629
    %2631 = vmatmul.bf16.gmra.mxu0 %v255
    %v2632 = vpop.f32.mrf.mxu0
    %v2633 = vadd.f32 %v552, %v2632
    %v2634 = vpop.f32.mrf.mxu0
    %v2635 = vadd.f32 %v552, %v2634
    %2636 = vdwg.mxu0
    %2637 = vmatpush.bf16.msra.mxu0 %v1620
    %2638 = vmatpush.bf16.msra.mxu0 %v1608
    %2639 = vmatpush.bf16.msra.mxu0 %v1596
    %2640 = vmatpush.bf16.msra.mxu0 %v1584
    %2641 = vmatpush.bf16.msra.mxu0 %v1572
    %2642 = vmatpush.bf16.msra.mxu0 %v1560
    %2643 = vmatpush.bf16.msra.mxu0 %v1548
    %2644 = vmatpush.bf16.msra.mxu0 %v1536
    %2645 = vmatmul.bf16.gmra.mxu0 %v211
    %v2646 = vpop.f32.mrf.mxu0
    %v2647 = vadd.f32 %v2558, %v2646
    %v2648 = vpop.f32.mrf.mxu0
    %v2649 = vadd.f32 %v2560, %v2648
    %2650 = vmatmul.bf16.gmra.mxu0 %v214
    %v2651 = vpop.f32.mrf.mxu0
    %v2652 = vadd.f32 %v2563, %v2651
    %v2653 = vpop.f32.mrf.mxu0
    %v2654 = vadd.f32 %v2565, %v2653
    %2655 = vmatmul.bf16.gmra.mxu0 %v217
    %v2656 = vpop.f32.mrf.mxu0
    %v2657 = vadd.f32 %v2568, %v2656
    %v2658 = vpop.f32.mrf.mxu0
    %v2659 = vadd.f32 %v2570, %v2658
    %2660 = vmatmul.bf16.gmra.mxu0 %v220
    %v2661 = vpop.f32.mrf.mxu0
    %v2662 = vadd.f32 %v2573, %v2661
    %v2663 = vpop.f32.mrf.mxu0
    %v2664 = vadd.f32 %v2575, %v2663
    %2665 = vmatmul.bf16.gmra.mxu0 %v223
    %v2666 = vpop.f32.mrf.mxu0
    %v2667 = vadd.f32 %v2578, %v2666
    %v2668 = vpop.f32.mrf.mxu0
    %v2669 = vadd.f32 %v2580, %v2668
    %2670 = vmatmul.bf16.gmra.mxu0 %v226
    %v2671 = vpop.f32.mrf.mxu0
    %v2672 = vadd.f32 %v2583, %v2671
    %v2673 = vpop.f32.mrf.mxu0
    %v2674 = vadd.f32 %v2585, %v2673
    %2675 = vmatmul.bf16.gmra.mxu0 %v229
    %v2676 = vpop.f32.mrf.mxu0
    %v2677 = vadd.f32 %v2588, %v2676
    %v2678 = vpop.f32.mrf.mxu0
    %v2679 = vadd.f32 %v2590, %v2678
    %2680 = vmatmul.bf16.gmra.mxu0 %v232
    %v2681 = vpop.f32.mrf.mxu0
    %v2682 = vadd.f32 %v2593, %v2681
    %v2683 = vpop.f32.mrf.mxu0
    %v2684 = vadd.f32 %v2595, %v2683
    %2685 = vmatmul.bf16.gmra.mxu0 %v235
    %v2686 = vpop.f32.mrf.mxu0
    %v2687 = vadd.f32 %v2598, %v2686
    %v2688 = vpop.f32.mrf.mxu0
    %v2689 = vadd.f32 %v2600, %v2688
    %2690 = vmatmul.bf16.gmra.mxu0 %v238
    %v2691 = vpop.f32.mrf.mxu0
    %v2692 = vadd.f32 %v2603, %v2691
    %v2693 = vpop.f32.mrf.mxu0
    %v2694 = vadd.f32 %v2605, %v2693
    %2695 = vmatmul.bf16.gmra.mxu0 %v241
    %v2696 = vpop.f32.mrf.mxu0
    %v2697 = vadd.f32 %v2608, %v2696
    %v2698 = vpop.f32.mrf.mxu0
    %v2699 = vadd.f32 %v2610, %v2698
    %2700 = vmatmul.bf16.gmra.mxu0 %v244
    %v2701 = vpop.f32.mrf.mxu0
    %v2702 = vadd.f32 %v2613, %v2701
    %v2703 = vpop.f32.mrf.mxu0
    %v2704 = vadd.f32 %v2615, %v2703
    %2705 = vmatmul.bf16.gmra.mxu0 %v247
    %v2706 = vpop.f32.mrf.mxu0
    %v2707 = vadd.f32 %v2618, %v2706
    %v2708 = vpop.f32.mrf.mxu0
    %v2709 = vadd.f32 %v2620, %v2708
    %2710 = vmatmul.bf16.gmra.mxu0 %v250
    %v2711 = vpop.f32.mrf.mxu0
    %v2712 = vadd.f32 %v2623, %v2711
    %v2713 = vpop.f32.mrf.mxu0
    %v2714 = vadd.f32 %v2625, %v2713
    %2715 = vmatmul.bf16.gmra.mxu0 %v253
    %v2716 = vpop.f32.mrf.mxu0
    %v2717 = vadd.f32 %v2628, %v2716
    %v2718 = vpop.f32.mrf.mxu0
    %v2719 = vadd.f32 %v2630, %v2718
    %2720 = vmatmul.bf16.gmra.mxu0 %v256
    %v2721 = vpop.f32.mrf.mxu0
    %v2722 = vadd.f32 %v2633, %v2721
    %v2723 = vpop.f32.mrf.mxu0
    %v2724 = vadd.f32 %v2635, %v2723
    %2725 = vdwg.mxu0
    %2726 = vmatpush.bf16.msra.mxu0 %v1716
    %2727 = vmatpush.bf16.msra.mxu0 %v1704
    %2728 = vmatpush.bf16.msra.mxu0 %v1692
    %2729 = vmatpush.bf16.msra.mxu0 %v1680
    %2730 = vmatpush.bf16.msra.mxu0 %v1668
    %2731 = vmatpush.bf16.msra.mxu0 %v1656
    %2732 = vmatpush.bf16.msra.mxu0 %v1644
    %2733 = vmatpush.bf16.msra.mxu0 %v1632
    %2734 = vmatmul.bf16.gmra.mxu0 %v212
    %v2735 = vpop.f32.mrf.mxu0
    %v2736 = vadd.f32 %v2647, %v2735
    %v2737 = vpop.f32.mrf.mxu0
    %v2738 = vadd.f32 %v2649, %v2737
    %2739 = vmatmul.bf16.gmra.mxu0 %v215
    %v2740 = vpop.f32.mrf.mxu0
    %v2741 = vadd.f32 %v2652, %v2740
    %v2742 = vpop.f32.mrf.mxu0
    %v2743 = vadd.f32 %v2654, %v2742
    %2744 = vmatmul.bf16.gmra.mxu0 %v218
    %v2745 = vpop.f32.mrf.mxu0
    %v2746 = vadd.f32 %v2657, %v2745
    %v2747 = vpop.f32.mrf.mxu0
    %v2748 = vadd.f32 %v2659, %v2747
    %2749 = vmatmul.bf16.gmra.mxu0 %v221
    %v2750 = vpop.f32.mrf.mxu0
    %v2751 = vadd.f32 %v2662, %v2750
    %v2752 = vpop.f32.mrf.mxu0
    %v2753 = vadd.f32 %v2664, %v2752
    %2754 = vmatmul.bf16.gmra.mxu0 %v224
    %v2755 = vpop.f32.mrf.mxu0
    %v2756 = vadd.f32 %v2667, %v2755
    %v2757 = vpop.f32.mrf.mxu0
    %v2758 = vadd.f32 %v2669, %v2757
    %2759 = vmatmul.bf16.gmra.mxu0 %v227
    %v2760 = vpop.f32.mrf.mxu0
    %v2761 = vadd.f32 %v2672, %v2760
    %v2762 = vpop.f32.mrf.mxu0
    %v2763 = vadd.f32 %v2674, %v2762
    %2764 = vmatmul.bf16.gmra.mxu0 %v230
    %v2765 = vpop.f32.mrf.mxu0
    %v2766 = vadd.f32 %v2677, %v2765
    %v2767 = vpop.f32.mrf.mxu0
    %v2768 = vadd.f32 %v2679, %v2767
    %2769 = vmatmul.bf16.gmra.mxu0 %v233
    %v2770 = vpop.f32.mrf.mxu0
    %v2771 = vadd.f32 %v2682, %v2770
    %v2772 = vpop.f32.mrf.mxu0
    %v2773 = vadd.f32 %v2684, %v2772
    %2774 = vmatmul.bf16.gmra.mxu0 %v236
    %v2775 = vpop.f32.mrf.mxu0
    %v2776 = vadd.f32 %v2687, %v2775
    %v2777 = vpop.f32.mrf.mxu0
    %v2778 = vadd.f32 %v2689, %v2777
    %2779 = vmatmul.bf16.gmra.mxu0 %v239
    %v2780 = vpop.f32.mrf.mxu0
    %v2781 = vadd.f32 %v2692, %v2780
    %v2782 = vpop.f32.mrf.mxu0
    %v2783 = vadd.f32 %v2694, %v2782
    %2784 = vmatmul.bf16.gmra.mxu0 %v242
    %v2785 = vpop.f32.mrf.mxu0
    %v2786 = vadd.f32 %v2697, %v2785
    %v2787 = vpop.f32.mrf.mxu0
    %v2788 = vadd.f32 %v2699, %v2787
    %2789 = vmatmul.bf16.gmra.mxu0 %v245
    %v2790 = vpop.f32.mrf.mxu0
    %v2791 = vadd.f32 %v2702, %v2790
    %v2792 = vpop.f32.mrf.mxu0
    %v2793 = vadd.f32 %v2704, %v2792
    %2794 = vmatmul.bf16.gmra.mxu0 %v248
    %v2795 = vpop.f32.mrf.mxu0
    %v2796 = vadd.f32 %v2707, %v2795
    %v2797 = vpop.f32.mrf.mxu0
    %v2798 = vadd.f32 %v2709, %v2797
    %2799 = vmatmul.bf16.gmra.mxu0 %v251
    %v2800 = vpop.f32.mrf.mxu0
    %v2801 = vadd.f32 %v2712, %v2800
    %v2802 = vpop.f32.mrf.mxu0
    %v2803 = vadd.f32 %v2714, %v2802
    %2804 = vmatmul.bf16.gmra.mxu0 %v254
    %v2805 = vpop.f32.mrf.mxu0
    %v2806 = vadd.f32 %v2717, %v2805
    %v2807 = vpop.f32.mrf.mxu0
    %v2808 = vadd.f32 %v2719, %v2807
    %2809 = vmatmul.bf16.gmra.mxu0 %v257
    %v2810 = vpop.f32.mrf.mxu0
    %v2811 = vadd.f32 %v2722, %v2810
    %v2812 = vpop.f32.mrf.mxu0
    %v2813 = vadd.f32 %v2724, %v2812
    %2814 = vdwg.mxu0
    %2815 = vmatpush.bf16.msra.mxu0 %v1525
    %2816 = vmatpush.bf16.msra.mxu0 %v1513
    %2817 = vmatpush.bf16.msra.mxu0 %v1501
    %2818 = vmatpush.bf16.msra.mxu0 %v1489
    %2819 = vmatpush.bf16.msra.mxu0 %v1477
    %2820 = vmatpush.bf16.msra.mxu0 %v1465
    %2821 = vmatpush.bf16.msra.mxu0 %v1453
    %2822 = vmatpush.bf16.msra.mxu0 %v1441
    %2823 = vmatmul.bf16.gmra.mxu0 %v210
    %v2824 = vpop.f32.mrf.mxu0
    %v2825 = vadd.f32 %v553, %v2824
    %v2826 = vpop.f32.mrf.mxu0
    %v2827 = vadd.f32 %v553, %v2826
    %2828 = vmatmul.bf16.gmra.mxu0 %v213
    %v2829 = vpop.f32.mrf.mxu0
    %v2830 = vadd.f32 %v553, %v2829
    %v2831 = vpop.f32.mrf.mxu0
    %v2832 = vadd.f32 %v553, %v2831
    %2833 = vmatmul.bf16.gmra.mxu0 %v216
    %v2834 = vpop.f32.mrf.mxu0
    %v2835 = vadd.f32 %v553, %v2834
    %v2836 = vpop.f32.mrf.mxu0
    %v2837 = vadd.f32 %v553, %v2836
    %2838 = vmatmul.bf16.gmra.mxu0 %v219
    %v2839 = vpop.f32.mrf.mxu0
    %v2840 = vadd.f32 %v553, %v2839
    %v2841 = vpop.f32.mrf.mxu0
    %v2842 = vadd.f32 %v553, %v2841
    %2843 = vmatmul.bf16.gmra.mxu0 %v222
    %v2844 = vpop.f32.mrf.mxu0
    %v2845 = vadd.f32 %v553, %v2844
    %v2846 = vpop.f32.mrf.mxu0
    %v2847 = vadd.f32 %v553, %v2846
    %2848 = vmatmul.bf16.gmra.mxu0 %v225
    %v2849 = vpop.f32.mrf.mxu0
    %v2850 = vadd.f32 %v553, %v2849
    %v2851 = vpop.f32.mrf.mxu0
    %v2852 = vadd.f32 %v553, %v2851
    %2853 = vmatmul.bf16.gmra.mxu0 %v228
    %v2854 = vpop.f32.mrf.mxu0
    %v2855 = vadd.f32 %v553, %v2854
    %v2856 = vpop.f32.mrf.mxu0
    %v2857 = vadd.f32 %v553, %v2856
    %2858 = vmatmul.bf16.gmra.mxu0 %v231
    %v2859 = vpop.f32.mrf.mxu0
    %v2860 = vadd.f32 %v553, %v2859
    %v2861 = vpop.f32.mrf.mxu0
    %v2862 = vadd.f32 %v553, %v2861
    %2863 = vmatmul.bf16.gmra.mxu0 %v234
    %v2864 = vpop.f32.mrf.mxu0
    %v2865 = vadd.f32 %v553, %v2864
    %v2866 = vpop.f32.mrf.mxu0
    %v2867 = vadd.f32 %v553, %v2866
    %2868 = vmatmul.bf16.gmra.mxu0 %v237
    %v2869 = vpop.f32.mrf.mxu0
    %v2870 = vadd.f32 %v553, %v2869
    %v2871 = vpop.f32.mrf.mxu0
    %v2872 = vadd.f32 %v553, %v2871
    %2873 = vmatmul.bf16.gmra.mxu0 %v240
    %v2874 = vpop.f32.mrf.mxu0
    %v2875 = vadd.f32 %v553, %v2874
    %v2876 = vpop.f32.mrf.mxu0
    %v2877 = vadd.f32 %v553, %v2876
    %2878 = vmatmul.bf16.gmra.mxu0 %v243
    %v2879 = vpop.f32.mrf.mxu0
    %v2880 = vadd.f32 %v553, %v2879
    %v2881 = vpop.f32.mrf.mxu0
    %v2882 = vadd.f32 %v553, %v2881
    %2883 = vmatmul.bf16.gmra.mxu0 %v246
    %v2884 = vpop.f32.mrf.mxu0
    %v2885 = vadd.f32 %v553, %v2884
    %v2886 = vpop.f32.mrf.mxu0
    %v2887 = vadd.f32 %v553, %v2886
    %2888 = vmatmul.bf16.gmra.mxu0 %v249
    %v2889 = vpop.f32.mrf.mxu0
    %v2890 = vadd.f32 %v553, %v2889
    %v2891 = vpop.f32.mrf.mxu0
    %v2892 = vadd.f32 %v553, %v2891
    %2893 = vmatmul.bf16.gmra.mxu0 %v252
    %v2894 = vpop.f32.mrf.mxu0
    %v2895 = vadd.f32 %v553, %v2894
    %v2896 = vpop.f32.mrf.mxu0
    %v2897 = vadd.f32 %v553, %v2896
    %2898 = vmatmul.bf16.gmra.mxu0 %v255
    %v2899 = vpop.f32.mrf.mxu0
    %v2900 = vadd.f32 %v553, %v2899
    %v2901 = vpop.f32.mrf.mxu0
    %v2902 = vadd.f32 %v553, %v2901
    %2903 = vdwg.mxu0
    %2904 = vmatpush.bf16.msra.mxu0 %v1621
    %2905 = vmatpush.bf16.msra.mxu0 %v1609
    %2906 = vmatpush.bf16.msra.mxu0 %v1597
    %2907 = vmatpush.bf16.msra.mxu0 %v1585
    %2908 = vmatpush.bf16.msra.mxu0 %v1573
    %2909 = vmatpush.bf16.msra.mxu0 %v1561
    %2910 = vmatpush.bf16.msra.mxu0 %v1549
    %2911 = vmatpush.bf16.msra.mxu0 %v1537
    %2912 = vmatmul.bf16.gmra.mxu0 %v211
    %v2913 = vpop.f32.mrf.mxu0
    %v2914 = vadd.f32 %v2825, %v2913
    %v2915 = vpop.f32.mrf.mxu0
    %v2916 = vadd.f32 %v2827, %v2915
    %2917 = vmatmul.bf16.gmra.mxu0 %v214
    %v2918 = vpop.f32.mrf.mxu0
    %v2919 = vadd.f32 %v2830, %v2918
    %v2920 = vpop.f32.mrf.mxu0
    %v2921 = vadd.f32 %v2832, %v2920
    %2922 = vmatmul.bf16.gmra.mxu0 %v217
    %v2923 = vpop.f32.mrf.mxu0
    %v2924 = vadd.f32 %v2835, %v2923
    %v2925 = vpop.f32.mrf.mxu0
    %v2926 = vadd.f32 %v2837, %v2925
    %2927 = vmatmul.bf16.gmra.mxu0 %v220
    %v2928 = vpop.f32.mrf.mxu0
    %v2929 = vadd.f32 %v2840, %v2928
    %v2930 = vpop.f32.mrf.mxu0
    %v2931 = vadd.f32 %v2842, %v2930
    %2932 = vmatmul.bf16.gmra.mxu0 %v223
    %v2933 = vpop.f32.mrf.mxu0
    %v2934 = vadd.f32 %v2845, %v2933
    %v2935 = vpop.f32.mrf.mxu0
    %v2936 = vadd.f32 %v2847, %v2935
    %2937 = vmatmul.bf16.gmra.mxu0 %v226
    %v2938 = vpop.f32.mrf.mxu0
    %v2939 = vadd.f32 %v2850, %v2938
    %v2940 = vpop.f32.mrf.mxu0
    %v2941 = vadd.f32 %v2852, %v2940
    %2942 = vmatmul.bf16.gmra.mxu0 %v229
    %v2943 = vpop.f32.mrf.mxu0
    %v2944 = vadd.f32 %v2855, %v2943
    %v2945 = vpop.f32.mrf.mxu0
    %v2946 = vadd.f32 %v2857, %v2945
    %2947 = vmatmul.bf16.gmra.mxu0 %v232
    %v2948 = vpop.f32.mrf.mxu0
    %v2949 = vadd.f32 %v2860, %v2948
    %v2950 = vpop.f32.mrf.mxu0
    %v2951 = vadd.f32 %v2862, %v2950
    %2952 = vmatmul.bf16.gmra.mxu0 %v235
    %v2953 = vpop.f32.mrf.mxu0
    %v2954 = vadd.f32 %v2865, %v2953
    %v2955 = vpop.f32.mrf.mxu0
    %v2956 = vadd.f32 %v2867, %v2955
    %2957 = vmatmul.bf16.gmra.mxu0 %v238
    %v2958 = vpop.f32.mrf.mxu0
    %v2959 = vadd.f32 %v2870, %v2958
    %v2960 = vpop.f32.mrf.mxu0
    %v2961 = vadd.f32 %v2872, %v2960
    %2962 = vmatmul.bf16.gmra.mxu0 %v241
    %v2963 = vpop.f32.mrf.mxu0
    %v2964 = vadd.f32 %v2875, %v2963
    %v2965 = vpop.f32.mrf.mxu0
    %v2966 = vadd.f32 %v2877, %v2965
    %2967 = vmatmul.bf16.gmra.mxu0 %v244
    %v2968 = vpop.f32.mrf.mxu0
    %v2969 = vadd.f32 %v2880, %v2968
    %v2970 = vpop.f32.mrf.mxu0
    %v2971 = vadd.f32 %v2882, %v2970
    %2972 = vmatmul.bf16.gmra.mxu0 %v247
    %v2973 = vpop.f32.mrf.mxu0
    %v2974 = vadd.f32 %v2885, %v2973
    %v2975 = vpop.f32.mrf.mxu0
    %v2976 = vadd.f32 %v2887, %v2975
    %2977 = vmatmul.bf16.gmra.mxu0 %v250
    %v2978 = vpop.f32.mrf.mxu0
    %v2979 = vadd.f32 %v2890, %v2978
    %v2980 = vpop.f32.mrf.mxu0
    %v2981 = vadd.f32 %v2892, %v2980
    %2982 = vmatmul.bf16.gmra.mxu0 %v253
    %v2983 = vpop.f32.mrf.mxu0
    %v2984 = vadd.f32 %v2895, %v2983
    %v2985 = vpop.f32.mrf.mxu0
    %v2986 = vadd.f32 %v2897, %v2985
    %2987 = vmatmul.bf16.gmra.mxu0 %v256
    %v2988 = vpop.f32.mrf.mxu0
    %v2989 = vadd.f32 %v2900, %v2988
    %v2990 = vpop.f32.mrf.mxu0
    %v2991 = vadd.f32 %v2902, %v2990
    %2992 = vdwg.mxu0
    %2993 = vmatpush.bf16.msra.mxu0 %v1717
    %2994 = vmatpush.bf16.msra.mxu0 %v1705
    %2995 = vmatpush.bf16.msra.mxu0 %v1693
    %2996 = vmatpush.bf16.msra.mxu0 %v1681
    %2997 = vmatpush.bf16.msra.mxu0 %v1669
    %2998 = vmatpush.bf16.msra.mxu0 %v1657
    %2999 = vmatpush.bf16.msra.mxu0 %v1645
    %3000 = vmatpush.bf16.msra.mxu0 %v1633
    %3001 = vmatmul.bf16.gmra.mxu0 %v212
    %v3002 = vpop.f32.mrf.mxu0
    %v3003 = vadd.f32 %v2914, %v3002
    %v3004 = vpop.f32.mrf.mxu0
    %v3005 = vadd.f32 %v2916, %v3004
    %3006 = vmatmul.bf16.gmra.mxu0 %v215
    %v3007 = vpop.f32.mrf.mxu0
    %v3008 = vadd.f32 %v2919, %v3007
    %v3009 = vpop.f32.mrf.mxu0
    %v3010 = vadd.f32 %v2921, %v3009
    %3011 = vmatmul.bf16.gmra.mxu0 %v218
    %v3012 = vpop.f32.mrf.mxu0
    %v3013 = vadd.f32 %v2924, %v3012
    %v3014 = vpop.f32.mrf.mxu0
    %v3015 = vadd.f32 %v2926, %v3014
    %3016 = vmatmul.bf16.gmra.mxu0 %v221
    %v3017 = vpop.f32.mrf.mxu0
    %v3018 = vadd.f32 %v2929, %v3017
    %v3019 = vpop.f32.mrf.mxu0
    %v3020 = vadd.f32 %v2931, %v3019
    %3021 = vmatmul.bf16.gmra.mxu0 %v224
    %v3022 = vpop.f32.mrf.mxu0
    %v3023 = vadd.f32 %v2934, %v3022
    %v3024 = vpop.f32.mrf.mxu0
    %v3025 = vadd.f32 %v2936, %v3024
    %3026 = vmatmul.bf16.gmra.mxu0 %v227
    %v3027 = vpop.f32.mrf.mxu0
    %v3028 = vadd.f32 %v2939, %v3027
    %v3029 = vpop.f32.mrf.mxu0
    %v3030 = vadd.f32 %v2941, %v3029
    %3031 = vmatmul.bf16.gmra.mxu0 %v230
    %v3032 = vpop.f32.mrf.mxu0
    %v3033 = vadd.f32 %v2944, %v3032
    %v3034 = vpop.f32.mrf.mxu0
    %v3035 = vadd.f32 %v2946, %v3034
    %3036 = vmatmul.bf16.gmra.mxu0 %v233
    %v3037 = vpop.f32.mrf.mxu0
    %v3038 = vadd.f32 %v2949, %v3037
    %v3039 = vpop.f32.mrf.mxu0
    %v3040 = vadd.f32 %v2951, %v3039
    %3041 = vmatmul.bf16.gmra.mxu0 %v236
    %v3042 = vpop.f32.mrf.mxu0
    %v3043 = vadd.f32 %v2954, %v3042
    %v3044 = vpop.f32.mrf.mxu0
    %v3045 = vadd.f32 %v2956, %v3044
    %3046 = vmatmul.bf16.gmra.mxu0 %v239
    %v3047 = vpop.f32.mrf.mxu0
    %v3048 = vadd.f32 %v2959, %v3047
    %v3049 = vpop.f32.mrf.mxu0
    %v3050 = vadd.f32 %v2961, %v3049
    %3051 = vmatmul.bf16.gmra.mxu0 %v242
    %v3052 = vpop.f32.mrf.mxu0
    %v3053 = vadd.f32 %v2964, %v3052
    %v3054 = vpop.f32.mrf.mxu0
    %v3055 = vadd.f32 %v2966, %v3054
    %3056 = vmatmul.bf16.gmra.mxu0 %v245
    %v3057 = vpop.f32.mrf.mxu0
    %v3058 = vadd.f32 %v2969, %v3057
    %v3059 = vpop.f32.mrf.mxu0
    %v3060 = vadd.f32 %v2971, %v3059
    %3061 = vmatmul.bf16.gmra.mxu0 %v248
    %v3062 = vpop.f32.mrf.mxu0
    %v3063 = vadd.f32 %v2974, %v3062
    %v3064 = vpop.f32.mrf.mxu0
    %v3065 = vadd.f32 %v2976, %v3064
    %3066 = vmatmul.bf16.gmra.mxu0 %v251
    %v3067 = vpop.f32.mrf.mxu0
    %v3068 = vadd.f32 %v2979, %v3067
    %v3069 = vpop.f32.mrf.mxu0
    %v3070 = vadd.f32 %v2981, %v3069
    %3071 = vmatmul.bf16.gmra.mxu0 %v254
    %v3072 = vpop.f32.mrf.mxu0
    %v3073 = vadd.f32 %v2984, %v3072
    %v3074 = vpop.f32.mrf.mxu0
    %v3075 = vadd.f32 %v2986, %v3074
    %3076 = vmatmul.bf16.gmra.mxu0 %v257
    %v3077 = vpop.f32.mrf.mxu0
    %v3078 = vadd.f32 %v2989, %v3077
    %v3079 = vpop.f32.mrf.mxu0
    %v3080 = vadd.f32 %v2991, %v3079
    %3081 = vdwg.mxu0
    %3082 = vmatpush.bf16.msra.mxu0 %v1526
    %3083 = vmatpush.bf16.msra.mxu0 %v1514
    %3084 = vmatpush.bf16.msra.mxu0 %v1502
    %3085 = vmatpush.bf16.msra.mxu0 %v1490
    %3086 = vmatpush.bf16.msra.mxu0 %v1478
    %3087 = vmatpush.bf16.msra.mxu0 %v1466
    %3088 = vmatpush.bf16.msra.mxu0 %v1454
    %3089 = vmatpush.bf16.msra.mxu0 %v1442
    %3090 = vmatmul.bf16.gmra.mxu0 %v210
    %v3091 = vpop.f32.mrf.mxu0
    %v3092 = vadd.f32 %v554, %v3091
    %v3093 = vpop.f32.mrf.mxu0
    %v3094 = vadd.f32 %v554, %v3093
    %3095 = vmatmul.bf16.gmra.mxu0 %v213
    %v3096 = vpop.f32.mrf.mxu0
    %v3097 = vadd.f32 %v554, %v3096
    %v3098 = vpop.f32.mrf.mxu0
    %v3099 = vadd.f32 %v554, %v3098
    %3100 = vmatmul.bf16.gmra.mxu0 %v216
    %v3101 = vpop.f32.mrf.mxu0
    %v3102 = vadd.f32 %v554, %v3101
    %v3103 = vpop.f32.mrf.mxu0
    %v3104 = vadd.f32 %v554, %v3103
    %3105 = vmatmul.bf16.gmra.mxu0 %v219
    %v3106 = vpop.f32.mrf.mxu0
    %v3107 = vadd.f32 %v554, %v3106
    %v3108 = vpop.f32.mrf.mxu0
    %v3109 = vadd.f32 %v554, %v3108
    %3110 = vmatmul.bf16.gmra.mxu0 %v222
    %v3111 = vpop.f32.mrf.mxu0
    %v3112 = vadd.f32 %v554, %v3111
    %v3113 = vpop.f32.mrf.mxu0
    %v3114 = vadd.f32 %v554, %v3113
    %3115 = vmatmul.bf16.gmra.mxu0 %v225
    %v3116 = vpop.f32.mrf.mxu0
    %v3117 = vadd.f32 %v554, %v3116
    %v3118 = vpop.f32.mrf.mxu0
    %v3119 = vadd.f32 %v554, %v3118
    %3120 = vmatmul.bf16.gmra.mxu0 %v228
    %v3121 = vpop.f32.mrf.mxu0
    %v3122 = vadd.f32 %v554, %v3121
    %v3123 = vpop.f32.mrf.mxu0
    %v3124 = vadd.f32 %v554, %v3123
    %3125 = vmatmul.bf16.gmra.mxu0 %v231
    %v3126 = vpop.f32.mrf.mxu0
    %v3127 = vadd.f32 %v554, %v3126
    %v3128 = vpop.f32.mrf.mxu0
    %v3129 = vadd.f32 %v554, %v3128
    %3130 = vmatmul.bf16.gmra.mxu0 %v234
    %v3131 = vpop.f32.mrf.mxu0
    %v3132 = vadd.f32 %v554, %v3131
    %v3133 = vpop.f32.mrf.mxu0
    %v3134 = vadd.f32 %v554, %v3133
    %3135 = vmatmul.bf16.gmra.mxu0 %v237
    %v3136 = vpop.f32.mrf.mxu0
    %v3137 = vadd.f32 %v554, %v3136
    %v3138 = vpop.f32.mrf.mxu0
    %v3139 = vadd.f32 %v554, %v3138
    %3140 = vmatmul.bf16.gmra.mxu0 %v240
    %v3141 = vpop.f32.mrf.mxu0
    %v3142 = vadd.f32 %v554, %v3141
    %v3143 = vpop.f32.mrf.mxu0
    %v3144 = vadd.f32 %v554, %v3143
    %3145 = vmatmul.bf16.gmra.mxu0 %v243
    %v3146 = vpop.f32.mrf.mxu0
    %v3147 = vadd.f32 %v554, %v3146
    %v3148 = vpop.f32.mrf.mxu0
    %v3149 = vadd.f32 %v554, %v3148
    %3150 = vmatmul.bf16.gmra.mxu0 %v246
    %v3151 = vpop.f32.mrf.mxu0
    %v3152 = vadd.f32 %v554, %v3151
    %v3153 = vpop.f32.mrf.mxu0
    %v3154 = vadd.f32 %v554, %v3153
    %3155 = vmatmul.bf16.gmra.mxu0 %v249
    %v3156 = vpop.f32.mrf.mxu0
    %v3157 = vadd.f32 %v554, %v3156
    %v3158 = vpop.f32.mrf.mxu0
    %v3159 = vadd.f32 %v554, %v3158
    %3160 = vmatmul.bf16.gmra.mxu0 %v252
    %v3161 = vpop.f32.mrf.mxu0
    %v3162 = vadd.f32 %v554, %v3161
    %v3163 = vpop.f32.mrf.mxu0
    %v3164 = vadd.f32 %v554, %v3163
    %3165 = vmatmul.bf16.gmra.mxu0 %v255
    %v3166 = vpop.f32.mrf.mxu0
    %v3167 = vadd.f32 %v554, %v3166
    %v3168 = vpop.f32.mrf.mxu0
    %v3169 = vadd.f32 %v554, %v3168
    %3170 = vdwg.mxu0
    %3171 = vmatpush.bf16.msra.mxu0 %v1622
    %3172 = vmatpush.bf16.msra.mxu0 %v1610
    %3173 = vmatpush.bf16.msra.mxu0 %v1598
    %3174 = vmatpush.bf16.msra.mxu0 %v1586
    %3175 = vmatpush.bf16.msra.mxu0 %v1574
    %3176 = vmatpush.bf16.msra.mxu0 %v1562
    %3177 = vmatpush.bf16.msra.mxu0 %v1550
    %3178 = vmatpush.bf16.msra.mxu0 %v1538
    %3179 = vmatmul.bf16.gmra.mxu0 %v211
    %v3180 = vpop.f32.mrf.mxu0
    %v3181 = vadd.f32 %v3092, %v3180
    %v3182 = vpop.f32.mrf.mxu0
    %v3183 = vadd.f32 %v3094, %v3182
    %3184 = vmatmul.bf16.gmra.mxu0 %v214
    %v3185 = vpop.f32.mrf.mxu0
    %v3186 = vadd.f32 %v3097, %v3185
    %v3187 = vpop.f32.mrf.mxu0
    %v3188 = vadd.f32 %v3099, %v3187
    %3189 = vmatmul.bf16.gmra.mxu0 %v217
    %v3190 = vpop.f32.mrf.mxu0
    %v3191 = vadd.f32 %v3102, %v3190
    %v3192 = vpop.f32.mrf.mxu0
    %v3193 = vadd.f32 %v3104, %v3192
    %3194 = vmatmul.bf16.gmra.mxu0 %v220
    %v3195 = vpop.f32.mrf.mxu0
    %v3196 = vadd.f32 %v3107, %v3195
    %v3197 = vpop.f32.mrf.mxu0
    %v3198 = vadd.f32 %v3109, %v3197
    %3199 = vmatmul.bf16.gmra.mxu0 %v223
    %v3200 = vpop.f32.mrf.mxu0
    %v3201 = vadd.f32 %v3112, %v3200
    %v3202 = vpop.f32.mrf.mxu0
    %v3203 = vadd.f32 %v3114, %v3202
    %3204 = vmatmul.bf16.gmra.mxu0 %v226
    %v3205 = vpop.f32.mrf.mxu0
    %v3206 = vadd.f32 %v3117, %v3205
    %v3207 = vpop.f32.mrf.mxu0
    %v3208 = vadd.f32 %v3119, %v3207
    %3209 = vmatmul.bf16.gmra.mxu0 %v229
    %v3210 = vpop.f32.mrf.mxu0
    %v3211 = vadd.f32 %v3122, %v3210
    %v3212 = vpop.f32.mrf.mxu0
    %v3213 = vadd.f32 %v3124, %v3212
    %3214 = vmatmul.bf16.gmra.mxu0 %v232
    %v3215 = vpop.f32.mrf.mxu0
    %v3216 = vadd.f32 %v3127, %v3215
    %v3217 = vpop.f32.mrf.mxu0
    %v3218 = vadd.f32 %v3129, %v3217
    %3219 = vmatmul.bf16.gmra.mxu0 %v235
    %v3220 = vpop.f32.mrf.mxu0
    %v3221 = vadd.f32 %v3132, %v3220
    %v3222 = vpop.f32.mrf.mxu0
    %v3223 = vadd.f32 %v3134, %v3222
    %3224 = vmatmul.bf16.gmra.mxu0 %v238
    %v3225 = vpop.f32.mrf.mxu0
    %v3226 = vadd.f32 %v3137, %v3225
    %v3227 = vpop.f32.mrf.mxu0
    %v3228 = vadd.f32 %v3139, %v3227
    %3229 = vmatmul.bf16.gmra.mxu0 %v241
    %v3230 = vpop.f32.mrf.mxu0
    %v3231 = vadd.f32 %v3142, %v3230
    %v3232 = vpop.f32.mrf.mxu0
    %v3233 = vadd.f32 %v3144, %v3232
    %3234 = vmatmul.bf16.gmra.mxu0 %v244
    %v3235 = vpop.f32.mrf.mxu0
    %v3236 = vadd.f32 %v3147, %v3235
    %v3237 = vpop.f32.mrf.mxu0
    %v3238 = vadd.f32 %v3149, %v3237
    %3239 = vmatmul.bf16.gmra.mxu0 %v247
    %v3240 = vpop.f32.mrf.mxu0
    %v3241 = vadd.f32 %v3152, %v3240
    %v3242 = vpop.f32.mrf.mxu0
    %v3243 = vadd.f32 %v3154, %v3242
    %3244 = vmatmul.bf16.gmra.mxu0 %v250
    %v3245 = vpop.f32.mrf.mxu0
    %v3246 = vadd.f32 %v3157, %v3245
    %v3247 = vpop.f32.mrf.mxu0
    %v3248 = vadd.f32 %v3159, %v3247
    %3249 = vmatmul.bf16.gmra.mxu0 %v253
    %v3250 = vpop.f32.mrf.mxu0
    %v3251 = vadd.f32 %v3162, %v3250
    %v3252 = vpop.f32.mrf.mxu0
    %v3253 = vadd.f32 %v3164, %v3252
    %3254 = vmatmul.bf16.gmra.mxu0 %v256
    %v3255 = vpop.f32.mrf.mxu0
    %v3256 = vadd.f32 %v3167, %v3255
    %v3257 = vpop.f32.mrf.mxu0
    %v3258 = vadd.f32 %v3169, %v3257
    %3259 = vdwg.mxu0
    %3260 = vmatpush.bf16.msra.mxu0 %v1718
    %3261 = vmatpush.bf16.msra.mxu0 %v1706
    %3262 = vmatpush.bf16.msra.mxu0 %v1694
    %3263 = vmatpush.bf16.msra.mxu0 %v1682
    %3264 = vmatpush.bf16.msra.mxu0 %v1670
    %3265 = vmatpush.bf16.msra.mxu0 %v1658
    %3266 = vmatpush.bf16.msra.mxu0 %v1646
    %3267 = vmatpush.bf16.msra.mxu0 %v1634
    %3268 = vmatmul.bf16.gmra.mxu0 %v212
    %v3269 = vpop.f32.mrf.mxu0
    %v3270 = vadd.f32 %v3181, %v3269
    %v3271 = vpop.f32.mrf.mxu0
    %v3272 = vadd.f32 %v3183, %v3271
    %3273 = vmatmul.bf16.gmra.mxu0 %v215
    %v3274 = vpop.f32.mrf.mxu0
    %v3275 = vadd.f32 %v3186, %v3274
    %v3276 = vpop.f32.mrf.mxu0
    %v3277 = vadd.f32 %v3188, %v3276
    %3278 = vmatmul.bf16.gmra.mxu0 %v218
    %v3279 = vpop.f32.mrf.mxu0
    %v3280 = vadd.f32 %v3191, %v3279
    %v3281 = vpop.f32.mrf.mxu0
    %v3282 = vadd.f32 %v3193, %v3281
    %3283 = vmatmul.bf16.gmra.mxu0 %v221
    %v3284 = vpop.f32.mrf.mxu0
    %v3285 = vadd.f32 %v3196, %v3284
    %v3286 = vpop.f32.mrf.mxu0
    %v3287 = vadd.f32 %v3198, %v3286
    %3288 = vmatmul.bf16.gmra.mxu0 %v224
    %v3289 = vpop.f32.mrf.mxu0
    %v3290 = vadd.f32 %v3201, %v3289
    %v3291 = vpop.f32.mrf.mxu0
    %v3292 = vadd.f32 %v3203, %v3291
    %3293 = vmatmul.bf16.gmra.mxu0 %v227
    %v3294 = vpop.f32.mrf.mxu0
    %v3295 = vadd.f32 %v3206, %v3294
    %v3296 = vpop.f32.mrf.mxu0
    %v3297 = vadd.f32 %v3208, %v3296
    %3298 = vmatmul.bf16.gmra.mxu0 %v230
    %v3299 = vpop.f32.mrf.mxu0
    %v3300 = vadd.f32 %v3211, %v3299
    %v3301 = vpop.f32.mrf.mxu0
    %v3302 = vadd.f32 %v3213, %v3301
    %3303 = vmatmul.bf16.gmra.mxu0 %v233
    %v3304 = vpop.f32.mrf.mxu0
    %v3305 = vadd.f32 %v3216, %v3304
    %v3306 = vpop.f32.mrf.mxu0
    %v3307 = vadd.f32 %v3218, %v3306
    %3308 = vmatmul.bf16.gmra.mxu0 %v236
    %v3309 = vpop.f32.mrf.mxu0
    %v3310 = vadd.f32 %v3221, %v3309
    %v3311 = vpop.f32.mrf.mxu0
    %v3312 = vadd.f32 %v3223, %v3311
    %3313 = vmatmul.bf16.gmra.mxu0 %v239
    %v3314 = vpop.f32.mrf.mxu0
    %v3315 = vadd.f32 %v3226, %v3314
    %v3316 = vpop.f32.mrf.mxu0
    %v3317 = vadd.f32 %v3228, %v3316
    %3318 = vmatmul.bf16.gmra.mxu0 %v242
    %v3319 = vpop.f32.mrf.mxu0
    %v3320 = vadd.f32 %v3231, %v3319
    %v3321 = vpop.f32.mrf.mxu0
    %v3322 = vadd.f32 %v3233, %v3321
    %3323 = vmatmul.bf16.gmra.mxu0 %v245
    %v3324 = vpop.f32.mrf.mxu0
    %v3325 = vadd.f32 %v3236, %v3324
    %v3326 = vpop.f32.mrf.mxu0
    %v3327 = vadd.f32 %v3238, %v3326
    %3328 = vmatmul.bf16.gmra.mxu0 %v248
    %v3329 = vpop.f32.mrf.mxu0
    %v3330 = vadd.f32 %v3241, %v3329
    %v3331 = vpop.f32.mrf.mxu0
    %v3332 = vadd.f32 %v3243, %v3331
    %3333 = vmatmul.bf16.gmra.mxu0 %v251
    %v3334 = vpop.f32.mrf.mxu0
    %v3335 = vadd.f32 %v3246, %v3334
    %v3336 = vpop.f32.mrf.mxu0
    %v3337 = vadd.f32 %v3248, %v3336
    %3338 = vmatmul.bf16.gmra.mxu0 %v254
    %v3339 = vpop.f32.mrf.mxu0
    %v3340 = vadd.f32 %v3251, %v3339
    %v3341 = vpop.f32.mrf.mxu0
    %v3342 = vadd.f32 %v3253, %v3341
    %3343 = vmatmul.bf16.gmra.mxu0 %v257
    %v3344 = vpop.f32.mrf.mxu0
    %v3345 = vadd.f32 %v3256, %v3344
    %v3346 = vpop.f32.mrf.mxu0
    %v3347 = vadd.f32 %v3258, %v3346
    %3348 = vdwg.mxu0
    %3349 = vmatpush.bf16.msra.mxu0 %v1527
    %3350 = vmatpush.bf16.msra.mxu0 %v1515
    %3351 = vmatpush.bf16.msra.mxu0 %v1503
    %3352 = vmatpush.bf16.msra.mxu0 %v1491
    %3353 = vmatpush.bf16.msra.mxu0 %v1479
    %3354 = vmatpush.bf16.msra.mxu0 %v1467
    %3355 = vmatpush.bf16.msra.mxu0 %v1455
    %3356 = vmatpush.bf16.msra.mxu0 %v1443
    %3357 = vmatmul.bf16.gmra.mxu0 %v210
    %v3358 = vpop.f32.mrf.mxu0
    %v3359 = vadd.f32 %v555, %v3358
    %v3360 = vpop.f32.mrf.mxu0
    %v3361 = vadd.f32 %v555, %v3360
    %3362 = vmatmul.bf16.gmra.mxu0 %v213
    %v3363 = vpop.f32.mrf.mxu0
    %v3364 = vadd.f32 %v555, %v3363
    %v3365 = vpop.f32.mrf.mxu0
    %v3366 = vadd.f32 %v555, %v3365
    %3367 = vmatmul.bf16.gmra.mxu0 %v216
    %v3368 = vpop.f32.mrf.mxu0
    %v3369 = vadd.f32 %v555, %v3368
    %v3370 = vpop.f32.mrf.mxu0
    %v3371 = vadd.f32 %v555, %v3370
    %3372 = vmatmul.bf16.gmra.mxu0 %v219
    %v3373 = vpop.f32.mrf.mxu0
    %v3374 = vadd.f32 %v555, %v3373
    %v3375 = vpop.f32.mrf.mxu0
    %v3376 = vadd.f32 %v555, %v3375
    %3377 = vmatmul.bf16.gmra.mxu0 %v222
    %v3378 = vpop.f32.mrf.mxu0
    %v3379 = vadd.f32 %v555, %v3378
    %v3380 = vpop.f32.mrf.mxu0
    %v3381 = vadd.f32 %v555, %v3380
    %3382 = vmatmul.bf16.gmra.mxu0 %v225
    %v3383 = vpop.f32.mrf.mxu0
    %v3384 = vadd.f32 %v555, %v3383
    %v3385 = vpop.f32.mrf.mxu0
    %v3386 = vadd.f32 %v555, %v3385
    %3387 = vmatmul.bf16.gmra.mxu0 %v228
    %v3388 = vpop.f32.mrf.mxu0
    %v3389 = vadd.f32 %v555, %v3388
    %v3390 = vpop.f32.mrf.mxu0
    %v3391 = vadd.f32 %v555, %v3390
    %3392 = vmatmul.bf16.gmra.mxu0 %v231
    %v3393 = vpop.f32.mrf.mxu0
    %v3394 = vadd.f32 %v555, %v3393
    %v3395 = vpop.f32.mrf.mxu0
    %v3396 = vadd.f32 %v555, %v3395
    %3397 = vmatmul.bf16.gmra.mxu0 %v234
    %v3398 = vpop.f32.mrf.mxu0
    %v3399 = vadd.f32 %v555, %v3398
    %v3400 = vpop.f32.mrf.mxu0
    %v3401 = vadd.f32 %v555, %v3400
    %3402 = vmatmul.bf16.gmra.mxu0 %v237
    %v3403 = vpop.f32.mrf.mxu0
    %v3404 = vadd.f32 %v555, %v3403
    %v3405 = vpop.f32.mrf.mxu0
    %v3406 = vadd.f32 %v555, %v3405
    %3407 = vmatmul.bf16.gmra.mxu0 %v240
    %v3408 = vpop.f32.mrf.mxu0
    %v3409 = vadd.f32 %v555, %v3408
    %v3410 = vpop.f32.mrf.mxu0
    %v3411 = vadd.f32 %v555, %v3410
    %3412 = vmatmul.bf16.gmra.mxu0 %v243
    %v3413 = vpop.f32.mrf.mxu0
    %v3414 = vadd.f32 %v555, %v3413
    %v3415 = vpop.f32.mrf.mxu0
    %v3416 = vadd.f32 %v555, %v3415
    %3417 = vmatmul.bf16.gmra.mxu0 %v246
    %v3418 = vpop.f32.mrf.mxu0
    %v3419 = vadd.f32 %v555, %v3418
    %v3420 = vpop.f32.mrf.mxu0
    %v3421 = vadd.f32 %v555, %v3420
    %3422 = vmatmul.bf16.gmra.mxu0 %v249
    %v3423 = vpop.f32.mrf.mxu0
    %v3424 = vadd.f32 %v555, %v3423
    %v3425 = vpop.f32.mrf.mxu0
    %v3426 = vadd.f32 %v555, %v3425
    %3427 = vmatmul.bf16.gmra.mxu0 %v252
    %v3428 = vpop.f32.mrf.mxu0
    %v3429 = vadd.f32 %v555, %v3428
    %v3430 = vpop.f32.mrf.mxu0
    %v3431 = vadd.f32 %v555, %v3430
    %3432 = vmatmul.bf16.gmra.mxu0 %v255
    %v3433 = vpop.f32.mrf.mxu0
    %v3434 = vadd.f32 %v555, %v3433
    %v3435 = vpop.f32.mrf.mxu0
    %v3436 = vadd.f32 %v555, %v3435
    %3437 = vdwg.mxu0
    %3438 = vmatpush.bf16.msra.mxu0 %v1623
    %3439 = vmatpush.bf16.msra.mxu0 %v1611
    %3440 = vmatpush.bf16.msra.mxu0 %v1599
    %3441 = vmatpush.bf16.msra.mxu0 %v1587
    %3442 = vmatpush.bf16.msra.mxu0 %v1575
    %3443 = vmatpush.bf16.msra.mxu0 %v1563
    %3444 = vmatpush.bf16.msra.mxu0 %v1551
    %3445 = vmatpush.bf16.msra.mxu0 %v1539
    %3446 = vmatmul.bf16.gmra.mxu0 %v211
    %v3447 = vpop.f32.mrf.mxu0
    %v3448 = vadd.f32 %v3359, %v3447
    %v3449 = vpop.f32.mrf.mxu0
    %v3450 = vadd.f32 %v3361, %v3449
    %3451 = vmatmul.bf16.gmra.mxu0 %v214
    %v3452 = vpop.f32.mrf.mxu0
    %v3453 = vadd.f32 %v3364, %v3452
    %v3454 = vpop.f32.mrf.mxu0
    %v3455 = vadd.f32 %v3366, %v3454
    %3456 = vmatmul.bf16.gmra.mxu0 %v217
    %v3457 = vpop.f32.mrf.mxu0
    %v3458 = vadd.f32 %v3369, %v3457
    %v3459 = vpop.f32.mrf.mxu0
    %v3460 = vadd.f32 %v3371, %v3459
    %3461 = vmatmul.bf16.gmra.mxu0 %v220
    %v3462 = vpop.f32.mrf.mxu0
    %v3463 = vadd.f32 %v3374, %v3462
    %v3464 = vpop.f32.mrf.mxu0
    %v3465 = vadd.f32 %v3376, %v3464
    %3466 = vmatmul.bf16.gmra.mxu0 %v223
    %v3467 = vpop.f32.mrf.mxu0
    %v3468 = vadd.f32 %v3379, %v3467
    %v3469 = vpop.f32.mrf.mxu0
    %v3470 = vadd.f32 %v3381, %v3469
    %3471 = vmatmul.bf16.gmra.mxu0 %v226
    %v3472 = vpop.f32.mrf.mxu0
    %v3473 = vadd.f32 %v3384, %v3472
    %v3474 = vpop.f32.mrf.mxu0
    %v3475 = vadd.f32 %v3386, %v3474
    %3476 = vmatmul.bf16.gmra.mxu0 %v229
    %v3477 = vpop.f32.mrf.mxu0
    %v3478 = vadd.f32 %v3389, %v3477
    %v3479 = vpop.f32.mrf.mxu0
    %v3480 = vadd.f32 %v3391, %v3479
    %3481 = vmatmul.bf16.gmra.mxu0 %v232
    %v3482 = vpop.f32.mrf.mxu0
    %v3483 = vadd.f32 %v3394, %v3482
    %v3484 = vpop.f32.mrf.mxu0
    %v3485 = vadd.f32 %v3396, %v3484
    %3486 = vmatmul.bf16.gmra.mxu0 %v235
    %v3487 = vpop.f32.mrf.mxu0
    %v3488 = vadd.f32 %v3399, %v3487
    %v3489 = vpop.f32.mrf.mxu0
    %v3490 = vadd.f32 %v3401, %v3489
    %3491 = vmatmul.bf16.gmra.mxu0 %v238
    %v3492 = vpop.f32.mrf.mxu0
    %v3493 = vadd.f32 %v3404, %v3492
    %v3494 = vpop.f32.mrf.mxu0
    %v3495 = vadd.f32 %v3406, %v3494
    %3496 = vmatmul.bf16.gmra.mxu0 %v241
    %v3497 = vpop.f32.mrf.mxu0
    %v3498 = vadd.f32 %v3409, %v3497
    %v3499 = vpop.f32.mrf.mxu0
    %v3500 = vadd.f32 %v3411, %v3499
    %3501 = vmatmul.bf16.gmra.mxu0 %v244
    %v3502 = vpop.f32.mrf.mxu0
    %v3503 = vadd.f32 %v3414, %v3502
    %v3504 = vpop.f32.mrf.mxu0
    %v3505 = vadd.f32 %v3416, %v3504
    %3506 = vmatmul.bf16.gmra.mxu0 %v247
    %v3507 = vpop.f32.mrf.mxu0
    %v3508 = vadd.f32 %v3419, %v3507
    %v3509 = vpop.f32.mrf.mxu0
    %v3510 = vadd.f32 %v3421, %v3509
    %3511 = vmatmul.bf16.gmra.mxu0 %v250
    %v3512 = vpop.f32.mrf.mxu0
    %v3513 = vadd.f32 %v3424, %v3512
    %v3514 = vpop.f32.mrf.mxu0
    %v3515 = vadd.f32 %v3426, %v3514
    %3516 = vmatmul.bf16.gmra.mxu0 %v253
    %v3517 = vpop.f32.mrf.mxu0
    %v3518 = vadd.f32 %v3429, %v3517
    %v3519 = vpop.f32.mrf.mxu0
    %v3520 = vadd.f32 %v3431, %v3519
    %3521 = vmatmul.bf16.gmra.mxu0 %v256
    %v3522 = vpop.f32.mrf.mxu0
    %v3523 = vadd.f32 %v3434, %v3522
    %v3524 = vpop.f32.mrf.mxu0
    %v3525 = vadd.f32 %v3436, %v3524
    %3526 = vdwg.mxu0
    %3527 = vmatpush.bf16.msra.mxu0 %v1719
    %3528 = vmatpush.bf16.msra.mxu0 %v1707
    %3529 = vmatpush.bf16.msra.mxu0 %v1695
    %3530 = vmatpush.bf16.msra.mxu0 %v1683
    %3531 = vmatpush.bf16.msra.mxu0 %v1671
    %3532 = vmatpush.bf16.msra.mxu0 %v1659
    %3533 = vmatpush.bf16.msra.mxu0 %v1647
    %3534 = vmatpush.bf16.msra.mxu0 %v1635
    %3535 = vmatmul.bf16.gmra.mxu0 %v212
    %v3536 = vpop.f32.mrf.mxu0
    %v3537 = vadd.f32 %v3448, %v3536
    %v3538 = vpop.f32.mrf.mxu0
    %v3539 = vadd.f32 %v3450, %v3538
    %3540 = vmatmul.bf16.gmra.mxu0 %v215
    %v3541 = vpop.f32.mrf.mxu0
    %v3542 = vadd.f32 %v3453, %v3541
    %v3543 = vpop.f32.mrf.mxu0
    %v3544 = vadd.f32 %v3455, %v3543
    %3545 = vmatmul.bf16.gmra.mxu0 %v218
    %v3546 = vpop.f32.mrf.mxu0
    %v3547 = vadd.f32 %v3458, %v3546
    %v3548 = vpop.f32.mrf.mxu0
    %v3549 = vadd.f32 %v3460, %v3548
    %3550 = vmatmul.bf16.gmra.mxu0 %v221
    %v3551 = vpop.f32.mrf.mxu0
    %v3552 = vadd.f32 %v3463, %v3551
    %v3553 = vpop.f32.mrf.mxu0
    %v3554 = vadd.f32 %v3465, %v3553
    %3555 = vmatmul.bf16.gmra.mxu0 %v224
    %v3556 = vpop.f32.mrf.mxu0
    %v3557 = vadd.f32 %v3468, %v3556
    %v3558 = vpop.f32.mrf.mxu0
    %v3559 = vadd.f32 %v3470, %v3558
    %3560 = vmatmul.bf16.gmra.mxu0 %v227
    %v3561 = vpop.f32.mrf.mxu0
    %v3562 = vadd.f32 %v3473, %v3561
    %v3563 = vpop.f32.mrf.mxu0
    %v3564 = vadd.f32 %v3475, %v3563
    %3565 = vmatmul.bf16.gmra.mxu0 %v230
    %v3566 = vpop.f32.mrf.mxu0
    %v3567 = vadd.f32 %v3478, %v3566
    %v3568 = vpop.f32.mrf.mxu0
    %v3569 = vadd.f32 %v3480, %v3568
    %3570 = vmatmul.bf16.gmra.mxu0 %v233
    %v3571 = vpop.f32.mrf.mxu0
    %v3572 = vadd.f32 %v3483, %v3571
    %v3573 = vpop.f32.mrf.mxu0
    %v3574 = vadd.f32 %v3485, %v3573
    %3575 = vmatmul.bf16.gmra.mxu0 %v236
    %v3576 = vpop.f32.mrf.mxu0
    %v3577 = vadd.f32 %v3488, %v3576
    %v3578 = vpop.f32.mrf.mxu0
    %v3579 = vadd.f32 %v3490, %v3578
    %3580 = vmatmul.bf16.gmra.mxu0 %v239
    %v3581 = vpop.f32.mrf.mxu0
    %v3582 = vadd.f32 %v3493, %v3581
    %v3583 = vpop.f32.mrf.mxu0
    %v3584 = vadd.f32 %v3495, %v3583
    %3585 = vmatmul.bf16.gmra.mxu0 %v242
    %v3586 = vpop.f32.mrf.mxu0
    %v3587 = vadd.f32 %v3498, %v3586
    %v3588 = vpop.f32.mrf.mxu0
    %v3589 = vadd.f32 %v3500, %v3588
    %3590 = vmatmul.bf16.gmra.mxu0 %v245
    %v3591 = vpop.f32.mrf.mxu0
    %v3592 = vadd.f32 %v3503, %v3591
    %v3593 = vpop.f32.mrf.mxu0
    %v3594 = vadd.f32 %v3505, %v3593
    %3595 = vmatmul.bf16.gmra.mxu0 %v248
    %v3596 = vpop.f32.mrf.mxu0
    %v3597 = vadd.f32 %v3508, %v3596
    %v3598 = vpop.f32.mrf.mxu0
    %v3599 = vadd.f32 %v3510, %v3598
    %3600 = vmatmul.bf16.gmra.mxu0 %v251
    %v3601 = vpop.f32.mrf.mxu0
    %v3602 = vadd.f32 %v3513, %v3601
    %v3603 = vpop.f32.mrf.mxu0
    %v3604 = vadd.f32 %v3515, %v3603
    %3605 = vmatmul.bf16.gmra.mxu0 %v254
    %v3606 = vpop.f32.mrf.mxu0
    %v3607 = vadd.f32 %v3518, %v3606
    %v3608 = vpop.f32.mrf.mxu0
    %v3609 = vadd.f32 %v3520, %v3608
    %3610 = vmatmul.bf16.gmra.mxu0 %v257
    %v3611 = vpop.f32.mrf.mxu0
    %v3612 = vadd.f32 %v3523, %v3611
    %v3613 = vpop.f32.mrf.mxu0
    %v3614 = vadd.f32 %v3525, %v3613
    %3615 = vdwg.mxu0
    %3616 = vmatpush.bf16.msra.mxu0 %v1528
    %3617 = vmatpush.bf16.msra.mxu0 %v1516
    %3618 = vmatpush.bf16.msra.mxu0 %v1504
    %3619 = vmatpush.bf16.msra.mxu0 %v1492
    %3620 = vmatpush.bf16.msra.mxu0 %v1480
    %3621 = vmatpush.bf16.msra.mxu0 %v1468
    %3622 = vmatpush.bf16.msra.mxu0 %v1456
    %3623 = vmatpush.bf16.msra.mxu0 %v1444
    %3624 = vmatmul.bf16.gmra.mxu0 %v210
    %v3625 = vpop.f32.mrf.mxu0
    %v3626 = vadd.f32 %v556, %v3625
    %v3627 = vpop.f32.mrf.mxu0
    %v3628 = vadd.f32 %v556, %v3627
    %3629 = vmatmul.bf16.gmra.mxu0 %v213
    %v3630 = vpop.f32.mrf.mxu0
    %v3631 = vadd.f32 %v556, %v3630
    %v3632 = vpop.f32.mrf.mxu0
    %v3633 = vadd.f32 %v556, %v3632
    %3634 = vmatmul.bf16.gmra.mxu0 %v216
    %v3635 = vpop.f32.mrf.mxu0
    %v3636 = vadd.f32 %v556, %v3635
    %v3637 = vpop.f32.mrf.mxu0
    %v3638 = vadd.f32 %v556, %v3637
    %3639 = vmatmul.bf16.gmra.mxu0 %v219
    %v3640 = vpop.f32.mrf.mxu0
    %v3641 = vadd.f32 %v556, %v3640
    %v3642 = vpop.f32.mrf.mxu0
    %v3643 = vadd.f32 %v556, %v3642
    %3644 = vmatmul.bf16.gmra.mxu0 %v222
    %v3645 = vpop.f32.mrf.mxu0
    %v3646 = vadd.f32 %v556, %v3645
    %v3647 = vpop.f32.mrf.mxu0
    %v3648 = vadd.f32 %v556, %v3647
    %3649 = vmatmul.bf16.gmra.mxu0 %v225
    %v3650 = vpop.f32.mrf.mxu0
    %v3651 = vadd.f32 %v556, %v3650
    %v3652 = vpop.f32.mrf.mxu0
    %v3653 = vadd.f32 %v556, %v3652
    %3654 = vmatmul.bf16.gmra.mxu0 %v228
    %v3655 = vpop.f32.mrf.mxu0
    %v3656 = vadd.f32 %v556, %v3655
    %v3657 = vpop.f32.mrf.mxu0
    %v3658 = vadd.f32 %v556, %v3657
    %3659 = vmatmul.bf16.gmra.mxu0 %v231
    %v3660 = vpop.f32.mrf.mxu0
    %v3661 = vadd.f32 %v556, %v3660
    %v3662 = vpop.f32.mrf.mxu0
    %v3663 = vadd.f32 %v556, %v3662
    %3664 = vmatmul.bf16.gmra.mxu0 %v234
    %v3665 = vpop.f32.mrf.mxu0
    %v3666 = vadd.f32 %v556, %v3665
    %v3667 = vpop.f32.mrf.mxu0
    %v3668 = vadd.f32 %v556, %v3667
    %3669 = vmatmul.bf16.gmra.mxu0 %v237
    %v3670 = vpop.f32.mrf.mxu0
    %v3671 = vadd.f32 %v556, %v3670
    %v3672 = vpop.f32.mrf.mxu0
    %v3673 = vadd.f32 %v556, %v3672
    %3674 = vmatmul.bf16.gmra.mxu0 %v240
    %v3675 = vpop.f32.mrf.mxu0
    %v3676 = vadd.f32 %v556, %v3675
    %v3677 = vpop.f32.mrf.mxu0
    %v3678 = vadd.f32 %v556, %v3677
    %3679 = vmatmul.bf16.gmra.mxu0 %v243
    %v3680 = vpop.f32.mrf.mxu0
    %v3681 = vadd.f32 %v556, %v3680
    %v3682 = vpop.f32.mrf.mxu0
    %v3683 = vadd.f32 %v556, %v3682
    %3684 = vmatmul.bf16.gmra.mxu0 %v246
    %v3685 = vpop.f32.mrf.mxu0
    %v3686 = vadd.f32 %v556, %v3685
    %v3687 = vpop.f32.mrf.mxu0
    %v3688 = vadd.f32 %v556, %v3687
    %3689 = vmatmul.bf16.gmra.mxu0 %v249
    %v3690 = vpop.f32.mrf.mxu0
    %v3691 = vadd.f32 %v556, %v3690
    %v3692 = vpop.f32.mrf.mxu0
    %v3693 = vadd.f32 %v556, %v3692
    %3694 = vmatmul.bf16.gmra.mxu0 %v252
    %v3695 = vpop.f32.mrf.mxu0
    %v3696 = vadd.f32 %v556, %v3695
    %v3697 = vpop.f32.mrf.mxu0
    %v3698 = vadd.f32 %v556, %v3697
    %3699 = vmatmul.bf16.gmra.mxu0 %v255
    %v3700 = vpop.f32.mrf.mxu0
    %v3701 = vadd.f32 %v556, %v3700
    %v3702 = vpop.f32.mrf.mxu0
    %v3703 = vadd.f32 %v556, %v3702
    %3704 = vdwg.mxu0
    %3705 = vmatpush.bf16.msra.mxu0 %v1624
    %3706 = vmatpush.bf16.msra.mxu0 %v1612
    %3707 = vmatpush.bf16.msra.mxu0 %v1600
    %3708 = vmatpush.bf16.msra.mxu0 %v1588
    %3709 = vmatpush.bf16.msra.mxu0 %v1576
    %3710 = vmatpush.bf16.msra.mxu0 %v1564
    %3711 = vmatpush.bf16.msra.mxu0 %v1552
    %3712 = vmatpush.bf16.msra.mxu0 %v1540
    %3713 = vmatmul.bf16.gmra.mxu0 %v211
    %v3714 = vpop.f32.mrf.mxu0
    %v3715 = vadd.f32 %v3626, %v3714
    %v3716 = vpop.f32.mrf.mxu0
    %v3717 = vadd.f32 %v3628, %v3716
    %3718 = vmatmul.bf16.gmra.mxu0 %v214
    %v3719 = vpop.f32.mrf.mxu0
    %v3720 = vadd.f32 %v3631, %v3719
    %v3721 = vpop.f32.mrf.mxu0
    %v3722 = vadd.f32 %v3633, %v3721
    %3723 = vmatmul.bf16.gmra.mxu0 %v217
    %v3724 = vpop.f32.mrf.mxu0
    %v3725 = vadd.f32 %v3636, %v3724
    %v3726 = vpop.f32.mrf.mxu0
    %v3727 = vadd.f32 %v3638, %v3726
    %3728 = vmatmul.bf16.gmra.mxu0 %v220
    %v3729 = vpop.f32.mrf.mxu0
    %v3730 = vadd.f32 %v3641, %v3729
    %v3731 = vpop.f32.mrf.mxu0
    %v3732 = vadd.f32 %v3643, %v3731
    %3733 = vmatmul.bf16.gmra.mxu0 %v223
    %v3734 = vpop.f32.mrf.mxu0
    %v3735 = vadd.f32 %v3646, %v3734
    %v3736 = vpop.f32.mrf.mxu0
    %v3737 = vadd.f32 %v3648, %v3736
    %3738 = vmatmul.bf16.gmra.mxu0 %v226
    %v3739 = vpop.f32.mrf.mxu0
    %v3740 = vadd.f32 %v3651, %v3739
    %v3741 = vpop.f32.mrf.mxu0
    %v3742 = vadd.f32 %v3653, %v3741
    %3743 = vmatmul.bf16.gmra.mxu0 %v229
    %v3744 = vpop.f32.mrf.mxu0
    %v3745 = vadd.f32 %v3656, %v3744
    %v3746 = vpop.f32.mrf.mxu0
    %v3747 = vadd.f32 %v3658, %v3746
    %3748 = vmatmul.bf16.gmra.mxu0 %v232
    %v3749 = vpop.f32.mrf.mxu0
    %v3750 = vadd.f32 %v3661, %v3749
    %v3751 = vpop.f32.mrf.mxu0
    %v3752 = vadd.f32 %v3663, %v3751
    %3753 = vmatmul.bf16.gmra.mxu0 %v235
    %v3754 = vpop.f32.mrf.mxu0
    %v3755 = vadd.f32 %v3666, %v3754
    %v3756 = vpop.f32.mrf.mxu0
    %v3757 = vadd.f32 %v3668, %v3756
    %3758 = vmatmul.bf16.gmra.mxu0 %v238
    %v3759 = vpop.f32.mrf.mxu0
    %v3760 = vadd.f32 %v3671, %v3759
    %v3761 = vpop.f32.mrf.mxu0
    %v3762 = vadd.f32 %v3673, %v3761
    %3763 = vmatmul.bf16.gmra.mxu0 %v241
    %v3764 = vpop.f32.mrf.mxu0
    %v3765 = vadd.f32 %v3676, %v3764
    %v3766 = vpop.f32.mrf.mxu0
    %v3767 = vadd.f32 %v3678, %v3766
    %3768 = vmatmul.bf16.gmra.mxu0 %v244
    %v3769 = vpop.f32.mrf.mxu0
    %v3770 = vadd.f32 %v3681, %v3769
    %v3771 = vpop.f32.mrf.mxu0
    %v3772 = vadd.f32 %v3683, %v3771
    %3773 = vmatmul.bf16.gmra.mxu0 %v247
    %v3774 = vpop.f32.mrf.mxu0
    %v3775 = vadd.f32 %v3686, %v3774
    %v3776 = vpop.f32.mrf.mxu0
    %v3777 = vadd.f32 %v3688, %v3776
    %3778 = vmatmul.bf16.gmra.mxu0 %v250
    %v3779 = vpop.f32.mrf.mxu0
    %v3780 = vadd.f32 %v3691, %v3779
    %v3781 = vpop.f32.mrf.mxu0
    %v3782 = vadd.f32 %v3693, %v3781
    %3783 = vmatmul.bf16.gmra.mxu0 %v253
    %v3784 = vpop.f32.mrf.mxu0
    %v3785 = vadd.f32 %v3696, %v3784
    %v3786 = vpop.f32.mrf.mxu0
    %v3787 = vadd.f32 %v3698, %v3786
    %3788 = vmatmul.bf16.gmra.mxu0 %v256
    %v3789 = vpop.f32.mrf.mxu0
    %v3790 = vadd.f32 %v3701, %v3789
    %v3791 = vpop.f32.mrf.mxu0
    %v3792 = vadd.f32 %v3703, %v3791
    %3793 = vdwg.mxu0
    %3794 = vmatpush.bf16.msra.mxu0 %v1720
    %3795 = vmatpush.bf16.msra.mxu0 %v1708
    %3796 = vmatpush.bf16.msra.mxu0 %v1696
    %3797 = vmatpush.bf16.msra.mxu0 %v1684
    %3798 = vmatpush.bf16.msra.mxu0 %v1672
    %3799 = vmatpush.bf16.msra.mxu0 %v1660
    %3800 = vmatpush.bf16.msra.mxu0 %v1648
    %3801 = vmatpush.bf16.msra.mxu0 %v1636
    %3802 = vmatmul.bf16.gmra.mxu0 %v212
    %v3803 = vpop.f32.mrf.mxu0
    %v3804 = vadd.f32 %v3715, %v3803
    %v3805 = vpop.f32.mrf.mxu0
    %v3806 = vadd.f32 %v3717, %v3805
    %3807 = vmatmul.bf16.gmra.mxu0 %v215
    %v3808 = vpop.f32.mrf.mxu0
    %v3809 = vadd.f32 %v3720, %v3808
    %v3810 = vpop.f32.mrf.mxu0
    %v3811 = vadd.f32 %v3722, %v3810
    %3812 = vmatmul.bf16.gmra.mxu0 %v218
    %v3813 = vpop.f32.mrf.mxu0
    %v3814 = vadd.f32 %v3725, %v3813
    %v3815 = vpop.f32.mrf.mxu0
    %v3816 = vadd.f32 %v3727, %v3815
    %3817 = vmatmul.bf16.gmra.mxu0 %v221
    %v3818 = vpop.f32.mrf.mxu0
    %v3819 = vadd.f32 %v3730, %v3818
    %v3820 = vpop.f32.mrf.mxu0
    %v3821 = vadd.f32 %v3732, %v3820
    %3822 = vmatmul.bf16.gmra.mxu0 %v224
    %v3823 = vpop.f32.mrf.mxu0
    %v3824 = vadd.f32 %v3735, %v3823
    %v3825 = vpop.f32.mrf.mxu0
    %v3826 = vadd.f32 %v3737, %v3825
    %3827 = vmatmul.bf16.gmra.mxu0 %v227
    %v3828 = vpop.f32.mrf.mxu0
    %v3829 = vadd.f32 %v3740, %v3828
    %v3830 = vpop.f32.mrf.mxu0
    %v3831 = vadd.f32 %v3742, %v3830
    %3832 = vmatmul.bf16.gmra.mxu0 %v230
    %v3833 = vpop.f32.mrf.mxu0
    %v3834 = vadd.f32 %v3745, %v3833
    %v3835 = vpop.f32.mrf.mxu0
    %v3836 = vadd.f32 %v3747, %v3835
    %3837 = vmatmul.bf16.gmra.mxu0 %v233
    %v3838 = vpop.f32.mrf.mxu0
    %v3839 = vadd.f32 %v3750, %v3838
    %v3840 = vpop.f32.mrf.mxu0
    %v3841 = vadd.f32 %v3752, %v3840
    %3842 = vmatmul.bf16.gmra.mxu0 %v236
    %v3843 = vpop.f32.mrf.mxu0
    %v3844 = vadd.f32 %v3755, %v3843
    %v3845 = vpop.f32.mrf.mxu0
    %v3846 = vadd.f32 %v3757, %v3845
    %3847 = vmatmul.bf16.gmra.mxu0 %v239
    %v3848 = vpop.f32.mrf.mxu0
    %v3849 = vadd.f32 %v3760, %v3848
    %v3850 = vpop.f32.mrf.mxu0
    %v3851 = vadd.f32 %v3762, %v3850
    %3852 = vmatmul.bf16.gmra.mxu0 %v242
    %v3853 = vpop.f32.mrf.mxu0
    %v3854 = vadd.f32 %v3765, %v3853
    %v3855 = vpop.f32.mrf.mxu0
    %v3856 = vadd.f32 %v3767, %v3855
    %3857 = vmatmul.bf16.gmra.mxu0 %v245
    %v3858 = vpop.f32.mrf.mxu0
    %v3859 = vadd.f32 %v3770, %v3858
    %v3860 = vpop.f32.mrf.mxu0
    %v3861 = vadd.f32 %v3772, %v3860
    %3862 = vmatmul.bf16.gmra.mxu0 %v248
    %v3863 = vpop.f32.mrf.mxu0
    %v3864 = vadd.f32 %v3775, %v3863
    %v3865 = vpop.f32.mrf.mxu0
    %v3866 = vadd.f32 %v3777, %v3865
    %3867 = vmatmul.bf16.gmra.mxu0 %v251
    %v3868 = vpop.f32.mrf.mxu0
    %v3869 = vadd.f32 %v3780, %v3868
    %v3870 = vpop.f32.mrf.mxu0
    %v3871 = vadd.f32 %v3782, %v3870
    %3872 = vmatmul.bf16.gmra.mxu0 %v254
    %v3873 = vpop.f32.mrf.mxu0
    %v3874 = vadd.f32 %v3785, %v3873
    %v3875 = vpop.f32.mrf.mxu0
    %v3876 = vadd.f32 %v3787, %v3875
    %3877 = vmatmul.bf16.gmra.mxu0 %v257
    %v3878 = vpop.f32.mrf.mxu0
    %v3879 = vadd.f32 %v3790, %v3878
    %v3880 = vpop.f32.mrf.mxu0
    %v3881 = vadd.f32 %v3792, %v3880
    %3882 = vdwg.mxu0
    %3883 = vmatpush.bf16.msra.mxu0 %v1529
    %3884 = vmatpush.bf16.msra.mxu0 %v1517
    %3885 = vmatpush.bf16.msra.mxu0 %v1505
    %3886 = vmatpush.bf16.msra.mxu0 %v1493
    %3887 = vmatpush.bf16.msra.mxu0 %v1481
    %3888 = vmatpush.bf16.msra.mxu0 %v1469
    %3889 = vmatpush.bf16.msra.mxu0 %v1457
    %3890 = vmatpush.bf16.msra.mxu0 %v1445
    %3891 = vmatmul.bf16.gmra.mxu0 %v210
    %v3892 = vpop.f32.mrf.mxu0
    %v3893 = vadd.f32 %v557, %v3892
    %v3894 = vpop.f32.mrf.mxu0
    %v3895 = vadd.f32 %v557, %v3894
    %3896 = vmatmul.bf16.gmra.mxu0 %v213
    %v3897 = vpop.f32.mrf.mxu0
    %v3898 = vadd.f32 %v557, %v3897
    %v3899 = vpop.f32.mrf.mxu0
    %v3900 = vadd.f32 %v557, %v3899
    %3901 = vmatmul.bf16.gmra.mxu0 %v216
    %v3902 = vpop.f32.mrf.mxu0
    %v3903 = vadd.f32 %v557, %v3902
    %v3904 = vpop.f32.mrf.mxu0
    %v3905 = vadd.f32 %v557, %v3904
    %3906 = vmatmul.bf16.gmra.mxu0 %v219
    %v3907 = vpop.f32.mrf.mxu0
    %v3908 = vadd.f32 %v557, %v3907
    %v3909 = vpop.f32.mrf.mxu0
    %v3910 = vadd.f32 %v557, %v3909
    %3911 = vmatmul.bf16.gmra.mxu0 %v222
    %v3912 = vpop.f32.mrf.mxu0
    %v3913 = vadd.f32 %v557, %v3912
    %v3914 = vpop.f32.mrf.mxu0
    %v3915 = vadd.f32 %v557, %v3914
    %3916 = vmatmul.bf16.gmra.mxu0 %v225
    %v3917 = vpop.f32.mrf.mxu0
    %v3918 = vadd.f32 %v557, %v3917
    %v3919 = vpop.f32.mrf.mxu0
    %v3920 = vadd.f32 %v557, %v3919
    %3921 = vmatmul.bf16.gmra.mxu0 %v228
    %v3922 = vpop.f32.mrf.mxu0
    %v3923 = vadd.f32 %v557, %v3922
    %v3924 = vpop.f32.mrf.mxu0
    %v3925 = vadd.f32 %v557, %v3924
    %3926 = vmatmul.bf16.gmra.mxu0 %v231
    %v3927 = vpop.f32.mrf.mxu0
    %v3928 = vadd.f32 %v557, %v3927
    %v3929 = vpop.f32.mrf.mxu0
    %v3930 = vadd.f32 %v557, %v3929
    %3931 = vmatmul.bf16.gmra.mxu0 %v234
    %v3932 = vpop.f32.mrf.mxu0
    %v3933 = vadd.f32 %v557, %v3932
    %v3934 = vpop.f32.mrf.mxu0
    %v3935 = vadd.f32 %v557, %v3934
    %3936 = vmatmul.bf16.gmra.mxu0 %v237
    %v3937 = vpop.f32.mrf.mxu0
    %v3938 = vadd.f32 %v557, %v3937
    %v3939 = vpop.f32.mrf.mxu0
    %v3940 = vadd.f32 %v557, %v3939
    %3941 = vmatmul.bf16.gmra.mxu0 %v240
    %v3942 = vpop.f32.mrf.mxu0
    %v3943 = vadd.f32 %v557, %v3942
    %v3944 = vpop.f32.mrf.mxu0
    %v3945 = vadd.f32 %v557, %v3944
    %3946 = vmatmul.bf16.gmra.mxu0 %v243
    %v3947 = vpop.f32.mrf.mxu0
    %v3948 = vadd.f32 %v557, %v3947
    %v3949 = vpop.f32.mrf.mxu0
    %v3950 = vadd.f32 %v557, %v3949
    %3951 = vmatmul.bf16.gmra.mxu0 %v246
    %v3952 = vpop.f32.mrf.mxu0
    %v3953 = vadd.f32 %v557, %v3952
    %v3954 = vpop.f32.mrf.mxu0
    %v3955 = vadd.f32 %v557, %v3954
    %3956 = vmatmul.bf16.gmra.mxu0 %v249
    %v3957 = vpop.f32.mrf.mxu0
    %v3958 = vadd.f32 %v557, %v3957
    %v3959 = vpop.f32.mrf.mxu0
    %v3960 = vadd.f32 %v557, %v3959
    %3961 = vmatmul.bf16.gmra.mxu0 %v252
    %v3962 = vpop.f32.mrf.mxu0
    %v3963 = vadd.f32 %v557, %v3962
    %v3964 = vpop.f32.mrf.mxu0
    %v3965 = vadd.f32 %v557, %v3964
    %3966 = vmatmul.bf16.gmra.mxu0 %v255
    %v3967 = vpop.f32.mrf.mxu0
    %v3968 = vadd.f32 %v557, %v3967
    %v3969 = vpop.f32.mrf.mxu0
    %v3970 = vadd.f32 %v557, %v3969
    %3971 = vdwg.mxu0
    %3972 = vmatpush.bf16.msra.mxu0 %v1625
    %3973 = vmatpush.bf16.msra.mxu0 %v1613
    %3974 = vmatpush.bf16.msra.mxu0 %v1601
    %3975 = vmatpush.bf16.msra.mxu0 %v1589
    %3976 = vmatpush.bf16.msra.mxu0 %v1577
    %3977 = vmatpush.bf16.msra.mxu0 %v1565
    %3978 = vmatpush.bf16.msra.mxu0 %v1553
    %3979 = vmatpush.bf16.msra.mxu0 %v1541
    %3980 = vmatmul.bf16.gmra.mxu0 %v211
    %v3981 = vpop.f32.mrf.mxu0
    %v3982 = vadd.f32 %v3893, %v3981
    %v3983 = vpop.f32.mrf.mxu0
    %v3984 = vadd.f32 %v3895, %v3983
    %3985 = vmatmul.bf16.gmra.mxu0 %v214
    %v3986 = vpop.f32.mrf.mxu0
    %v3987 = vadd.f32 %v3898, %v3986
    %v3988 = vpop.f32.mrf.mxu0
    %v3989 = vadd.f32 %v3900, %v3988
    %3990 = vmatmul.bf16.gmra.mxu0 %v217
    %v3991 = vpop.f32.mrf.mxu0
    %v3992 = vadd.f32 %v3903, %v3991
    %v3993 = vpop.f32.mrf.mxu0
    %v3994 = vadd.f32 %v3905, %v3993
    %3995 = vmatmul.bf16.gmra.mxu0 %v220
    %v3996 = vpop.f32.mrf.mxu0
    %v3997 = vadd.f32 %v3908, %v3996
    %v3998 = vpop.f32.mrf.mxu0
    %v3999 = vadd.f32 %v3910, %v3998
    %4000 = vmatmul.bf16.gmra.mxu0 %v223
    %v4001 = vpop.f32.mrf.mxu0
    %v4002 = vadd.f32 %v3913, %v4001
    %v4003 = vpop.f32.mrf.mxu0
    %v4004 = vadd.f32 %v3915, %v4003
    %4005 = vmatmul.bf16.gmra.mxu0 %v226
    %v4006 = vpop.f32.mrf.mxu0
    %v4007 = vadd.f32 %v3918, %v4006
    %v4008 = vpop.f32.mrf.mxu0
    %v4009 = vadd.f32 %v3920, %v4008
    %4010 = vmatmul.bf16.gmra.mxu0 %v229
    %v4011 = vpop.f32.mrf.mxu0
    %v4012 = vadd.f32 %v3923, %v4011
    %v4013 = vpop.f32.mrf.mxu0
    %v4014 = vadd.f32 %v3925, %v4013
    %4015 = vmatmul.bf16.gmra.mxu0 %v232
    %v4016 = vpop.f32.mrf.mxu0
    %v4017 = vadd.f32 %v3928, %v4016
    %v4018 = vpop.f32.mrf.mxu0
    %v4019 = vadd.f32 %v3930, %v4018
    %4020 = vmatmul.bf16.gmra.mxu0 %v235
    %v4021 = vpop.f32.mrf.mxu0
    %v4022 = vadd.f32 %v3933, %v4021
    %v4023 = vpop.f32.mrf.mxu0
    %v4024 = vadd.f32 %v3935, %v4023
    %4025 = vmatmul.bf16.gmra.mxu0 %v238
    %v4026 = vpop.f32.mrf.mxu0
    %v4027 = vadd.f32 %v3938, %v4026
    %v4028 = vpop.f32.mrf.mxu0
    %v4029 = vadd.f32 %v3940, %v4028
    %4030 = vmatmul.bf16.gmra.mxu0 %v241
    %v4031 = vpop.f32.mrf.mxu0
    %v4032 = vadd.f32 %v3943, %v4031
    %v4033 = vpop.f32.mrf.mxu0
    %v4034 = vadd.f32 %v3945, %v4033
    %4035 = vmatmul.bf16.gmra.mxu0 %v244
    %v4036 = vpop.f32.mrf.mxu0
    %v4037 = vadd.f32 %v3948, %v4036
    %v4038 = vpop.f32.mrf.mxu0
    %v4039 = vadd.f32 %v3950, %v4038
    %4040 = vmatmul.bf16.gmra.mxu0 %v247
    %v4041 = vpop.f32.mrf.mxu0
    %v4042 = vadd.f32 %v3953, %v4041
    %v4043 = vpop.f32.mrf.mxu0
    %v4044 = vadd.f32 %v3955, %v4043
    %4045 = vmatmul.bf16.gmra.mxu0 %v250
    %v4046 = vpop.f32.mrf.mxu0
    %v4047 = vadd.f32 %v3958, %v4046
    %v4048 = vpop.f32.mrf.mxu0
    %v4049 = vadd.f32 %v3960, %v4048
    %4050 = vmatmul.bf16.gmra.mxu0 %v253
    %v4051 = vpop.f32.mrf.mxu0
    %v4052 = vadd.f32 %v3963, %v4051
    %v4053 = vpop.f32.mrf.mxu0
    %v4054 = vadd.f32 %v3965, %v4053
    %4055 = vmatmul.bf16.gmra.mxu0 %v256
    %v4056 = vpop.f32.mrf.mxu0
    %v4057 = vadd.f32 %v3968, %v4056
    %v4058 = vpop.f32.mrf.mxu0
    %v4059 = vadd.f32 %v3970, %v4058
    %4060 = vdwg.mxu0
    %4061 = vmatpush.bf16.msra.mxu0 %v1721
    %4062 = vmatpush.bf16.msra.mxu0 %v1709
    %4063 = vmatpush.bf16.msra.mxu0 %v1697
    %4064 = vmatpush.bf16.msra.mxu0 %v1685
    %4065 = vmatpush.bf16.msra.mxu0 %v1673
    %4066 = vmatpush.bf16.msra.mxu0 %v1661
    %4067 = vmatpush.bf16.msra.mxu0 %v1649
    %4068 = vmatpush.bf16.msra.mxu0 %v1637
    %4069 = vmatmul.bf16.gmra.mxu0 %v212
    %v4070 = vpop.f32.mrf.mxu0
    %v4071 = vadd.f32 %v3982, %v4070
    %v4072 = vpop.f32.mrf.mxu0
    %v4073 = vadd.f32 %v3984, %v4072
    %4074 = vmatmul.bf16.gmra.mxu0 %v215
    %v4075 = vpop.f32.mrf.mxu0
    %v4076 = vadd.f32 %v3987, %v4075
    %v4077 = vpop.f32.mrf.mxu0
    %v4078 = vadd.f32 %v3989, %v4077
    %4079 = vmatmul.bf16.gmra.mxu0 %v218
    %v4080 = vpop.f32.mrf.mxu0
    %v4081 = vadd.f32 %v3992, %v4080
    %v4082 = vpop.f32.mrf.mxu0
    %v4083 = vadd.f32 %v3994, %v4082
    %4084 = vmatmul.bf16.gmra.mxu0 %v221
    %v4085 = vpop.f32.mrf.mxu0
    %v4086 = vadd.f32 %v3997, %v4085
    %v4087 = vpop.f32.mrf.mxu0
    %v4088 = vadd.f32 %v3999, %v4087
    %4089 = vmatmul.bf16.gmra.mxu0 %v224
    %v4090 = vpop.f32.mrf.mxu0
    %v4091 = vadd.f32 %v4002, %v4090
    %v4092 = vpop.f32.mrf.mxu0
    %v4093 = vadd.f32 %v4004, %v4092
    %4094 = vmatmul.bf16.gmra.mxu0 %v227
    %v4095 = vpop.f32.mrf.mxu0
    %v4096 = vadd.f32 %v4007, %v4095
    %v4097 = vpop.f32.mrf.mxu0
    %v4098 = vadd.f32 %v4009, %v4097
    %4099 = vmatmul.bf16.gmra.mxu0 %v230
    %v4100 = vpop.f32.mrf.mxu0
    %v4101 = vadd.f32 %v4012, %v4100
    %v4102 = vpop.f32.mrf.mxu0
    %v4103 = vadd.f32 %v4014, %v4102
    %4104 = vmatmul.bf16.gmra.mxu0 %v233
    %v4105 = vpop.f32.mrf.mxu0
    %v4106 = vadd.f32 %v4017, %v4105
    %v4107 = vpop.f32.mrf.mxu0
    %v4108 = vadd.f32 %v4019, %v4107
    %4109 = vmatmul.bf16.gmra.mxu0 %v236
    %v4110 = vpop.f32.mrf.mxu0
    %v4111 = vadd.f32 %v4022, %v4110
    %v4112 = vpop.f32.mrf.mxu0
    %v4113 = vadd.f32 %v4024, %v4112
    %4114 = vmatmul.bf16.gmra.mxu0 %v239
    %v4115 = vpop.f32.mrf.mxu0
    %v4116 = vadd.f32 %v4027, %v4115
    %v4117 = vpop.f32.mrf.mxu0
    %v4118 = vadd.f32 %v4029, %v4117
    %4119 = vmatmul.bf16.gmra.mxu0 %v242
    %v4120 = vpop.f32.mrf.mxu0
    %v4121 = vadd.f32 %v4032, %v4120
    %v4122 = vpop.f32.mrf.mxu0
    %v4123 = vadd.f32 %v4034, %v4122
    %4124 = vmatmul.bf16.gmra.mxu0 %v245
    %v4125 = vpop.f32.mrf.mxu0
    %v4126 = vadd.f32 %v4037, %v4125
    %v4127 = vpop.f32.mrf.mxu0
    %v4128 = vadd.f32 %v4039, %v4127
    %4129 = vmatmul.bf16.gmra.mxu0 %v248
    %v4130 = vpop.f32.mrf.mxu0
    %v4131 = vadd.f32 %v4042, %v4130
    %v4132 = vpop.f32.mrf.mxu0
    %v4133 = vadd.f32 %v4044, %v4132
    %4134 = vmatmul.bf16.gmra.mxu0 %v251
    %v4135 = vpop.f32.mrf.mxu0
    %v4136 = vadd.f32 %v4047, %v4135
    %v4137 = vpop.f32.mrf.mxu0
    %v4138 = vadd.f32 %v4049, %v4137
    %4139 = vmatmul.bf16.gmra.mxu0 %v254
    %v4140 = vpop.f32.mrf.mxu0
    %v4141 = vadd.f32 %v4052, %v4140
    %v4142 = vpop.f32.mrf.mxu0
    %v4143 = vadd.f32 %v4054, %v4142
    %4144 = vmatmul.bf16.gmra.mxu0 %v257
    %v4145 = vpop.f32.mrf.mxu0
    %v4146 = vadd.f32 %v4057, %v4145
    %v4147 = vpop.f32.mrf.mxu0
    %v4148 = vadd.f32 %v4059, %v4147
    %4149 = vdwg.mxu0
    %4150 = vmatpush.bf16.msra.mxu0 %v1530
    %4151 = vmatpush.bf16.msra.mxu0 %v1518
    %4152 = vmatpush.bf16.msra.mxu0 %v1506
    %4153 = vmatpush.bf16.msra.mxu0 %v1494
    %4154 = vmatpush.bf16.msra.mxu0 %v1482
    %4155 = vmatpush.bf16.msra.mxu0 %v1470
    %4156 = vmatpush.bf16.msra.mxu0 %v1458
    %4157 = vmatpush.bf16.msra.mxu0 %v1446
    %4158 = vmatmul.bf16.gmra.mxu0 %v210
    %v4159 = vpop.f32.mrf.mxu0
    %v4160 = vadd.f32 %v558, %v4159
    %v4161 = vpop.f32.mrf.mxu0
    %v4162 = vadd.f32 %v558, %v4161
    %4163 = vmatmul.bf16.gmra.mxu0 %v213
    %v4164 = vpop.f32.mrf.mxu0
    %v4165 = vadd.f32 %v558, %v4164
    %v4166 = vpop.f32.mrf.mxu0
    %v4167 = vadd.f32 %v558, %v4166
    %4168 = vmatmul.bf16.gmra.mxu0 %v216
    %v4169 = vpop.f32.mrf.mxu0
    %v4170 = vadd.f32 %v558, %v4169
    %v4171 = vpop.f32.mrf.mxu0
    %v4172 = vadd.f32 %v558, %v4171
    %4173 = vmatmul.bf16.gmra.mxu0 %v219
    %v4174 = vpop.f32.mrf.mxu0
    %v4175 = vadd.f32 %v558, %v4174
    %v4176 = vpop.f32.mrf.mxu0
    %v4177 = vadd.f32 %v558, %v4176
    %4178 = vmatmul.bf16.gmra.mxu0 %v222
    %v4179 = vpop.f32.mrf.mxu0
    %v4180 = vadd.f32 %v558, %v4179
    %v4181 = vpop.f32.mrf.mxu0
    %v4182 = vadd.f32 %v558, %v4181
    %4183 = vmatmul.bf16.gmra.mxu0 %v225
    %v4184 = vpop.f32.mrf.mxu0
    %v4185 = vadd.f32 %v558, %v4184
    %v4186 = vpop.f32.mrf.mxu0
    %v4187 = vadd.f32 %v558, %v4186
    %4188 = vmatmul.bf16.gmra.mxu0 %v228
    %v4189 = vpop.f32.mrf.mxu0
    %v4190 = vadd.f32 %v558, %v4189
    %v4191 = vpop.f32.mrf.mxu0
    %v4192 = vadd.f32 %v558, %v4191
    %4193 = vmatmul.bf16.gmra.mxu0 %v231
    %v4194 = vpop.f32.mrf.mxu0
    %v4195 = vadd.f32 %v558, %v4194
    %v4196 = vpop.f32.mrf.mxu0
    %v4197 = vadd.f32 %v558, %v4196
    %4198 = vmatmul.bf16.gmra.mxu0 %v234
    %v4199 = vpop.f32.mrf.mxu0
    %v4200 = vadd.f32 %v558, %v4199
    %v4201 = vpop.f32.mrf.mxu0
    %v4202 = vadd.f32 %v558, %v4201
    %4203 = vmatmul.bf16.gmra.mxu0 %v237
    %v4204 = vpop.f32.mrf.mxu0
    %v4205 = vadd.f32 %v558, %v4204
    %v4206 = vpop.f32.mrf.mxu0
    %v4207 = vadd.f32 %v558, %v4206
    %4208 = vmatmul.bf16.gmra.mxu0 %v240
    %v4209 = vpop.f32.mrf.mxu0
    %v4210 = vadd.f32 %v558, %v4209
    %v4211 = vpop.f32.mrf.mxu0
    %v4212 = vadd.f32 %v558, %v4211
    %4213 = vmatmul.bf16.gmra.mxu0 %v243
    %v4214 = vpop.f32.mrf.mxu0
    %v4215 = vadd.f32 %v558, %v4214
    %v4216 = vpop.f32.mrf.mxu0
    %v4217 = vadd.f32 %v558, %v4216
    %4218 = vmatmul.bf16.gmra.mxu0 %v246
    %v4219 = vpop.f32.mrf.mxu0
    %v4220 = vadd.f32 %v558, %v4219
    %v4221 = vpop.f32.mrf.mxu0
    %v4222 = vadd.f32 %v558, %v4221
    %4223 = vmatmul.bf16.gmra.mxu0 %v249
    %v4224 = vpop.f32.mrf.mxu0
    %v4225 = vadd.f32 %v558, %v4224
    %v4226 = vpop.f32.mrf.mxu0
    %v4227 = vadd.f32 %v558, %v4226
    %4228 = vmatmul.bf16.gmra.mxu0 %v252
    %v4229 = vpop.f32.mrf.mxu0
    %v4230 = vadd.f32 %v558, %v4229
    %v4231 = vpop.f32.mrf.mxu0
    %v4232 = vadd.f32 %v558, %v4231
    %4233 = vmatmul.bf16.gmra.mxu0 %v255
    %v4234 = vpop.f32.mrf.mxu0
    %v4235 = vadd.f32 %v558, %v4234
    %v4236 = vpop.f32.mrf.mxu0
    %v4237 = vadd.f32 %v558, %v4236
    %4238 = vdwg.mxu0
    %4239 = vmatpush.bf16.msra.mxu0 %v1626
    %4240 = vmatpush.bf16.msra.mxu0 %v1614
    %4241 = vmatpush.bf16.msra.mxu0 %v1602
    %4242 = vmatpush.bf16.msra.mxu0 %v1590
    %4243 = vmatpush.bf16.msra.mxu0 %v1578
    %4244 = vmatpush.bf16.msra.mxu0 %v1566
    %4245 = vmatpush.bf16.msra.mxu0 %v1554
    %4246 = vmatpush.bf16.msra.mxu0 %v1542
    %4247 = vmatmul.bf16.gmra.mxu0 %v211
    %v4248 = vpop.f32.mrf.mxu0
    %v4249 = vadd.f32 %v4160, %v4248
    %v4250 = vpop.f32.mrf.mxu0
    %v4251 = vadd.f32 %v4162, %v4250
    %4252 = vmatmul.bf16.gmra.mxu0 %v214
    %v4253 = vpop.f32.mrf.mxu0
    %v4254 = vadd.f32 %v4165, %v4253
    %v4255 = vpop.f32.mrf.mxu0
    %v4256 = vadd.f32 %v4167, %v4255
    %4257 = vmatmul.bf16.gmra.mxu0 %v217
    %v4258 = vpop.f32.mrf.mxu0
    %v4259 = vadd.f32 %v4170, %v4258
    %v4260 = vpop.f32.mrf.mxu0
    %v4261 = vadd.f32 %v4172, %v4260
    %4262 = vmatmul.bf16.gmra.mxu0 %v220
    %v4263 = vpop.f32.mrf.mxu0
    %v4264 = vadd.f32 %v4175, %v4263
    %v4265 = vpop.f32.mrf.mxu0
    %v4266 = vadd.f32 %v4177, %v4265
    %4267 = vmatmul.bf16.gmra.mxu0 %v223
    %v4268 = vpop.f32.mrf.mxu0
    %v4269 = vadd.f32 %v4180, %v4268
    %v4270 = vpop.f32.mrf.mxu0
    %v4271 = vadd.f32 %v4182, %v4270
    %4272 = vmatmul.bf16.gmra.mxu0 %v226
    %v4273 = vpop.f32.mrf.mxu0
    %v4274 = vadd.f32 %v4185, %v4273
    %v4275 = vpop.f32.mrf.mxu0
    %v4276 = vadd.f32 %v4187, %v4275
    %4277 = vmatmul.bf16.gmra.mxu0 %v229
    %v4278 = vpop.f32.mrf.mxu0
    %v4279 = vadd.f32 %v4190, %v4278
    %v4280 = vpop.f32.mrf.mxu0
    %v4281 = vadd.f32 %v4192, %v4280
    %4282 = vmatmul.bf16.gmra.mxu0 %v232
    %v4283 = vpop.f32.mrf.mxu0
    %v4284 = vadd.f32 %v4195, %v4283
    %v4285 = vpop.f32.mrf.mxu0
    %v4286 = vadd.f32 %v4197, %v4285
    %4287 = vmatmul.bf16.gmra.mxu0 %v235
    %v4288 = vpop.f32.mrf.mxu0
    %v4289 = vadd.f32 %v4200, %v4288
    %v4290 = vpop.f32.mrf.mxu0
    %v4291 = vadd.f32 %v4202, %v4290
    %4292 = vmatmul.bf16.gmra.mxu0 %v238
    %v4293 = vpop.f32.mrf.mxu0
    %v4294 = vadd.f32 %v4205, %v4293
    %v4295 = vpop.f32.mrf.mxu0
    %v4296 = vadd.f32 %v4207, %v4295
    %4297 = vmatmul.bf16.gmra.mxu0 %v241
    %v4298 = vpop.f32.mrf.mxu0
    %v4299 = vadd.f32 %v4210, %v4298
    %v4300 = vpop.f32.mrf.mxu0
    %v4301 = vadd.f32 %v4212, %v4300
    %4302 = vmatmul.bf16.gmra.mxu0 %v244
    %v4303 = vpop.f32.mrf.mxu0
    %v4304 = vadd.f32 %v4215, %v4303
    %v4305 = vpop.f32.mrf.mxu0
    %v4306 = vadd.f32 %v4217, %v4305
    %4307 = vmatmul.bf16.gmra.mxu0 %v247
    %v4308 = vpop.f32.mrf.mxu0
    %v4309 = vadd.f32 %v4220, %v4308
    %v4310 = vpop.f32.mrf.mxu0
    %v4311 = vadd.f32 %v4222, %v4310
    %4312 = vmatmul.bf16.gmra.mxu0 %v250
    %v4313 = vpop.f32.mrf.mxu0
    %v4314 = vadd.f32 %v4225, %v4313
    %v4315 = vpop.f32.mrf.mxu0
    %v4316 = vadd.f32 %v4227, %v4315
    %4317 = vmatmul.bf16.gmra.mxu0 %v253
    %v4318 = vpop.f32.mrf.mxu0
    %v4319 = vadd.f32 %v4230, %v4318
    %v4320 = vpop.f32.mrf.mxu0
    %v4321 = vadd.f32 %v4232, %v4320
    %4322 = vmatmul.bf16.gmra.mxu0 %v256
    %v4323 = vpop.f32.mrf.mxu0
    %v4324 = vadd.f32 %v4235, %v4323
    %v4325 = vpop.f32.mrf.mxu0
    %v4326 = vadd.f32 %v4237, %v4325
    %4327 = vdwg.mxu0
    %4328 = vmatpush.bf16.msra.mxu0 %v1722
    %4329 = vmatpush.bf16.msra.mxu0 %v1710
    %4330 = vmatpush.bf16.msra.mxu0 %v1698
    %4331 = vmatpush.bf16.msra.mxu0 %v1686
    %4332 = vmatpush.bf16.msra.mxu0 %v1674
    %4333 = vmatpush.bf16.msra.mxu0 %v1662
    %4334 = vmatpush.bf16.msra.mxu0 %v1650
    %4335 = vmatpush.bf16.msra.mxu0 %v1638
    %4336 = vmatmul.bf16.gmra.mxu0 %v212
    %v4337 = vpop.f32.mrf.mxu0
    %v4338 = vadd.f32 %v4249, %v4337
    %v4339 = vpop.f32.mrf.mxu0
    %v4340 = vadd.f32 %v4251, %v4339
    %4341 = vmatmul.bf16.gmra.mxu0 %v215
    %v4342 = vpop.f32.mrf.mxu0
    %v4343 = vadd.f32 %v4254, %v4342
    %v4344 = vpop.f32.mrf.mxu0
    %v4345 = vadd.f32 %v4256, %v4344
    %4346 = vmatmul.bf16.gmra.mxu0 %v218
    %v4347 = vpop.f32.mrf.mxu0
    %v4348 = vadd.f32 %v4259, %v4347
    %v4349 = vpop.f32.mrf.mxu0
    %v4350 = vadd.f32 %v4261, %v4349
    %4351 = vmatmul.bf16.gmra.mxu0 %v221
    %v4352 = vpop.f32.mrf.mxu0
    %v4353 = vadd.f32 %v4264, %v4352
    %v4354 = vpop.f32.mrf.mxu0
    %v4355 = vadd.f32 %v4266, %v4354
    %4356 = vmatmul.bf16.gmra.mxu0 %v224
    %v4357 = vpop.f32.mrf.mxu0
    %v4358 = vadd.f32 %v4269, %v4357
    %v4359 = vpop.f32.mrf.mxu0
    %v4360 = vadd.f32 %v4271, %v4359
    %4361 = vmatmul.bf16.gmra.mxu0 %v227
    %v4362 = vpop.f32.mrf.mxu0
    %v4363 = vadd.f32 %v4274, %v4362
    %v4364 = vpop.f32.mrf.mxu0
    %v4365 = vadd.f32 %v4276, %v4364
    %4366 = vmatmul.bf16.gmra.mxu0 %v230
    %v4367 = vpop.f32.mrf.mxu0
    %v4368 = vadd.f32 %v4279, %v4367
    %v4369 = vpop.f32.mrf.mxu0
    %v4370 = vadd.f32 %v4281, %v4369
    %4371 = vmatmul.bf16.gmra.mxu0 %v233
    %v4372 = vpop.f32.mrf.mxu0
    %v4373 = vadd.f32 %v4284, %v4372
    %v4374 = vpop.f32.mrf.mxu0
    %v4375 = vadd.f32 %v4286, %v4374
    %4376 = vmatmul.bf16.gmra.mxu0 %v236
    %v4377 = vpop.f32.mrf.mxu0
    %v4378 = vadd.f32 %v4289, %v4377
    %v4379 = vpop.f32.mrf.mxu0
    %v4380 = vadd.f32 %v4291, %v4379
    %4381 = vmatmul.bf16.gmra.mxu0 %v239
    %v4382 = vpop.f32.mrf.mxu0
    %v4383 = vadd.f32 %v4294, %v4382
    %v4384 = vpop.f32.mrf.mxu0
    %v4385 = vadd.f32 %v4296, %v4384
    %4386 = vmatmul.bf16.gmra.mxu0 %v242
    %v4387 = vpop.f32.mrf.mxu0
    %v4388 = vadd.f32 %v4299, %v4387
    %v4389 = vpop.f32.mrf.mxu0
    %v4390 = vadd.f32 %v4301, %v4389
    %4391 = vmatmul.bf16.gmra.mxu0 %v245
    %v4392 = vpop.f32.mrf.mxu0
    %v4393 = vadd.f32 %v4304, %v4392
    %v4394 = vpop.f32.mrf.mxu0
    %v4395 = vadd.f32 %v4306, %v4394
    %4396 = vmatmul.bf16.gmra.mxu0 %v248
    %v4397 = vpop.f32.mrf.mxu0
    %v4398 = vadd.f32 %v4309, %v4397
    %v4399 = vpop.f32.mrf.mxu0
    %v4400 = vadd.f32 %v4311, %v4399
    %4401 = vmatmul.bf16.gmra.mxu0 %v251
    %v4402 = vpop.f32.mrf.mxu0
    %v4403 = vadd.f32 %v4314, %v4402
    %v4404 = vpop.f32.mrf.mxu0
    %v4405 = vadd.f32 %v4316, %v4404
    %4406 = vmatmul.bf16.gmra.mxu0 %v254
    %v4407 = vpop.f32.mrf.mxu0
    %v4408 = vadd.f32 %v4319, %v4407
    %v4409 = vpop.f32.mrf.mxu0
    %v4410 = vadd.f32 %v4321, %v4409
    %4411 = vmatmul.bf16.gmra.mxu0 %v257
    %v4412 = vpop.f32.mrf.mxu0
    %v4413 = vadd.f32 %v4324, %v4412
    %v4414 = vpop.f32.mrf.mxu0
    %v4415 = vadd.f32 %v4326, %v4414
    %4416 = vdwg.mxu0
    %4417 = vmatpush.bf16.msra.mxu0 %v1531
    %4418 = vmatpush.bf16.msra.mxu0 %v1519
    %4419 = vmatpush.bf16.msra.mxu0 %v1507
    %4420 = vmatpush.bf16.msra.mxu0 %v1495
    %4421 = vmatpush.bf16.msra.mxu0 %v1483
    %4422 = vmatpush.bf16.msra.mxu0 %v1471
    %4423 = vmatpush.bf16.msra.mxu0 %v1459
    %4424 = vmatpush.bf16.msra.mxu0 %v1447
    %4425 = vmatmul.bf16.gmra.mxu0 %v210
    %v4426 = vpop.f32.mrf.mxu0
    %v4427 = vadd.f32 %v559, %v4426
    %v4428 = vpop.f32.mrf.mxu0
    %v4429 = vadd.f32 %v559, %v4428
    %4430 = vmatmul.bf16.gmra.mxu0 %v213
    %v4431 = vpop.f32.mrf.mxu0
    %v4432 = vadd.f32 %v559, %v4431
    %v4433 = vpop.f32.mrf.mxu0
    %v4434 = vadd.f32 %v559, %v4433
    %4435 = vmatmul.bf16.gmra.mxu0 %v216
    %v4436 = vpop.f32.mrf.mxu0
    %v4437 = vadd.f32 %v559, %v4436
    %v4438 = vpop.f32.mrf.mxu0
    %v4439 = vadd.f32 %v559, %v4438
    %4440 = vmatmul.bf16.gmra.mxu0 %v219
    %v4441 = vpop.f32.mrf.mxu0
    %v4442 = vadd.f32 %v559, %v4441
    %v4443 = vpop.f32.mrf.mxu0
    %v4444 = vadd.f32 %v559, %v4443
    %4445 = vmatmul.bf16.gmra.mxu0 %v222
    %v4446 = vpop.f32.mrf.mxu0
    %v4447 = vadd.f32 %v559, %v4446
    %v4448 = vpop.f32.mrf.mxu0
    %v4449 = vadd.f32 %v559, %v4448
    %4450 = vmatmul.bf16.gmra.mxu0 %v225
    %v4451 = vpop.f32.mrf.mxu0
    %v4452 = vadd.f32 %v559, %v4451
    %v4453 = vpop.f32.mrf.mxu0
    %v4454 = vadd.f32 %v559, %v4453
    %4455 = vmatmul.bf16.gmra.mxu0 %v228
    %v4456 = vpop.f32.mrf.mxu0
    %v4457 = vadd.f32 %v559, %v4456
    %v4458 = vpop.f32.mrf.mxu0
    %v4459 = vadd.f32 %v559, %v4458
    %4460 = vmatmul.bf16.gmra.mxu0 %v231
    %v4461 = vpop.f32.mrf.mxu0
    %v4462 = vadd.f32 %v559, %v4461
    %v4463 = vpop.f32.mrf.mxu0
    %v4464 = vadd.f32 %v559, %v4463
    %4465 = vmatmul.bf16.gmra.mxu0 %v234
    %v4466 = vpop.f32.mrf.mxu0
    %v4467 = vadd.f32 %v559, %v4466
    %v4468 = vpop.f32.mrf.mxu0
    %v4469 = vadd.f32 %v559, %v4468
    %4470 = vmatmul.bf16.gmra.mxu0 %v237
    %v4471 = vpop.f32.mrf.mxu0
    %v4472 = vadd.f32 %v559, %v4471
    %v4473 = vpop.f32.mrf.mxu0
    %v4474 = vadd.f32 %v559, %v4473
    %4475 = vmatmul.bf16.gmra.mxu0 %v240
    %v4476 = vpop.f32.mrf.mxu0
    %v4477 = vadd.f32 %v559, %v4476
    %v4478 = vpop.f32.mrf.mxu0
    %v4479 = vadd.f32 %v559, %v4478
    %4480 = vmatmul.bf16.gmra.mxu0 %v243
    %v4481 = vpop.f32.mrf.mxu0
    %v4482 = vadd.f32 %v559, %v4481
    %v4483 = vpop.f32.mrf.mxu0
    %v4484 = vadd.f32 %v559, %v4483
    %4485 = vmatmul.bf16.gmra.mxu0 %v246
    %v4486 = vpop.f32.mrf.mxu0
    %v4487 = vadd.f32 %v559, %v4486
    %v4488 = vpop.f32.mrf.mxu0
    %v4489 = vadd.f32 %v559, %v4488
    %4490 = vmatmul.bf16.gmra.mxu0 %v249
    %v4491 = vpop.f32.mrf.mxu0
    %v4492 = vadd.f32 %v559, %v4491
    %v4493 = vpop.f32.mrf.mxu0
    %v4494 = vadd.f32 %v559, %v4493
    %4495 = vmatmul.bf16.gmra.mxu0 %v252
    %v4496 = vpop.f32.mrf.mxu0
    %v4497 = vadd.f32 %v559, %v4496
    %v4498 = vpop.f32.mrf.mxu0
    %v4499 = vadd.f32 %v559, %v4498
    %4500 = vmatmul.bf16.gmra.mxu0 %v255
    %v4501 = vpop.f32.mrf.mxu0
    %v4502 = vadd.f32 %v559, %v4501
    %v4503 = vpop.f32.mrf.mxu0
    %v4504 = vadd.f32 %v559, %v4503
    %4505 = vdwg.mxu0
    %4506 = vmatpush.bf16.msra.mxu0 %v1627
    %4507 = vmatpush.bf16.msra.mxu0 %v1615
    %4508 = vmatpush.bf16.msra.mxu0 %v1603
    %4509 = vmatpush.bf16.msra.mxu0 %v1591
    %4510 = vmatpush.bf16.msra.mxu0 %v1579
    %4511 = vmatpush.bf16.msra.mxu0 %v1567
    %4512 = vmatpush.bf16.msra.mxu0 %v1555
    %4513 = vmatpush.bf16.msra.mxu0 %v1543
    %4514 = vmatmul.bf16.gmra.mxu0 %v211
    %v4515 = vpop.f32.mrf.mxu0
    %v4516 = vadd.f32 %v4427, %v4515
    %v4517 = vpop.f32.mrf.mxu0
    %v4518 = vadd.f32 %v4429, %v4517
    %4519 = vmatmul.bf16.gmra.mxu0 %v214
    %v4520 = vpop.f32.mrf.mxu0
    %v4521 = vadd.f32 %v4432, %v4520
    %v4522 = vpop.f32.mrf.mxu0
    %v4523 = vadd.f32 %v4434, %v4522
    %4524 = vmatmul.bf16.gmra.mxu0 %v217
    %v4525 = vpop.f32.mrf.mxu0
    %v4526 = vadd.f32 %v4437, %v4525
    %v4527 = vpop.f32.mrf.mxu0
    %v4528 = vadd.f32 %v4439, %v4527
    %4529 = vmatmul.bf16.gmra.mxu0 %v220
    %v4530 = vpop.f32.mrf.mxu0
    %v4531 = vadd.f32 %v4442, %v4530
    %v4532 = vpop.f32.mrf.mxu0
    %v4533 = vadd.f32 %v4444, %v4532
    %4534 = vmatmul.bf16.gmra.mxu0 %v223
    %v4535 = vpop.f32.mrf.mxu0
    %v4536 = vadd.f32 %v4447, %v4535
    %v4537 = vpop.f32.mrf.mxu0
    %v4538 = vadd.f32 %v4449, %v4537
    %4539 = vmatmul.bf16.gmra.mxu0 %v226
    %v4540 = vpop.f32.mrf.mxu0
    %v4541 = vadd.f32 %v4452, %v4540
    %v4542 = vpop.f32.mrf.mxu0
    %v4543 = vadd.f32 %v4454, %v4542
    %4544 = vmatmul.bf16.gmra.mxu0 %v229
    %v4545 = vpop.f32.mrf.mxu0
    %v4546 = vadd.f32 %v4457, %v4545
    %v4547 = vpop.f32.mrf.mxu0
    %v4548 = vadd.f32 %v4459, %v4547
    %4549 = vmatmul.bf16.gmra.mxu0 %v232
    %v4550 = vpop.f32.mrf.mxu0
    %v4551 = vadd.f32 %v4462, %v4550
    %v4552 = vpop.f32.mrf.mxu0
    %v4553 = vadd.f32 %v4464, %v4552
    %4554 = vmatmul.bf16.gmra.mxu0 %v235
    %v4555 = vpop.f32.mrf.mxu0
    %v4556 = vadd.f32 %v4467, %v4555
    %v4557 = vpop.f32.mrf.mxu0
    %v4558 = vadd.f32 %v4469, %v4557
    %4559 = vmatmul.bf16.gmra.mxu0 %v238
    %v4560 = vpop.f32.mrf.mxu0
    %v4561 = vadd.f32 %v4472, %v4560
    %v4562 = vpop.f32.mrf.mxu0
    %v4563 = vadd.f32 %v4474, %v4562
    %4564 = vmatmul.bf16.gmra.mxu0 %v241
    %v4565 = vpop.f32.mrf.mxu0
    %v4566 = vadd.f32 %v4477, %v4565
    %v4567 = vpop.f32.mrf.mxu0
    %v4568 = vadd.f32 %v4479, %v4567
    %4569 = vmatmul.bf16.gmra.mxu0 %v244
    %v4570 = vpop.f32.mrf.mxu0
    %v4571 = vadd.f32 %v4482, %v4570
    %v4572 = vpop.f32.mrf.mxu0
    %v4573 = vadd.f32 %v4484, %v4572
    %4574 = vmatmul.bf16.gmra.mxu0 %v247
    %v4575 = vpop.f32.mrf.mxu0
    %v4576 = vadd.f32 %v4487, %v4575
    %v4577 = vpop.f32.mrf.mxu0
    %v4578 = vadd.f32 %v4489, %v4577
    %4579 = vmatmul.bf16.gmra.mxu0 %v250
    %v4580 = vpop.f32.mrf.mxu0
    %v4581 = vadd.f32 %v4492, %v4580
    %v4582 = vpop.f32.mrf.mxu0
    %v4583 = vadd.f32 %v4494, %v4582
    %4584 = vmatmul.bf16.gmra.mxu0 %v253
    %v4585 = vpop.f32.mrf.mxu0
    %v4586 = vadd.f32 %v4497, %v4585
    %v4587 = vpop.f32.mrf.mxu0
    %v4588 = vadd.f32 %v4499, %v4587
    %4589 = vmatmul.bf16.gmra.mxu0 %v256
    %v4590 = vpop.f32.mrf.mxu0
    %v4591 = vadd.f32 %v4502, %v4590
    %v4592 = vpop.f32.mrf.mxu0
    %v4593 = vadd.f32 %v4504, %v4592
    %4594 = vdwg.mxu0
    %4595 = vmatpush.bf16.msra.mxu0 %v1723
    %4596 = vmatpush.bf16.msra.mxu0 %v1711
    %4597 = vmatpush.bf16.msra.mxu0 %v1699
    %4598 = vmatpush.bf16.msra.mxu0 %v1687
    %4599 = vmatpush.bf16.msra.mxu0 %v1675
    %4600 = vmatpush.bf16.msra.mxu0 %v1663
    %4601 = vmatpush.bf16.msra.mxu0 %v1651
    %4602 = vmatpush.bf16.msra.mxu0 %v1639
    %4603 = vmatmul.bf16.gmra.mxu0 %v212
    %v4604 = vpop.f32.mrf.mxu0
    %v4605 = vadd.f32 %v4516, %v4604
    %v4606 = vpop.f32.mrf.mxu0
    %v4607 = vadd.f32 %v4518, %v4606
    %4608 = vmatmul.bf16.gmra.mxu0 %v215
    %v4609 = vpop.f32.mrf.mxu0
    %v4610 = vadd.f32 %v4521, %v4609
    %v4611 = vpop.f32.mrf.mxu0
    %v4612 = vadd.f32 %v4523, %v4611
    %4613 = vmatmul.bf16.gmra.mxu0 %v218
    %v4614 = vpop.f32.mrf.mxu0
    %v4615 = vadd.f32 %v4526, %v4614
    %v4616 = vpop.f32.mrf.mxu0
    %v4617 = vadd.f32 %v4528, %v4616
    %4618 = vmatmul.bf16.gmra.mxu0 %v221
    %v4619 = vpop.f32.mrf.mxu0
    %v4620 = vadd.f32 %v4531, %v4619
    %v4621 = vpop.f32.mrf.mxu0
    %v4622 = vadd.f32 %v4533, %v4621
    %4623 = vmatmul.bf16.gmra.mxu0 %v224
    %v4624 = vpop.f32.mrf.mxu0
    %v4625 = vadd.f32 %v4536, %v4624
    %v4626 = vpop.f32.mrf.mxu0
    %v4627 = vadd.f32 %v4538, %v4626
    %4628 = vmatmul.bf16.gmra.mxu0 %v227
    %v4629 = vpop.f32.mrf.mxu0
    %v4630 = vadd.f32 %v4541, %v4629
    %v4631 = vpop.f32.mrf.mxu0
    %v4632 = vadd.f32 %v4543, %v4631
    %4633 = vmatmul.bf16.gmra.mxu0 %v230
    %v4634 = vpop.f32.mrf.mxu0
    %v4635 = vadd.f32 %v4546, %v4634
    %v4636 = vpop.f32.mrf.mxu0
    %v4637 = vadd.f32 %v4548, %v4636
    %4638 = vmatmul.bf16.gmra.mxu0 %v233
    %v4639 = vpop.f32.mrf.mxu0
    %v4640 = vadd.f32 %v4551, %v4639
    %v4641 = vpop.f32.mrf.mxu0
    %v4642 = vadd.f32 %v4553, %v4641
    %4643 = vmatmul.bf16.gmra.mxu0 %v236
    %v4644 = vpop.f32.mrf.mxu0
    %v4645 = vadd.f32 %v4556, %v4644
    %v4646 = vpop.f32.mrf.mxu0
    %v4647 = vadd.f32 %v4558, %v4646
    %4648 = vmatmul.bf16.gmra.mxu0 %v239
    %v4649 = vpop.f32.mrf.mxu0
    %v4650 = vadd.f32 %v4561, %v4649
    %v4651 = vpop.f32.mrf.mxu0
    %v4652 = vadd.f32 %v4563, %v4651
    %4653 = vmatmul.bf16.gmra.mxu0 %v242
    %v4654 = vpop.f32.mrf.mxu0
    %v4655 = vadd.f32 %v4566, %v4654
    %v4656 = vpop.f32.mrf.mxu0
    %v4657 = vadd.f32 %v4568, %v4656
    %4658 = vmatmul.bf16.gmra.mxu0 %v245
    %v4659 = vpop.f32.mrf.mxu0
    %v4660 = vadd.f32 %v4571, %v4659
    %v4661 = vpop.f32.mrf.mxu0
    %v4662 = vadd.f32 %v4573, %v4661
    %4663 = vmatmul.bf16.gmra.mxu0 %v248
    %v4664 = vpop.f32.mrf.mxu0
    %v4665 = vadd.f32 %v4576, %v4664
    %v4666 = vpop.f32.mrf.mxu0
    %v4667 = vadd.f32 %v4578, %v4666
    %4668 = vmatmul.bf16.gmra.mxu0 %v251
    %v4669 = vpop.f32.mrf.mxu0
    %v4670 = vadd.f32 %v4581, %v4669
    %v4671 = vpop.f32.mrf.mxu0
    %v4672 = vadd.f32 %v4583, %v4671
    %4673 = vmatmul.bf16.gmra.mxu0 %v254
    %v4674 = vpop.f32.mrf.mxu0
    %v4675 = vadd.f32 %v4586, %v4674
    %v4676 = vpop.f32.mrf.mxu0
    %v4677 = vadd.f32 %v4588, %v4676
    %4678 = vmatmul.bf16.gmra.mxu0 %v257
    %v4679 = vpop.f32.mrf.mxu0
    %v4680 = vadd.f32 %v4591, %v4679
    %v4681 = vpop.f32.mrf.mxu0
    %v4682 = vadd.f32 %v4593, %v4681
    %4683 = vdwg.mxu0
    %4684 = vmatpush.bf16.msra.mxu0 %v1532
    %4685 = vmatpush.bf16.msra.mxu0 %v1520
    %4686 = vmatpush.bf16.msra.mxu0 %v1508
    %4687 = vmatpush.bf16.msra.mxu0 %v1496
    %4688 = vmatpush.bf16.msra.mxu0 %v1484
    %4689 = vmatpush.bf16.msra.mxu0 %v1472
    %4690 = vmatpush.bf16.msra.mxu0 %v1460
    %4691 = vmatpush.bf16.msra.mxu0 %v1448
    %4692 = vmatmul.bf16.gmra.mxu0 %v210
    %v4693 = vpop.f32.mrf.mxu0
    %v4694 = vadd.f32 %v560, %v4693
    %v4695 = vpop.f32.mrf.mxu0
    %v4696 = vadd.f32 %v560, %v4695
    %4697 = vmatmul.bf16.gmra.mxu0 %v213
    %v4698 = vpop.f32.mrf.mxu0
    %v4699 = vadd.f32 %v560, %v4698
    %v4700 = vpop.f32.mrf.mxu0
    %v4701 = vadd.f32 %v560, %v4700
    %4702 = vmatmul.bf16.gmra.mxu0 %v216
    %v4703 = vpop.f32.mrf.mxu0
    %v4704 = vadd.f32 %v560, %v4703
    %v4705 = vpop.f32.mrf.mxu0
    %v4706 = vadd.f32 %v560, %v4705
    %4707 = vmatmul.bf16.gmra.mxu0 %v219
    %v4708 = vpop.f32.mrf.mxu0
    %v4709 = vadd.f32 %v560, %v4708
    %v4710 = vpop.f32.mrf.mxu0
    %v4711 = vadd.f32 %v560, %v4710
    %4712 = vmatmul.bf16.gmra.mxu0 %v222
    %v4713 = vpop.f32.mrf.mxu0
    %v4714 = vadd.f32 %v560, %v4713
    %v4715 = vpop.f32.mrf.mxu0
    %v4716 = vadd.f32 %v560, %v4715
    %4717 = vmatmul.bf16.gmra.mxu0 %v225
    %v4718 = vpop.f32.mrf.mxu0
    %v4719 = vadd.f32 %v560, %v4718
    %v4720 = vpop.f32.mrf.mxu0
    %v4721 = vadd.f32 %v560, %v4720
    %4722 = vmatmul.bf16.gmra.mxu0 %v228
    %v4723 = vpop.f32.mrf.mxu0
    %v4724 = vadd.f32 %v560, %v4723
    %v4725 = vpop.f32.mrf.mxu0
    %v4726 = vadd.f32 %v560, %v4725
    %4727 = vmatmul.bf16.gmra.mxu0 %v231
    %v4728 = vpop.f32.mrf.mxu0
    %v4729 = vadd.f32 %v560, %v4728
    %v4730 = vpop.f32.mrf.mxu0
    %v4731 = vadd.f32 %v560, %v4730
    %4732 = vmatmul.bf16.gmra.mxu0 %v234
    %v4733 = vpop.f32.mrf.mxu0
    %v4734 = vadd.f32 %v560, %v4733
    %v4735 = vpop.f32.mrf.mxu0
    %v4736 = vadd.f32 %v560, %v4735
    %4737 = vmatmul.bf16.gmra.mxu0 %v237
    %v4738 = vpop.f32.mrf.mxu0
    %v4739 = vadd.f32 %v560, %v4738
    %v4740 = vpop.f32.mrf.mxu0
    %v4741 = vadd.f32 %v560, %v4740
    %4742 = vmatmul.bf16.gmra.mxu0 %v240
    %v4743 = vpop.f32.mrf.mxu0
    %v4744 = vadd.f32 %v560, %v4743
    %v4745 = vpop.f32.mrf.mxu0
    %v4746 = vadd.f32 %v560, %v4745
    %4747 = vmatmul.bf16.gmra.mxu0 %v243
    %v4748 = vpop.f32.mrf.mxu0
    %v4749 = vadd.f32 %v560, %v4748
    %v4750 = vpop.f32.mrf.mxu0
    %v4751 = vadd.f32 %v560, %v4750
    %4752 = vmatmul.bf16.gmra.mxu0 %v246
    %v4753 = vpop.f32.mrf.mxu0
    %v4754 = vadd.f32 %v560, %v4753
    %v4755 = vpop.f32.mrf.mxu0
    %v4756 = vadd.f32 %v560, %v4755
    %4757 = vmatmul.bf16.gmra.mxu0 %v249
    %v4758 = vpop.f32.mrf.mxu0
    %v4759 = vadd.f32 %v560, %v4758
    %v4760 = vpop.f32.mrf.mxu0
    %v4761 = vadd.f32 %v560, %v4760
    %4762 = vmatmul.bf16.gmra.mxu0 %v252
    %v4763 = vpop.f32.mrf.mxu0
    %v4764 = vadd.f32 %v560, %v4763
    %v4765 = vpop.f32.mrf.mxu0
    %v4766 = vadd.f32 %v560, %v4765
    %4767 = vmatmul.bf16.gmra.mxu0 %v255
    %v4768 = vpop.f32.mrf.mxu0
    %v4769 = vadd.f32 %v560, %v4768
    %v4770 = vpop.f32.mrf.mxu0
    %v4771 = vadd.f32 %v560, %v4770
    %4772 = vdwg.mxu0
    %4773 = vmatpush.bf16.msra.mxu0 %v1628
    %4774 = vmatpush.bf16.msra.mxu0 %v1616
    %4775 = vmatpush.bf16.msra.mxu0 %v1604
    %4776 = vmatpush.bf16.msra.mxu0 %v1592
    %4777 = vmatpush.bf16.msra.mxu0 %v1580
    %4778 = vmatpush.bf16.msra.mxu0 %v1568
    %4779 = vmatpush.bf16.msra.mxu0 %v1556
    %4780 = vmatpush.bf16.msra.mxu0 %v1544
    %4781 = vmatmul.bf16.gmra.mxu0 %v211
    %v4782 = vpop.f32.mrf.mxu0
    %v4783 = vadd.f32 %v4694, %v4782
    %v4784 = vpop.f32.mrf.mxu0
    %v4785 = vadd.f32 %v4696, %v4784
    %4786 = vmatmul.bf16.gmra.mxu0 %v214
    %v4787 = vpop.f32.mrf.mxu0
    %v4788 = vadd.f32 %v4699, %v4787
    %v4789 = vpop.f32.mrf.mxu0
    %v4790 = vadd.f32 %v4701, %v4789
    %4791 = vmatmul.bf16.gmra.mxu0 %v217
    %v4792 = vpop.f32.mrf.mxu0
    %v4793 = vadd.f32 %v4704, %v4792
    %v4794 = vpop.f32.mrf.mxu0
    %v4795 = vadd.f32 %v4706, %v4794
    %4796 = vmatmul.bf16.gmra.mxu0 %v220
    %v4797 = vpop.f32.mrf.mxu0
    %v4798 = vadd.f32 %v4709, %v4797
    %v4799 = vpop.f32.mrf.mxu0
    %v4800 = vadd.f32 %v4711, %v4799
    %4801 = vmatmul.bf16.gmra.mxu0 %v223
    %v4802 = vpop.f32.mrf.mxu0
    %v4803 = vadd.f32 %v4714, %v4802
    %v4804 = vpop.f32.mrf.mxu0
    %v4805 = vadd.f32 %v4716, %v4804
    %4806 = vmatmul.bf16.gmra.mxu0 %v226
    %v4807 = vpop.f32.mrf.mxu0
    %v4808 = vadd.f32 %v4719, %v4807
    %v4809 = vpop.f32.mrf.mxu0
    %v4810 = vadd.f32 %v4721, %v4809
    %4811 = vmatmul.bf16.gmra.mxu0 %v229
    %v4812 = vpop.f32.mrf.mxu0
    %v4813 = vadd.f32 %v4724, %v4812
    %v4814 = vpop.f32.mrf.mxu0
    %v4815 = vadd.f32 %v4726, %v4814
    %4816 = vmatmul.bf16.gmra.mxu0 %v232
    %v4817 = vpop.f32.mrf.mxu0
    %v4818 = vadd.f32 %v4729, %v4817
    %v4819 = vpop.f32.mrf.mxu0
    %v4820 = vadd.f32 %v4731, %v4819
    %4821 = vmatmul.bf16.gmra.mxu0 %v235
    %v4822 = vpop.f32.mrf.mxu0
    %v4823 = vadd.f32 %v4734, %v4822
    %v4824 = vpop.f32.mrf.mxu0
    %v4825 = vadd.f32 %v4736, %v4824
    %4826 = vmatmul.bf16.gmra.mxu0 %v238
    %v4827 = vpop.f32.mrf.mxu0
    %v4828 = vadd.f32 %v4739, %v4827
    %v4829 = vpop.f32.mrf.mxu0
    %v4830 = vadd.f32 %v4741, %v4829
    %4831 = vmatmul.bf16.gmra.mxu0 %v241
    %v4832 = vpop.f32.mrf.mxu0
    %v4833 = vadd.f32 %v4744, %v4832
    %v4834 = vpop.f32.mrf.mxu0
    %v4835 = vadd.f32 %v4746, %v4834
    %4836 = vmatmul.bf16.gmra.mxu0 %v244
    %v4837 = vpop.f32.mrf.mxu0
    %v4838 = vadd.f32 %v4749, %v4837
    %v4839 = vpop.f32.mrf.mxu0
    %v4840 = vadd.f32 %v4751, %v4839
    %4841 = vmatmul.bf16.gmra.mxu0 %v247
    %v4842 = vpop.f32.mrf.mxu0
    %v4843 = vadd.f32 %v4754, %v4842
    %v4844 = vpop.f32.mrf.mxu0
    %v4845 = vadd.f32 %v4756, %v4844
    %4846 = vmatmul.bf16.gmra.mxu0 %v250
    %v4847 = vpop.f32.mrf.mxu0
    %v4848 = vadd.f32 %v4759, %v4847
    %v4849 = vpop.f32.mrf.mxu0
    %v4850 = vadd.f32 %v4761, %v4849
    %4851 = vmatmul.bf16.gmra.mxu0 %v253
    %v4852 = vpop.f32.mrf.mxu0
    %v4853 = vadd.f32 %v4764, %v4852
    %v4854 = vpop.f32.mrf.mxu0
    %v4855 = vadd.f32 %v4766, %v4854
    %4856 = vmatmul.bf16.gmra.mxu0 %v256
    %v4857 = vpop.f32.mrf.mxu0
    %v4858 = vadd.f32 %v4769, %v4857
    %v4859 = vpop.f32.mrf.mxu0
    %v4860 = vadd.f32 %v4771, %v4859
    %4861 = vdwg.mxu0
    %4862 = vmatpush.bf16.msra.mxu0 %v1724
    %4863 = vmatpush.bf16.msra.mxu0 %v1712
    %4864 = vmatpush.bf16.msra.mxu0 %v1700
    %4865 = vmatpush.bf16.msra.mxu0 %v1688
    %4866 = vmatpush.bf16.msra.mxu0 %v1676
    %4867 = vmatpush.bf16.msra.mxu0 %v1664
    %4868 = vmatpush.bf16.msra.mxu0 %v1652
    %4869 = vmatpush.bf16.msra.mxu0 %v1640
    %4870 = vmatmul.bf16.gmra.mxu0 %v212
    %v4871 = vpop.f32.mrf.mxu0
    %v4872 = vadd.f32 %v4783, %v4871
    %v4873 = vpop.f32.mrf.mxu0
    %v4874 = vadd.f32 %v4785, %v4873
    %4875 = vmatmul.bf16.gmra.mxu0 %v215
    %v4876 = vpop.f32.mrf.mxu0
    %v4877 = vadd.f32 %v4788, %v4876
    %v4878 = vpop.f32.mrf.mxu0
    %v4879 = vadd.f32 %v4790, %v4878
    %4880 = vmatmul.bf16.gmra.mxu0 %v218
    %v4881 = vpop.f32.mrf.mxu0
    %v4882 = vadd.f32 %v4793, %v4881
    %v4883 = vpop.f32.mrf.mxu0
    %v4884 = vadd.f32 %v4795, %v4883
    %4885 = vmatmul.bf16.gmra.mxu0 %v221
    %v4886 = vpop.f32.mrf.mxu0
    %v4887 = vadd.f32 %v4798, %v4886
    %v4888 = vpop.f32.mrf.mxu0
    %v4889 = vadd.f32 %v4800, %v4888
    %4890 = vmatmul.bf16.gmra.mxu0 %v224
    %v4891 = vpop.f32.mrf.mxu0
    %v4892 = vadd.f32 %v4803, %v4891
    %v4893 = vpop.f32.mrf.mxu0
    %v4894 = vadd.f32 %v4805, %v4893
    %4895 = vmatmul.bf16.gmra.mxu0 %v227
    %v4896 = vpop.f32.mrf.mxu0
    %v4897 = vadd.f32 %v4808, %v4896
    %v4898 = vpop.f32.mrf.mxu0
    %v4899 = vadd.f32 %v4810, %v4898
    %4900 = vmatmul.bf16.gmra.mxu0 %v230
    %v4901 = vpop.f32.mrf.mxu0
    %v4902 = vadd.f32 %v4813, %v4901
    %v4903 = vpop.f32.mrf.mxu0
    %v4904 = vadd.f32 %v4815, %v4903
    %4905 = vmatmul.bf16.gmra.mxu0 %v233
    %v4906 = vpop.f32.mrf.mxu0
    %v4907 = vadd.f32 %v4818, %v4906
    %v4908 = vpop.f32.mrf.mxu0
    %v4909 = vadd.f32 %v4820, %v4908
    %4910 = vmatmul.bf16.gmra.mxu0 %v236
    %v4911 = vpop.f32.mrf.mxu0
    %v4912 = vadd.f32 %v4823, %v4911
    %v4913 = vpop.f32.mrf.mxu0
    %v4914 = vadd.f32 %v4825, %v4913
    %4915 = vmatmul.bf16.gmra.mxu0 %v239
    %v4916 = vpop.f32.mrf.mxu0
    %v4917 = vadd.f32 %v4828, %v4916
    %v4918 = vpop.f32.mrf.mxu0
    %v4919 = vadd.f32 %v4830, %v4918
    %4920 = vmatmul.bf16.gmra.mxu0 %v242
    %v4921 = vpop.f32.mrf.mxu0
    %v4922 = vadd.f32 %v4833, %v4921
    %v4923 = vpop.f32.mrf.mxu0
    %v4924 = vadd.f32 %v4835, %v4923
    %4925 = vmatmul.bf16.gmra.mxu0 %v245
    %v4926 = vpop.f32.mrf.mxu0
    %v4927 = vadd.f32 %v4838, %v4926
    %v4928 = vpop.f32.mrf.mxu0
    %v4929 = vadd.f32 %v4840, %v4928
    %4930 = vmatmul.bf16.gmra.mxu0 %v248
    %v4931 = vpop.f32.mrf.mxu0
    %v4932 = vadd.f32 %v4843, %v4931
    %v4933 = vpop.f32.mrf.mxu0
    %v4934 = vadd.f32 %v4845, %v4933
    %4935 = vmatmul.bf16.gmra.mxu0 %v251
    %v4936 = vpop.f32.mrf.mxu0
    %v4937 = vadd.f32 %v4848, %v4936
    %v4938 = vpop.f32.mrf.mxu0
    %v4939 = vadd.f32 %v4850, %v4938
    %4940 = vmatmul.bf16.gmra.mxu0 %v254
    %v4941 = vpop.f32.mrf.mxu0
    %v4942 = vadd.f32 %v4853, %v4941
    %v4943 = vpop.f32.mrf.mxu0
    %v4944 = vadd.f32 %v4855, %v4943
    %4945 = vmatmul.bf16.gmra.mxu0 %v257
    %v4946 = vpop.f32.mrf.mxu0
    %v4947 = vadd.f32 %v4858, %v4946
    %v4948 = vpop.f32.mrf.mxu0
    %v4949 = vadd.f32 %v4860, %v4948
    %4950 = vdwg.mxu0
    %4951 = vmatpush.bf16.msra.mxu0 %v1533
    %4952 = vmatpush.bf16.msra.mxu0 %v1521
    %4953 = vmatpush.bf16.msra.mxu0 %v1509
    %4954 = vmatpush.bf16.msra.mxu0 %v1497
    %4955 = vmatpush.bf16.msra.mxu0 %v1485
    %4956 = vmatpush.bf16.msra.mxu0 %v1473
    %4957 = vmatpush.bf16.msra.mxu0 %v1461
    %4958 = vmatpush.bf16.msra.mxu0 %v1449
    %4959 = vmatmul.bf16.gmra.mxu0 %v210
    %v4960 = vpop.f32.mrf.mxu0
    %v4961 = vadd.f32 %v561, %v4960
    %v4962 = vpop.f32.mrf.mxu0
    %v4963 = vadd.f32 %v561, %v4962
    %4964 = vmatmul.bf16.gmra.mxu0 %v213
    %v4965 = vpop.f32.mrf.mxu0
    %v4966 = vadd.f32 %v561, %v4965
    %v4967 = vpop.f32.mrf.mxu0
    %v4968 = vadd.f32 %v561, %v4967
    %4969 = vmatmul.bf16.gmra.mxu0 %v216
    %v4970 = vpop.f32.mrf.mxu0
    %v4971 = vadd.f32 %v561, %v4970
    %v4972 = vpop.f32.mrf.mxu0
    %v4973 = vadd.f32 %v561, %v4972
    %4974 = vmatmul.bf16.gmra.mxu0 %v219
    %v4975 = vpop.f32.mrf.mxu0
    %v4976 = vadd.f32 %v561, %v4975
    %v4977 = vpop.f32.mrf.mxu0
    %v4978 = vadd.f32 %v561, %v4977
    %4979 = vmatmul.bf16.gmra.mxu0 %v222
    %v4980 = vpop.f32.mrf.mxu0
    %v4981 = vadd.f32 %v561, %v4980
    %v4982 = vpop.f32.mrf.mxu0
    %v4983 = vadd.f32 %v561, %v4982
    %4984 = vmatmul.bf16.gmra.mxu0 %v225
    %v4985 = vpop.f32.mrf.mxu0
    %v4986 = vadd.f32 %v561, %v4985
    %v4987 = vpop.f32.mrf.mxu0
    %v4988 = vadd.f32 %v561, %v4987
    %4989 = vmatmul.bf16.gmra.mxu0 %v228
    %v4990 = vpop.f32.mrf.mxu0
    %v4991 = vadd.f32 %v561, %v4990
    %v4992 = vpop.f32.mrf.mxu0
    %v4993 = vadd.f32 %v561, %v4992
    %4994 = vmatmul.bf16.gmra.mxu0 %v231
    %v4995 = vpop.f32.mrf.mxu0
    %v4996 = vadd.f32 %v561, %v4995
    %v4997 = vpop.f32.mrf.mxu0
    %v4998 = vadd.f32 %v561, %v4997
    %4999 = vmatmul.bf16.gmra.mxu0 %v234
    %v5000 = vpop.f32.mrf.mxu0
    %v5001 = vadd.f32 %v561, %v5000
    %v5002 = vpop.f32.mrf.mxu0
    %v5003 = vadd.f32 %v561, %v5002
    %5004 = vmatmul.bf16.gmra.mxu0 %v237
    %v5005 = vpop.f32.mrf.mxu0
    %v5006 = vadd.f32 %v561, %v5005
    %v5007 = vpop.f32.mrf.mxu0
    %v5008 = vadd.f32 %v561, %v5007
    %5009 = vmatmul.bf16.gmra.mxu0 %v240
    %v5010 = vpop.f32.mrf.mxu0
    %v5011 = vadd.f32 %v561, %v5010
    %v5012 = vpop.f32.mrf.mxu0
    %v5013 = vadd.f32 %v561, %v5012
    %5014 = vmatmul.bf16.gmra.mxu0 %v243
    %v5015 = vpop.f32.mrf.mxu0
    %v5016 = vadd.f32 %v561, %v5015
    %v5017 = vpop.f32.mrf.mxu0
    %v5018 = vadd.f32 %v561, %v5017
    %5019 = vmatmul.bf16.gmra.mxu0 %v246
    %v5020 = vpop.f32.mrf.mxu0
    %v5021 = vadd.f32 %v561, %v5020
    %v5022 = vpop.f32.mrf.mxu0
    %v5023 = vadd.f32 %v561, %v5022
    %5024 = vmatmul.bf16.gmra.mxu0 %v249
    %v5025 = vpop.f32.mrf.mxu0
    %v5026 = vadd.f32 %v561, %v5025
    %v5027 = vpop.f32.mrf.mxu0
    %v5028 = vadd.f32 %v561, %v5027
    %5029 = vmatmul.bf16.gmra.mxu0 %v252
    %v5030 = vpop.f32.mrf.mxu0
    %v5031 = vadd.f32 %v561, %v5030
    %v5032 = vpop.f32.mrf.mxu0
    %v5033 = vadd.f32 %v561, %v5032
    %5034 = vmatmul.bf16.gmra.mxu0 %v255
    %v5035 = vpop.f32.mrf.mxu0
    %v5036 = vadd.f32 %v561, %v5035
    %v5037 = vpop.f32.mrf.mxu0
    %v5038 = vadd.f32 %v561, %v5037
    %5039 = vdwg.mxu0
    %5040 = vmatpush.bf16.msra.mxu0 %v1629
    %5041 = vmatpush.bf16.msra.mxu0 %v1617
    %5042 = vmatpush.bf16.msra.mxu0 %v1605
    %5043 = vmatpush.bf16.msra.mxu0 %v1593
    %5044 = vmatpush.bf16.msra.mxu0 %v1581
    %5045 = vmatpush.bf16.msra.mxu0 %v1569
    %5046 = vmatpush.bf16.msra.mxu0 %v1557
    %5047 = vmatpush.bf16.msra.mxu0 %v1545
    %5048 = vmatmul.bf16.gmra.mxu0 %v211
    %v5049 = vpop.f32.mrf.mxu0
    %v5050 = vadd.f32 %v4961, %v5049
    %v5051 = vpop.f32.mrf.mxu0
    %v5052 = vadd.f32 %v4963, %v5051
    %5053 = vmatmul.bf16.gmra.mxu0 %v214
    %v5054 = vpop.f32.mrf.mxu0
    %v5055 = vadd.f32 %v4966, %v5054
    %v5056 = vpop.f32.mrf.mxu0
    %v5057 = vadd.f32 %v4968, %v5056
    %5058 = vmatmul.bf16.gmra.mxu0 %v217
    %v5059 = vpop.f32.mrf.mxu0
    %v5060 = vadd.f32 %v4971, %v5059
    %v5061 = vpop.f32.mrf.mxu0
    %v5062 = vadd.f32 %v4973, %v5061
    %5063 = vmatmul.bf16.gmra.mxu0 %v220
    %v5064 = vpop.f32.mrf.mxu0
    %v5065 = vadd.f32 %v4976, %v5064
    %v5066 = vpop.f32.mrf.mxu0
    %v5067 = vadd.f32 %v4978, %v5066
    %5068 = vmatmul.bf16.gmra.mxu0 %v223
    %v5069 = vpop.f32.mrf.mxu0
    %v5070 = vadd.f32 %v4981, %v5069
    %v5071 = vpop.f32.mrf.mxu0
    %v5072 = vadd.f32 %v4983, %v5071
    %5073 = vmatmul.bf16.gmra.mxu0 %v226
    %v5074 = vpop.f32.mrf.mxu0
    %v5075 = vadd.f32 %v4986, %v5074
    %v5076 = vpop.f32.mrf.mxu0
    %v5077 = vadd.f32 %v4988, %v5076
    %5078 = vmatmul.bf16.gmra.mxu0 %v229
    %v5079 = vpop.f32.mrf.mxu0
    %v5080 = vadd.f32 %v4991, %v5079
    %v5081 = vpop.f32.mrf.mxu0
    %v5082 = vadd.f32 %v4993, %v5081
    %5083 = vmatmul.bf16.gmra.mxu0 %v232
    %v5084 = vpop.f32.mrf.mxu0
    %v5085 = vadd.f32 %v4996, %v5084
    %v5086 = vpop.f32.mrf.mxu0
    %v5087 = vadd.f32 %v4998, %v5086
    %5088 = vmatmul.bf16.gmra.mxu0 %v235
    %v5089 = vpop.f32.mrf.mxu0
    %v5090 = vadd.f32 %v5001, %v5089
    %v5091 = vpop.f32.mrf.mxu0
    %v5092 = vadd.f32 %v5003, %v5091
    %5093 = vmatmul.bf16.gmra.mxu0 %v238
    %v5094 = vpop.f32.mrf.mxu0
    %v5095 = vadd.f32 %v5006, %v5094
    %v5096 = vpop.f32.mrf.mxu0
    %v5097 = vadd.f32 %v5008, %v5096
    %5098 = vmatmul.bf16.gmra.mxu0 %v241
    %v5099 = vpop.f32.mrf.mxu0
    %v5100 = vadd.f32 %v5011, %v5099
    %v5101 = vpop.f32.mrf.mxu0
    %v5102 = vadd.f32 %v5013, %v5101
    %5103 = vmatmul.bf16.gmra.mxu0 %v244
    %v5104 = vpop.f32.mrf.mxu0
    %v5105 = vadd.f32 %v5016, %v5104
    %v5106 = vpop.f32.mrf.mxu0
    %v5107 = vadd.f32 %v5018, %v5106
    %5108 = vmatmul.bf16.gmra.mxu0 %v247
    %v5109 = vpop.f32.mrf.mxu0
    %v5110 = vadd.f32 %v5021, %v5109
    %v5111 = vpop.f32.mrf.mxu0
    %v5112 = vadd.f32 %v5023, %v5111
    %5113 = vmatmul.bf16.gmra.mxu0 %v250
    %v5114 = vpop.f32.mrf.mxu0
    %v5115 = vadd.f32 %v5026, %v5114
    %v5116 = vpop.f32.mrf.mxu0
    %v5117 = vadd.f32 %v5028, %v5116
    %5118 = vmatmul.bf16.gmra.mxu0 %v253
    %v5119 = vpop.f32.mrf.mxu0
    %v5120 = vadd.f32 %v5031, %v5119
    %v5121 = vpop.f32.mrf.mxu0
    %v5122 = vadd.f32 %v5033, %v5121
    %5123 = vmatmul.bf16.gmra.mxu0 %v256
    %v5124 = vpop.f32.mrf.mxu0
    %v5125 = vadd.f32 %v5036, %v5124
    %v5126 = vpop.f32.mrf.mxu0
    %v5127 = vadd.f32 %v5038, %v5126
    %5128 = vdwg.mxu0
    %5129 = vmatpush.bf16.msra.mxu0 %v1725
    %5130 = vmatpush.bf16.msra.mxu0 %v1713
    %5131 = vmatpush.bf16.msra.mxu0 %v1701
    %5132 = vmatpush.bf16.msra.mxu0 %v1689
    %5133 = vmatpush.bf16.msra.mxu0 %v1677
    %5134 = vmatpush.bf16.msra.mxu0 %v1665
    %5135 = vmatpush.bf16.msra.mxu0 %v1653
    %5136 = vmatpush.bf16.msra.mxu0 %v1641
    %5137 = vmatmul.bf16.gmra.mxu0 %v212
    %v5138 = vpop.f32.mrf.mxu0
    %v5139 = vadd.f32 %v5050, %v5138
    %v5140 = vpop.f32.mrf.mxu0
    %v5141 = vadd.f32 %v5052, %v5140
    %5142 = vmatmul.bf16.gmra.mxu0 %v215
    %v5143 = vpop.f32.mrf.mxu0
    %v5144 = vadd.f32 %v5055, %v5143
    %v5145 = vpop.f32.mrf.mxu0
    %v5146 = vadd.f32 %v5057, %v5145
    %5147 = vmatmul.bf16.gmra.mxu0 %v218
    %v5148 = vpop.f32.mrf.mxu0
    %v5149 = vadd.f32 %v5060, %v5148
    %v5150 = vpop.f32.mrf.mxu0
    %v5151 = vadd.f32 %v5062, %v5150
    %5152 = vmatmul.bf16.gmra.mxu0 %v221
    %v5153 = vpop.f32.mrf.mxu0
    %v5154 = vadd.f32 %v5065, %v5153
    %v5155 = vpop.f32.mrf.mxu0
    %v5156 = vadd.f32 %v5067, %v5155
    %5157 = vmatmul.bf16.gmra.mxu0 %v224
    %v5158 = vpop.f32.mrf.mxu0
    %v5159 = vadd.f32 %v5070, %v5158
    %v5160 = vpop.f32.mrf.mxu0
    %v5161 = vadd.f32 %v5072, %v5160
    %5162 = vmatmul.bf16.gmra.mxu0 %v227
    %v5163 = vpop.f32.mrf.mxu0
    %v5164 = vadd.f32 %v5075, %v5163
    %v5165 = vpop.f32.mrf.mxu0
    %v5166 = vadd.f32 %v5077, %v5165
    %5167 = vmatmul.bf16.gmra.mxu0 %v230
    %v5168 = vpop.f32.mrf.mxu0
    %v5169 = vadd.f32 %v5080, %v5168
    %v5170 = vpop.f32.mrf.mxu0
    %v5171 = vadd.f32 %v5082, %v5170
    %5172 = vmatmul.bf16.gmra.mxu0 %v233
    %v5173 = vpop.f32.mrf.mxu0
    %v5174 = vadd.f32 %v5085, %v5173
    %v5175 = vpop.f32.mrf.mxu0
    %v5176 = vadd.f32 %v5087, %v5175
    %5177 = vmatmul.bf16.gmra.mxu0 %v236
    %v5178 = vpop.f32.mrf.mxu0
    %v5179 = vadd.f32 %v5090, %v5178
    %v5180 = vpop.f32.mrf.mxu0
    %v5181 = vadd.f32 %v5092, %v5180
    %5182 = vmatmul.bf16.gmra.mxu0 %v239
    %v5183 = vpop.f32.mrf.mxu0
    %v5184 = vadd.f32 %v5095, %v5183
    %v5185 = vpop.f32.mrf.mxu0
    %v5186 = vadd.f32 %v5097, %v5185
    %5187 = vmatmul.bf16.gmra.mxu0 %v242
    %v5188 = vpop.f32.mrf.mxu0
    %v5189 = vadd.f32 %v5100, %v5188
    %v5190 = vpop.f32.mrf.mxu0
    %v5191 = vadd.f32 %v5102, %v5190
    %5192 = vmatmul.bf16.gmra.mxu0 %v245
    %v5193 = vpop.f32.mrf.mxu0
    %v5194 = vadd.f32 %v5105, %v5193
    %v5195 = vpop.f32.mrf.mxu0
    %v5196 = vadd.f32 %v5107, %v5195
    %5197 = vmatmul.bf16.gmra.mxu0 %v248
    %v5198 = vpop.f32.mrf.mxu0
    %v5199 = vadd.f32 %v5110, %v5198
    %v5200 = vpop.f32.mrf.mxu0
    %v5201 = vadd.f32 %v5112, %v5200
    %5202 = vmatmul.bf16.gmra.mxu0 %v251
    %v5203 = vpop.f32.mrf.mxu0
    %v5204 = vadd.f32 %v5115, %v5203
    %v5205 = vpop.f32.mrf.mxu0
    %v5206 = vadd.f32 %v5117, %v5205
    %5207 = vmatmul.bf16.gmra.mxu0 %v254
    %v5208 = vpop.f32.mrf.mxu0
    %v5209 = vadd.f32 %v5120, %v5208
    %v5210 = vpop.f32.mrf.mxu0
    %v5211 = vadd.f32 %v5122, %v5210
    %5212 = vmatmul.bf16.gmra.mxu0 %v257
    %v5213 = vpop.f32.mrf.mxu0
    %v5214 = vadd.f32 %v5125, %v5213
    %v5215 = vpop.f32.mrf.mxu0
    %v5216 = vadd.f32 %v5127, %v5215
    %5217 = vdwg.mxu0
    %v5218 = vmax.f32 %v2202, 0.0
    %v5219 = vmax.f32 %v2469, 0.0
    %v5220 = vmax.f32 %v2736, 0.0
    %v5221 = vmax.f32 %v3003, 0.0
    %v5222 = vmax.f32 %v3270, 0.0
    %v5223 = vmax.f32 %v3537, 0.0
    %v5224 = vmax.f32 %v3804, 0.0
    %v5225 = vmax.f32 %v4071, 0.0
    %v5226 = vmax.f32 %v4338, 0.0
    %v5227 = vmax.f32 %v4605, 0.0
    %v5228 = vmax.f32 %v4872, 0.0
    %v5229 = vmax.f32 %v5139, 0.0
    %v5230 = vmax.f32 %v2204, 0.0
    %v5231 = vmax.f32 %v2471, 0.0
    %v5232 = vmax.f32 %v2738, 0.0
    %v5233 = vmax.f32 %v3005, 0.0
    %v5234 = vmax.f32 %v3272, 0.0
    %v5235 = vmax.f32 %v3539, 0.0
    %v5236 = vmax.f32 %v3806, 0.0
    %v5237 = vmax.f32 %v4073, 0.0
    %v5238 = vmax.f32 %v4340, 0.0
    %v5239 = vmax.f32 %v4607, 0.0
    %v5240 = vmax.f32 %v4874, 0.0
    %v5241 = vmax.f32 %v5141, 0.0
    %v5242 = vmax.f32 %v2207, 0.0
    %v5243 = vmax.f32 %v2474, 0.0
    %v5244 = vmax.f32 %v2741, 0.0
    %v5245 = vmax.f32 %v3008, 0.0
    %v5246 = vmax.f32 %v3275, 0.0
    %v5247 = vmax.f32 %v3542, 0.0
    %v5248 = vmax.f32 %v3809, 0.0
    %v5249 = vmax.f32 %v4076, 0.0
    %v5250 = vmax.f32 %v4343, 0.0
    %v5251 = vmax.f32 %v4610, 0.0
    %v5252 = vmax.f32 %v4877, 0.0
    %v5253 = vmax.f32 %v5144, 0.0
    %v5254 = vmax.f32 %v2209, 0.0
    %v5255 = vmax.f32 %v2476, 0.0
    %v5256 = vmax.f32 %v2743, 0.0
    %v5257 = vmax.f32 %v3010, 0.0
    %v5258 = vmax.f32 %v3277, 0.0
    %v5259 = vmax.f32 %v3544, 0.0
    %v5260 = vmax.f32 %v3811, 0.0
    %v5261 = vmax.f32 %v4078, 0.0
    %v5262 = vmax.f32 %v4345, 0.0
    %v5263 = vmax.f32 %v4612, 0.0
    %v5264 = vmax.f32 %v4879, 0.0
    %v5265 = vmax.f32 %v5146, 0.0
    %v5266 = vmax.f32 %v2212, 0.0
    %v5267 = vmax.f32 %v2479, 0.0
    %v5268 = vmax.f32 %v2746, 0.0
    %v5269 = vmax.f32 %v3013, 0.0
    %v5270 = vmax.f32 %v3280, 0.0
    %v5271 = vmax.f32 %v3547, 0.0
    %v5272 = vmax.f32 %v3814, 0.0
    %v5273 = vmax.f32 %v4081, 0.0
    %v5274 = vmax.f32 %v4348, 0.0
    %v5275 = vmax.f32 %v4615, 0.0
    %v5276 = vmax.f32 %v4882, 0.0
    %v5277 = vmax.f32 %v5149, 0.0
    %v5278 = vmax.f32 %v2214, 0.0
    %v5279 = vmax.f32 %v2481, 0.0
    %v5280 = vmax.f32 %v2748, 0.0
    %v5281 = vmax.f32 %v3015, 0.0
    %v5282 = vmax.f32 %v3282, 0.0
    %v5283 = vmax.f32 %v3549, 0.0
    %v5284 = vmax.f32 %v3816, 0.0
    %v5285 = vmax.f32 %v4083, 0.0
    %v5286 = vmax.f32 %v4350, 0.0
    %v5287 = vmax.f32 %v4617, 0.0
    %v5288 = vmax.f32 %v4884, 0.0
    %v5289 = vmax.f32 %v5151, 0.0
    %v5290 = vmax.f32 %v2217, 0.0
    %v5291 = vmax.f32 %v2484, 0.0
    %v5292 = vmax.f32 %v2751, 0.0
    %v5293 = vmax.f32 %v3018, 0.0
    %v5294 = vmax.f32 %v3285, 0.0
    %v5295 = vmax.f32 %v3552, 0.0
    %v5296 = vmax.f32 %v3819, 0.0
    %v5297 = vmax.f32 %v4086, 0.0
    %v5298 = vmax.f32 %v4353, 0.0
    %v5299 = vmax.f32 %v4620, 0.0
    %v5300 = vmax.f32 %v4887, 0.0
    %v5301 = vmax.f32 %v5154, 0.0
    %v5302 = vmax.f32 %v2219, 0.0
    %v5303 = vmax.f32 %v2486, 0.0
    %v5304 = vmax.f32 %v2753, 0.0
    %v5305 = vmax.f32 %v3020, 0.0
    %v5306 = vmax.f32 %v3287, 0.0
    %v5307 = vmax.f32 %v3554, 0.0
    %v5308 = vmax.f32 %v3821, 0.0
    %v5309 = vmax.f32 %v4088, 0.0
    %v5310 = vmax.f32 %v4355, 0.0
    %v5311 = vmax.f32 %v4622, 0.0
    %v5312 = vmax.f32 %v4889, 0.0
    %v5313 = vmax.f32 %v5156, 0.0
    %v5314 = vmax.f32 %v2222, 0.0
    %v5315 = vmax.f32 %v2489, 0.0
    %v5316 = vmax.f32 %v2756, 0.0
    %v5317 = vmax.f32 %v3023, 0.0
    %v5318 = vmax.f32 %v3290, 0.0
    %v5319 = vmax.f32 %v3557, 0.0
    %v5320 = vmax.f32 %v3824, 0.0
    %v5321 = vmax.f32 %v4091, 0.0
    %v5322 = vmax.f32 %v4358, 0.0
    %v5323 = vmax.f32 %v4625, 0.0
    %v5324 = vmax.f32 %v4892, 0.0
    %v5325 = vmax.f32 %v5159, 0.0
    %v5326 = vmax.f32 %v2224, 0.0
    %v5327 = vmax.f32 %v2491, 0.0
    %v5328 = vmax.f32 %v2758, 0.0
    %v5329 = vmax.f32 %v3025, 0.0
    %v5330 = vmax.f32 %v3292, 0.0
    %v5331 = vmax.f32 %v3559, 0.0
    %v5332 = vmax.f32 %v3826, 0.0
    %v5333 = vmax.f32 %v4093, 0.0
    %v5334 = vmax.f32 %v4360, 0.0
    %v5335 = vmax.f32 %v4627, 0.0
    %v5336 = vmax.f32 %v4894, 0.0
    %v5337 = vmax.f32 %v5161, 0.0
    %v5338 = vmax.f32 %v2227, 0.0
    %v5339 = vmax.f32 %v2494, 0.0
    %v5340 = vmax.f32 %v2761, 0.0
    %v5341 = vmax.f32 %v3028, 0.0
    %v5342 = vmax.f32 %v3295, 0.0
    %v5343 = vmax.f32 %v3562, 0.0
    %v5344 = vmax.f32 %v3829, 0.0
    %v5345 = vmax.f32 %v4096, 0.0
    %v5346 = vmax.f32 %v4363, 0.0
    %v5347 = vmax.f32 %v4630, 0.0
    %v5348 = vmax.f32 %v4897, 0.0
    %v5349 = vmax.f32 %v5164, 0.0
    %v5350 = vmax.f32 %v2229, 0.0
    %v5351 = vmax.f32 %v2496, 0.0
    %v5352 = vmax.f32 %v2763, 0.0
    %v5353 = vmax.f32 %v3030, 0.0
    %v5354 = vmax.f32 %v3297, 0.0
    %v5355 = vmax.f32 %v3564, 0.0
    %v5356 = vmax.f32 %v3831, 0.0
    %v5357 = vmax.f32 %v4098, 0.0
    %v5358 = vmax.f32 %v4365, 0.0
    %v5359 = vmax.f32 %v4632, 0.0
    %v5360 = vmax.f32 %v4899, 0.0
    %v5361 = vmax.f32 %v5166, 0.0
    %v5362 = vmax.f32 %v2232, 0.0
    %v5363 = vmax.f32 %v2499, 0.0
    %v5364 = vmax.f32 %v2766, 0.0
    %v5365 = vmax.f32 %v3033, 0.0
    %v5366 = vmax.f32 %v3300, 0.0
    %v5367 = vmax.f32 %v3567, 0.0
    %v5368 = vmax.f32 %v3834, 0.0
    %v5369 = vmax.f32 %v4101, 0.0
    %v5370 = vmax.f32 %v4368, 0.0
    %v5371 = vmax.f32 %v4635, 0.0
    %v5372 = vmax.f32 %v4902, 0.0
    %v5373 = vmax.f32 %v5169, 0.0
    %v5374 = vmax.f32 %v2234, 0.0
    %v5375 = vmax.f32 %v2501, 0.0
    %v5376 = vmax.f32 %v2768, 0.0
    %v5377 = vmax.f32 %v3035, 0.0
    %v5378 = vmax.f32 %v3302, 0.0
    %v5379 = vmax.f32 %v3569, 0.0
    %v5380 = vmax.f32 %v3836, 0.0
    %v5381 = vmax.f32 %v4103, 0.0
    %v5382 = vmax.f32 %v4370, 0.0
    %v5383 = vmax.f32 %v4637, 0.0
    %v5384 = vmax.f32 %v4904, 0.0
    %v5385 = vmax.f32 %v5171, 0.0
    %v5386 = vmax.f32 %v2237, 0.0
    %v5387 = vmax.f32 %v2504, 0.0
    %v5388 = vmax.f32 %v2771, 0.0
    %v5389 = vmax.f32 %v3038, 0.0
    %v5390 = vmax.f32 %v3305, 0.0
    %v5391 = vmax.f32 %v3572, 0.0
    %v5392 = vmax.f32 %v3839, 0.0
    %v5393 = vmax.f32 %v4106, 0.0
    %v5394 = vmax.f32 %v4373, 0.0
    %v5395 = vmax.f32 %v4640, 0.0
    %v5396 = vmax.f32 %v4907, 0.0
    %v5397 = vmax.f32 %v5174, 0.0
    %v5398 = vmax.f32 %v2239, 0.0
    %v5399 = vmax.f32 %v2506, 0.0
    %v5400 = vmax.f32 %v2773, 0.0
    %v5401 = vmax.f32 %v3040, 0.0
    %v5402 = vmax.f32 %v3307, 0.0
    %v5403 = vmax.f32 %v3574, 0.0
    %v5404 = vmax.f32 %v3841, 0.0
    %v5405 = vmax.f32 %v4108, 0.0
    %v5406 = vmax.f32 %v4375, 0.0
    %v5407 = vmax.f32 %v4642, 0.0
    %v5408 = vmax.f32 %v4909, 0.0
    %v5409 = vmax.f32 %v5176, 0.0
    %v5410 = vmax.f32 %v2242, 0.0
    %v5411 = vmax.f32 %v2509, 0.0
    %v5412 = vmax.f32 %v2776, 0.0
    %v5413 = vmax.f32 %v3043, 0.0
    %v5414 = vmax.f32 %v3310, 0.0
    %v5415 = vmax.f32 %v3577, 0.0
    %v5416 = vmax.f32 %v3844, 0.0
    %v5417 = vmax.f32 %v4111, 0.0
    %v5418 = vmax.f32 %v4378, 0.0
    %v5419 = vmax.f32 %v4645, 0.0
    %v5420 = vmax.f32 %v4912, 0.0
    %v5421 = vmax.f32 %v5179, 0.0
    %v5422 = vmax.f32 %v2244, 0.0
    %v5423 = vmax.f32 %v2511, 0.0
    %v5424 = vmax.f32 %v2778, 0.0
    %v5425 = vmax.f32 %v3045, 0.0
    %v5426 = vmax.f32 %v3312, 0.0
    %v5427 = vmax.f32 %v3579, 0.0
    %v5428 = vmax.f32 %v3846, 0.0
    %v5429 = vmax.f32 %v4113, 0.0
    %v5430 = vmax.f32 %v4380, 0.0
    %v5431 = vmax.f32 %v4647, 0.0
    %v5432 = vmax.f32 %v4914, 0.0
    %v5433 = vmax.f32 %v5181, 0.0
    %v5434 = vmax.f32 %v2247, 0.0
    %v5435 = vmax.f32 %v2514, 0.0
    %v5436 = vmax.f32 %v2781, 0.0
    %v5437 = vmax.f32 %v3048, 0.0
    %v5438 = vmax.f32 %v3315, 0.0
    %v5439 = vmax.f32 %v3582, 0.0
    %v5440 = vmax.f32 %v3849, 0.0
    %v5441 = vmax.f32 %v4116, 0.0
    %v5442 = vmax.f32 %v4383, 0.0
    %v5443 = vmax.f32 %v4650, 0.0
    %v5444 = vmax.f32 %v4917, 0.0
    %v5445 = vmax.f32 %v5184, 0.0
    %v5446 = vmax.f32 %v2249, 0.0
    %v5447 = vmax.f32 %v2516, 0.0
    %v5448 = vmax.f32 %v2783, 0.0
    %v5449 = vmax.f32 %v3050, 0.0
    %v5450 = vmax.f32 %v3317, 0.0
    %v5451 = vmax.f32 %v3584, 0.0
    %v5452 = vmax.f32 %v3851, 0.0
    %v5453 = vmax.f32 %v4118, 0.0
    %v5454 = vmax.f32 %v4385, 0.0
    %v5455 = vmax.f32 %v4652, 0.0
    %v5456 = vmax.f32 %v4919, 0.0
    %v5457 = vmax.f32 %v5186, 0.0
    %v5458 = vmax.f32 %v2252, 0.0
    %v5459 = vmax.f32 %v2519, 0.0
    %v5460 = vmax.f32 %v2786, 0.0
    %v5461 = vmax.f32 %v3053, 0.0
    %v5462 = vmax.f32 %v3320, 0.0
    %v5463 = vmax.f32 %v3587, 0.0
    %v5464 = vmax.f32 %v3854, 0.0
    %v5465 = vmax.f32 %v4121, 0.0
    %v5466 = vmax.f32 %v4388, 0.0
    %v5467 = vmax.f32 %v4655, 0.0
    %v5468 = vmax.f32 %v4922, 0.0
    %v5469 = vmax.f32 %v5189, 0.0
    %v5470 = vmax.f32 %v2254, 0.0
    %v5471 = vmax.f32 %v2521, 0.0
    %v5472 = vmax.f32 %v2788, 0.0
    %v5473 = vmax.f32 %v3055, 0.0
    %v5474 = vmax.f32 %v3322, 0.0
    %v5475 = vmax.f32 %v3589, 0.0
    %v5476 = vmax.f32 %v3856, 0.0
    %v5477 = vmax.f32 %v4123, 0.0
    %v5478 = vmax.f32 %v4390, 0.0
    %v5479 = vmax.f32 %v4657, 0.0
    %v5480 = vmax.f32 %v4924, 0.0
    %v5481 = vmax.f32 %v5191, 0.0
    %v5482 = vmax.f32 %v2257, 0.0
    %v5483 = vmax.f32 %v2524, 0.0
    %v5484 = vmax.f32 %v2791, 0.0
    %v5485 = vmax.f32 %v3058, 0.0
    %v5486 = vmax.f32 %v3325, 0.0
    %v5487 = vmax.f32 %v3592, 0.0
    %v5488 = vmax.f32 %v3859, 0.0
    %v5489 = vmax.f32 %v4126, 0.0
    %v5490 = vmax.f32 %v4393, 0.0
    %v5491 = vmax.f32 %v4660, 0.0
    %v5492 = vmax.f32 %v4927, 0.0
    %v5493 = vmax.f32 %v5194, 0.0
    %v5494 = vmax.f32 %v2259, 0.0
    %v5495 = vmax.f32 %v2526, 0.0
    %v5496 = vmax.f32 %v2793, 0.0
    %v5497 = vmax.f32 %v3060, 0.0
    %v5498 = vmax.f32 %v3327, 0.0
    %v5499 = vmax.f32 %v3594, 0.0
    %v5500 = vmax.f32 %v3861, 0.0
    %v5501 = vmax.f32 %v4128, 0.0
    %v5502 = vmax.f32 %v4395, 0.0
    %v5503 = vmax.f32 %v4662, 0.0
    %v5504 = vmax.f32 %v4929, 0.0
    %v5505 = vmax.f32 %v5196, 0.0
    %v5506 = vmax.f32 %v2262, 0.0
    %v5507 = vmax.f32 %v2529, 0.0
    %v5508 = vmax.f32 %v2796, 0.0
    %v5509 = vmax.f32 %v3063, 0.0
    %v5510 = vmax.f32 %v3330, 0.0
    %v5511 = vmax.f32 %v3597, 0.0
    %v5512 = vmax.f32 %v3864, 0.0
    %v5513 = vmax.f32 %v4131, 0.0
    %v5514 = vmax.f32 %v4398, 0.0
    %v5515 = vmax.f32 %v4665, 0.0
    %v5516 = vmax.f32 %v4932, 0.0
    %v5517 = vmax.f32 %v5199, 0.0
    %v5518 = vmax.f32 %v2264, 0.0
    %v5519 = vmax.f32 %v2531, 0.0
    %v5520 = vmax.f32 %v2798, 0.0
    %v5521 = vmax.f32 %v3065, 0.0
    %v5522 = vmax.f32 %v3332, 0.0
    %v5523 = vmax.f32 %v3599, 0.0
    %v5524 = vmax.f32 %v3866, 0.0
    %v5525 = vmax.f32 %v4133, 0.0
    %v5526 = vmax.f32 %v4400, 0.0
    %v5527 = vmax.f32 %v4667, 0.0
    %v5528 = vmax.f32 %v4934, 0.0
    %v5529 = vmax.f32 %v5201, 0.0
    %v5530 = vmax.f32 %v2267, 0.0
    %v5531 = vmax.f32 %v2534, 0.0
    %v5532 = vmax.f32 %v2801, 0.0
    %v5533 = vmax.f32 %v3068, 0.0
    %v5534 = vmax.f32 %v3335, 0.0
    %v5535 = vmax.f32 %v3602, 0.0
    %v5536 = vmax.f32 %v3869, 0.0
    %v5537 = vmax.f32 %v4136, 0.0
    %v5538 = vmax.f32 %v4403, 0.0
    %v5539 = vmax.f32 %v4670, 0.0
    %v5540 = vmax.f32 %v4937, 0.0
    %v5541 = vmax.f32 %v5204, 0.0
    %v5542 = vmax.f32 %v2269, 0.0
    %v5543 = vmax.f32 %v2536, 0.0
    %v5544 = vmax.f32 %v2803, 0.0
    %v5545 = vmax.f32 %v3070, 0.0
    %v5546 = vmax.f32 %v3337, 0.0
    %v5547 = vmax.f32 %v3604, 0.0
    %v5548 = vmax.f32 %v3871, 0.0
    %v5549 = vmax.f32 %v4138, 0.0
    %v5550 = vmax.f32 %v4405, 0.0
    %v5551 = vmax.f32 %v4672, 0.0
    %v5552 = vmax.f32 %v4939, 0.0
    %v5553 = vmax.f32 %v5206, 0.0
    %v5554 = vmax.f32 %v2272, 0.0
    %v5555 = vmax.f32 %v2539, 0.0
    %v5556 = vmax.f32 %v2806, 0.0
    %v5557 = vmax.f32 %v3073, 0.0
    %v5558 = vmax.f32 %v3340, 0.0
    %v5559 = vmax.f32 %v3607, 0.0
    %v5560 = vmax.f32 %v3874, 0.0
    %v5561 = vmax.f32 %v4141, 0.0
    %v5562 = vmax.f32 %v4408, 0.0
    %v5563 = vmax.f32 %v4675, 0.0
    %v5564 = vmax.f32 %v4942, 0.0
    %v5565 = vmax.f32 %v5209, 0.0
    %v5566 = vmax.f32 %v2274, 0.0
    %v5567 = vmax.f32 %v2541, 0.0
    %v5568 = vmax.f32 %v2808, 0.0
    %v5569 = vmax.f32 %v3075, 0.0
    %v5570 = vmax.f32 %v3342, 0.0
    %v5571 = vmax.f32 %v3609, 0.0
    %v5572 = vmax.f32 %v3876, 0.0
    %v5573 = vmax.f32 %v4143, 0.0
    %v5574 = vmax.f32 %v4410, 0.0
    %v5575 = vmax.f32 %v4677, 0.0
    %v5576 = vmax.f32 %v4944, 0.0
    %v5577 = vmax.f32 %v5211, 0.0
    %v5578 = vmax.f32 %v2277, 0.0
    %v5579 = vmax.f32 %v2544, 0.0
    %v5580 = vmax.f32 %v2811, 0.0
    %v5581 = vmax.f32 %v3078, 0.0
    %v5582 = vmax.f32 %v3345, 0.0
    %v5583 = vmax.f32 %v3612, 0.0
    %v5584 = vmax.f32 %v3879, 0.0
    %v5585 = vmax.f32 %v4146, 0.0
    %v5586 = vmax.f32 %v4413, 0.0
    %v5587 = vmax.f32 %v4680, 0.0
    %v5588 = vmax.f32 %v4947, 0.0
    %v5589 = vmax.f32 %v5214, 0.0
    %v5590 = vmax.f32 %v2279, 0.0
    %v5591 = vmax.f32 %v2546, 0.0
    %v5592 = vmax.f32 %v2813, 0.0
    %v5593 = vmax.f32 %v3080, 0.0
    %v5594 = vmax.f32 %v3347, 0.0
    %v5595 = vmax.f32 %v3614, 0.0
    %v5596 = vmax.f32 %v3881, 0.0
    %v5597 = vmax.f32 %v4148, 0.0
    %v5598 = vmax.f32 %v4415, 0.0
    %v5599 = vmax.f32 %v4682, 0.0
    %v5600 = vmax.f32 %v4949, 0.0
    %v5601 = vmax.f32 %v5216, 0.0
    %v5602 = vpack.c.bf16 %v5230, %v5218
    %v5603 = vpack.c.bf16 %v5231, %v5219
    %v5604 = vpack.c.bf16 %v5232, %v5220
    %v5605 = vpack.c.bf16 %v5233, %v5221
    %v5606 = vpack.c.bf16 %v5234, %v5222
    %v5607 = vpack.c.bf16 %v5235, %v5223
    %v5608 = vpack.c.bf16 %v5236, %v5224
    %v5609 = vpack.c.bf16 %v5237, %v5225
    %v5610 = vpack.c.bf16 %v5238, %v5226
    %v5611 = vpack.c.bf16 %v5239, %v5227
    %v5612 = vpack.c.bf16 %v5240, %v5228
    %v5613 = vpack.c.bf16 %v5241, %v5229
    %v5614 = vpack.c.bf16 %v5254, %v5242
    %v5615 = vpack.c.bf16 %v5255, %v5243
    %v5616 = vpack.c.bf16 %v5256, %v5244
    %v5617 = vpack.c.bf16 %v5257, %v5245
    %v5618 = vpack.c.bf16 %v5258, %v5246
    %v5619 = vpack.c.bf16 %v5259, %v5247
    %v5620 = vpack.c.bf16 %v5260, %v5248
    %v5621 = vpack.c.bf16 %v5261, %v5249
    %v5622 = vpack.c.bf16 %v5262, %v5250
    %v5623 = vpack.c.bf16 %v5263, %v5251
    %v5624 = vpack.c.bf16 %v5264, %v5252
    %v5625 = vpack.c.bf16 %v5265, %v5253
    %v5626 = vpack.c.bf16 %v5278, %v5266
    %v5627 = vpack.c.bf16 %v5279, %v5267
    %v5628 = vpack.c.bf16 %v5280, %v5268
    %v5629 = vpack.c.bf16 %v5281, %v5269
    %v5630 = vpack.c.bf16 %v5282, %v5270
    %v5631 = vpack.c.bf16 %v5283, %v5271
    %v5632 = vpack.c.bf16 %v5284, %v5272
    %v5633 = vpack.c.bf16 %v5285, %v5273
    %v5634 = vpack.c.bf16 %v5286, %v5274
    %v5635 = vpack.c.bf16 %v5287, %v5275
    %v5636 = vpack.c.bf16 %v5288, %v5276
    %v5637 = vpack.c.bf16 %v5289, %v5277
    %v5638 = vpack.c.bf16 %v5302, %v5290
    %v5639 = vpack.c.bf16 %v5303, %v5291
    %v5640 = vpack.c.bf16 %v5304, %v5292
    %v5641 = vpack.c.bf16 %v5305, %v5293
    %v5642 = vpack.c.bf16 %v5306, %v5294
    %v5643 = vpack.c.bf16 %v5307, %v5295
    %v5644 = vpack.c.bf16 %v5308, %v5296
    %v5645 = vpack.c.bf16 %v5309, %v5297
    %v5646 = vpack.c.bf16 %v5310, %v5298
    %v5647 = vpack.c.bf16 %v5311, %v5299
    %v5648 = vpack.c.bf16 %v5312, %v5300
    %v5649 = vpack.c.bf16 %v5313, %v5301
    %v5650 = vpack.c.bf16 %v5326, %v5314
    %v5651 = vpack.c.bf16 %v5327, %v5315
    %v5652 = vpack.c.bf16 %v5328, %v5316
    %v5653 = vpack.c.bf16 %v5329, %v5317
    %v5654 = vpack.c.bf16 %v5330, %v5318
    %v5655 = vpack.c.bf16 %v5331, %v5319
    %v5656 = vpack.c.bf16 %v5332, %v5320
    %v5657 = vpack.c.bf16 %v5333, %v5321
    %v5658 = vpack.c.bf16 %v5334, %v5322
    %v5659 = vpack.c.bf16 %v5335, %v5323
    %v5660 = vpack.c.bf16 %v5336, %v5324
    %v5661 = vpack.c.bf16 %v5337, %v5325
    %v5662 = vpack.c.bf16 %v5350, %v5338
    %v5663 = vpack.c.bf16 %v5351, %v5339
    %v5664 = vpack.c.bf16 %v5352, %v5340
    %v5665 = vpack.c.bf16 %v5353, %v5341
    %v5666 = vpack.c.bf16 %v5354, %v5342
    %v5667 = vpack.c.bf16 %v5355, %v5343
    %v5668 = vpack.c.bf16 %v5356, %v5344
    %v5669 = vpack.c.bf16 %v5357, %v5345
    %v5670 = vpack.c.bf16 %v5358, %v5346
    %v5671 = vpack.c.bf16 %v5359, %v5347
    %v5672 = vpack.c.bf16 %v5360, %v5348
    %v5673 = vpack.c.bf16 %v5361, %v5349
    %v5674 = vpack.c.bf16 %v5374, %v5362
    %v5675 = vpack.c.bf16 %v5375, %v5363
    %v5676 = vpack.c.bf16 %v5376, %v5364
    %v5677 = vpack.c.bf16 %v5377, %v5365
    %v5678 = vpack.c.bf16 %v5378, %v5366
    %v5679 = vpack.c.bf16 %v5379, %v5367
    %v5680 = vpack.c.bf16 %v5380, %v5368
    %v5681 = vpack.c.bf16 %v5381, %v5369
    %v5682 = vpack.c.bf16 %v5382, %v5370
    %v5683 = vpack.c.bf16 %v5383, %v5371
    %v5684 = vpack.c.bf16 %v5384, %v5372
    %v5685 = vpack.c.bf16 %v5385, %v5373
    %v5686 = vpack.c.bf16 %v5398, %v5386
    %v5687 = vpack.c.bf16 %v5399, %v5387
    %v5688 = vpack.c.bf16 %v5400, %v5388
    %v5689 = vpack.c.bf16 %v5401, %v5389
    %v5690 = vpack.c.bf16 %v5402, %v5390
    %v5691 = vpack.c.bf16 %v5403, %v5391
    %v5692 = vpack.c.bf16 %v5404, %v5392
    %v5693 = vpack.c.bf16 %v5405, %v5393
    %v5694 = vpack.c.bf16 %v5406, %v5394
    %v5695 = vpack.c.bf16 %v5407, %v5395
    %v5696 = vpack.c.bf16 %v5408, %v5396
    %v5697 = vpack.c.bf16 %v5409, %v5397
    %v5698 = vpack.c.bf16 %v5422, %v5410
    %v5699 = vpack.c.bf16 %v5423, %v5411
    %v5700 = vpack.c.bf16 %v5424, %v5412
    %v5701 = vpack.c.bf16 %v5425, %v5413
    %v5702 = vpack.c.bf16 %v5426, %v5414
    %v5703 = vpack.c.bf16 %v5427, %v5415
    %v5704 = vpack.c.bf16 %v5428, %v5416
    %v5705 = vpack.c.bf16 %v5429, %v5417
    %v5706 = vpack.c.bf16 %v5430, %v5418
    %v5707 = vpack.c.bf16 %v5431, %v5419
    %v5708 = vpack.c.bf16 %v5432, %v5420
    %v5709 = vpack.c.bf16 %v5433, %v5421
    %v5710 = vpack.c.bf16 %v5446, %v5434
    %v5711 = vpack.c.bf16 %v5447, %v5435
    %v5712 = vpack.c.bf16 %v5448, %v5436
    %v5713 = vpack.c.bf16 %v5449, %v5437
    %v5714 = vpack.c.bf16 %v5450, %v5438
    %v5715 = vpack.c.bf16 %v5451, %v5439
    %v5716 = vpack.c.bf16 %v5452, %v5440
    %v5717 = vpack.c.bf16 %v5453, %v5441
    %v5718 = vpack.c.bf16 %v5454, %v5442
    %v5719 = vpack.c.bf16 %v5455, %v5443
    %v5720 = vpack.c.bf16 %v5456, %v5444
    %v5721 = vpack.c.bf16 %v5457, %v5445
    %v5722 = vpack.c.bf16 %v5470, %v5458
    %v5723 = vpack.c.bf16 %v5471, %v5459
    %v5724 = vpack.c.bf16 %v5472, %v5460
    %v5725 = vpack.c.bf16 %v5473, %v5461
    %v5726 = vpack.c.bf16 %v5474, %v5462
    %v5727 = vpack.c.bf16 %v5475, %v5463
    %v5728 = vpack.c.bf16 %v5476, %v5464
    %v5729 = vpack.c.bf16 %v5477, %v5465
    %v5730 = vpack.c.bf16 %v5478, %v5466
    %v5731 = vpack.c.bf16 %v5479, %v5467
    %v5732 = vpack.c.bf16 %v5480, %v5468
    %v5733 = vpack.c.bf16 %v5481, %v5469
    %v5734 = vpack.c.bf16 %v5494, %v5482
    %v5735 = vpack.c.bf16 %v5495, %v5483
    %v5736 = vpack.c.bf16 %v5496, %v5484
    %v5737 = vpack.c.bf16 %v5497, %v5485
    %v5738 = vpack.c.bf16 %v5498, %v5486
    %v5739 = vpack.c.bf16 %v5499, %v5487
    %v5740 = vpack.c.bf16 %v5500, %v5488
    %v5741 = vpack.c.bf16 %v5501, %v5489
    %v5742 = vpack.c.bf16 %v5502, %v5490
    %v5743 = vpack.c.bf16 %v5503, %v5491
    %v5744 = vpack.c.bf16 %v5504, %v5492
    %v5745 = vpack.c.bf16 %v5505, %v5493
    %v5746 = vpack.c.bf16 %v5518, %v5506
    %v5747 = vpack.c.bf16 %v5519, %v5507
    %v5748 = vpack.c.bf16 %v5520, %v5508
    %v5749 = vpack.c.bf16 %v5521, %v5509
    %v5750 = vpack.c.bf16 %v5522, %v5510
    %v5751 = vpack.c.bf16 %v5523, %v5511
    %v5752 = vpack.c.bf16 %v5524, %v5512
    %v5753 = vpack.c.bf16 %v5525, %v5513
    %v5754 = vpack.c.bf16 %v5526, %v5514
    %v5755 = vpack.c.bf16 %v5527, %v5515
    %v5756 = vpack.c.bf16 %v5528, %v5516
    %v5757 = vpack.c.bf16 %v5529, %v5517
    %v5758 = vpack.c.bf16 %v5542, %v5530
    %v5759 = vpack.c.bf16 %v5543, %v5531
    %v5760 = vpack.c.bf16 %v5544, %v5532
    %v5761 = vpack.c.bf16 %v5545, %v5533
    %v5762 = vpack.c.bf16 %v5546, %v5534
    %v5763 = vpack.c.bf16 %v5547, %v5535
    %v5764 = vpack.c.bf16 %v5548, %v5536
    %v5765 = vpack.c.bf16 %v5549, %v5537
    %v5766 = vpack.c.bf16 %v5550, %v5538
    %v5767 = vpack.c.bf16 %v5551, %v5539
    %v5768 = vpack.c.bf16 %v5552, %v5540
    %v5769 = vpack.c.bf16 %v5553, %v5541
    %v5770 = vpack.c.bf16 %v5566, %v5554
    %v5771 = vpack.c.bf16 %v5567, %v5555
    %v5772 = vpack.c.bf16 %v5568, %v5556
    %v5773 = vpack.c.bf16 %v5569, %v5557
    %v5774 = vpack.c.bf16 %v5570, %v5558
    %v5775 = vpack.c.bf16 %v5571, %v5559
    %v5776 = vpack.c.bf16 %v5572, %v5560
    %v5777 = vpack.c.bf16 %v5573, %v5561
    %v5778 = vpack.c.bf16 %v5574, %v5562
    %v5779 = vpack.c.bf16 %v5575, %v5563
    %v5780 = vpack.c.bf16 %v5576, %v5564
    %v5781 = vpack.c.bf16 %v5577, %v5565
    %v5782 = vpack.c.bf16 %v5590, %v5578
    %v5783 = vpack.c.bf16 %v5591, %v5579
    %v5784 = vpack.c.bf16 %v5592, %v5580
    %v5785 = vpack.c.bf16 %v5593, %v5581
    %v5786 = vpack.c.bf16 %v5594, %v5582
    %v5787 = vpack.c.bf16 %v5595, %v5583
    %v5788 = vpack.c.bf16 %v5596, %v5584
    %v5789 = vpack.c.bf16 %v5597, %v5585
    %v5790 = vpack.c.bf16 %v5598, %v5586
    %v5791 = vpack.c.bf16 %v5599, %v5587
    %v5792 = vpack.c.bf16 %v5600, %v5588
    %v5793 = vpack.c.bf16 %v5601, %v5589
    %v5794 = vld [vmem:[#allocation8] sm:$0xff]
    %v5795 = vld [vmem:[#allocation8 + $0x8] sm:$0xf]
    %v5796 = vld [vmem:[#allocation8 + $0xc] sm:$0xff]
    %v5797 = vld [vmem:[#allocation8 + $0x14] sm:$0xf]
    %v5798 = vld [vmem:[#allocation8 + $0x18] sm:$0xff]
    %v5799 = vld [vmem:[#allocation8 + $0x20] sm:$0xf]
    %v5800 = vld [vmem:[#allocation8 + $0x24] sm:$0xff]
    %v5801 = vld [vmem:[#allocation8 + $0x2c] sm:$0xf]
    %v5802 = vld [vmem:[#allocation8 + $0x30] sm:$0xff]
    %v5803 = vld [vmem:[#allocation8 + $0x38] sm:$0xf]
    %v5804 = vld [vmem:[#allocation8 + $0x3c] sm:$0xff]
    %v5805 = vld [vmem:[#allocation8 + $0x44] sm:$0xf]
    %v5806 = vld [vmem:[#allocation8 + $0x48] sm:$0xff]
    %v5807 = vld [vmem:[#allocation8 + $0x50] sm:$0xf]
    %v5808 = vld [vmem:[#allocation8 + $0x54] sm:$0xff]
    %v5809 = vld [vmem:[#allocation8 + $0x5c] sm:$0xf]
    %v5810 = vld [vmem:[#allocation8 + $0x60] sm:$0xff]
    %v5811 = vld [vmem:[#allocation8 + $0x68] sm:$0xf]
    %v5812 = vld [vmem:[#allocation8 + $0x6c] sm:$0xff]
    %v5813 = vld [vmem:[#allocation8 + $0x74] sm:$0xf]
    %v5814 = vld [vmem:[#allocation8 + $0x78] sm:$0xff]
    %v5815 = vld [vmem:[#allocation8 + $0x80] sm:$0xf]
    %v5816 = vld [vmem:[#allocation8 + $0x84] sm:$0xff]
    %v5817 = vld [vmem:[#allocation8 + $0x8c] sm:$0xf]
    %v5818 = vld [vmem:[#allocation8 + $0x90] sm:$0xff]
    %v5819 = vld [vmem:[#allocation8 + $0x98] sm:$0xf]
    %v5820 = vld [vmem:[#allocation8 + $0x9c] sm:$0xff]
    %v5821 = vld [vmem:[#allocation8 + $0xa4] sm:$0xf]
    %v5822 = vld [vmem:[#allocation8 + $0xa8] sm:$0xff]
    %v5823 = vld [vmem:[#allocation8 + $0xb0] sm:$0xf]
    %v5824 = vld [vmem:[#allocation8 + $0xb4] sm:$0xff]
    %v5825 = vld [vmem:[#allocation8 + $0xbc] sm:$0xf]
    %v5826 = vld [vmem:[#allocation8 + $0xc0] sm:$0xff]
    %v5827 = vld [vmem:[#allocation8 + $0xc8] sm:$0xf]
    %v5828 = vld [vmem:[#allocation8 + $0xcc] sm:$0xff]
    %v5829 = vld [vmem:[#allocation8 + $0xd4] sm:$0xf]
    %v5830 = vld [vmem:[#allocation8 + $0xd8] sm:$0xff]
    %v5831 = vld [vmem:[#allocation8 + $0xe0] sm:$0xf]
    %v5832 = vld [vmem:[#allocation8 + $0xe4] sm:$0xff]
    %v5833 = vld [vmem:[#allocation8 + $0xec] sm:$0xf]
    %v5834 = vld [vmem:[#allocation8 + $0xf0] sm:$0xff]
    %v5835 = vld [vmem:[#allocation8 + $0xf8] sm:$0xf]
    %v5836 = vld [vmem:[#allocation8 + $0xfc] sm:$0xff]
    %v5837 = vld [vmem:[#allocation8 + $0x104] sm:$0xf]
    %v5838 = vld [vmem:[#allocation8 + $0x108] sm:$0xff]
    %v5839 = vld [vmem:[#allocation8 + $0x110] sm:$0xf]
    %v5840 = vld [vmem:[#allocation8 + $0x114] sm:$0xff]
    %v5841 = vld [vmem:[#allocation8 + $0x11c] sm:$0xf]
    %v5842 = vld [vmem:[#allocation8 + $0x120] sm:$0xff]
    %v5843 = vld [vmem:[#allocation8 + $0x128] sm:$0xf]
    %v5844 = vld [vmem:[#allocation8 + $0x12c] sm:$0xff]
    %v5845 = vld [vmem:[#allocation8 + $0x134] sm:$0xf]
    %v5846 = vld [vmem:[#allocation8 + $0x138] sm:$0xff]
    %v5847 = vld [vmem:[#allocation8 + $0x140] sm:$0xf]
    %v5848 = vld [vmem:[#allocation8 + $0x144] sm:$0xff]
    %v5849 = vld [vmem:[#allocation8 + $0x14c] sm:$0xf]
    %v5850 = vld [vmem:[#allocation8 + $0x150] sm:$0xff]
    %v5851 = vld [vmem:[#allocation8 + $0x158] sm:$0xf]
    %v5852 = vld [vmem:[#allocation8 + $0x15c] sm:$0xff]
    %v5853 = vld [vmem:[#allocation8 + $0x164] sm:$0xf]
    %v5854 = vld [vmem:[#allocation8 + $0x168] sm:$0xff]
    %v5855 = vld [vmem:[#allocation8 + $0x170] sm:$0xf]
    %v5856 = vld [vmem:[#allocation8 + $0x174] sm:$0xff]
    %v5857 = vld [vmem:[#allocation8 + $0x17c] sm:$0xf]
    %v5858 = vld [vmem:[#allocation8 + $0x180] sm:$0xff]
    %v5859 = vld [vmem:[#allocation8 + $0x188] sm:$0xf]
    %v5860 = vld [vmem:[#allocation8 + $0x18c] sm:$0xff]
    %v5861 = vld [vmem:[#allocation8 + $0x194] sm:$0xf]
    %v5862 = vld [vmem:[#allocation8 + $0x198] sm:$0xff]
    %v5863 = vld [vmem:[#allocation8 + $0x1a0] sm:$0xf]
    %v5864 = vld [vmem:[#allocation8 + $0x1a4] sm:$0xff]
    %v5865 = vld [vmem:[#allocation8 + $0x1ac] sm:$0xf]
    %v5866 = vld [vmem:[#allocation8 + $0x1b0] sm:$0xff]
    %v5867 = vld [vmem:[#allocation8 + $0x1b8] sm:$0xf]
    %v5868 = vld [vmem:[#allocation8 + $0x1bc] sm:$0xff]
    %v5869 = vld [vmem:[#allocation8 + $0x1c4] sm:$0xf]
    %v5870 = vld [vmem:[#allocation8 + $0x1c8] sm:$0xff]
    %v5871 = vld [vmem:[#allocation8 + $0x1d0] sm:$0xf]
    %v5872 = vld [vmem:[#allocation8 + $0x1d4] sm:$0xff]
    %v5873 = vld [vmem:[#allocation8 + $0x1dc] sm:$0xf]
    %v5874 = vld [vmem:[#allocation8 + $0x1e0] sm:$0xff]
    %v5875 = vld [vmem:[#allocation8 + $0x1e8] sm:$0xf]
    %v5876 = vld [vmem:[#allocation8 + $0x1ec] sm:$0xff]
    %v5877 = vld [vmem:[#allocation8 + $0x1f4] sm:$0xf]
    %v5878 = vld [vmem:[#allocation8 + $0x1f8] sm:$0xff]
    %v5879 = vld [vmem:[#allocation8 + $0x200] sm:$0xf]
    %v5880 = vld [vmem:[#allocation8 + $0x204] sm:$0xff]
    %v5881 = vld [vmem:[#allocation8 + $0x20c] sm:$0xf]
    %v5882 = vld [vmem:[#allocation8 + $0x210] sm:$0xff]
    %v5883 = vld [vmem:[#allocation8 + $0x218] sm:$0xf]
    %v5884 = vld [vmem:[#allocation8 + $0x21c] sm:$0xff]
    %v5885 = vld [vmem:[#allocation8 + $0x224] sm:$0xf]
    %v5886 = vld [vmem:[#allocation8 + $0x228] sm:$0xff]
    %v5887 = vld [vmem:[#allocation8 + $0x230] sm:$0xf]
    %v5888 = vld [vmem:[#allocation8 + $0x234] sm:$0xff]
    %v5889 = vld [vmem:[#allocation8 + $0x23c] sm:$0xf]
    %v5890 = vld [vmem:[#allocation8 + $0x240] sm:$0xff]
    %v5891 = vld [vmem:[#allocation8 + $0x248] sm:$0xf]
    %v5892 = vld [vmem:[#allocation8 + $0x24c] sm:$0xff]
    %v5893 = vld [vmem:[#allocation8 + $0x254] sm:$0xf]
    %v5894 = vld [vmem:[#allocation8 + $0x258] sm:$0xff]
    %v5895 = vld [vmem:[#allocation8 + $0x260] sm:$0xf]
    %v5896 = vld [vmem:[#allocation8 + $0x264] sm:$0xff]
    %v5897 = vld [vmem:[#allocation8 + $0x26c] sm:$0xf]
    %v5898 = vld [vmem:[#allocation8 + $0x270] sm:$0xff]
    %v5899 = vld [vmem:[#allocation8 + $0x278] sm:$0xf]
    %v5900 = vld [vmem:[#allocation8 + $0x27c] sm:$0xff]
    %v5901 = vld [vmem:[#allocation8 + $0x284] sm:$0xf]
    %v5902 = vld [vmem:[#allocation8 + $0x288] sm:$0xff]
    %v5903 = vld [vmem:[#allocation8 + $0x290] sm:$0xf]
    %v5904 = vld [vmem:[#allocation8 + $0x294] sm:$0xff]
    %v5905 = vld [vmem:[#allocation8 + $0x29c] sm:$0xf]
    %v5906 = vld [vmem:[#allocation8 + $0x2a0] sm:$0xff]
    %v5907 = vld [vmem:[#allocation8 + $0x2a8] sm:$0xf]
    %v5908 = vld [vmem:[#allocation8 + $0x2ac] sm:$0xff]
    %v5909 = vld [vmem:[#allocation8 + $0x2b4] sm:$0xf]
    %v5910 = vld [vmem:[#allocation8 + $0x2b8] sm:$0xff]
    %v5911 = vld [vmem:[#allocation8 + $0x2c0] sm:$0xf]
    %v5912 = vld [vmem:[#allocation8 + $0x2c4] sm:$0xff]
    %v5913 = vld [vmem:[#allocation8 + $0x2cc] sm:$0xf]
    %v5914 = vld [vmem:[#allocation8 + $0x2d0] sm:$0xff]
    %v5915 = vld [vmem:[#allocation8 + $0x2d8] sm:$0xf]
    %v5916 = vld [vmem:[#allocation8 + $0x2dc] sm:$0xff]
    %v5917 = vld [vmem:[#allocation8 + $0x2e4] sm:$0xf]
    %v5918 = vld [vmem:[#allocation8 + $0x2e8] sm:$0xff]
    %v5919 = vld [vmem:[#allocation8 + $0x2f0] sm:$0xf]
    %v5920 = vld [vmem:[#allocation8 + $0x2f4] sm:$0xff]
    %v5921 = vld [vmem:[#allocation8 + $0x2fc] sm:$0xf]
    %v5922 = vld [vmem:[#allocation8 + $0x300] sm:$0xff]
    %v5923 = vld [vmem:[#allocation8 + $0x308] sm:$0xf]
    %v5924 = vld [vmem:[#allocation8 + $0x30c] sm:$0xff]
    %v5925 = vld [vmem:[#allocation8 + $0x314] sm:$0xf]
    %v5926 = vld [vmem:[#allocation8 + $0x318] sm:$0xff]
    %v5927 = vld [vmem:[#allocation8 + $0x320] sm:$0xf]
    %v5928 = vld [vmem:[#allocation8 + $0x324] sm:$0xff]
    %v5929 = vld [vmem:[#allocation8 + $0x32c] sm:$0xf]
    %v5930 = vld [vmem:[#allocation8 + $0x330] sm:$0xff]
    %v5931 = vld [vmem:[#allocation8 + $0x338] sm:$0xf]
    %v5932 = vld [vmem:[#allocation8 + $0x33c] sm:$0xff]
    %v5933 = vld [vmem:[#allocation8 + $0x344] sm:$0xf]
    %v5934 = vld [vmem:[#allocation8 + $0x348] sm:$0xff]
    %v5935 = vld [vmem:[#allocation8 + $0x350] sm:$0xf]
    %v5936 = vld [vmem:[#allocation8 + $0x354] sm:$0xff]
    %v5937 = vld [vmem:[#allocation8 + $0x35c] sm:$0xf]
    %v5938 = vld [vmem:[#allocation8 + $0x360] sm:$0xff]
    %v5939 = vld [vmem:[#allocation8 + $0x368] sm:$0xf]
    %v5940 = vld [vmem:[#allocation8 + $0x36c] sm:$0xff]
    %v5941 = vld [vmem:[#allocation8 + $0x374] sm:$0xf]
    %v5942 = vld [vmem:[#allocation8 + $0x378] sm:$0xff]
    %v5943 = vld [vmem:[#allocation8 + $0x380] sm:$0xf]
    %v5944 = vld [vmem:[#allocation8 + $0x384] sm:$0xff]
    %v5945 = vld [vmem:[#allocation8 + $0x38c] sm:$0xf]
    %v5946 = vld [vmem:[#allocation8 + $0x390] sm:$0xff]
    %v5947 = vld [vmem:[#allocation8 + $0x398] sm:$0xf]
    %v5948 = vld [vmem:[#allocation8 + $0x39c] sm:$0xff]
    %v5949 = vld [vmem:[#allocation8 + $0x3a4] sm:$0xf]
    %v5950 = vld [vmem:[#allocation8 + $0x3a8] sm:$0xff]
    %v5951 = vld [vmem:[#allocation8 + $0x3b0] sm:$0xf]
    %v5952 = vld [vmem:[#allocation8 + $0x3b4] sm:$0xff]
    %v5953 = vld [vmem:[#allocation8 + $0x3bc] sm:$0xf]
    %v5954 = vld [vmem:[#allocation8 + $0x3c0] sm:$0xff]
    %v5955 = vld [vmem:[#allocation8 + $0x3c8] sm:$0xf]
    %v5956 = vld [vmem:[#allocation8 + $0x3cc] sm:$0xff]
    %v5957 = vld [vmem:[#allocation8 + $0x3d4] sm:$0xf]
    %v5958 = vld [vmem:[#allocation8 + $0x3d8] sm:$0xff]
    %v5959 = vld [vmem:[#allocation8 + $0x3e0] sm:$0xf]
    %v5960 = vld [vmem:[#allocation8 + $0x3e4] sm:$0xff]
    %v5961 = vld [vmem:[#allocation8 + $0x3ec] sm:$0xf]
    %v5962 = vld [vmem:[#allocation8 + $0x3f0] sm:$0xff]
    %v5963 = vld [vmem:[#allocation8 + $0x3f8] sm:$0xf]
    %v5964 = vld [vmem:[#allocation8 + $0x3fc] sm:$0xff]
    %v5965 = vld [vmem:[#allocation8 + $0x404] sm:$0xf]
    %v5966 = vld [vmem:[#allocation8 + $0x408] sm:$0xff]
    %v5967 = vld [vmem:[#allocation8 + $0x410] sm:$0xf]
    %v5968 = vld [vmem:[#allocation8 + $0x414] sm:$0xff]
    %v5969 = vld [vmem:[#allocation8 + $0x41c] sm:$0xf]
    %v5970 = vld [vmem:[#allocation8 + $0x420] sm:$0xff]
    %v5971 = vld [vmem:[#allocation8 + $0x428] sm:$0xf]
    %v5972 = vld [vmem:[#allocation8 + $0x42c] sm:$0xff]
    %v5973 = vld [vmem:[#allocation8 + $0x434] sm:$0xf]
    %v5974 = vld [vmem:[#allocation8 + $0x438] sm:$0xff]
    %v5975 = vld [vmem:[#allocation8 + $0x440] sm:$0xf]
    %v5976 = vld [vmem:[#allocation8 + $0x444] sm:$0xff]
    %v5977 = vld [vmem:[#allocation8 + $0x44c] sm:$0xf]
    %v5978 = vld [vmem:[#allocation8 + $0x450] sm:$0xff]
    %v5979 = vld [vmem:[#allocation8 + $0x458] sm:$0xf]
    %v5980 = vld [vmem:[#allocation8 + $0x45c] sm:$0xff]
    %v5981 = vld [vmem:[#allocation8 + $0x464] sm:$0xf]
    %v5982 = vld [vmem:[#allocation8 + $0x468] sm:$0xff]
    %v5983 = vld [vmem:[#allocation8 + $0x470] sm:$0xf]
    %v5984 = vld [vmem:[#allocation8 + $0x474] sm:$0xff]
    %v5985 = vld [vmem:[#allocation8 + $0x47c] sm:$0xf]
    %v5986 = vld [vmem:[#allocation8 + $0x480] sm:$0xff]
    %v5987 = vld [vmem:[#allocation8 + $0x488] sm:$0xf]
    %v5988 = vld [vmem:[#allocation8 + $0x48c] sm:$0xff]
    %v5989 = vld [vmem:[#allocation8 + $0x494] sm:$0xf]
    %v5990 = vld [vmem:[#allocation8 + $0x498] sm:$0xff]
    %v5991 = vld [vmem:[#allocation8 + $0x4a0] sm:$0xf]
    %v5992 = vld [vmem:[#allocation8 + $0x4a4] sm:$0xff]
    %v5993 = vld [vmem:[#allocation8 + $0x4ac] sm:$0xf]
    %v5994 = vld [vmem:[#allocation8 + $0x4b0] sm:$0xff]
    %v5995 = vld [vmem:[#allocation8 + $0x4b8] sm:$0xf]
    %v5996 = vld [vmem:[#allocation8 + $0x4bc] sm:$0xff]
    %v5997 = vld [vmem:[#allocation8 + $0x4c4] sm:$0xf]
    %v5998 = vld [vmem:[#allocation8 + $0x4c8] sm:$0xff]
    %v5999 = vld [vmem:[#allocation8 + $0x4d0] sm:$0xf]
    %v6000 = vld [vmem:[#allocation8 + $0x4d4] sm:$0xff]
    %v6001 = vld [vmem:[#allocation8 + $0x4dc] sm:$0xf]
    %v6002 = vld [vmem:[#allocation8 + $0x4e0] sm:$0xff]
    %v6003 = vld [vmem:[#allocation8 + $0x4e8] sm:$0xf]
    %v6004 = vld [vmem:[#allocation8 + $0x4ec] sm:$0xff]
    %v6005 = vld [vmem:[#allocation8 + $0x4f4] sm:$0xf]
    %v6006 = vld [vmem:[#allocation8 + $0x4f8] sm:$0xff]
    %v6007 = vld [vmem:[#allocation8 + $0x500] sm:$0xf]
    %v6008 = vld [vmem:[#allocation8 + $0x504] sm:$0xff]
    %v6009 = vld [vmem:[#allocation8 + $0x50c] sm:$0xf]
    %v6010 = vld [vmem:[#allocation8 + $0x510] sm:$0xff]
    %v6011 = vld [vmem:[#allocation8 + $0x518] sm:$0xf]
    %v6012 = vld [vmem:[#allocation8 + $0x51c] sm:$0xff]
    %v6013 = vld [vmem:[#allocation8 + $0x524] sm:$0xf]
    %v6014 = vld [vmem:[#allocation8 + $0x528] sm:$0xff]
    %v6015 = vld [vmem:[#allocation8 + $0x530] sm:$0xf]
    %v6016 = vld [vmem:[#allocation8 + $0x534] sm:$0xff]
    %v6017 = vld [vmem:[#allocation8 + $0x53c] sm:$0xf]
    %v6018 = vld [vmem:[#allocation8 + $0x540] sm:$0xff]
    %v6019 = vld [vmem:[#allocation8 + $0x548] sm:$0xf]
    %v6020 = vld [vmem:[#allocation8 + $0x54c] sm:$0xff]
    %v6021 = vld [vmem:[#allocation8 + $0x554] sm:$0xf]
    %v6022 = vld [vmem:[#allocation8 + $0x558] sm:$0xff]
    %v6023 = vld [vmem:[#allocation8 + $0x560] sm:$0xf]
    %v6024 = vld [vmem:[#allocation8 + $0x564] sm:$0xff]
    %v6025 = vld [vmem:[#allocation8 + $0x56c] sm:$0xf]
    %v6026 = vld [vmem:[#allocation8 + $0x570] sm:$0xff]
    %v6027 = vld [vmem:[#allocation8 + $0x578] sm:$0xf]
    %v6028 = vld [vmem:[#allocation8 + $0x57c] sm:$0xff]
    %v6029 = vld [vmem:[#allocation8 + $0x584] sm:$0xf]
    %v6030 = vld [vmem:[#allocation8 + $0x588] sm:$0xff]
    %v6031 = vld [vmem:[#allocation8 + $0x590] sm:$0xf]
    %v6032 = vld [vmem:[#allocation8 + $0x594] sm:$0xff]
    %v6033 = vld [vmem:[#allocation8 + $0x59c] sm:$0xf]
    %v6034 = vld [vmem:[#allocation8 + $0x5a0] sm:$0xff]
    %v6035 = vld [vmem:[#allocation8 + $0x5a8] sm:$0xf]
    %v6036 = vld [vmem:[#allocation8 + $0x5ac] sm:$0xff]
    %v6037 = vld [vmem:[#allocation8 + $0x5b4] sm:$0xf]
    %v6038 = vld [vmem:[#allocation8 + $0x5b8] sm:$0xff]
    %v6039 = vld [vmem:[#allocation8 + $0x5c0] sm:$0xf]
    %v6040 = vld [vmem:[#allocation8 + $0x5c4] sm:$0xff]
    %v6041 = vld [vmem:[#allocation8 + $0x5cc] sm:$0xf]
    %v6042 = vld [vmem:[#allocation8 + $0x5d0] sm:$0xff]
    %v6043 = vld [vmem:[#allocation8 + $0x5d8] sm:$0xf]
    %v6044 = vld [vmem:[#allocation8 + $0x5dc] sm:$0xff]
    %v6045 = vld [vmem:[#allocation8 + $0x5e4] sm:$0xf]
    %v6046 = vld [vmem:[#allocation8 + $0x5e8] sm:$0xff]
    %v6047 = vld [vmem:[#allocation8 + $0x5f0] sm:$0xf]
    %v6048 = vld [vmem:[#allocation8 + $0x5f4] sm:$0xff]
    %v6049 = vld [vmem:[#allocation8 + $0x5fc] sm:$0xf]
    %v6050 = vld [vmem:[#allocation8 + $0x600] sm:$0xff]
    %v6051 = vld [vmem:[#allocation8 + $0x608] sm:$0xf]
    %v6052 = vld [vmem:[#allocation8 + $0x60c] sm:$0xff]
    %v6053 = vld [vmem:[#allocation8 + $0x614] sm:$0xf]
    %v6054 = vld [vmem:[#allocation8 + $0x618] sm:$0xff]
    %v6055 = vld [vmem:[#allocation8 + $0x620] sm:$0xf]
    %v6056 = vld [vmem:[#allocation8 + $0x624] sm:$0xff]
    %v6057 = vld [vmem:[#allocation8 + $0x62c] sm:$0xf]
    %v6058 = vld [vmem:[#allocation8 + $0x630] sm:$0xff]
    %v6059 = vld [vmem:[#allocation8 + $0x638] sm:$0xf]
    %v6060 = vld [vmem:[#allocation8 + $0x63c] sm:$0xff]
    %v6061 = vld [vmem:[#allocation8 + $0x644] sm:$0xf]
    %v6062 = vld [vmem:[#allocation8 + $0x648] sm:$0xff]
    %v6063 = vld [vmem:[#allocation8 + $0x650] sm:$0xf]
    %v6064 = vld [vmem:[#allocation8 + $0x654] sm:$0xff]
    %v6065 = vld [vmem:[#allocation8 + $0x65c] sm:$0xf]
    %v6066 = vld [vmem:[#allocation8 + $0x660] sm:$0xff]
    %v6067 = vld [vmem:[#allocation8 + $0x668] sm:$0xf]
    %v6068 = vld [vmem:[#allocation8 + $0x66c] sm:$0xff]
    %v6069 = vld [vmem:[#allocation8 + $0x674] sm:$0xf]
    %v6070 = vld [vmem:[#allocation8 + $0x678] sm:$0xff]
    %v6071 = vld [vmem:[#allocation8 + $0x680] sm:$0xf]
    %v6072 = vld [vmem:[#allocation8 + $0x684] sm:$0xff]
    %v6073 = vld [vmem:[#allocation8 + $0x68c] sm:$0xf]
    %v6074 = vld [vmem:[#allocation8 + $0x690] sm:$0xff]
    %v6075 = vld [vmem:[#allocation8 + $0x698] sm:$0xf]
    %v6076 = vld [vmem:[#allocation8 + $0x69c] sm:$0xff]
    %v6077 = vld [vmem:[#allocation8 + $0x6a4] sm:$0xf]
    %v6078 = vld [vmem:[#allocation8 + $0x6a8] sm:$0xff]
    %v6079 = vld [vmem:[#allocation8 + $0x6b0] sm:$0xf]
    %v6080 = vld [vmem:[#allocation8 + $0x6b4] sm:$0xff]
    %v6081 = vld [vmem:[#allocation8 + $0x6bc] sm:$0xf]
    %v6082 = vld [vmem:[#allocation8 + $0x6c0] sm:$0xff]
    %v6083 = vld [vmem:[#allocation8 + $0x6c8] sm:$0xf]
    %v6084 = vld [vmem:[#allocation8 + $0x6cc] sm:$0xff]
    %v6085 = vld [vmem:[#allocation8 + $0x6d4] sm:$0xf]
    %v6086 = vld [vmem:[#allocation8 + $0x6d8] sm:$0xff]
    %v6087 = vld [vmem:[#allocation8 + $0x6e0] sm:$0xf]
    %v6088 = vld [vmem:[#allocation8 + $0x6e4] sm:$0xff]
    %v6089 = vld [vmem:[#allocation8 + $0x6ec] sm:$0xf]
    %v6090 = vld [vmem:[#allocation8 + $0x6f0] sm:$0xff]
    %v6091 = vld [vmem:[#allocation8 + $0x6f8] sm:$0xf]
    %v6092 = vld [vmem:[#allocation8 + $0x6fc] sm:$0xff]
    %v6093 = vld [vmem:[#allocation8 + $0x704] sm:$0xf]
    %v6094 = vld [vmem:[#allocation8 + $0x708] sm:$0xff]
    %v6095 = vld [vmem:[#allocation8 + $0x710] sm:$0xf]
    %v6096 = vld [vmem:[#allocation8 + $0x714] sm:$0xff]
    %v6097 = vld [vmem:[#allocation8 + $0x71c] sm:$0xf]
    %v6098 = vld [vmem:[#allocation8 + $0x720] sm:$0xff]
    %v6099 = vld [vmem:[#allocation8 + $0x728] sm:$0xf]
    %v6100 = vld [vmem:[#allocation8 + $0x72c] sm:$0xff]
    %v6101 = vld [vmem:[#allocation8 + $0x734] sm:$0xf]
    %v6102 = vld [vmem:[#allocation8 + $0x738] sm:$0xff]
    %v6103 = vld [vmem:[#allocation8 + $0x740] sm:$0xf]
    %v6104 = vld [vmem:[#allocation8 + $0x744] sm:$0xff]
    %v6105 = vld [vmem:[#allocation8 + $0x74c] sm:$0xf]
    %v6106 = vld [vmem:[#allocation8 + $0x750] sm:$0xff]
    %v6107 = vld [vmem:[#allocation8 + $0x758] sm:$0xf]
    %v6108 = vld [vmem:[#allocation8 + $0x75c] sm:$0xff]
    %v6109 = vld [vmem:[#allocation8 + $0x764] sm:$0xf]
    %v6110 = vld [vmem:[#allocation8 + $0x768] sm:$0xff]
    %v6111 = vld [vmem:[#allocation8 + $0x770] sm:$0xf]
    %v6112 = vld [vmem:[#allocation8 + $0x774] sm:$0xff]
    %v6113 = vld [vmem:[#allocation8 + $0x77c] sm:$0xf]
    %v6114 = vld [vmem:[#allocation8 + $0x780] sm:$0xff]
    %v6115 = vld [vmem:[#allocation8 + $0x788] sm:$0xf]
    %v6116 = vld [vmem:[#allocation8 + $0x78c] sm:$0xff]
    %v6117 = vld [vmem:[#allocation8 + $0x794] sm:$0xf]
    %v6118 = vld [vmem:[#allocation8 + $0x798] sm:$0xff]
    %v6119 = vld [vmem:[#allocation8 + $0x7a0] sm:$0xf]
    %v6120 = vld [vmem:[#allocation8 + $0x7a4] sm:$0xff]
    %v6121 = vld [vmem:[#allocation8 + $0x7ac] sm:$0xf]
    %v6122 = vld [vmem:[#allocation8 + $0x7b0] sm:$0xff]
    %v6123 = vld [vmem:[#allocation8 + $0x7b8] sm:$0xf]
    %v6124 = vld [vmem:[#allocation8 + $0x7bc] sm:$0xff]
    %v6125 = vld [vmem:[#allocation8 + $0x7c4] sm:$0xf]
    %v6126 = vld [vmem:[#allocation8 + $0x7c8] sm:$0xff]
    %v6127 = vld [vmem:[#allocation8 + $0x7d0] sm:$0xf]
    %v6128 = vld [vmem:[#allocation8 + $0x7d4] sm:$0xff]
    %v6129 = vld [vmem:[#allocation8 + $0x7dc] sm:$0xf]
    %v6130 = vld [vmem:[#allocation8 + $0x7e0] sm:$0xff]
    %v6131 = vld [vmem:[#allocation8 + $0x7e8] sm:$0xf]
    %v6132 = vld [vmem:[#allocation8 + $0x7ec] sm:$0xff]
    %v6133 = vld [vmem:[#allocation8 + $0x7f4] sm:$0xf]
    %v6134 = vld [vmem:[#allocation8 + $0x7f8] sm:$0xff]
    %v6135 = vld [vmem:[#allocation8 + $0x800] sm:$0xf]
    %v6136 = vld [vmem:[#allocation8 + $0x804] sm:$0xff]
    %v6137 = vld [vmem:[#allocation8 + $0x80c] sm:$0xf]
    %v6138 = vld [vmem:[#allocation8 + $0x810] sm:$0xff]
    %v6139 = vld [vmem:[#allocation8 + $0x818] sm:$0xf]
    %v6140 = vld [vmem:[#allocation8 + $0x81c] sm:$0xff]
    %v6141 = vld [vmem:[#allocation8 + $0x824] sm:$0xf]
    %v6142 = vld [vmem:[#allocation8 + $0x828] sm:$0xff]
    %v6143 = vld [vmem:[#allocation8 + $0x830] sm:$0xf]
    %v6144 = vld [vmem:[#allocation8 + $0x834] sm:$0xff]
    %v6145 = vld [vmem:[#allocation8 + $0x83c] sm:$0xf]
    %v6146 = vld [vmem:[#allocation8 + $0x840] sm:$0xff]
    %v6147 = vld [vmem:[#allocation8 + $0x848] sm:$0xf]
    %v6148 = vld [vmem:[#allocation8 + $0x84c] sm:$0xff]
    %v6149 = vld [vmem:[#allocation8 + $0x854] sm:$0xf]
    %v6150 = vld [vmem:[#allocation8 + $0x858] sm:$0xff]
    %v6151 = vld [vmem:[#allocation8 + $0x860] sm:$0xf]
    %v6152 = vld [vmem:[#allocation8 + $0x864] sm:$0xff]
    %v6153 = vld [vmem:[#allocation8 + $0x86c] sm:$0xf]
    %v6154 = vld [vmem:[#allocation8 + $0x870] sm:$0xff]
    %v6155 = vld [vmem:[#allocation8 + $0x878] sm:$0xf]
    %v6156 = vld [vmem:[#allocation8 + $0x87c] sm:$0xff]
    %v6157 = vld [vmem:[#allocation8 + $0x884] sm:$0xf]
    %v6158 = vld [vmem:[#allocation8 + $0x888] sm:$0xff]
    %v6159 = vld [vmem:[#allocation8 + $0x890] sm:$0xf]
    %v6160 = vld [vmem:[#allocation8 + $0x894] sm:$0xff]
    %v6161 = vld [vmem:[#allocation8 + $0x89c] sm:$0xf]
    %v6162 = vld [vmem:[#allocation8 + $0x8a0] sm:$0xff]
    %v6163 = vld [vmem:[#allocation8 + $0x8a8] sm:$0xf]
    %v6164 = vld [vmem:[#allocation8 + $0x8ac] sm:$0xff]
    %v6165 = vld [vmem:[#allocation8 + $0x8b4] sm:$0xf]
    %v6166 = vld [vmem:[#allocation8 + $0x8b8] sm:$0xff]
    %v6167 = vld [vmem:[#allocation8 + $0x8c0] sm:$0xf]
    %v6168 = vld [vmem:[#allocation8 + $0x8c4] sm:$0xff]
    %v6169 = vld [vmem:[#allocation8 + $0x8cc] sm:$0xf]
    %v6170 = vld [vmem:[#allocation8 + $0x8d0] sm:$0xff]
    %v6171 = vld [vmem:[#allocation8 + $0x8d8] sm:$0xf]
    %v6172 = vld [vmem:[#allocation8 + $0x8dc] sm:$0xff]
    %v6173 = vld [vmem:[#allocation8 + $0x8e4] sm:$0xf]
    %v6174 = vld [vmem:[#allocation8 + $0x8e8] sm:$0xff]
    %v6175 = vld [vmem:[#allocation8 + $0x8f0] sm:$0xf]
    %v6176 = vld [vmem:[#allocation8 + $0x8f4] sm:$0xff]
    %v6177 = vld [vmem:[#allocation8 + $0x8fc] sm:$0xf]
    %v6178 = vld [vmem:[#allocation10] sm:$0x7]
    %v6180 = vperm.slane %v6178, 0
    %v6181 = vperm.slane %v6178, 1
    %v6182 = vperm.slane %v6178, 2
    %v6570 = vunpack.c.l.b16 %v5794
    %v6571 = vunpack.c.h.b16 %v5794
    %v6572 = vunpack.c.l.b16 %v5795
    %v6573 = vunpack.c.l.b16 %v5796
    %v6574 = vunpack.c.h.b16 %v5796
    %v6575 = vunpack.c.l.b16 %v5797
    %v6576 = vunpack.c.l.b16 %v5798
    %v6577 = vunpack.c.h.b16 %v5798
    %v6578 = vunpack.c.l.b16 %v5799
    %v6579 = vunpack.c.l.b16 %v5800
    %v6580 = vunpack.c.h.b16 %v5800
    %v6581 = vunpack.c.l.b16 %v5801
    %v6582 = vunpack.c.l.b16 %v5802
    %v6583 = vunpack.c.h.b16 %v5802
    %v6584 = vunpack.c.l.b16 %v5803
    %v6585 = vunpack.c.l.b16 %v5804
    %v6586 = vunpack.c.h.b16 %v5804
    %v6587 = vunpack.c.l.b16 %v5805
    %v6588 = vunpack.c.l.b16 %v5806
    %v6589 = vunpack.c.h.b16 %v5806
    %v6590 = vunpack.c.l.b16 %v5807
    %v6591 = vunpack.c.l.b16 %v5808
    %v6592 = vunpack.c.h.b16 %v5808
    %v6593 = vunpack.c.l.b16 %v5809
    %v6594 = vunpack.c.l.b16 %v5810
    %v6595 = vunpack.c.h.b16 %v5810
    %v6596 = vunpack.c.l.b16 %v5811
    %v6597 = vunpack.c.l.b16 %v5812
    %v6598 = vunpack.c.h.b16 %v5812
    %v6599 = vunpack.c.l.b16 %v5813
    %v6600 = vunpack.c.l.b16 %v5814
    %v6601 = vunpack.c.h.b16 %v5814
    %v6602 = vunpack.c.l.b16 %v5815
    %v6603 = vunpack.c.l.b16 %v5816
    %v6604 = vunpack.c.h.b16 %v5816
    %v6605 = vunpack.c.l.b16 %v5817
    %v6606 = vunpack.c.l.b16 %v5818
    %v6607 = vunpack.c.h.b16 %v5818
    %v6608 = vunpack.c.l.b16 %v5819
    %v6609 = vunpack.c.l.b16 %v5820
    %v6610 = vunpack.c.h.b16 %v5820
    %v6611 = vunpack.c.l.b16 %v5821
    %v6612 = vunpack.c.l.b16 %v5822
    %v6613 = vunpack.c.h.b16 %v5822
    %v6614 = vunpack.c.l.b16 %v5823
    %v6615 = vunpack.c.l.b16 %v5824
    %v6616 = vunpack.c.h.b16 %v5824
    %v6617 = vunpack.c.l.b16 %v5825
    %v6618 = vunpack.c.l.b16 %v5826
    %v6619 = vunpack.c.h.b16 %v5826
    %v6620 = vunpack.c.l.b16 %v5827
    %v6621 = vunpack.c.l.b16 %v5828
    %v6622 = vunpack.c.h.b16 %v5828
    %v6623 = vunpack.c.l.b16 %v5829
    %v6624 = vunpack.c.l.b16 %v5830
    %v6625 = vunpack.c.h.b16 %v5830
    %v6626 = vunpack.c.l.b16 %v5831
    %v6627 = vunpack.c.l.b16 %v5832
    %v6628 = vunpack.c.h.b16 %v5832
    %v6629 = vunpack.c.l.b16 %v5833
    %v6630 = vunpack.c.l.b16 %v5834
    %v6631 = vunpack.c.h.b16 %v5834
    %v6632 = vunpack.c.l.b16 %v5835
    %v6633 = vunpack.c.l.b16 %v5836
    %v6634 = vunpack.c.h.b16 %v5836
    %v6635 = vunpack.c.l.b16 %v5837
    %v6636 = vunpack.c.l.b16 %v5838
    %v6637 = vunpack.c.h.b16 %v5838
    %v6638 = vunpack.c.l.b16 %v5839
    %v6639 = vunpack.c.l.b16 %v5840
    %v6640 = vunpack.c.h.b16 %v5840
    %v6641 = vunpack.c.l.b16 %v5841
    %v6642 = vunpack.c.l.b16 %v5842
    %v6643 = vunpack.c.h.b16 %v5842
    %v6644 = vunpack.c.l.b16 %v5843
    %v6645 = vunpack.c.l.b16 %v5844
    %v6646 = vunpack.c.h.b16 %v5844
    %v6647 = vunpack.c.l.b16 %v5845
    %v6648 = vunpack.c.l.b16 %v5846
    %v6649 = vunpack.c.h.b16 %v5846
    %v6650 = vunpack.c.l.b16 %v5847
    %v6651 = vunpack.c.l.b16 %v5848
    %v6652 = vunpack.c.h.b16 %v5848
    %v6653 = vunpack.c.l.b16 %v5849
    %v6654 = vunpack.c.l.b16 %v5850
    %v6655 = vunpack.c.h.b16 %v5850
    %v6656 = vunpack.c.l.b16 %v5851
    %v6657 = vunpack.c.l.b16 %v5852
    %v6658 = vunpack.c.h.b16 %v5852
    %v6659 = vunpack.c.l.b16 %v5853
    %v6660 = vunpack.c.l.b16 %v5854
    %v6661 = vunpack.c.h.b16 %v5854
    %v6662 = vunpack.c.l.b16 %v5855
    %v6663 = vunpack.c.l.b16 %v5856
    %v6664 = vunpack.c.h.b16 %v5856
    %v6665 = vunpack.c.l.b16 %v5857
    %v6666 = vunpack.c.l.b16 %v5858
    %v6667 = vunpack.c.h.b16 %v5858
    %v6668 = vunpack.c.l.b16 %v5859
    %v6669 = vunpack.c.l.b16 %v5860
    %v6670 = vunpack.c.h.b16 %v5860
    %v6671 = vunpack.c.l.b16 %v5861
    %v6672 = vunpack.c.l.b16 %v5862
    %v6673 = vunpack.c.h.b16 %v5862
    %v6674 = vunpack.c.l.b16 %v5863
    %v6675 = vunpack.c.l.b16 %v5864
    %v6676 = vunpack.c.h.b16 %v5864
    %v6677 = vunpack.c.l.b16 %v5865
    %v6678 = vunpack.c.l.b16 %v5866
    %v6679 = vunpack.c.h.b16 %v5866
    %v6680 = vunpack.c.l.b16 %v5867
    %v6681 = vunpack.c.l.b16 %v5868
    %v6682 = vunpack.c.h.b16 %v5868
    %v6683 = vunpack.c.l.b16 %v5869
    %v6684 = vunpack.c.l.b16 %v5870
    %v6685 = vunpack.c.h.b16 %v5870
    %v6686 = vunpack.c.l.b16 %v5871
    %v6687 = vunpack.c.l.b16 %v5872
    %v6688 = vunpack.c.h.b16 %v5872
    %v6689 = vunpack.c.l.b16 %v5873
    %v6690 = vunpack.c.l.b16 %v5874
    %v6691 = vunpack.c.h.b16 %v5874
    %v6692 = vunpack.c.l.b16 %v5875
    %v6693 = vunpack.c.l.b16 %v5876
    %v6694 = vunpack.c.h.b16 %v5876
    %v6695 = vunpack.c.l.b16 %v5877
    %v6696 = vunpack.c.l.b16 %v5878
    %v6697 = vunpack.c.h.b16 %v5878
    %v6698 = vunpack.c.l.b16 %v5879
    %v6699 = vunpack.c.l.b16 %v5880
    %v6700 = vunpack.c.h.b16 %v5880
    %v6701 = vunpack.c.l.b16 %v5881
    %v6702 = vunpack.c.l.b16 %v5882
    %v6703 = vunpack.c.h.b16 %v5882
    %v6704 = vunpack.c.l.b16 %v5883
    %v6705 = vunpack.c.l.b16 %v5884
    %v6706 = vunpack.c.h.b16 %v5884
    %v6707 = vunpack.c.l.b16 %v5885
    %v6708 = vunpack.c.l.b16 %v5886
    %v6709 = vunpack.c.h.b16 %v5886
    %v6710 = vunpack.c.l.b16 %v5887
    %v6711 = vunpack.c.l.b16 %v5888
    %v6712 = vunpack.c.h.b16 %v5888
    %v6713 = vunpack.c.l.b16 %v5889
    %v6714 = vunpack.c.l.b16 %v5890
    %v6715 = vunpack.c.h.b16 %v5890
    %v6716 = vunpack.c.l.b16 %v5891
    %v6717 = vunpack.c.l.b16 %v5892
    %v6718 = vunpack.c.h.b16 %v5892
    %v6719 = vunpack.c.l.b16 %v5893
    %v6720 = vunpack.c.l.b16 %v5894
    %v6721 = vunpack.c.h.b16 %v5894
    %v6722 = vunpack.c.l.b16 %v5895
    %v6723 = vunpack.c.l.b16 %v5896
    %v6724 = vunpack.c.h.b16 %v5896
    %v6725 = vunpack.c.l.b16 %v5897
    %v6726 = vunpack.c.l.b16 %v5898
    %v6727 = vunpack.c.h.b16 %v5898
    %v6728 = vunpack.c.l.b16 %v5899
    %v6729 = vunpack.c.l.b16 %v5900
    %v6730 = vunpack.c.h.b16 %v5900
    %v6731 = vunpack.c.l.b16 %v5901
    %v6732 = vunpack.c.l.b16 %v5902
    %v6733 = vunpack.c.h.b16 %v5902
    %v6734 = vunpack.c.l.b16 %v5903
    %v6735 = vunpack.c.l.b16 %v5904
    %v6736 = vunpack.c.h.b16 %v5904
    %v6737 = vunpack.c.l.b16 %v5905
    %v6738 = vunpack.c.l.b16 %v5906
    %v6739 = vunpack.c.h.b16 %v5906
    %v6740 = vunpack.c.l.b16 %v5907
    %v6741 = vunpack.c.l.b16 %v5908
    %v6742 = vunpack.c.h.b16 %v5908
    %v6743 = vunpack.c.l.b16 %v5909
    %v6744 = vunpack.c.l.b16 %v5910
    %v6745 = vunpack.c.h.b16 %v5910
    %v6746 = vunpack.c.l.b16 %v5911
    %v6747 = vunpack.c.l.b16 %v5912
    %v6748 = vunpack.c.h.b16 %v5912
    %v6749 = vunpack.c.l.b16 %v5913
    %v6750 = vunpack.c.l.b16 %v5914
    %v6751 = vunpack.c.h.b16 %v5914
    %v6752 = vunpack.c.l.b16 %v5915
    %v6753 = vunpack.c.l.b16 %v5916
    %v6754 = vunpack.c.h.b16 %v5916
    %v6755 = vunpack.c.l.b16 %v5917
    %v6756 = vunpack.c.l.b16 %v5918
    %v6757 = vunpack.c.h.b16 %v5918
    %v6758 = vunpack.c.l.b16 %v5919
    %v6759 = vunpack.c.l.b16 %v5920
    %v6760 = vunpack.c.h.b16 %v5920
    %v6761 = vunpack.c.l.b16 %v5921
    %v6762 = vunpack.c.l.b16 %v5922
    %v6763 = vunpack.c.h.b16 %v5922
    %v6764 = vunpack.c.l.b16 %v5923
    %v6765 = vunpack.c.l.b16 %v5924
    %v6766 = vunpack.c.h.b16 %v5924
    %v6767 = vunpack.c.l.b16 %v5925
    %v6768 = vunpack.c.l.b16 %v5926
    %v6769 = vunpack.c.h.b16 %v5926
    %v6770 = vunpack.c.l.b16 %v5927
    %v6771 = vunpack.c.l.b16 %v5928
    %v6772 = vunpack.c.h.b16 %v5928
    %v6773 = vunpack.c.l.b16 %v5929
    %v6774 = vunpack.c.l.b16 %v5930
    %v6775 = vunpack.c.h.b16 %v5930
    %v6776 = vunpack.c.l.b16 %v5931
    %v6777 = vunpack.c.l.b16 %v5932
    %v6778 = vunpack.c.h.b16 %v5932
    %v6779 = vunpack.c.l.b16 %v5933
    %v6780 = vunpack.c.l.b16 %v5934
    %v6781 = vunpack.c.h.b16 %v5934
    %v6782 = vunpack.c.l.b16 %v5935
    %v6783 = vunpack.c.l.b16 %v5936
    %v6784 = vunpack.c.h.b16 %v5936
    %v6785 = vunpack.c.l.b16 %v5937
    %v6786 = vunpack.c.l.b16 %v5938
    %v6787 = vunpack.c.h.b16 %v5938
    %v6788 = vunpack.c.l.b16 %v5939
    %v6789 = vunpack.c.l.b16 %v5940
    %v6790 = vunpack.c.h.b16 %v5940
    %v6791 = vunpack.c.l.b16 %v5941
    %v6792 = vunpack.c.l.b16 %v5942
    %v6793 = vunpack.c.h.b16 %v5942
    %v6794 = vunpack.c.l.b16 %v5943
    %v6795 = vunpack.c.l.b16 %v5944
    %v6796 = vunpack.c.h.b16 %v5944
    %v6797 = vunpack.c.l.b16 %v5945
    %v6798 = vunpack.c.l.b16 %v5946
    %v6799 = vunpack.c.h.b16 %v5946
    %v6800 = vunpack.c.l.b16 %v5947
    %v6801 = vunpack.c.l.b16 %v5948
    %v6802 = vunpack.c.h.b16 %v5948
    %v6803 = vunpack.c.l.b16 %v5949
    %v6804 = vunpack.c.l.b16 %v5950
    %v6805 = vunpack.c.h.b16 %v5950
    %v6806 = vunpack.c.l.b16 %v5951
    %v6807 = vunpack.c.l.b16 %v5952
    %v6808 = vunpack.c.h.b16 %v5952
    %v6809 = vunpack.c.l.b16 %v5953
    %v6810 = vunpack.c.l.b16 %v5954
    %v6811 = vunpack.c.h.b16 %v5954
    %v6812 = vunpack.c.l.b16 %v5955
    %v6813 = vunpack.c.l.b16 %v5956
    %v6814 = vunpack.c.h.b16 %v5956
    %v6815 = vunpack.c.l.b16 %v5957
    %v6816 = vunpack.c.l.b16 %v5958
    %v6817 = vunpack.c.h.b16 %v5958
    %v6818 = vunpack.c.l.b16 %v5959
    %v6819 = vunpack.c.l.b16 %v5960
    %v6820 = vunpack.c.h.b16 %v5960
    %v6821 = vunpack.c.l.b16 %v5961
    %v6822 = vunpack.c.l.b16 %v5962
    %v6823 = vunpack.c.h.b16 %v5962
    %v6824 = vunpack.c.l.b16 %v5963
    %v6825 = vunpack.c.l.b16 %v5964
    %v6826 = vunpack.c.h.b16 %v5964
    %v6827 = vunpack.c.l.b16 %v5965
    %v6828 = vunpack.c.l.b16 %v5966
    %v6829 = vunpack.c.h.b16 %v5966
    %v6830 = vunpack.c.l.b16 %v5967
    %v6831 = vunpack.c.l.b16 %v5968
    %v6832 = vunpack.c.h.b16 %v5968
    %v6833 = vunpack.c.l.b16 %v5969
    %v6834 = vunpack.c.l.b16 %v5970
    %v6835 = vunpack.c.h.b16 %v5970
    %v6836 = vunpack.c.l.b16 %v5971
    %v6837 = vunpack.c.l.b16 %v5972
    %v6838 = vunpack.c.h.b16 %v5972
    %v6839 = vunpack.c.l.b16 %v5973
    %v6840 = vunpack.c.l.b16 %v5974
    %v6841 = vunpack.c.h.b16 %v5974
    %v6842 = vunpack.c.l.b16 %v5975
    %v6843 = vunpack.c.l.b16 %v5976
    %v6844 = vunpack.c.h.b16 %v5976
    %v6845 = vunpack.c.l.b16 %v5977
    %v6846 = vunpack.c.l.b16 %v5978
    %v6847 = vunpack.c.h.b16 %v5978
    %v6848 = vunpack.c.l.b16 %v5979
    %v6849 = vunpack.c.l.b16 %v5980
    %v6850 = vunpack.c.h.b16 %v5980
    %v6851 = vunpack.c.l.b16 %v5981
    %v6852 = vunpack.c.l.b16 %v5982
    %v6853 = vunpack.c.h.b16 %v5982
    %v6854 = vunpack.c.l.b16 %v5983
    %v6855 = vunpack.c.l.b16 %v5984
    %v6856 = vunpack.c.h.b16 %v5984
    %v6857 = vunpack.c.l.b16 %v5985
    %v6858 = vunpack.c.l.b16 %v5986
    %v6859 = vunpack.c.h.b16 %v5986
    %v6860 = vunpack.c.l.b16 %v5987
    %v6861 = vunpack.c.l.b16 %v5988
    %v6862 = vunpack.c.h.b16 %v5988
    %v6863 = vunpack.c.l.b16 %v5989
    %v6864 = vunpack.c.l.b16 %v5990
    %v6865 = vunpack.c.h.b16 %v5990
    %v6866 = vunpack.c.l.b16 %v5991
    %v6867 = vunpack.c.l.b16 %v5992
    %v6868 = vunpack.c.h.b16 %v5992
    %v6869 = vunpack.c.l.b16 %v5993
    %v6870 = vunpack.c.l.b16 %v5994
    %v6871 = vunpack.c.h.b16 %v5994
    %v6872 = vunpack.c.l.b16 %v5995
    %v6873 = vunpack.c.l.b16 %v5996
    %v6874 = vunpack.c.h.b16 %v5996
    %v6875 = vunpack.c.l.b16 %v5997
    %v6876 = vunpack.c.l.b16 %v5998
    %v6877 = vunpack.c.h.b16 %v5998
    %v6878 = vunpack.c.l.b16 %v5999
    %v6879 = vunpack.c.l.b16 %v6000
    %v6880 = vunpack.c.h.b16 %v6000
    %v6881 = vunpack.c.l.b16 %v6001
    %v6882 = vunpack.c.l.b16 %v6002
    %v6883 = vunpack.c.h.b16 %v6002
    %v6884 = vunpack.c.l.b16 %v6003
    %v6885 = vunpack.c.l.b16 %v6004
    %v6886 = vunpack.c.h.b16 %v6004
    %v6887 = vunpack.c.l.b16 %v6005
    %v6888 = vunpack.c.l.b16 %v6006
    %v6889 = vunpack.c.h.b16 %v6006
    %v6890 = vunpack.c.l.b16 %v6007
    %v6891 = vunpack.c.l.b16 %v6008
    %v6892 = vunpack.c.h.b16 %v6008
    %v6893 = vunpack.c.l.b16 %v6009
    %v6894 = vunpack.c.l.b16 %v6010
    %v6895 = vunpack.c.h.b16 %v6010
    %v6896 = vunpack.c.l.b16 %v6011
    %v6897 = vunpack.c.l.b16 %v6012
    %v6898 = vunpack.c.h.b16 %v6012
    %v6899 = vunpack.c.l.b16 %v6013
    %v6900 = vunpack.c.l.b16 %v6014
    %v6901 = vunpack.c.h.b16 %v6014
    %v6902 = vunpack.c.l.b16 %v6015
    %v6903 = vunpack.c.l.b16 %v6016
    %v6904 = vunpack.c.h.b16 %v6016
    %v6905 = vunpack.c.l.b16 %v6017
    %v6906 = vunpack.c.l.b16 %v6018
    %v6907 = vunpack.c.h.b16 %v6018
    %v6908 = vunpack.c.l.b16 %v6019
    %v6909 = vunpack.c.l.b16 %v6020
    %v6910 = vunpack.c.h.b16 %v6020
    %v6911 = vunpack.c.l.b16 %v6021
    %v6912 = vunpack.c.l.b16 %v6022
    %v6913 = vunpack.c.h.b16 %v6022
    %v6914 = vunpack.c.l.b16 %v6023
    %v6915 = vunpack.c.l.b16 %v6024
    %v6916 = vunpack.c.h.b16 %v6024
    %v6917 = vunpack.c.l.b16 %v6025
    %v6918 = vunpack.c.l.b16 %v6026
    %v6919 = vunpack.c.h.b16 %v6026
    %v6920 = vunpack.c.l.b16 %v6027
    %v6921 = vunpack.c.l.b16 %v6028
    %v6922 = vunpack.c.h.b16 %v6028
    %v6923 = vunpack.c.l.b16 %v6029
    %v6924 = vunpack.c.l.b16 %v6030
    %v6925 = vunpack.c.h.b16 %v6030
    %v6926 = vunpack.c.l.b16 %v6031
    %v6927 = vunpack.c.l.b16 %v6032
    %v6928 = vunpack.c.h.b16 %v6032
    %v6929 = vunpack.c.l.b16 %v6033
    %v6930 = vunpack.c.l.b16 %v6034
    %v6931 = vunpack.c.h.b16 %v6034
    %v6932 = vunpack.c.l.b16 %v6035
    %v6933 = vunpack.c.l.b16 %v6036
    %v6934 = vunpack.c.h.b16 %v6036
    %v6935 = vunpack.c.l.b16 %v6037
    %v6936 = vunpack.c.l.b16 %v6038
    %v6937 = vunpack.c.h.b16 %v6038
    %v6938 = vunpack.c.l.b16 %v6039
    %v6939 = vunpack.c.l.b16 %v6040
    %v6940 = vunpack.c.h.b16 %v6040
    %v6941 = vunpack.c.l.b16 %v6041
    %v6942 = vunpack.c.l.b16 %v6042
    %v6943 = vunpack.c.h.b16 %v6042
    %v6944 = vunpack.c.l.b16 %v6043
    %v6945 = vunpack.c.l.b16 %v6044
    %v6946 = vunpack.c.h.b16 %v6044
    %v6947 = vunpack.c.l.b16 %v6045
    %v6948 = vunpack.c.l.b16 %v6046
    %v6949 = vunpack.c.h.b16 %v6046
    %v6950 = vunpack.c.l.b16 %v6047
    %v6951 = vunpack.c.l.b16 %v6048
    %v6952 = vunpack.c.h.b16 %v6048
    %v6953 = vunpack.c.l.b16 %v6049
    %v6954 = vunpack.c.l.b16 %v6050
    %v6955 = vunpack.c.h.b16 %v6050
    %v6956 = vunpack.c.l.b16 %v6051
    %v6957 = vunpack.c.l.b16 %v6052
    %v6958 = vunpack.c.h.b16 %v6052
    %v6959 = vunpack.c.l.b16 %v6053
    %v6960 = vunpack.c.l.b16 %v6054
    %v6961 = vunpack.c.h.b16 %v6054
    %v6962 = vunpack.c.l.b16 %v6055
    %v6963 = vunpack.c.l.b16 %v6056
    %v6964 = vunpack.c.h.b16 %v6056
    %v6965 = vunpack.c.l.b16 %v6057
    %v6966 = vunpack.c.l.b16 %v6058
    %v6967 = vunpack.c.h.b16 %v6058
    %v6968 = vunpack.c.l.b16 %v6059
    %v6969 = vunpack.c.l.b16 %v6060
    %v6970 = vunpack.c.h.b16 %v6060
    %v6971 = vunpack.c.l.b16 %v6061
    %v6972 = vunpack.c.l.b16 %v6062
    %v6973 = vunpack.c.h.b16 %v6062
    %v6974 = vunpack.c.l.b16 %v6063
    %v6975 = vunpack.c.l.b16 %v6064
    %v6976 = vunpack.c.h.b16 %v6064
    %v6977 = vunpack.c.l.b16 %v6065
    %v6978 = vunpack.c.l.b16 %v6066
    %v6979 = vunpack.c.h.b16 %v6066
    %v6980 = vunpack.c.l.b16 %v6067
    %v6981 = vunpack.c.l.b16 %v6068
    %v6982 = vunpack.c.h.b16 %v6068
    %v6983 = vunpack.c.l.b16 %v6069
    %v6984 = vunpack.c.l.b16 %v6070
    %v6985 = vunpack.c.h.b16 %v6070
    %v6986 = vunpack.c.l.b16 %v6071
    %v6987 = vunpack.c.l.b16 %v6072
    %v6988 = vunpack.c.h.b16 %v6072
    %v6989 = vunpack.c.l.b16 %v6073
    %v6990 = vunpack.c.l.b16 %v6074
    %v6991 = vunpack.c.h.b16 %v6074
    %v6992 = vunpack.c.l.b16 %v6075
    %v6993 = vunpack.c.l.b16 %v6076
    %v6994 = vunpack.c.h.b16 %v6076
    %v6995 = vunpack.c.l.b16 %v6077
    %v6996 = vunpack.c.l.b16 %v6078
    %v6997 = vunpack.c.h.b16 %v6078
    %v6998 = vunpack.c.l.b16 %v6079
    %v6999 = vunpack.c.l.b16 %v6080
    %v7000 = vunpack.c.h.b16 %v6080
    %v7001 = vunpack.c.l.b16 %v6081
    %v7002 = vunpack.c.l.b16 %v6082
    %v7003 = vunpack.c.h.b16 %v6082
    %v7004 = vunpack.c.l.b16 %v6083
    %v7005 = vunpack.c.l.b16 %v6084
    %v7006 = vunpack.c.h.b16 %v6084
    %v7007 = vunpack.c.l.b16 %v6085
    %v7008 = vunpack.c.l.b16 %v6086
    %v7009 = vunpack.c.h.b16 %v6086
    %v7010 = vunpack.c.l.b16 %v6087
    %v7011 = vunpack.c.l.b16 %v6088
    %v7012 = vunpack.c.h.b16 %v6088
    %v7013 = vunpack.c.l.b16 %v6089
    %v7014 = vunpack.c.l.b16 %v6090
    %v7015 = vunpack.c.h.b16 %v6090
    %v7016 = vunpack.c.l.b16 %v6091
    %v7017 = vunpack.c.l.b16 %v6092
    %v7018 = vunpack.c.h.b16 %v6092
    %v7019 = vunpack.c.l.b16 %v6093
    %v7020 = vunpack.c.l.b16 %v6094
    %v7021 = vunpack.c.h.b16 %v6094
    %v7022 = vunpack.c.l.b16 %v6095
    %v7023 = vunpack.c.l.b16 %v6096
    %v7024 = vunpack.c.h.b16 %v6096
    %v7025 = vunpack.c.l.b16 %v6097
    %v7026 = vunpack.c.l.b16 %v6098
    %v7027 = vunpack.c.h.b16 %v6098
    %v7028 = vunpack.c.l.b16 %v6099
    %v7029 = vunpack.c.l.b16 %v6100
    %v7030 = vunpack.c.h.b16 %v6100
    %v7031 = vunpack.c.l.b16 %v6101
    %v7032 = vunpack.c.l.b16 %v6102
    %v7033 = vunpack.c.h.b16 %v6102
    %v7034 = vunpack.c.l.b16 %v6103
    %v7035 = vunpack.c.l.b16 %v6104
    %v7036 = vunpack.c.h.b16 %v6104
    %v7037 = vunpack.c.l.b16 %v6105
    %v7038 = vunpack.c.l.b16 %v6106
    %v7039 = vunpack.c.h.b16 %v6106
    %v7040 = vunpack.c.l.b16 %v6107
    %v7041 = vunpack.c.l.b16 %v6108
    %v7042 = vunpack.c.h.b16 %v6108
    %v7043 = vunpack.c.l.b16 %v6109
    %v7044 = vunpack.c.l.b16 %v6110
    %v7045 = vunpack.c.h.b16 %v6110
    %v7046 = vunpack.c.l.b16 %v6111
    %v7047 = vunpack.c.l.b16 %v6112
    %v7048 = vunpack.c.h.b16 %v6112
    %v7049 = vunpack.c.l.b16 %v6113
    %v7050 = vunpack.c.l.b16 %v6114
    %v7051 = vunpack.c.h.b16 %v6114
    %v7052 = vunpack.c.l.b16 %v6115
    %v7053 = vunpack.c.l.b16 %v6116
    %v7054 = vunpack.c.h.b16 %v6116
    %v7055 = vunpack.c.l.b16 %v6117
    %v7056 = vunpack.c.l.b16 %v6118
    %v7057 = vunpack.c.h.b16 %v6118
    %v7058 = vunpack.c.l.b16 %v6119
    %v7059 = vunpack.c.l.b16 %v6120
    %v7060 = vunpack.c.h.b16 %v6120
    %v7061 = vunpack.c.l.b16 %v6121
    %v7062 = vunpack.c.l.b16 %v6122
    %v7063 = vunpack.c.h.b16 %v6122
    %v7064 = vunpack.c.l.b16 %v6123
    %v7065 = vunpack.c.l.b16 %v6124
    %v7066 = vunpack.c.h.b16 %v6124
    %v7067 = vunpack.c.l.b16 %v6125
    %v7068 = vunpack.c.l.b16 %v6126
    %v7069 = vunpack.c.h.b16 %v6126
    %v7070 = vunpack.c.l.b16 %v6127
    %v7071 = vunpack.c.l.b16 %v6128
    %v7072 = vunpack.c.h.b16 %v6128
    %v7073 = vunpack.c.l.b16 %v6129
    %v7074 = vunpack.c.l.b16 %v6130
    %v7075 = vunpack.c.h.b16 %v6130
    %v7076 = vunpack.c.l.b16 %v6131
    %v7077 = vunpack.c.l.b16 %v6132
    %v7078 = vunpack.c.h.b16 %v6132
    %v7079 = vunpack.c.l.b16 %v6133
    %v7080 = vunpack.c.l.b16 %v6134
    %v7081 = vunpack.c.h.b16 %v6134
    %v7082 = vunpack.c.l.b16 %v6135
    %v7083 = vunpack.c.l.b16 %v6136
    %v7084 = vunpack.c.h.b16 %v6136
    %v7085 = vunpack.c.l.b16 %v6137
    %v7086 = vunpack.c.l.b16 %v6138
    %v7087 = vunpack.c.h.b16 %v6138
    %v7088 = vunpack.c.l.b16 %v6139
    %v7089 = vunpack.c.l.b16 %v6140
    %v7090 = vunpack.c.h.b16 %v6140
    %v7091 = vunpack.c.l.b16 %v6141
    %v7092 = vunpack.c.l.b16 %v6142
    %v7093 = vunpack.c.h.b16 %v6142
    %v7094 = vunpack.c.l.b16 %v6143
    %v7095 = vunpack.c.l.b16 %v6144
    %v7096 = vunpack.c.h.b16 %v6144
    %v7097 = vunpack.c.l.b16 %v6145
    %v7098 = vunpack.c.l.b16 %v6146
    %v7099 = vunpack.c.h.b16 %v6146
    %v7100 = vunpack.c.l.b16 %v6147
    %v7101 = vunpack.c.l.b16 %v6148
    %v7102 = vunpack.c.h.b16 %v6148
    %v7103 = vunpack.c.l.b16 %v6149
    %v7104 = vunpack.c.l.b16 %v6150
    %v7105 = vunpack.c.h.b16 %v6150
    %v7106 = vunpack.c.l.b16 %v6151
    %v7107 = vunpack.c.l.b16 %v6152
    %v7108 = vunpack.c.h.b16 %v6152
    %v7109 = vunpack.c.l.b16 %v6153
    %v7110 = vunpack.c.l.b16 %v6154
    %v7111 = vunpack.c.h.b16 %v6154
    %v7112 = vunpack.c.l.b16 %v6155
    %v7113 = vunpack.c.l.b16 %v6156
    %v7114 = vunpack.c.h.b16 %v6156
    %v7115 = vunpack.c.l.b16 %v6157
    %v7116 = vunpack.c.l.b16 %v6158
    %v7117 = vunpack.c.h.b16 %v6158
    %v7118 = vunpack.c.l.b16 %v6159
    %v7119 = vunpack.c.l.b16 %v6160
    %v7120 = vunpack.c.h.b16 %v6160
    %v7121 = vunpack.c.l.b16 %v6161
    %v7122 = vunpack.c.l.b16 %v6162
    %v7123 = vunpack.c.h.b16 %v6162
    %v7124 = vunpack.c.l.b16 %v6163
    %v7125 = vunpack.c.l.b16 %v6164
    %v7126 = vunpack.c.h.b16 %v6164
    %v7127 = vunpack.c.l.b16 %v6165
    %v7128 = vunpack.c.l.b16 %v6166
    %v7129 = vunpack.c.h.b16 %v6166
    %v7130 = vunpack.c.l.b16 %v6167
    %v7131 = vunpack.c.l.b16 %v6168
    %v7132 = vunpack.c.h.b16 %v6168
    %v7133 = vunpack.c.l.b16 %v6169
    %v7134 = vunpack.c.l.b16 %v6170
    %v7135 = vunpack.c.h.b16 %v6170
    %v7136 = vunpack.c.l.b16 %v6171
    %v7137 = vunpack.c.l.b16 %v6172
    %v7138 = vunpack.c.h.b16 %v6172
    %v7139 = vunpack.c.l.b16 %v6173
    %v7140 = vunpack.c.l.b16 %v6174
    %v7141 = vunpack.c.h.b16 %v6174
    %v7142 = vunpack.c.l.b16 %v6175
    %v7143 = vunpack.c.l.b16 %v6176
    %v7144 = vunpack.c.h.b16 %v6176
    %v7145 = vunpack.c.l.b16 %v6177
    %v7146 = vpack.c.b16 %v6573, %v6570
    %v7147 = vpack.c.b16 %v6574, %v6571
    %v7148 = vpack.c.b16 %v6575, %v6572
    %v7149 = vpack.c.b16 %v6579, %v6576
    %v7150 = vpack.c.b16 %v6580, %v6577
    %v7151 = vpack.c.b16 %v6581, %v6578
    %v7152 = vpack.c.b16 %v6585, %v6582
    %v7153 = vpack.c.b16 %v6586, %v6583
    %v7154 = vpack.c.b16 %v6587, %v6584
    %v7155 = vpack.c.b16 %v6591, %v6588
    %v7156 = vpack.c.b16 %v6592, %v6589
    %v7157 = vpack.c.b16 %v6593, %v6590
    %v7158 = vpack.c.b16 %v6597, %v6594
    %v7159 = vpack.c.b16 %v6598, %v6595
    %v7160 = vpack.c.b16 %v6599, %v6596
    %v7161 = vpack.c.b16 %v6603, %v6600
    %v7162 = vpack.c.b16 %v6604, %v6601
    %v7163 = vpack.c.b16 %v6605, %v6602
    %v7164 = vpack.c.b16 %v6609, %v6606
    %v7165 = vpack.c.b16 %v6610, %v6607
    %v7166 = vpack.c.b16 %v6611, %v6608
    %v7167 = vpack.c.b16 %v6615, %v6612
    %v7168 = vpack.c.b16 %v6616, %v6613
    %v7169 = vpack.c.b16 %v6617, %v6614
    %v7170 = vpack.c.b16 %v6621, %v6618
    %v7171 = vpack.c.b16 %v6622, %v6619
    %v7172 = vpack.c.b16 %v6623, %v6620
    %v7173 = vpack.c.b16 %v6627, %v6624
    %v7174 = vpack.c.b16 %v6628, %v6625
    %v7175 = vpack.c.b16 %v6629, %v6626
    %v7176 = vpack.c.b16 %v6633, %v6630
    %v7177 = vpack.c.b16 %v6634, %v6631
    %v7178 = vpack.c.b16 %v6635, %v6632
    %v7179 = vpack.c.b16 %v6639, %v6636
    %v7180 = vpack.c.b16 %v6640, %v6637
    %v7181 = vpack.c.b16 %v6641, %v6638
    %v7182 = vpack.c.b16 %v6645, %v6642
    %v7183 = vpack.c.b16 %v6646, %v6643
    %v7184 = vpack.c.b16 %v6647, %v6644
    %v7185 = vpack.c.b16 %v6651, %v6648
    %v7186 = vpack.c.b16 %v6652, %v6649
    %v7187 = vpack.c.b16 %v6653, %v6650
    %v7188 = vpack.c.b16 %v6657, %v6654
    %v7189 = vpack.c.b16 %v6658, %v6655
    %v7190 = vpack.c.b16 %v6659, %v6656
    %v7191 = vpack.c.b16 %v6663, %v6660
    %v7192 = vpack.c.b16 %v6664, %v6661
    %v7193 = vpack.c.b16 %v6665, %v6662
    %v7194 = vpack.c.b16 %v6669, %v6666
    %v7195 = vpack.c.b16 %v6670, %v6667
    %v7196 = vpack.c.b16 %v6671, %v6668
    %v7197 = vpack.c.b16 %v6675, %v6672
    %v7198 = vpack.c.b16 %v6676, %v6673
    %v7199 = vpack.c.b16 %v6677, %v6674
    %v7200 = vpack.c.b16 %v6681, %v6678
    %v7201 = vpack.c.b16 %v6682, %v6679
    %v7202 = vpack.c.b16 %v6683, %v6680
    %v7203 = vpack.c.b16 %v6687, %v6684
    %v7204 = vpack.c.b16 %v6688, %v6685
    %v7205 = vpack.c.b16 %v6689, %v6686
    %v7206 = vpack.c.b16 %v6693, %v6690
    %v7207 = vpack.c.b16 %v6694, %v6691
    %v7208 = vpack.c.b16 %v6695, %v6692
    %v7209 = vpack.c.b16 %v6699, %v6696
    %v7210 = vpack.c.b16 %v6700, %v6697
    %v7211 = vpack.c.b16 %v6701, %v6698
    %v7212 = vpack.c.b16 %v6705, %v6702
    %v7213 = vpack.c.b16 %v6706, %v6703
    %v7214 = vpack.c.b16 %v6707, %v6704
    %v7215 = vpack.c.b16 %v6711, %v6708
    %v7216 = vpack.c.b16 %v6712, %v6709
    %v7217 = vpack.c.b16 %v6713, %v6710
    %v7218 = vpack.c.b16 %v6717, %v6714
    %v7219 = vpack.c.b16 %v6718, %v6715
    %v7220 = vpack.c.b16 %v6719, %v6716
    %v7221 = vpack.c.b16 %v6723, %v6720
    %v7222 = vpack.c.b16 %v6724, %v6721
    %v7223 = vpack.c.b16 %v6725, %v6722
    %v7224 = vpack.c.b16 %v6729, %v6726
    %v7225 = vpack.c.b16 %v6730, %v6727
    %v7226 = vpack.c.b16 %v6731, %v6728
    %v7227 = vpack.c.b16 %v6735, %v6732
    %v7228 = vpack.c.b16 %v6736, %v6733
    %v7229 = vpack.c.b16 %v6737, %v6734
    %v7230 = vpack.c.b16 %v6741, %v6738
    %v7231 = vpack.c.b16 %v6742, %v6739
    %v7232 = vpack.c.b16 %v6743, %v6740
    %v7233 = vpack.c.b16 %v6747, %v6744
    %v7234 = vpack.c.b16 %v6748, %v6745
    %v7235 = vpack.c.b16 %v6749, %v6746
    %v7236 = vpack.c.b16 %v6753, %v6750
    %v7237 = vpack.c.b16 %v6754, %v6751
    %v7238 = vpack.c.b16 %v6755, %v6752
    %v7239 = vpack.c.b16 %v6759, %v6756
    %v7240 = vpack.c.b16 %v6760, %v6757
    %v7241 = vpack.c.b16 %v6761, %v6758
    %v7242 = vpack.c.b16 %v6765, %v6762
    %v7243 = vpack.c.b16 %v6766, %v6763
    %v7244 = vpack.c.b16 %v6767, %v6764
    %v7245 = vpack.c.b16 %v6771, %v6768
    %v7246 = vpack.c.b16 %v6772, %v6769
    %v7247 = vpack.c.b16 %v6773, %v6770
    %v7248 = vpack.c.b16 %v6777, %v6774
    %v7249 = vpack.c.b16 %v6778, %v6775
    %v7250 = vpack.c.b16 %v6779, %v6776
    %v7251 = vpack.c.b16 %v6783, %v6780
    %v7252 = vpack.c.b16 %v6784, %v6781
    %v7253 = vpack.c.b16 %v6785, %v6782
    %v7254 = vpack.c.b16 %v6789, %v6786
    %v7255 = vpack.c.b16 %v6790, %v6787
    %v7256 = vpack.c.b16 %v6791, %v6788
    %v7257 = vpack.c.b16 %v6795, %v6792
    %v7258 = vpack.c.b16 %v6796, %v6793
    %v7259 = vpack.c.b16 %v6797, %v6794
    %v7260 = vpack.c.b16 %v6801, %v6798
    %v7261 = vpack.c.b16 %v6802, %v6799
    %v7262 = vpack.c.b16 %v6803, %v6800
    %v7263 = vpack.c.b16 %v6807, %v6804
    %v7264 = vpack.c.b16 %v6808, %v6805
    %v7265 = vpack.c.b16 %v6809, %v6806
    %v7266 = vpack.c.b16 %v6813, %v6810
    %v7267 = vpack.c.b16 %v6814, %v6811
    %v7268 = vpack.c.b16 %v6815, %v6812
    %v7269 = vpack.c.b16 %v6819, %v6816
    %v7270 = vpack.c.b16 %v6820, %v6817
    %v7271 = vpack.c.b16 %v6821, %v6818
    %v7272 = vpack.c.b16 %v6825, %v6822
    %v7273 = vpack.c.b16 %v6826, %v6823
    %v7274 = vpack.c.b16 %v6827, %v6824
    %v7275 = vpack.c.b16 %v6831, %v6828
    %v7276 = vpack.c.b16 %v6832, %v6829
    %v7277 = vpack.c.b16 %v6833, %v6830
    %v7278 = vpack.c.b16 %v6837, %v6834
    %v7279 = vpack.c.b16 %v6838, %v6835
    %v7280 = vpack.c.b16 %v6839, %v6836
    %v7281 = vpack.c.b16 %v6843, %v6840
    %v7282 = vpack.c.b16 %v6844, %v6841
    %v7283 = vpack.c.b16 %v6845, %v6842
    %v7284 = vpack.c.b16 %v6849, %v6846
    %v7285 = vpack.c.b16 %v6850, %v6847
    %v7286 = vpack.c.b16 %v6851, %v6848
    %v7287 = vpack.c.b16 %v6855, %v6852
    %v7288 = vpack.c.b16 %v6856, %v6853
    %v7289 = vpack.c.b16 %v6857, %v6854
    %v7290 = vpack.c.b16 %v6861, %v6858
    %v7291 = vpack.c.b16 %v6862, %v6859
    %v7292 = vpack.c.b16 %v6863, %v6860
    %v7293 = vpack.c.b16 %v6867, %v6864
    %v7294 = vpack.c.b16 %v6868, %v6865
    %v7295 = vpack.c.b16 %v6869, %v6866
    %v7296 = vpack.c.b16 %v6873, %v6870
    %v7297 = vpack.c.b16 %v6874, %v6871
    %v7298 = vpack.c.b16 %v6875, %v6872
    %v7299 = vpack.c.b16 %v6879, %v6876
    %v7300 = vpack.c.b16 %v6880, %v6877
    %v7301 = vpack.c.b16 %v6881, %v6878
    %v7302 = vpack.c.b16 %v6885, %v6882
    %v7303 = vpack.c.b16 %v6886, %v6883
    %v7304 = vpack.c.b16 %v6887, %v6884
    %v7305 = vpack.c.b16 %v6891, %v6888
    %v7306 = vpack.c.b16 %v6892, %v6889
    %v7307 = vpack.c.b16 %v6893, %v6890
    %v7308 = vpack.c.b16 %v6897, %v6894
    %v7309 = vpack.c.b16 %v6898, %v6895
    %v7310 = vpack.c.b16 %v6899, %v6896
    %v7311 = vpack.c.b16 %v6903, %v6900
    %v7312 = vpack.c.b16 %v6904, %v6901
    %v7313 = vpack.c.b16 %v6905, %v6902
    %v7314 = vpack.c.b16 %v6909, %v6906
    %v7315 = vpack.c.b16 %v6910, %v6907
    %v7316 = vpack.c.b16 %v6911, %v6908
    %v7317 = vpack.c.b16 %v6915, %v6912
    %v7318 = vpack.c.b16 %v6916, %v6913
    %v7319 = vpack.c.b16 %v6917, %v6914
    %v7320 = vpack.c.b16 %v6921, %v6918
    %v7321 = vpack.c.b16 %v6922, %v6919
    %v7322 = vpack.c.b16 %v6923, %v6920
    %v7323 = vpack.c.b16 %v6927, %v6924
    %v7324 = vpack.c.b16 %v6928, %v6925
    %v7325 = vpack.c.b16 %v6929, %v6926
    %v7326 = vpack.c.b16 %v6933, %v6930
    %v7327 = vpack.c.b16 %v6934, %v6931
    %v7328 = vpack.c.b16 %v6935, %v6932
    %v7329 = vpack.c.b16 %v6939, %v6936
    %v7330 = vpack.c.b16 %v6940, %v6937
    %v7331 = vpack.c.b16 %v6941, %v6938
    %v7332 = vpack.c.b16 %v6945, %v6942
    %v7333 = vpack.c.b16 %v6946, %v6943
    %v7334 = vpack.c.b16 %v6947, %v6944
    %v7335 = vpack.c.b16 %v6951, %v6948
    %v7336 = vpack.c.b16 %v6952, %v6949
    %v7337 = vpack.c.b16 %v6953, %v6950
    %v7338 = vpack.c.b16 %v6957, %v6954
    %v7339 = vpack.c.b16 %v6958, %v6955
    %v7340 = vpack.c.b16 %v6959, %v6956
    %v7341 = vpack.c.b16 %v6963, %v6960
    %v7342 = vpack.c.b16 %v6964, %v6961
    %v7343 = vpack.c.b16 %v6965, %v6962
    %v7344 = vpack.c.b16 %v6969, %v6966
    %v7345 = vpack.c.b16 %v6970, %v6967
    %v7346 = vpack.c.b16 %v6971, %v6968
    %v7347 = vpack.c.b16 %v6975, %v6972
    %v7348 = vpack.c.b16 %v6976, %v6973
    %v7349 = vpack.c.b16 %v6977, %v6974
    %v7350 = vpack.c.b16 %v6981, %v6978
    %v7351 = vpack.c.b16 %v6982, %v6979
    %v7352 = vpack.c.b16 %v6983, %v6980
    %v7353 = vpack.c.b16 %v6987, %v6984
    %v7354 = vpack.c.b16 %v6988, %v6985
    %v7355 = vpack.c.b16 %v6989, %v6986
    %v7356 = vpack.c.b16 %v6993, %v6990
    %v7357 = vpack.c.b16 %v6994, %v6991
    %v7358 = vpack.c.b16 %v6995, %v6992
    %v7359 = vpack.c.b16 %v6999, %v6996
    %v7360 = vpack.c.b16 %v7000, %v6997
    %v7361 = vpack.c.b16 %v7001, %v6998
    %v7362 = vpack.c.b16 %v7005, %v7002
    %v7363 = vpack.c.b16 %v7006, %v7003
    %v7364 = vpack.c.b16 %v7007, %v7004
    %v7365 = vpack.c.b16 %v7011, %v7008
    %v7366 = vpack.c.b16 %v7012, %v7009
    %v7367 = vpack.c.b16 %v7013, %v7010
    %v7368 = vpack.c.b16 %v7017, %v7014
    %v7369 = vpack.c.b16 %v7018, %v7015
    %v7370 = vpack.c.b16 %v7019, %v7016
    %v7371 = vpack.c.b16 %v7023, %v7020
    %v7372 = vpack.c.b16 %v7024, %v7021
    %v7373 = vpack.c.b16 %v7025, %v7022
    %v7374 = vpack.c.b16 %v7029, %v7026
    %v7375 = vpack.c.b16 %v7030, %v7027
    %v7376 = vpack.c.b16 %v7031, %v7028
    %v7377 = vpack.c.b16 %v7035, %v7032
    %v7378 = vpack.c.b16 %v7036, %v7033
    %v7379 = vpack.c.b16 %v7037, %v7034
    %v7380 = vpack.c.b16 %v7041, %v7038
    %v7381 = vpack.c.b16 %v7042, %v7039
    %v7382 = vpack.c.b16 %v7043, %v7040
    %v7383 = vpack.c.b16 %v7047, %v7044
    %v7384 = vpack.c.b16 %v7048, %v7045
    %v7385 = vpack.c.b16 %v7049, %v7046
    %v7386 = vpack.c.b16 %v7053, %v7050
    %v7387 = vpack.c.b16 %v7054, %v7051
    %v7388 = vpack.c.b16 %v7055, %v7052
    %v7389 = vpack.c.b16 %v7059, %v7056
    %v7390 = vpack.c.b16 %v7060, %v7057
    %v7391 = vpack.c.b16 %v7061, %v7058
    %v7392 = vpack.c.b16 %v7065, %v7062
    %v7393 = vpack.c.b16 %v7066, %v7063
    %v7394 = vpack.c.b16 %v7067, %v7064
    %v7395 = vpack.c.b16 %v7071, %v7068
    %v7396 = vpack.c.b16 %v7072, %v7069
    %v7397 = vpack.c.b16 %v7073, %v7070
    %v7398 = vpack.c.b16 %v7077, %v7074
    %v7399 = vpack.c.b16 %v7078, %v7075
    %v7400 = vpack.c.b16 %v7079, %v7076
    %v7401 = vpack.c.b16 %v7083, %v7080
    %v7402 = vpack.c.b16 %v7084, %v7081
    %v7403 = vpack.c.b16 %v7085, %v7082
    %v7404 = vpack.c.b16 %v7089, %v7086
    %v7405 = vpack.c.b16 %v7090, %v7087
    %v7406 = vpack.c.b16 %v7091, %v7088
    %v7407 = vpack.c.b16 %v7095, %v7092
    %v7408 = vpack.c.b16 %v7096, %v7093
    %v7409 = vpack.c.b16 %v7097, %v7094
    %v7410 = vpack.c.b16 %v7101, %v7098
    %v7411 = vpack.c.b16 %v7102, %v7099
    %v7412 = vpack.c.b16 %v7103, %v7100
    %v7413 = vpack.c.b16 %v7107, %v7104
    %v7414 = vpack.c.b16 %v7108, %v7105
    %v7415 = vpack.c.b16 %v7109, %v7106
    %v7416 = vpack.c.b16 %v7113, %v7110
    %v7417 = vpack.c.b16 %v7114, %v7111
    %v7418 = vpack.c.b16 %v7115, %v7112
    %v7419 = vpack.c.b16 %v7119, %v7116
    %v7420 = vpack.c.b16 %v7120, %v7117
    %v7421 = vpack.c.b16 %v7121, %v7118
    %v7422 = vpack.c.b16 %v7125, %v7122
    %v7423 = vpack.c.b16 %v7126, %v7123
    %v7424 = vpack.c.b16 %v7127, %v7124
    %v7425 = vpack.c.b16 %v7131, %v7128
    %v7426 = vpack.c.b16 %v7132, %v7129
    %v7427 = vpack.c.b16 %v7133, %v7130
    %v7428 = vpack.c.b16 %v7137, %v7134
    %v7429 = vpack.c.b16 %v7138, %v7135
    %v7430 = vpack.c.b16 %v7139, %v7136
    %v7431 = vpack.c.b16 %v7143, %v7140
    %v7432 = vpack.c.b16 %v7144, %v7141
    %v7433 = vpack.c.b16 %v7145, %v7142
    %7722 = vmatpush.bf16.msra.mxu0 %v7167
    %7723 = vmatpush.bf16.msra.mxu0 %v7164
    %7724 = vmatpush.bf16.msra.mxu0 %v7161
    %7725 = vmatpush.bf16.msra.mxu0 %v7158
    %7726 = vmatpush.bf16.msra.mxu0 %v7155
    %7727 = vmatpush.bf16.msra.mxu0 %v7152
    %7728 = vmatpush.bf16.msra.mxu0 %v7149
    %7729 = vmatpush.bf16.msra.mxu0 %v7146
    %7730 = vmatmul.bf16.gmra.mxu0 %v5602
    %v7731 = vpop.f32.mrf.mxu0
    %v7732 = vadd.f32 %v6180, %v7731
    %v7733 = vpop.f32.mrf.mxu0
    %v7734 = vadd.f32 %v6180, %v7733
    %7735 = vmatmul.bf16.gmra.mxu0 %v5614
    %v7736 = vpop.f32.mrf.mxu0
    %v7737 = vadd.f32 %v6180, %v7736
    %v7738 = vpop.f32.mrf.mxu0
    %v7739 = vadd.f32 %v6180, %v7738
    %7740 = vmatmul.bf16.gmra.mxu0 %v5626
    %v7741 = vpop.f32.mrf.mxu0
    %v7742 = vadd.f32 %v6180, %v7741
    %v7743 = vpop.f32.mrf.mxu0
    %v7744 = vadd.f32 %v6180, %v7743
    %7745 = vmatmul.bf16.gmra.mxu0 %v5638
    %v7746 = vpop.f32.mrf.mxu0
    %v7747 = vadd.f32 %v6180, %v7746
    %v7748 = vpop.f32.mrf.mxu0
    %v7749 = vadd.f32 %v6180, %v7748
    %7750 = vmatmul.bf16.gmra.mxu0 %v5650
    %v7751 = vpop.f32.mrf.mxu0
    %v7752 = vadd.f32 %v6180, %v7751
    %v7753 = vpop.f32.mrf.mxu0
    %v7754 = vadd.f32 %v6180, %v7753
    %7755 = vmatmul.bf16.gmra.mxu0 %v5662
    %v7756 = vpop.f32.mrf.mxu0
    %v7757 = vadd.f32 %v6180, %v7756
    %v7758 = vpop.f32.mrf.mxu0
    %v7759 = vadd.f32 %v6180, %v7758
    %7760 = vmatmul.bf16.gmra.mxu0 %v5674
    %v7761 = vpop.f32.mrf.mxu0
    %v7762 = vadd.f32 %v6180, %v7761
    %v7763 = vpop.f32.mrf.mxu0
    %v7764 = vadd.f32 %v6180, %v7763
    %7765 = vmatmul.bf16.gmra.mxu0 %v5686
    %v7766 = vpop.f32.mrf.mxu0
    %v7767 = vadd.f32 %v6180, %v7766
    %v7768 = vpop.f32.mrf.mxu0
    %v7769 = vadd.f32 %v6180, %v7768
    %7770 = vmatmul.bf16.gmra.mxu0 %v5698
    %v7771 = vpop.f32.mrf.mxu0
    %v7772 = vadd.f32 %v6180, %v7771
    %v7773 = vpop.f32.mrf.mxu0
    %v7774 = vadd.f32 %v6180, %v7773
    %7775 = vmatmul.bf16.gmra.mxu0 %v5710
    %v7776 = vpop.f32.mrf.mxu0
    %v7777 = vadd.f32 %v6180, %v7776
    %v7778 = vpop.f32.mrf.mxu0
    %v7779 = vadd.f32 %v6180, %v7778
    %7780 = vmatmul.bf16.gmra.mxu0 %v5722
    %v7781 = vpop.f32.mrf.mxu0
    %v7782 = vadd.f32 %v6180, %v7781
    %v7783 = vpop.f32.mrf.mxu0
    %v7784 = vadd.f32 %v6180, %v7783
    %7785 = vmatmul.bf16.gmra.mxu0 %v5734
    %v7786 = vpop.f32.mrf.mxu0
    %v7787 = vadd.f32 %v6180, %v7786
    %v7788 = vpop.f32.mrf.mxu0
    %v7789 = vadd.f32 %v6180, %v7788
    %7790 = vmatmul.bf16.gmra.mxu0 %v5746
    %v7791 = vpop.f32.mrf.mxu0
    %v7792 = vadd.f32 %v6180, %v7791
    %v7793 = vpop.f32.mrf.mxu0
    %v7794 = vadd.f32 %v6180, %v7793
    %7795 = vmatmul.bf16.gmra.mxu0 %v5758
    %v7796 = vpop.f32.mrf.mxu0
    %v7797 = vadd.f32 %v6180, %v7796
    %v7798 = vpop.f32.mrf.mxu0
    %v7799 = vadd.f32 %v6180, %v7798
    %7800 = vmatmul.bf16.gmra.mxu0 %v5770
    %v7801 = vpop.f32.mrf.mxu0
    %v7802 = vadd.f32 %v6180, %v7801
    %v7803 = vpop.f32.mrf.mxu0
    %v7804 = vadd.f32 %v6180, %v7803
    %7805 = vmatmul.bf16.gmra.mxu0 %v5782
    %v7806 = vpop.f32.mrf.mxu0
    %v7807 = vadd.f32 %v6180, %v7806
    %v7808 = vpop.f32.mrf.mxu0
    %v7809 = vadd.f32 %v6180, %v7808
    %7810 = vdwg.mxu0
    %7811 = vmatpush.bf16.msra.mxu0 %v7191
    %7812 = vmatpush.bf16.msra.mxu0 %v7188
    %7813 = vmatpush.bf16.msra.mxu0 %v7185
    %7814 = vmatpush.bf16.msra.mxu0 %v7182
    %7815 = vmatpush.bf16.msra.mxu0 %v7179
    %7816 = vmatpush.bf16.msra.mxu0 %v7176
    %7817 = vmatpush.bf16.msra.mxu0 %v7173
    %7818 = vmatpush.bf16.msra.mxu0 %v7170
    %7819 = vmatmul.bf16.gmra.mxu0 %v5603
    %v7820 = vpop.f32.mrf.mxu0
    %v7821 = vadd.f32 %v7732, %v7820
    %v7822 = vpop.f32.mrf.mxu0
    %v7823 = vadd.f32 %v7734, %v7822
    %7824 = vmatmul.bf16.gmra.mxu0 %v5615
    %v7825 = vpop.f32.mrf.mxu0
    %v7826 = vadd.f32 %v7737, %v7825
    %v7827 = vpop.f32.mrf.mxu0
    %v7828 = vadd.f32 %v7739, %v7827
    %7829 = vmatmul.bf16.gmra.mxu0 %v5627
    %v7830 = vpop.f32.mrf.mxu0
    %v7831 = vadd.f32 %v7742, %v7830
    %v7832 = vpop.f32.mrf.mxu0
    %v7833 = vadd.f32 %v7744, %v7832
    %7834 = vmatmul.bf16.gmra.mxu0 %v5639
    %v7835 = vpop.f32.mrf.mxu0
    %v7836 = vadd.f32 %v7747, %v7835
    %v7837 = vpop.f32.mrf.mxu0
    %v7838 = vadd.f32 %v7749, %v7837
    %7839 = vmatmul.bf16.gmra.mxu0 %v5651
    %v7840 = vpop.f32.mrf.mxu0
    %v7841 = vadd.f32 %v7752, %v7840
    %v7842 = vpop.f32.mrf.mxu0
    %v7843 = vadd.f32 %v7754, %v7842
    %7844 = vmatmul.bf16.gmra.mxu0 %v5663
    %v7845 = vpop.f32.mrf.mxu0
    %v7846 = vadd.f32 %v7757, %v7845
    %v7847 = vpop.f32.mrf.mxu0
    %v7848 = vadd.f32 %v7759, %v7847
    %7849 = vmatmul.bf16.gmra.mxu0 %v5675
    %v7850 = vpop.f32.mrf.mxu0
    %v7851 = vadd.f32 %v7762, %v7850
    %v7852 = vpop.f32.mrf.mxu0
    %v7853 = vadd.f32 %v7764, %v7852
    %7854 = vmatmul.bf16.gmra.mxu0 %v5687
    %v7855 = vpop.f32.mrf.mxu0
    %v7856 = vadd.f32 %v7767, %v7855
    %v7857 = vpop.f32.mrf.mxu0
    %v7858 = vadd.f32 %v7769, %v7857
    %7859 = vmatmul.bf16.gmra.mxu0 %v5699
    %v7860 = vpop.f32.mrf.mxu0
    %v7861 = vadd.f32 %v7772, %v7860
    %v7862 = vpop.f32.mrf.mxu0
    %v7863 = vadd.f32 %v7774, %v7862
    %7864 = vmatmul.bf16.gmra.mxu0 %v5711
    %v7865 = vpop.f32.mrf.mxu0
    %v7866 = vadd.f32 %v7777, %v7865
    %v7867 = vpop.f32.mrf.mxu0
    %v7868 = vadd.f32 %v7779, %v7867
    %7869 = vmatmul.bf16.gmra.mxu0 %v5723
    %v7870 = vpop.f32.mrf.mxu0
    %v7871 = vadd.f32 %v7782, %v7870
    %v7872 = vpop.f32.mrf.mxu0
    %v7873 = vadd.f32 %v7784, %v7872
    %7874 = vmatmul.bf16.gmra.mxu0 %v5735
    %v7875 = vpop.f32.mrf.mxu0
    %v7876 = vadd.f32 %v7787, %v7875
    %v7877 = vpop.f32.mrf.mxu0
    %v7878 = vadd.f32 %v7789, %v7877
    %7879 = vmatmul.bf16.gmra.mxu0 %v5747
    %v7880 = vpop.f32.mrf.mxu0
    %v7881 = vadd.f32 %v7792, %v7880
    %v7882 = vpop.f32.mrf.mxu0
    %v7883 = vadd.f32 %v7794, %v7882
    %7884 = vmatmul.bf16.gmra.mxu0 %v5759
    %v7885 = vpop.f32.mrf.mxu0
    %v7886 = vadd.f32 %v7797, %v7885
    %v7887 = vpop.f32.mrf.mxu0
    %v7888 = vadd.f32 %v7799, %v7887
    %7889 = vmatmul.bf16.gmra.mxu0 %v5771
    %v7890 = vpop.f32.mrf.mxu0
    %v7891 = vadd.f32 %v7802, %v7890
    %v7892 = vpop.f32.mrf.mxu0
    %v7893 = vadd.f32 %v7804, %v7892
    %7894 = vmatmul.bf16.gmra.mxu0 %v5783
    %v7895 = vpop.f32.mrf.mxu0
    %v7896 = vadd.f32 %v7807, %v7895
    %v7897 = vpop.f32.mrf.mxu0
    %v7898 = vadd.f32 %v7809, %v7897
    %7899 = vdwg.mxu0
    %7900 = vmatpush.bf16.msra.mxu0 %v7215
    %7901 = vmatpush.bf16.msra.mxu0 %v7212
    %7902 = vmatpush.bf16.msra.mxu0 %v7209
    %7903 = vmatpush.bf16.msra.mxu0 %v7206
    %7904 = vmatpush.bf16.msra.mxu0 %v7203
    %7905 = vmatpush.bf16.msra.mxu0 %v7200
    %7906 = vmatpush.bf16.msra.mxu0 %v7197
    %7907 = vmatpush.bf16.msra.mxu0 %v7194
    %7908 = vmatmul.bf16.gmra.mxu0 %v5604
    %v7909 = vpop.f32.mrf.mxu0
    %v7910 = vadd.f32 %v7821, %v7909
    %v7911 = vpop.f32.mrf.mxu0
    %v7912 = vadd.f32 %v7823, %v7911
    %7913 = vmatmul.bf16.gmra.mxu0 %v5616
    %v7914 = vpop.f32.mrf.mxu0
    %v7915 = vadd.f32 %v7826, %v7914
    %v7916 = vpop.f32.mrf.mxu0
    %v7917 = vadd.f32 %v7828, %v7916
    %7918 = vmatmul.bf16.gmra.mxu0 %v5628
    %v7919 = vpop.f32.mrf.mxu0
    %v7920 = vadd.f32 %v7831, %v7919
    %v7921 = vpop.f32.mrf.mxu0
    %v7922 = vadd.f32 %v7833, %v7921
    %7923 = vmatmul.bf16.gmra.mxu0 %v5640
    %v7924 = vpop.f32.mrf.mxu0
    %v7925 = vadd.f32 %v7836, %v7924
    %v7926 = vpop.f32.mrf.mxu0
    %v7927 = vadd.f32 %v7838, %v7926
    %7928 = vmatmul.bf16.gmra.mxu0 %v5652
    %v7929 = vpop.f32.mrf.mxu0
    %v7930 = vadd.f32 %v7841, %v7929
    %v7931 = vpop.f32.mrf.mxu0
    %v7932 = vadd.f32 %v7843, %v7931
    %7933 = vmatmul.bf16.gmra.mxu0 %v5664
    %v7934 = vpop.f32.mrf.mxu0
    %v7935 = vadd.f32 %v7846, %v7934
    %v7936 = vpop.f32.mrf.mxu0
    %v7937 = vadd.f32 %v7848, %v7936
    %7938 = vmatmul.bf16.gmra.mxu0 %v5676
    %v7939 = vpop.f32.mrf.mxu0
    %v7940 = vadd.f32 %v7851, %v7939
    %v7941 = vpop.f32.mrf.mxu0
    %v7942 = vadd.f32 %v7853, %v7941
    %7943 = vmatmul.bf16.gmra.mxu0 %v5688
    %v7944 = vpop.f32.mrf.mxu0
    %v7945 = vadd.f32 %v7856, %v7944
    %v7946 = vpop.f32.mrf.mxu0
    %v7947 = vadd.f32 %v7858, %v7946
    %7948 = vmatmul.bf16.gmra.mxu0 %v5700
    %v7949 = vpop.f32.mrf.mxu0
    %v7950 = vadd.f32 %v7861, %v7949
    %v7951 = vpop.f32.mrf.mxu0
    %v7952 = vadd.f32 %v7863, %v7951
    %7953 = vmatmul.bf16.gmra.mxu0 %v5712
    %v7954 = vpop.f32.mrf.mxu0
    %v7955 = vadd.f32 %v7866, %v7954
    %v7956 = vpop.f32.mrf.mxu0
    %v7957 = vadd.f32 %v7868, %v7956
    %7958 = vmatmul.bf16.gmra.mxu0 %v5724
    %v7959 = vpop.f32.mrf.mxu0
    %v7960 = vadd.f32 %v7871, %v7959
    %v7961 = vpop.f32.mrf.mxu0
    %v7962 = vadd.f32 %v7873, %v7961
    %7963 = vmatmul.bf16.gmra.mxu0 %v5736
    %v7964 = vpop.f32.mrf.mxu0
    %v7965 = vadd.f32 %v7876, %v7964
    %v7966 = vpop.f32.mrf.mxu0
    %v7967 = vadd.f32 %v7878, %v7966
    %7968 = vmatmul.bf16.gmra.mxu0 %v5748
    %v7969 = vpop.f32.mrf.mxu0
    %v7970 = vadd.f32 %v7881, %v7969
    %v7971 = vpop.f32.mrf.mxu0
    %v7972 = vadd.f32 %v7883, %v7971
    %7973 = vmatmul.bf16.gmra.mxu0 %v5760
    %v7974 = vpop.f32.mrf.mxu0
    %v7975 = vadd.f32 %v7886, %v7974
    %v7976 = vpop.f32.mrf.mxu0
    %v7977 = vadd.f32 %v7888, %v7976
    %7978 = vmatmul.bf16.gmra.mxu0 %v5772
    %v7979 = vpop.f32.mrf.mxu0
    %v7980 = vadd.f32 %v7891, %v7979
    %v7981 = vpop.f32.mrf.mxu0
    %v7982 = vadd.f32 %v7893, %v7981
    %7983 = vmatmul.bf16.gmra.mxu0 %v5784
    %v7984 = vpop.f32.mrf.mxu0
    %v7985 = vadd.f32 %v7896, %v7984
    %v7986 = vpop.f32.mrf.mxu0
    %v7987 = vadd.f32 %v7898, %v7986
    %7988 = vdwg.mxu0
    %7989 = vmatpush.bf16.msra.mxu0 %v7239
    %7990 = vmatpush.bf16.msra.mxu0 %v7236
    %7991 = vmatpush.bf16.msra.mxu0 %v7233
    %7992 = vmatpush.bf16.msra.mxu0 %v7230
    %7993 = vmatpush.bf16.msra.mxu0 %v7227
    %7994 = vmatpush.bf16.msra.mxu0 %v7224
    %7995 = vmatpush.bf16.msra.mxu0 %v7221
    %7996 = vmatpush.bf16.msra.mxu0 %v7218
    %7997 = vmatmul.bf16.gmra.mxu0 %v5605
    %v7998 = vpop.f32.mrf.mxu0
    %v7999 = vadd.f32 %v7910, %v7998
    %v8000 = vpop.f32.mrf.mxu0
    %v8001 = vadd.f32 %v7912, %v8000
    %8002 = vmatmul.bf16.gmra.mxu0 %v5617
    %v8003 = vpop.f32.mrf.mxu0
    %v8004 = vadd.f32 %v7915, %v8003
    %v8005 = vpop.f32.mrf.mxu0
    %v8006 = vadd.f32 %v7917, %v8005
    %8007 = vmatmul.bf16.gmra.mxu0 %v5629
    %v8008 = vpop.f32.mrf.mxu0
    %v8009 = vadd.f32 %v7920, %v8008
    %v8010 = vpop.f32.mrf.mxu0
    %v8011 = vadd.f32 %v7922, %v8010
    %8012 = vmatmul.bf16.gmra.mxu0 %v5641
    %v8013 = vpop.f32.mrf.mxu0
    %v8014 = vadd.f32 %v7925, %v8013
    %v8015 = vpop.f32.mrf.mxu0
    %v8016 = vadd.f32 %v7927, %v8015
    %8017 = vmatmul.bf16.gmra.mxu0 %v5653
    %v8018 = vpop.f32.mrf.mxu0
    %v8019 = vadd.f32 %v7930, %v8018
    %v8020 = vpop.f32.mrf.mxu0
    %v8021 = vadd.f32 %v7932, %v8020
    %8022 = vmatmul.bf16.gmra.mxu0 %v5665
    %v8023 = vpop.f32.mrf.mxu0
    %v8024 = vadd.f32 %v7935, %v8023
    %v8025 = vpop.f32.mrf.mxu0
    %v8026 = vadd.f32 %v7937, %v8025
    %8027 = vmatmul.bf16.gmra.mxu0 %v5677
    %v8028 = vpop.f32.mrf.mxu0
    %v8029 = vadd.f32 %v7940, %v8028
    %v8030 = vpop.f32.mrf.mxu0
    %v8031 = vadd.f32 %v7942, %v8030
    %8032 = vmatmul.bf16.gmra.mxu0 %v5689
    %v8033 = vpop.f32.mrf.mxu0
    %v8034 = vadd.f32 %v7945, %v8033
    %v8035 = vpop.f32.mrf.mxu0
    %v8036 = vadd.f32 %v7947, %v8035
    %8037 = vmatmul.bf16.gmra.mxu0 %v5701
    %v8038 = vpop.f32.mrf.mxu0
    %v8039 = vadd.f32 %v7950, %v8038
    %v8040 = vpop.f32.mrf.mxu0
    %v8041 = vadd.f32 %v7952, %v8040
    %8042 = vmatmul.bf16.gmra.mxu0 %v5713
    %v8043 = vpop.f32.mrf.mxu0
    %v8044 = vadd.f32 %v7955, %v8043
    %v8045 = vpop.f32.mrf.mxu0
    %v8046 = vadd.f32 %v7957, %v8045
    %8047 = vmatmul.bf16.gmra.mxu0 %v5725
    %v8048 = vpop.f32.mrf.mxu0
    %v8049 = vadd.f32 %v7960, %v8048
    %v8050 = vpop.f32.mrf.mxu0
    %v8051 = vadd.f32 %v7962, %v8050
    %8052 = vmatmul.bf16.gmra.mxu0 %v5737
    %v8053 = vpop.f32.mrf.mxu0
    %v8054 = vadd.f32 %v7965, %v8053
    %v8055 = vpop.f32.mrf.mxu0
    %v8056 = vadd.f32 %v7967, %v8055
    %8057 = vmatmul.bf16.gmra.mxu0 %v5749
    %v8058 = vpop.f32.mrf.mxu0
    %v8059 = vadd.f32 %v7970, %v8058
    %v8060 = vpop.f32.mrf.mxu0
    %v8061 = vadd.f32 %v7972, %v8060
    %8062 = vmatmul.bf16.gmra.mxu0 %v5761
    %v8063 = vpop.f32.mrf.mxu0
    %v8064 = vadd.f32 %v7975, %v8063
    %v8065 = vpop.f32.mrf.mxu0
    %v8066 = vadd.f32 %v7977, %v8065
    %8067 = vmatmul.bf16.gmra.mxu0 %v5773
    %v8068 = vpop.f32.mrf.mxu0
    %v8069 = vadd.f32 %v7980, %v8068
    %v8070 = vpop.f32.mrf.mxu0
    %v8071 = vadd.f32 %v7982, %v8070
    %8072 = vmatmul.bf16.gmra.mxu0 %v5785
    %v8073 = vpop.f32.mrf.mxu0
    %v8074 = vadd.f32 %v7985, %v8073
    %v8075 = vpop.f32.mrf.mxu0
    %v8076 = vadd.f32 %v7987, %v8075
    %8077 = vdwg.mxu0
    %8078 = vmatpush.bf16.msra.mxu0 %v7263
    %8079 = vmatpush.bf16.msra.mxu0 %v7260
    %8080 = vmatpush.bf16.msra.mxu0 %v7257
    %8081 = vmatpush.bf16.msra.mxu0 %v7254
    %8082 = vmatpush.bf16.msra.mxu0 %v7251
    %8083 = vmatpush.bf16.msra.mxu0 %v7248
    %8084 = vmatpush.bf16.msra.mxu0 %v7245
    %8085 = vmatpush.bf16.msra.mxu0 %v7242
    %8086 = vmatmul.bf16.gmra.mxu0 %v5606
    %v8087 = vpop.f32.mrf.mxu0
    %v8088 = vadd.f32 %v7999, %v8087
    %v8089 = vpop.f32.mrf.mxu0
    %v8090 = vadd.f32 %v8001, %v8089
    %8091 = vmatmul.bf16.gmra.mxu0 %v5618
    %v8092 = vpop.f32.mrf.mxu0
    %v8093 = vadd.f32 %v8004, %v8092
    %v8094 = vpop.f32.mrf.mxu0
    %v8095 = vadd.f32 %v8006, %v8094
    %8096 = vmatmul.bf16.gmra.mxu0 %v5630
    %v8097 = vpop.f32.mrf.mxu0
    %v8098 = vadd.f32 %v8009, %v8097
    %v8099 = vpop.f32.mrf.mxu0
    %v8100 = vadd.f32 %v8011, %v8099
    %8101 = vmatmul.bf16.gmra.mxu0 %v5642
    %v8102 = vpop.f32.mrf.mxu0
    %v8103 = vadd.f32 %v8014, %v8102
    %v8104 = vpop.f32.mrf.mxu0
    %v8105 = vadd.f32 %v8016, %v8104
    %8106 = vmatmul.bf16.gmra.mxu0 %v5654
    %v8107 = vpop.f32.mrf.mxu0
    %v8108 = vadd.f32 %v8019, %v8107
    %v8109 = vpop.f32.mrf.mxu0
    %v8110 = vadd.f32 %v8021, %v8109
    %8111 = vmatmul.bf16.gmra.mxu0 %v5666
    %v8112 = vpop.f32.mrf.mxu0
    %v8113 = vadd.f32 %v8024, %v8112
    %v8114 = vpop.f32.mrf.mxu0
    %v8115 = vadd.f32 %v8026, %v8114
    %8116 = vmatmul.bf16.gmra.mxu0 %v5678
    %v8117 = vpop.f32.mrf.mxu0
    %v8118 = vadd.f32 %v8029, %v8117
    %v8119 = vpop.f32.mrf.mxu0
    %v8120 = vadd.f32 %v8031, %v8119
    %8121 = vmatmul.bf16.gmra.mxu0 %v5690
    %v8122 = vpop.f32.mrf.mxu0
    %v8123 = vadd.f32 %v8034, %v8122
    %v8124 = vpop.f32.mrf.mxu0
    %v8125 = vadd.f32 %v8036, %v8124
    %8126 = vmatmul.bf16.gmra.mxu0 %v5702
    %v8127 = vpop.f32.mrf.mxu0
    %v8128 = vadd.f32 %v8039, %v8127
    %v8129 = vpop.f32.mrf.mxu0
    %v8130 = vadd.f32 %v8041, %v8129
    %8131 = vmatmul.bf16.gmra.mxu0 %v5714
    %v8132 = vpop.f32.mrf.mxu0
    %v8133 = vadd.f32 %v8044, %v8132
    %v8134 = vpop.f32.mrf.mxu0
    %v8135 = vadd.f32 %v8046, %v8134
    %8136 = vmatmul.bf16.gmra.mxu0 %v5726
    %v8137 = vpop.f32.mrf.mxu0
    %v8138 = vadd.f32 %v8049, %v8137
    %v8139 = vpop.f32.mrf.mxu0
    %v8140 = vadd.f32 %v8051, %v8139
    %8141 = vmatmul.bf16.gmra.mxu0 %v5738
    %v8142 = vpop.f32.mrf.mxu0
    %v8143 = vadd.f32 %v8054, %v8142
    %v8144 = vpop.f32.mrf.mxu0
    %v8145 = vadd.f32 %v8056, %v8144
    %8146 = vmatmul.bf16.gmra.mxu0 %v5750
    %v8147 = vpop.f32.mrf.mxu0
    %v8148 = vadd.f32 %v8059, %v8147
    %v8149 = vpop.f32.mrf.mxu0
    %v8150 = vadd.f32 %v8061, %v8149
    %8151 = vmatmul.bf16.gmra.mxu0 %v5762
    %v8152 = vpop.f32.mrf.mxu0
    %v8153 = vadd.f32 %v8064, %v8152
    %v8154 = vpop.f32.mrf.mxu0
    %v8155 = vadd.f32 %v8066, %v8154
    %8156 = vmatmul.bf16.gmra.mxu0 %v5774
    %v8157 = vpop.f32.mrf.mxu0
    %v8158 = vadd.f32 %v8069, %v8157
    %v8159 = vpop.f32.mrf.mxu0
    %v8160 = vadd.f32 %v8071, %v8159
    %8161 = vmatmul.bf16.gmra.mxu0 %v5786
    %v8162 = vpop.f32.mrf.mxu0
    %v8163 = vadd.f32 %v8074, %v8162
    %v8164 = vpop.f32.mrf.mxu0
    %v8165 = vadd.f32 %v8076, %v8164
    %8166 = vdwg.mxu0
    %8167 = vmatpush.bf16.msra.mxu0 %v7287
    %8168 = vmatpush.bf16.msra.mxu0 %v7284
    %8169 = vmatpush.bf16.msra.mxu0 %v7281
    %8170 = vmatpush.bf16.msra.mxu0 %v7278
    %8171 = vmatpush.bf16.msra.mxu0 %v7275
    %8172 = vmatpush.bf16.msra.mxu0 %v7272
    %8173 = vmatpush.bf16.msra.mxu0 %v7269
    %8174 = vmatpush.bf16.msra.mxu0 %v7266
    %8175 = vmatmul.bf16.gmra.mxu0 %v5607
    %v8176 = vpop.f32.mrf.mxu0
    %v8177 = vadd.f32 %v8088, %v8176
    %v8178 = vpop.f32.mrf.mxu0
    %v8179 = vadd.f32 %v8090, %v8178
    %8180 = vmatmul.bf16.gmra.mxu0 %v5619
    %v8181 = vpop.f32.mrf.mxu0
    %v8182 = vadd.f32 %v8093, %v8181
    %v8183 = vpop.f32.mrf.mxu0
    %v8184 = vadd.f32 %v8095, %v8183
    %8185 = vmatmul.bf16.gmra.mxu0 %v5631
    %v8186 = vpop.f32.mrf.mxu0
    %v8187 = vadd.f32 %v8098, %v8186
    %v8188 = vpop.f32.mrf.mxu0
    %v8189 = vadd.f32 %v8100, %v8188
    %8190 = vmatmul.bf16.gmra.mxu0 %v5643
    %v8191 = vpop.f32.mrf.mxu0
    %v8192 = vadd.f32 %v8103, %v8191
    %v8193 = vpop.f32.mrf.mxu0
    %v8194 = vadd.f32 %v8105, %v8193
    %8195 = vmatmul.bf16.gmra.mxu0 %v5655
    %v8196 = vpop.f32.mrf.mxu0
    %v8197 = vadd.f32 %v8108, %v8196
    %v8198 = vpop.f32.mrf.mxu0
    %v8199 = vadd.f32 %v8110, %v8198
    %8200 = vmatmul.bf16.gmra.mxu0 %v5667
    %v8201 = vpop.f32.mrf.mxu0
    %v8202 = vadd.f32 %v8113, %v8201
    %v8203 = vpop.f32.mrf.mxu0
    %v8204 = vadd.f32 %v8115, %v8203
    %8205 = vmatmul.bf16.gmra.mxu0 %v5679
    %v8206 = vpop.f32.mrf.mxu0
    %v8207 = vadd.f32 %v8118, %v8206
    %v8208 = vpop.f32.mrf.mxu0
    %v8209 = vadd.f32 %v8120, %v8208
    %8210 = vmatmul.bf16.gmra.mxu0 %v5691
    %v8211 = vpop.f32.mrf.mxu0
    %v8212 = vadd.f32 %v8123, %v8211
    %v8213 = vpop.f32.mrf.mxu0
    %v8214 = vadd.f32 %v8125, %v8213
    %8215 = vmatmul.bf16.gmra.mxu0 %v5703
    %v8216 = vpop.f32.mrf.mxu0
    %v8217 = vadd.f32 %v8128, %v8216
    %v8218 = vpop.f32.mrf.mxu0
    %v8219 = vadd.f32 %v8130, %v8218
    %8220 = vmatmul.bf16.gmra.mxu0 %v5715
    %v8221 = vpop.f32.mrf.mxu0
    %v8222 = vadd.f32 %v8133, %v8221
    %v8223 = vpop.f32.mrf.mxu0
    %v8224 = vadd.f32 %v8135, %v8223
    %8225 = vmatmul.bf16.gmra.mxu0 %v5727
    %v8226 = vpop.f32.mrf.mxu0
    %v8227 = vadd.f32 %v8138, %v8226
    %v8228 = vpop.f32.mrf.mxu0
    %v8229 = vadd.f32 %v8140, %v8228
    %8230 = vmatmul.bf16.gmra.mxu0 %v5739
    %v8231 = vpop.f32.mrf.mxu0
    %v8232 = vadd.f32 %v8143, %v8231
    %v8233 = vpop.f32.mrf.mxu0
    %v8234 = vadd.f32 %v8145, %v8233
    %8235 = vmatmul.bf16.gmra.mxu0 %v5751
    %v8236 = vpop.f32.mrf.mxu0
    %v8237 = vadd.f32 %v8148, %v8236
    %v8238 = vpop.f32.mrf.mxu0
    %v8239 = vadd.f32 %v8150, %v8238
    %8240 = vmatmul.bf16.gmra.mxu0 %v5763
    %v8241 = vpop.f32.mrf.mxu0
    %v8242 = vadd.f32 %v8153, %v8241
    %v8243 = vpop.f32.mrf.mxu0
    %v8244 = vadd.f32 %v8155, %v8243
    %8245 = vmatmul.bf16.gmra.mxu0 %v5775
    %v8246 = vpop.f32.mrf.mxu0
    %v8247 = vadd.f32 %v8158, %v8246
    %v8248 = vpop.f32.mrf.mxu0
    %v8249 = vadd.f32 %v8160, %v8248
    %8250 = vmatmul.bf16.gmra.mxu0 %v5787
    %v8251 = vpop.f32.mrf.mxu0
    %v8252 = vadd.f32 %v8163, %v8251
    %v8253 = vpop.f32.mrf.mxu0
    %v8254 = vadd.f32 %v8165, %v8253
    %8255 = vdwg.mxu0
    %8256 = vmatpush.bf16.msra.mxu0 %v7311
    %8257 = vmatpush.bf16.msra.mxu0 %v7308
    %8258 = vmatpush.bf16.msra.mxu0 %v7305
    %8259 = vmatpush.bf16.msra.mxu0 %v7302
    %8260 = vmatpush.bf16.msra.mxu0 %v7299
    %8261 = vmatpush.bf16.msra.mxu0 %v7296
    %8262 = vmatpush.bf16.msra.mxu0 %v7293
    %8263 = vmatpush.bf16.msra.mxu0 %v7290
    %8264 = vmatmul.bf16.gmra.mxu0 %v5608
    %v8265 = vpop.f32.mrf.mxu0
    %v8266 = vadd.f32 %v8177, %v8265
    %v8267 = vpop.f32.mrf.mxu0
    %v8268 = vadd.f32 %v8179, %v8267
    %8269 = vmatmul.bf16.gmra.mxu0 %v5620
    %v8270 = vpop.f32.mrf.mxu0
    %v8271 = vadd.f32 %v8182, %v8270
    %v8272 = vpop.f32.mrf.mxu0
    %v8273 = vadd.f32 %v8184, %v8272
    %8274 = vmatmul.bf16.gmra.mxu0 %v5632
    %v8275 = vpop.f32.mrf.mxu0
    %v8276 = vadd.f32 %v8187, %v8275
    %v8277 = vpop.f32.mrf.mxu0
    %v8278 = vadd.f32 %v8189, %v8277
    %8279 = vmatmul.bf16.gmra.mxu0 %v5644
    %v8280 = vpop.f32.mrf.mxu0
    %v8281 = vadd.f32 %v8192, %v8280
    %v8282 = vpop.f32.mrf.mxu0
    %v8283 = vadd.f32 %v8194, %v8282
    %8284 = vmatmul.bf16.gmra.mxu0 %v5656
    %v8285 = vpop.f32.mrf.mxu0
    %v8286 = vadd.f32 %v8197, %v8285
    %v8287 = vpop.f32.mrf.mxu0
    %v8288 = vadd.f32 %v8199, %v8287
    %8289 = vmatmul.bf16.gmra.mxu0 %v5668
    %v8290 = vpop.f32.mrf.mxu0
    %v8291 = vadd.f32 %v8202, %v8290
    %v8292 = vpop.f32.mrf.mxu0
    %v8293 = vadd.f32 %v8204, %v8292
    %8294 = vmatmul.bf16.gmra.mxu0 %v5680
    %v8295 = vpop.f32.mrf.mxu0
    %v8296 = vadd.f32 %v8207, %v8295
    %v8297 = vpop.f32.mrf.mxu0
    %v8298 = vadd.f32 %v8209, %v8297
    %8299 = vmatmul.bf16.gmra.mxu0 %v5692
    %v8300 = vpop.f32.mrf.mxu0
    %v8301 = vadd.f32 %v8212, %v8300
    %v8302 = vpop.f32.mrf.mxu0
    %v8303 = vadd.f32 %v8214, %v8302
    %8304 = vmatmul.bf16.gmra.mxu0 %v5704
    %v8305 = vpop.f32.mrf.mxu0
    %v8306 = vadd.f32 %v8217, %v8305
    %v8307 = vpop.f32.mrf.mxu0
    %v8308 = vadd.f32 %v8219, %v8307
    %8309 = vmatmul.bf16.gmra.mxu0 %v5716
    %v8310 = vpop.f32.mrf.mxu0
    %v8311 = vadd.f32 %v8222, %v8310
    %v8312 = vpop.f32.mrf.mxu0
    %v8313 = vadd.f32 %v8224, %v8312
    %8314 = vmatmul.bf16.gmra.mxu0 %v5728
    %v8315 = vpop.f32.mrf.mxu0
    %v8316 = vadd.f32 %v8227, %v8315
    %v8317 = vpop.f32.mrf.mxu0
    %v8318 = vadd.f32 %v8229, %v8317
    %8319 = vmatmul.bf16.gmra.mxu0 %v5740
    %v8320 = vpop.f32.mrf.mxu0
    %v8321 = vadd.f32 %v8232, %v8320
    %v8322 = vpop.f32.mrf.mxu0
    %v8323 = vadd.f32 %v8234, %v8322
    %8324 = vmatmul.bf16.gmra.mxu0 %v5752
    %v8325 = vpop.f32.mrf.mxu0
    %v8326 = vadd.f32 %v8237, %v8325
    %v8327 = vpop.f32.mrf.mxu0
    %v8328 = vadd.f32 %v8239, %v8327
    %8329 = vmatmul.bf16.gmra.mxu0 %v5764
    %v8330 = vpop.f32.mrf.mxu0
    %v8331 = vadd.f32 %v8242, %v8330
    %v8332 = vpop.f32.mrf.mxu0
    %v8333 = vadd.f32 %v8244, %v8332
    %8334 = vmatmul.bf16.gmra.mxu0 %v5776
    %v8335 = vpop.f32.mrf.mxu0
    %v8336 = vadd.f32 %v8247, %v8335
    %v8337 = vpop.f32.mrf.mxu0
    %v8338 = vadd.f32 %v8249, %v8337
    %8339 = vmatmul.bf16.gmra.mxu0 %v5788
    %v8340 = vpop.f32.mrf.mxu0
    %v8341 = vadd.f32 %v8252, %v8340
    %v8342 = vpop.f32.mrf.mxu0
    %v8343 = vadd.f32 %v8254, %v8342
    %8344 = vdwg.mxu0
    %8345 = vmatpush.bf16.msra.mxu0 %v7335
    %8346 = vmatpush.bf16.msra.mxu0 %v7332
    %8347 = vmatpush.bf16.msra.mxu0 %v7329
    %8348 = vmatpush.bf16.msra.mxu0 %v7326
    %8349 = vmatpush.bf16.msra.mxu0 %v7323
    %8350 = vmatpush.bf16.msra.mxu0 %v7320
    %8351 = vmatpush.bf16.msra.mxu0 %v7317
    %8352 = vmatpush.bf16.msra.mxu0 %v7314
    %8353 = vmatmul.bf16.gmra.mxu0 %v5609
    %v8354 = vpop.f32.mrf.mxu0
    %v8355 = vadd.f32 %v8266, %v8354
    %v8356 = vpop.f32.mrf.mxu0
    %v8357 = vadd.f32 %v8268, %v8356
    %8358 = vmatmul.bf16.gmra.mxu0 %v5621
    %v8359 = vpop.f32.mrf.mxu0
    %v8360 = vadd.f32 %v8271, %v8359
    %v8361 = vpop.f32.mrf.mxu0
    %v8362 = vadd.f32 %v8273, %v8361
    %8363 = vmatmul.bf16.gmra.mxu0 %v5633
    %v8364 = vpop.f32.mrf.mxu0
    %v8365 = vadd.f32 %v8276, %v8364
    %v8366 = vpop.f32.mrf.mxu0
    %v8367 = vadd.f32 %v8278, %v8366
    %8368 = vmatmul.bf16.gmra.mxu0 %v5645
    %v8369 = vpop.f32.mrf.mxu0
    %v8370 = vadd.f32 %v8281, %v8369
    %v8371 = vpop.f32.mrf.mxu0
    %v8372 = vadd.f32 %v8283, %v8371
    %8373 = vmatmul.bf16.gmra.mxu0 %v5657
    %v8374 = vpop.f32.mrf.mxu0
    %v8375 = vadd.f32 %v8286, %v8374
    %v8376 = vpop.f32.mrf.mxu0
    %v8377 = vadd.f32 %v8288, %v8376
    %8378 = vmatmul.bf16.gmra.mxu0 %v5669
    %v8379 = vpop.f32.mrf.mxu0
    %v8380 = vadd.f32 %v8291, %v8379
    %v8381 = vpop.f32.mrf.mxu0
    %v8382 = vadd.f32 %v8293, %v8381
    %8383 = vmatmul.bf16.gmra.mxu0 %v5681
    %v8384 = vpop.f32.mrf.mxu0
    %v8385 = vadd.f32 %v8296, %v8384
    %v8386 = vpop.f32.mrf.mxu0
    %v8387 = vadd.f32 %v8298, %v8386
    %8388 = vmatmul.bf16.gmra.mxu0 %v5693
    %v8389 = vpop.f32.mrf.mxu0
    %v8390 = vadd.f32 %v8301, %v8389
    %v8391 = vpop.f32.mrf.mxu0
    %v8392 = vadd.f32 %v8303, %v8391
    %8393 = vmatmul.bf16.gmra.mxu0 %v5705
    %v8394 = vpop.f32.mrf.mxu0
    %v8395 = vadd.f32 %v8306, %v8394
    %v8396 = vpop.f32.mrf.mxu0
    %v8397 = vadd.f32 %v8308, %v8396
    %8398 = vmatmul.bf16.gmra.mxu0 %v5717
    %v8399 = vpop.f32.mrf.mxu0
    %v8400 = vadd.f32 %v8311, %v8399
    %v8401 = vpop.f32.mrf.mxu0
    %v8402 = vadd.f32 %v8313, %v8401
    %8403 = vmatmul.bf16.gmra.mxu0 %v5729
    %v8404 = vpop.f32.mrf.mxu0
    %v8405 = vadd.f32 %v8316, %v8404
    %v8406 = vpop.f32.mrf.mxu0
    %v8407 = vadd.f32 %v8318, %v8406
    %8408 = vmatmul.bf16.gmra.mxu0 %v5741
    %v8409 = vpop.f32.mrf.mxu0
    %v8410 = vadd.f32 %v8321, %v8409
    %v8411 = vpop.f32.mrf.mxu0
    %v8412 = vadd.f32 %v8323, %v8411
    %8413 = vmatmul.bf16.gmra.mxu0 %v5753
    %v8414 = vpop.f32.mrf.mxu0
    %v8415 = vadd.f32 %v8326, %v8414
    %v8416 = vpop.f32.mrf.mxu0
    %v8417 = vadd.f32 %v8328, %v8416
    %8418 = vmatmul.bf16.gmra.mxu0 %v5765
    %v8419 = vpop.f32.mrf.mxu0
    %v8420 = vadd.f32 %v8331, %v8419
    %v8421 = vpop.f32.mrf.mxu0
    %v8422 = vadd.f32 %v8333, %v8421
    %8423 = vmatmul.bf16.gmra.mxu0 %v5777
    %v8424 = vpop.f32.mrf.mxu0
    %v8425 = vadd.f32 %v8336, %v8424
    %v8426 = vpop.f32.mrf.mxu0
    %v8427 = vadd.f32 %v8338, %v8426
    %8428 = vmatmul.bf16.gmra.mxu0 %v5789
    %v8429 = vpop.f32.mrf.mxu0
    %v8430 = vadd.f32 %v8341, %v8429
    %v8431 = vpop.f32.mrf.mxu0
    %v8432 = vadd.f32 %v8343, %v8431
    %8433 = vdwg.mxu0
    %8434 = vmatpush.bf16.msra.mxu0 %v7359
    %8435 = vmatpush.bf16.msra.mxu0 %v7356
    %8436 = vmatpush.bf16.msra.mxu0 %v7353
    %8437 = vmatpush.bf16.msra.mxu0 %v7350
    %8438 = vmatpush.bf16.msra.mxu0 %v7347
    %8439 = vmatpush.bf16.msra.mxu0 %v7344
    %8440 = vmatpush.bf16.msra.mxu0 %v7341
    %8441 = vmatpush.bf16.msra.mxu0 %v7338
    %8442 = vmatmul.bf16.gmra.mxu0 %v5610
    %v8443 = vpop.f32.mrf.mxu0
    %v8444 = vadd.f32 %v8355, %v8443
    %v8445 = vpop.f32.mrf.mxu0
    %v8446 = vadd.f32 %v8357, %v8445
    %8447 = vmatmul.bf16.gmra.mxu0 %v5622
    %v8448 = vpop.f32.mrf.mxu0
    %v8449 = vadd.f32 %v8360, %v8448
    %v8450 = vpop.f32.mrf.mxu0
    %v8451 = vadd.f32 %v8362, %v8450
    %8452 = vmatmul.bf16.gmra.mxu0 %v5634
    %v8453 = vpop.f32.mrf.mxu0
    %v8454 = vadd.f32 %v8365, %v8453
    %v8455 = vpop.f32.mrf.mxu0
    %v8456 = vadd.f32 %v8367, %v8455
    %8457 = vmatmul.bf16.gmra.mxu0 %v5646
    %v8458 = vpop.f32.mrf.mxu0
    %v8459 = vadd.f32 %v8370, %v8458
    %v8460 = vpop.f32.mrf.mxu0
    %v8461 = vadd.f32 %v8372, %v8460
    %8462 = vmatmul.bf16.gmra.mxu0 %v5658
    %v8463 = vpop.f32.mrf.mxu0
    %v8464 = vadd.f32 %v8375, %v8463
    %v8465 = vpop.f32.mrf.mxu0
    %v8466 = vadd.f32 %v8377, %v8465
    %8467 = vmatmul.bf16.gmra.mxu0 %v5670
    %v8468 = vpop.f32.mrf.mxu0
    %v8469 = vadd.f32 %v8380, %v8468
    %v8470 = vpop.f32.mrf.mxu0
    %v8471 = vadd.f32 %v8382, %v8470
    %8472 = vmatmul.bf16.gmra.mxu0 %v5682
    %v8473 = vpop.f32.mrf.mxu0
    %v8474 = vadd.f32 %v8385, %v8473
    %v8475 = vpop.f32.mrf.mxu0
    %v8476 = vadd.f32 %v8387, %v8475
    %8477 = vmatmul.bf16.gmra.mxu0 %v5694
    %v8478 = vpop.f32.mrf.mxu0
    %v8479 = vadd.f32 %v8390, %v8478
    %v8480 = vpop.f32.mrf.mxu0
    %v8481 = vadd.f32 %v8392, %v8480
    %8482 = vmatmul.bf16.gmra.mxu0 %v5706
    %v8483 = vpop.f32.mrf.mxu0
    %v8484 = vadd.f32 %v8395, %v8483
    %v8485 = vpop.f32.mrf.mxu0
    %v8486 = vadd.f32 %v8397, %v8485
    %8487 = vmatmul.bf16.gmra.mxu0 %v5718
    %v8488 = vpop.f32.mrf.mxu0
    %v8489 = vadd.f32 %v8400, %v8488
    %v8490 = vpop.f32.mrf.mxu0
    %v8491 = vadd.f32 %v8402, %v8490
    %8492 = vmatmul.bf16.gmra.mxu0 %v5730
    %v8493 = vpop.f32.mrf.mxu0
    %v8494 = vadd.f32 %v8405, %v8493
    %v8495 = vpop.f32.mrf.mxu0
    %v8496 = vadd.f32 %v8407, %v8495
    %8497 = vmatmul.bf16.gmra.mxu0 %v5742
    %v8498 = vpop.f32.mrf.mxu0
    %v8499 = vadd.f32 %v8410, %v8498
    %v8500 = vpop.f32.mrf.mxu0
    %v8501 = vadd.f32 %v8412, %v8500
    %8502 = vmatmul.bf16.gmra.mxu0 %v5754
    %v8503 = vpop.f32.mrf.mxu0
    %v8504 = vadd.f32 %v8415, %v8503
    %v8505 = vpop.f32.mrf.mxu0
    %v8506 = vadd.f32 %v8417, %v8505
    %8507 = vmatmul.bf16.gmra.mxu0 %v5766
    %v8508 = vpop.f32.mrf.mxu0
    %v8509 = vadd.f32 %v8420, %v8508
    %v8510 = vpop.f32.mrf.mxu0
    %v8511 = vadd.f32 %v8422, %v8510
    %8512 = vmatmul.bf16.gmra.mxu0 %v5778
    %v8513 = vpop.f32.mrf.mxu0
    %v8514 = vadd.f32 %v8425, %v8513
    %v8515 = vpop.f32.mrf.mxu0
    %v8516 = vadd.f32 %v8427, %v8515
    %8517 = vmatmul.bf16.gmra.mxu0 %v5790
    %v8518 = vpop.f32.mrf.mxu0
    %v8519 = vadd.f32 %v8430, %v8518
    %v8520 = vpop.f32.mrf.mxu0
    %v8521 = vadd.f32 %v8432, %v8520
    %8522 = vdwg.mxu0
    %8523 = vmatpush.bf16.msra.mxu0 %v7383
    %8524 = vmatpush.bf16.msra.mxu0 %v7380
    %8525 = vmatpush.bf16.msra.mxu0 %v7377
    %8526 = vmatpush.bf16.msra.mxu0 %v7374
    %8527 = vmatpush.bf16.msra.mxu0 %v7371
    %8528 = vmatpush.bf16.msra.mxu0 %v7368
    %8529 = vmatpush.bf16.msra.mxu0 %v7365
    %8530 = vmatpush.bf16.msra.mxu0 %v7362
    %8531 = vmatmul.bf16.gmra.mxu0 %v5611
    %v8532 = vpop.f32.mrf.mxu0
    %v8533 = vadd.f32 %v8444, %v8532
    %v8534 = vpop.f32.mrf.mxu0
    %v8535 = vadd.f32 %v8446, %v8534
    %8536 = vmatmul.bf16.gmra.mxu0 %v5623
    %v8537 = vpop.f32.mrf.mxu0
    %v8538 = vadd.f32 %v8449, %v8537
    %v8539 = vpop.f32.mrf.mxu0
    %v8540 = vadd.f32 %v8451, %v8539
    %8541 = vmatmul.bf16.gmra.mxu0 %v5635
    %v8542 = vpop.f32.mrf.mxu0
    %v8543 = vadd.f32 %v8454, %v8542
    %v8544 = vpop.f32.mrf.mxu0
    %v8545 = vadd.f32 %v8456, %v8544
    %8546 = vmatmul.bf16.gmra.mxu0 %v5647
    %v8547 = vpop.f32.mrf.mxu0
    %v8548 = vadd.f32 %v8459, %v8547
    %v8549 = vpop.f32.mrf.mxu0
    %v8550 = vadd.f32 %v8461, %v8549
    %8551 = vmatmul.bf16.gmra.mxu0 %v5659
    %v8552 = vpop.f32.mrf.mxu0
    %v8553 = vadd.f32 %v8464, %v8552
    %v8554 = vpop.f32.mrf.mxu0
    %v8555 = vadd.f32 %v8466, %v8554
    %8556 = vmatmul.bf16.gmra.mxu0 %v5671
    %v8557 = vpop.f32.mrf.mxu0
    %v8558 = vadd.f32 %v8469, %v8557
    %v8559 = vpop.f32.mrf.mxu0
    %v8560 = vadd.f32 %v8471, %v8559
    %8561 = vmatmul.bf16.gmra.mxu0 %v5683
    %v8562 = vpop.f32.mrf.mxu0
    %v8563 = vadd.f32 %v8474, %v8562
    %v8564 = vpop.f32.mrf.mxu0
    %v8565 = vadd.f32 %v8476, %v8564
    %8566 = vmatmul.bf16.gmra.mxu0 %v5695
    %v8567 = vpop.f32.mrf.mxu0
    %v8568 = vadd.f32 %v8479, %v8567
    %v8569 = vpop.f32.mrf.mxu0
    %v8570 = vadd.f32 %v8481, %v8569
    %8571 = vmatmul.bf16.gmra.mxu0 %v5707
    %v8572 = vpop.f32.mrf.mxu0
    %v8573 = vadd.f32 %v8484, %v8572
    %v8574 = vpop.f32.mrf.mxu0
    %v8575 = vadd.f32 %v8486, %v8574
    %8576 = vmatmul.bf16.gmra.mxu0 %v5719
    %v8577 = vpop.f32.mrf.mxu0
    %v8578 = vadd.f32 %v8489, %v8577
    %v8579 = vpop.f32.mrf.mxu0
    %v8580 = vadd.f32 %v8491, %v8579
    %8581 = vmatmul.bf16.gmra.mxu0 %v5731
    %v8582 = vpop.f32.mrf.mxu0
    %v8583 = vadd.f32 %v8494, %v8582
    %v8584 = vpop.f32.mrf.mxu0
    %v8585 = vadd.f32 %v8496, %v8584
    %8586 = vmatmul.bf16.gmra.mxu0 %v5743
    %v8587 = vpop.f32.mrf.mxu0
    %v8588 = vadd.f32 %v8499, %v8587
    %v8589 = vpop.f32.mrf.mxu0
    %v8590 = vadd.f32 %v8501, %v8589
    %8591 = vmatmul.bf16.gmra.mxu0 %v5755
    %v8592 = vpop.f32.mrf.mxu0
    %v8593 = vadd.f32 %v8504, %v8592
    %v8594 = vpop.f32.mrf.mxu0
    %v8595 = vadd.f32 %v8506, %v8594
    %8596 = vmatmul.bf16.gmra.mxu0 %v5767
    %v8597 = vpop.f32.mrf.mxu0
    %v8598 = vadd.f32 %v8509, %v8597
    %v8599 = vpop.f32.mrf.mxu0
    %v8600 = vadd.f32 %v8511, %v8599
    %8601 = vmatmul.bf16.gmra.mxu0 %v5779
    %v8602 = vpop.f32.mrf.mxu0
    %v8603 = vadd.f32 %v8514, %v8602
    %v8604 = vpop.f32.mrf.mxu0
    %v8605 = vadd.f32 %v8516, %v8604
    %8606 = vmatmul.bf16.gmra.mxu0 %v5791
    %v8607 = vpop.f32.mrf.mxu0
    %v8608 = vadd.f32 %v8519, %v8607
    %v8609 = vpop.f32.mrf.mxu0
    %v8610 = vadd.f32 %v8521, %v8609
    %8611 = vdwg.mxu0
    %8612 = vmatpush.bf16.msra.mxu0 %v7407
    %8613 = vmatpush.bf16.msra.mxu0 %v7404
    %8614 = vmatpush.bf16.msra.mxu0 %v7401
    %8615 = vmatpush.bf16.msra.mxu0 %v7398
    %8616 = vmatpush.bf16.msra.mxu0 %v7395
    %8617 = vmatpush.bf16.msra.mxu0 %v7392
    %8618 = vmatpush.bf16.msra.mxu0 %v7389
    %8619 = vmatpush.bf16.msra.mxu0 %v7386
    %8620 = vmatmul.bf16.gmra.mxu0 %v5612
    %v8621 = vpop.f32.mrf.mxu0
    %v8622 = vadd.f32 %v8533, %v8621
    %v8623 = vpop.f32.mrf.mxu0
    %v8624 = vadd.f32 %v8535, %v8623
    %8625 = vmatmul.bf16.gmra.mxu0 %v5624
    %v8626 = vpop.f32.mrf.mxu0
    %v8627 = vadd.f32 %v8538, %v8626
    %v8628 = vpop.f32.mrf.mxu0
    %v8629 = vadd.f32 %v8540, %v8628
    %8630 = vmatmul.bf16.gmra.mxu0 %v5636
    %v8631 = vpop.f32.mrf.mxu0
    %v8632 = vadd.f32 %v8543, %v8631
    %v8633 = vpop.f32.mrf.mxu0
    %v8634 = vadd.f32 %v8545, %v8633
    %8635 = vmatmul.bf16.gmra.mxu0 %v5648
    %v8636 = vpop.f32.mrf.mxu0
    %v8637 = vadd.f32 %v8548, %v8636
    %v8638 = vpop.f32.mrf.mxu0
    %v8639 = vadd.f32 %v8550, %v8638
    %8640 = vmatmul.bf16.gmra.mxu0 %v5660
    %v8641 = vpop.f32.mrf.mxu0
    %v8642 = vadd.f32 %v8553, %v8641
    %v8643 = vpop.f32.mrf.mxu0
    %v8644 = vadd.f32 %v8555, %v8643
    %8645 = vmatmul.bf16.gmra.mxu0 %v5672
    %v8646 = vpop.f32.mrf.mxu0
    %v8647 = vadd.f32 %v8558, %v8646
    %v8648 = vpop.f32.mrf.mxu0
    %v8649 = vadd.f32 %v8560, %v8648
    %8650 = vmatmul.bf16.gmra.mxu0 %v5684
    %v8651 = vpop.f32.mrf.mxu0
    %v8652 = vadd.f32 %v8563, %v8651
    %v8653 = vpop.f32.mrf.mxu0
    %v8654 = vadd.f32 %v8565, %v8653
    %8655 = vmatmul.bf16.gmra.mxu0 %v5696
    %v8656 = vpop.f32.mrf.mxu0
    %v8657 = vadd.f32 %v8568, %v8656
    %v8658 = vpop.f32.mrf.mxu0
    %v8659 = vadd.f32 %v8570, %v8658
    %8660 = vmatmul.bf16.gmra.mxu0 %v5708
    %v8661 = vpop.f32.mrf.mxu0
    %v8662 = vadd.f32 %v8573, %v8661
    %v8663 = vpop.f32.mrf.mxu0
    %v8664 = vadd.f32 %v8575, %v8663
    %8665 = vmatmul.bf16.gmra.mxu0 %v5720
    %v8666 = vpop.f32.mrf.mxu0
    %v8667 = vadd.f32 %v8578, %v8666
    %v8668 = vpop.f32.mrf.mxu0
    %v8669 = vadd.f32 %v8580, %v8668
    %8670 = vmatmul.bf16.gmra.mxu0 %v5732
    %v8671 = vpop.f32.mrf.mxu0
    %v8672 = vadd.f32 %v8583, %v8671
    %v8673 = vpop.f32.mrf.mxu0
    %v8674 = vadd.f32 %v8585, %v8673
    %8675 = vmatmul.bf16.gmra.mxu0 %v5744
    %v8676 = vpop.f32.mrf.mxu0
    %v8677 = vadd.f32 %v8588, %v8676
    %v8678 = vpop.f32.mrf.mxu0
    %v8679 = vadd.f32 %v8590, %v8678
    %8680 = vmatmul.bf16.gmra.mxu0 %v5756
    %v8681 = vpop.f32.mrf.mxu0
    %v8682 = vadd.f32 %v8593, %v8681
    %v8683 = vpop.f32.mrf.mxu0
    %v8684 = vadd.f32 %v8595, %v8683
    %8685 = vmatmul.bf16.gmra.mxu0 %v5768
    %v8686 = vpop.f32.mrf.mxu0
    %v8687 = vadd.f32 %v8598, %v8686
    %v8688 = vpop.f32.mrf.mxu0
    %v8689 = vadd.f32 %v8600, %v8688
    %8690 = vmatmul.bf16.gmra.mxu0 %v5780
    %v8691 = vpop.f32.mrf.mxu0
    %v8692 = vadd.f32 %v8603, %v8691
    %v8693 = vpop.f32.mrf.mxu0
    %v8694 = vadd.f32 %v8605, %v8693
    %8695 = vmatmul.bf16.gmra.mxu0 %v5792
    %v8696 = vpop.f32.mrf.mxu0
    %v8697 = vadd.f32 %v8608, %v8696
    %v8698 = vpop.f32.mrf.mxu0
    %v8699 = vadd.f32 %v8610, %v8698
    %8700 = vdwg.mxu0
    %8701 = vmatpush.bf16.msra.mxu0 %v7431
    %8702 = vmatpush.bf16.msra.mxu0 %v7428
    %8703 = vmatpush.bf16.msra.mxu0 %v7425
    %8704 = vmatpush.bf16.msra.mxu0 %v7422
    %8705 = vmatpush.bf16.msra.mxu0 %v7419
    %8706 = vmatpush.bf16.msra.mxu0 %v7416
    %8707 = vmatpush.bf16.msra.mxu0 %v7413
    %8708 = vmatpush.bf16.msra.mxu0 %v7410
    %8709 = vmatmul.bf16.gmra.mxu0 %v5613
    %v8710 = vpop.f32.mrf.mxu0
    %v8711 = vadd.f32 %v8622, %v8710
    %v8712 = vpop.f32.mrf.mxu0
    %v8713 = vadd.f32 %v8624, %v8712
    %8714 = vmatmul.bf16.gmra.mxu0 %v5625
    %v8715 = vpop.f32.mrf.mxu0
    %v8716 = vadd.f32 %v8627, %v8715
    %v8717 = vpop.f32.mrf.mxu0
    %v8718 = vadd.f32 %v8629, %v8717
    %8719 = vmatmul.bf16.gmra.mxu0 %v5637
    %v8720 = vpop.f32.mrf.mxu0
    %v8721 = vadd.f32 %v8632, %v8720
    %v8722 = vpop.f32.mrf.mxu0
    %v8723 = vadd.f32 %v8634, %v8722
    %8724 = vmatmul.bf16.gmra.mxu0 %v5649
    %v8725 = vpop.f32.mrf.mxu0
    %v8726 = vadd.f32 %v8637, %v8725
    %v8727 = vpop.f32.mrf.mxu0
    %v8728 = vadd.f32 %v8639, %v8727
    %8729 = vmatmul.bf16.gmra.mxu0 %v5661
    %v8730 = vpop.f32.mrf.mxu0
    %v8731 = vadd.f32 %v8642, %v8730
    %v8732 = vpop.f32.mrf.mxu0
    %v8733 = vadd.f32 %v8644, %v8732
    %8734 = vmatmul.bf16.gmra.mxu0 %v5673
    %v8735 = vpop.f32.mrf.mxu0
    %v8736 = vadd.f32 %v8647, %v8735
    %v8737 = vpop.f32.mrf.mxu0
    %v8738 = vadd.f32 %v8649, %v8737
    %8739 = vmatmul.bf16.gmra.mxu0 %v5685
    %v8740 = vpop.f32.mrf.mxu0
    %v8741 = vadd.f32 %v8652, %v8740
    %v8742 = vpop.f32.mrf.mxu0
    %v8743 = vadd.f32 %v8654, %v8742
    %8744 = vmatmul.bf16.gmra.mxu0 %v5697
    %v8745 = vpop.f32.mrf.mxu0
    %v8746 = vadd.f32 %v8657, %v8745
    %v8747 = vpop.f32.mrf.mxu0
    %v8748 = vadd.f32 %v8659, %v8747
    %8749 = vmatmul.bf16.gmra.mxu0 %v5709
    %v8750 = vpop.f32.mrf.mxu0
    %v8751 = vadd.f32 %v8662, %v8750
    %v8752 = vpop.f32.mrf.mxu0
    %v8753 = vadd.f32 %v8664, %v8752
    %8754 = vmatmul.bf16.gmra.mxu0 %v5721
    %v8755 = vpop.f32.mrf.mxu0
    %v8756 = vadd.f32 %v8667, %v8755
    %v8757 = vpop.f32.mrf.mxu0
    %v8758 = vadd.f32 %v8669, %v8757
    %8759 = vmatmul.bf16.gmra.mxu0 %v5733
    %v8760 = vpop.f32.mrf.mxu0
    %v8761 = vadd.f32 %v8672, %v8760
    %v8762 = vpop.f32.mrf.mxu0
    %v8763 = vadd.f32 %v8674, %v8762
    %8764 = vmatmul.bf16.gmra.mxu0 %v5745
    %v8765 = vpop.f32.mrf.mxu0
    %v8766 = vadd.f32 %v8677, %v8765
    %v8767 = vpop.f32.mrf.mxu0
    %v8768 = vadd.f32 %v8679, %v8767
    %8769 = vmatmul.bf16.gmra.mxu0 %v5757
    %v8770 = vpop.f32.mrf.mxu0
    %v8771 = vadd.f32 %v8682, %v8770
    %v8772 = vpop.f32.mrf.mxu0
    %v8773 = vadd.f32 %v8684, %v8772
    %8774 = vmatmul.bf16.gmra.mxu0 %v5769
    %v8775 = vpop.f32.mrf.mxu0
    %v8776 = vadd.f32 %v8687, %v8775
    %v8777 = vpop.f32.mrf.mxu0
    %v8778 = vadd.f32 %v8689, %v8777
    %8779 = vmatmul.bf16.gmra.mxu0 %v5781
    %v8780 = vpop.f32.mrf.mxu0
    %v8781 = vadd.f32 %v8692, %v8780
    %v8782 = vpop.f32.mrf.mxu0
    %v8783 = vadd.f32 %v8694, %v8782
    %8784 = vmatmul.bf16.gmra.mxu0 %v5793
    %v8785 = vpop.f32.mrf.mxu0
    %v8786 = vadd.f32 %v8697, %v8785
    %v8787 = vpop.f32.mrf.mxu0
    %v8788 = vadd.f32 %v8699, %v8787
    %8789 = vdwg.mxu0
    %8790 = vmatpush.bf16.msra.mxu0 %v7168
    %8791 = vmatpush.bf16.msra.mxu0 %v7165
    %8792 = vmatpush.bf16.msra.mxu0 %v7162
    %8793 = vmatpush.bf16.msra.mxu0 %v7159
    %8794 = vmatpush.bf16.msra.mxu0 %v7156
    %8795 = vmatpush.bf16.msra.mxu0 %v7153
    %8796 = vmatpush.bf16.msra.mxu0 %v7150
    %8797 = vmatpush.bf16.msra.mxu0 %v7147
    %8798 = vmatmul.bf16.gmra.mxu0 %v5602
    %v8799 = vpop.f32.mrf.mxu0
    %v8800 = vadd.f32 %v6181, %v8799
    %v8801 = vpop.f32.mrf.mxu0
    %v8802 = vadd.f32 %v6181, %v8801
    %8803 = vmatmul.bf16.gmra.mxu0 %v5614
    %v8804 = vpop.f32.mrf.mxu0
    %v8805 = vadd.f32 %v6181, %v8804
    %v8806 = vpop.f32.mrf.mxu0
    %v8807 = vadd.f32 %v6181, %v8806
    %8808 = vmatmul.bf16.gmra.mxu0 %v5626
    %v8809 = vpop.f32.mrf.mxu0
    %v8810 = vadd.f32 %v6181, %v8809
    %v8811 = vpop.f32.mrf.mxu0
    %v8812 = vadd.f32 %v6181, %v8811
    %8813 = vmatmul.bf16.gmra.mxu0 %v5638
    %v8814 = vpop.f32.mrf.mxu0
    %v8815 = vadd.f32 %v6181, %v8814
    %v8816 = vpop.f32.mrf.mxu0
    %v8817 = vadd.f32 %v6181, %v8816
    %8818 = vmatmul.bf16.gmra.mxu0 %v5650
    %v8819 = vpop.f32.mrf.mxu0
    %v8820 = vadd.f32 %v6181, %v8819
    %v8821 = vpop.f32.mrf.mxu0
    %v8822 = vadd.f32 %v6181, %v8821
    %8823 = vmatmul.bf16.gmra.mxu0 %v5662
    %v8824 = vpop.f32.mrf.mxu0
    %v8825 = vadd.f32 %v6181, %v8824
    %v8826 = vpop.f32.mrf.mxu0
    %v8827 = vadd.f32 %v6181, %v8826
    %8828 = vmatmul.bf16.gmra.mxu0 %v5674
    %v8829 = vpop.f32.mrf.mxu0
    %v8830 = vadd.f32 %v6181, %v8829
    %v8831 = vpop.f32.mrf.mxu0
    %v8832 = vadd.f32 %v6181, %v8831
    %8833 = vmatmul.bf16.gmra.mxu0 %v5686
    %v8834 = vpop.f32.mrf.mxu0
    %v8835 = vadd.f32 %v6181, %v8834
    %v8836 = vpop.f32.mrf.mxu0
    %v8837 = vadd.f32 %v6181, %v8836
    %8838 = vmatmul.bf16.gmra.mxu0 %v5698
    %v8839 = vpop.f32.mrf.mxu0
    %v8840 = vadd.f32 %v6181, %v8839
    %v8841 = vpop.f32.mrf.mxu0
    %v8842 = vadd.f32 %v6181, %v8841
    %8843 = vmatmul.bf16.gmra.mxu0 %v5710
    %v8844 = vpop.f32.mrf.mxu0
    %v8845 = vadd.f32 %v6181, %v8844
    %v8846 = vpop.f32.mrf.mxu0
    %v8847 = vadd.f32 %v6181, %v8846
    %8848 = vmatmul.bf16.gmra.mxu0 %v5722
    %v8849 = vpop.f32.mrf.mxu0
    %v8850 = vadd.f32 %v6181, %v8849
    %v8851 = vpop.f32.mrf.mxu0
    %v8852 = vadd.f32 %v6181, %v8851
    %8853 = vmatmul.bf16.gmra.mxu0 %v5734
    %v8854 = vpop.f32.mrf.mxu0
    %v8855 = vadd.f32 %v6181, %v8854
    %v8856 = vpop.f32.mrf.mxu0
    %v8857 = vadd.f32 %v6181, %v8856
    %8858 = vmatmul.bf16.gmra.mxu0 %v5746
    %v8859 = vpop.f32.mrf.mxu0
    %v8860 = vadd.f32 %v6181, %v8859
    %v8861 = vpop.f32.mrf.mxu0
    %v8862 = vadd.f32 %v6181, %v8861
    %8863 = vmatmul.bf16.gmra.mxu0 %v5758
    %v8864 = vpop.f32.mrf.mxu0
    %v8865 = vadd.f32 %v6181, %v8864
    %v8866 = vpop.f32.mrf.mxu0
    %v8867 = vadd.f32 %v6181, %v8866
    %8868 = vmatmul.bf16.gmra.mxu0 %v5770
    %v8869 = vpop.f32.mrf.mxu0
    %v8870 = vadd.f32 %v6181, %v8869
    %v8871 = vpop.f32.mrf.mxu0
    %v8872 = vadd.f32 %v6181, %v8871
    %8873 = vmatmul.bf16.gmra.mxu0 %v5782
    %v8874 = vpop.f32.mrf.mxu0
    %v8875 = vadd.f32 %v6181, %v8874
    %v8876 = vpop.f32.mrf.mxu0
    %v8877 = vadd.f32 %v6181, %v8876
    %8878 = vdwg.mxu0
    %8879 = vmatpush.bf16.msra.mxu0 %v7192
    %8880 = vmatpush.bf16.msra.mxu0 %v7189
    %8881 = vmatpush.bf16.msra.mxu0 %v7186
    %8882 = vmatpush.bf16.msra.mxu0 %v7183
    %8883 = vmatpush.bf16.msra.mxu0 %v7180
    %8884 = vmatpush.bf16.msra.mxu0 %v7177
    %8885 = vmatpush.bf16.msra.mxu0 %v7174
    %8886 = vmatpush.bf16.msra.mxu0 %v7171
    %8887 = vmatmul.bf16.gmra.mxu0 %v5603
    %v8888 = vpop.f32.mrf.mxu0
    %v8889 = vadd.f32 %v8800, %v8888
    %v8890 = vpop.f32.mrf.mxu0
    %v8891 = vadd.f32 %v8802, %v8890
    %8892 = vmatmul.bf16.gmra.mxu0 %v5615
    %v8893 = vpop.f32.mrf.mxu0
    %v8894 = vadd.f32 %v8805, %v8893
    %v8895 = vpop.f32.mrf.mxu0
    %v8896 = vadd.f32 %v8807, %v8895
    %8897 = vmatmul.bf16.gmra.mxu0 %v5627
    %v8898 = vpop.f32.mrf.mxu0
    %v8899 = vadd.f32 %v8810, %v8898
    %v8900 = vpop.f32.mrf.mxu0
    %v8901 = vadd.f32 %v8812, %v8900
    %8902 = vmatmul.bf16.gmra.mxu0 %v5639
    %v8903 = vpop.f32.mrf.mxu0
    %v8904 = vadd.f32 %v8815, %v8903
    %v8905 = vpop.f32.mrf.mxu0
    %v8906 = vadd.f32 %v8817, %v8905
    %8907 = vmatmul.bf16.gmra.mxu0 %v5651
    %v8908 = vpop.f32.mrf.mxu0
    %v8909 = vadd.f32 %v8820, %v8908
    %v8910 = vpop.f32.mrf.mxu0
    %v8911 = vadd.f32 %v8822, %v8910
    %8912 = vmatmul.bf16.gmra.mxu0 %v5663
    %v8913 = vpop.f32.mrf.mxu0
    %v8914 = vadd.f32 %v8825, %v8913
    %v8915 = vpop.f32.mrf.mxu0
    %v8916 = vadd.f32 %v8827, %v8915
    %8917 = vmatmul.bf16.gmra.mxu0 %v5675
    %v8918 = vpop.f32.mrf.mxu0
    %v8919 = vadd.f32 %v8830, %v8918
    %v8920 = vpop.f32.mrf.mxu0
    %v8921 = vadd.f32 %v8832, %v8920
    %8922 = vmatmul.bf16.gmra.mxu0 %v5687
    %v8923 = vpop.f32.mrf.mxu0
    %v8924 = vadd.f32 %v8835, %v8923
    %v8925 = vpop.f32.mrf.mxu0
    %v8926 = vadd.f32 %v8837, %v8925
    %8927 = vmatmul.bf16.gmra.mxu0 %v5699
    %v8928 = vpop.f32.mrf.mxu0
    %v8929 = vadd.f32 %v8840, %v8928
    %v8930 = vpop.f32.mrf.mxu0
    %v8931 = vadd.f32 %v8842, %v8930
    %8932 = vmatmul.bf16.gmra.mxu0 %v5711
    %v8933 = vpop.f32.mrf.mxu0
    %v8934 = vadd.f32 %v8845, %v8933
    %v8935 = vpop.f32.mrf.mxu0
    %v8936 = vadd.f32 %v8847, %v8935
    %8937 = vmatmul.bf16.gmra.mxu0 %v5723
    %v8938 = vpop.f32.mrf.mxu0
    %v8939 = vadd.f32 %v8850, %v8938
    %v8940 = vpop.f32.mrf.mxu0
    %v8941 = vadd.f32 %v8852, %v8940
    %8942 = vmatmul.bf16.gmra.mxu0 %v5735
    %v8943 = vpop.f32.mrf.mxu0
    %v8944 = vadd.f32 %v8855, %v8943
    %v8945 = vpop.f32.mrf.mxu0
    %v8946 = vadd.f32 %v8857, %v8945
    %8947 = vmatmul.bf16.gmra.mxu0 %v5747
    %v8948 = vpop.f32.mrf.mxu0
    %v8949 = vadd.f32 %v8860, %v8948
    %v8950 = vpop.f32.mrf.mxu0
    %v8951 = vadd.f32 %v8862, %v8950
    %8952 = vmatmul.bf16.gmra.mxu0 %v5759
    %v8953 = vpop.f32.mrf.mxu0
    %v8954 = vadd.f32 %v8865, %v8953
    %v8955 = vpop.f32.mrf.mxu0
    %v8956 = vadd.f32 %v8867, %v8955
    %8957 = vmatmul.bf16.gmra.mxu0 %v5771
    %v8958 = vpop.f32.mrf.mxu0
    %v8959 = vadd.f32 %v8870, %v8958
    %v8960 = vpop.f32.mrf.mxu0
    %v8961 = vadd.f32 %v8872, %v8960
    %8962 = vmatmul.bf16.gmra.mxu0 %v5783
    %v8963 = vpop.f32.mrf.mxu0
    %v8964 = vadd.f32 %v8875, %v8963
    %v8965 = vpop.f32.mrf.mxu0
    %v8966 = vadd.f32 %v8877, %v8965
    %8967 = vdwg.mxu0
    %8968 = vmatpush.bf16.msra.mxu0 %v7216
    %8969 = vmatpush.bf16.msra.mxu0 %v7213
    %8970 = vmatpush.bf16.msra.mxu0 %v7210
    %8971 = vmatpush.bf16.msra.mxu0 %v7207
    %8972 = vmatpush.bf16.msra.mxu0 %v7204
    %8973 = vmatpush.bf16.msra.mxu0 %v7201
    %8974 = vmatpush.bf16.msra.mxu0 %v7198
    %8975 = vmatpush.bf16.msra.mxu0 %v7195
    %8976 = vmatmul.bf16.gmra.mxu0 %v5604
    %v8977 = vpop.f32.mrf.mxu0
    %v8978 = vadd.f32 %v8889, %v8977
    %v8979 = vpop.f32.mrf.mxu0
    %v8980 = vadd.f32 %v8891, %v8979
    %8981 = vmatmul.bf16.gmra.mxu0 %v5616
    %v8982 = vpop.f32.mrf.mxu0
    %v8983 = vadd.f32 %v8894, %v8982
    %v8984 = vpop.f32.mrf.mxu0
    %v8985 = vadd.f32 %v8896, %v8984
    %8986 = vmatmul.bf16.gmra.mxu0 %v5628
    %v8987 = vpop.f32.mrf.mxu0
    %v8988 = vadd.f32 %v8899, %v8987
    %v8989 = vpop.f32.mrf.mxu0
    %v8990 = vadd.f32 %v8901, %v8989
    %8991 = vmatmul.bf16.gmra.mxu0 %v5640
    %v8992 = vpop.f32.mrf.mxu0
    %v8993 = vadd.f32 %v8904, %v8992
    %v8994 = vpop.f32.mrf.mxu0
    %v8995 = vadd.f32 %v8906, %v8994
    %8996 = vmatmul.bf16.gmra.mxu0 %v5652
    %v8997 = vpop.f32.mrf.mxu0
    %v8998 = vadd.f32 %v8909, %v8997
    %v8999 = vpop.f32.mrf.mxu0
    %v9000 = vadd.f32 %v8911, %v8999
    %9001 = vmatmul.bf16.gmra.mxu0 %v5664
    %v9002 = vpop.f32.mrf.mxu0
    %v9003 = vadd.f32 %v8914, %v9002
    %v9004 = vpop.f32.mrf.mxu0
    %v9005 = vadd.f32 %v8916, %v9004
    %9006 = vmatmul.bf16.gmra.mxu0 %v5676
    %v9007 = vpop.f32.mrf.mxu0
    %v9008 = vadd.f32 %v8919, %v9007
    %v9009 = vpop.f32.mrf.mxu0
    %v9010 = vadd.f32 %v8921, %v9009
    %9011 = vmatmul.bf16.gmra.mxu0 %v5688
    %v9012 = vpop.f32.mrf.mxu0
    %v9013 = vadd.f32 %v8924, %v9012
    %v9014 = vpop.f32.mrf.mxu0
    %v9015 = vadd.f32 %v8926, %v9014
    %9016 = vmatmul.bf16.gmra.mxu0 %v5700
    %v9017 = vpop.f32.mrf.mxu0
    %v9018 = vadd.f32 %v8929, %v9017
    %v9019 = vpop.f32.mrf.mxu0
    %v9020 = vadd.f32 %v8931, %v9019
    %9021 = vmatmul.bf16.gmra.mxu0 %v5712
    %v9022 = vpop.f32.mrf.mxu0
    %v9023 = vadd.f32 %v8934, %v9022
    %v9024 = vpop.f32.mrf.mxu0
    %v9025 = vadd.f32 %v8936, %v9024
    %9026 = vmatmul.bf16.gmra.mxu0 %v5724
    %v9027 = vpop.f32.mrf.mxu0
    %v9028 = vadd.f32 %v8939, %v9027
    %v9029 = vpop.f32.mrf.mxu0
    %v9030 = vadd.f32 %v8941, %v9029
    %9031 = vmatmul.bf16.gmra.mxu0 %v5736
    %v9032 = vpop.f32.mrf.mxu0
    %v9033 = vadd.f32 %v8944, %v9032
    %v9034 = vpop.f32.mrf.mxu0
    %v9035 = vadd.f32 %v8946, %v9034
    %9036 = vmatmul.bf16.gmra.mxu0 %v5748
    %v9037 = vpop.f32.mrf.mxu0
    %v9038 = vadd.f32 %v8949, %v9037
    %v9039 = vpop.f32.mrf.mxu0
    %v9040 = vadd.f32 %v8951, %v9039
    %9041 = vmatmul.bf16.gmra.mxu0 %v5760
    %v9042 = vpop.f32.mrf.mxu0
    %v9043 = vadd.f32 %v8954, %v9042
    %v9044 = vpop.f32.mrf.mxu0
    %v9045 = vadd.f32 %v8956, %v9044
    %9046 = vmatmul.bf16.gmra.mxu0 %v5772
    %v9047 = vpop.f32.mrf.mxu0
    %v9048 = vadd.f32 %v8959, %v9047
    %v9049 = vpop.f32.mrf.mxu0
    %v9050 = vadd.f32 %v8961, %v9049
    %9051 = vmatmul.bf16.gmra.mxu0 %v5784
    %v9052 = vpop.f32.mrf.mxu0
    %v9053 = vadd.f32 %v8964, %v9052
    %v9054 = vpop.f32.mrf.mxu0
    %v9055 = vadd.f32 %v8966, %v9054
    %9056 = vdwg.mxu0
    %9057 = vmatpush.bf16.msra.mxu0 %v7240
    %9058 = vmatpush.bf16.msra.mxu0 %v7237
    %9059 = vmatpush.bf16.msra.mxu0 %v7234
    %9060 = vmatpush.bf16.msra.mxu0 %v7231
    %9061 = vmatpush.bf16.msra.mxu0 %v7228
    %9062 = vmatpush.bf16.msra.mxu0 %v7225
    %9063 = vmatpush.bf16.msra.mxu0 %v7222
    %9064 = vmatpush.bf16.msra.mxu0 %v7219
    %9065 = vmatmul.bf16.gmra.mxu0 %v5605
    %v9066 = vpop.f32.mrf.mxu0
    %v9067 = vadd.f32 %v8978, %v9066
    %v9068 = vpop.f32.mrf.mxu0
    %v9069 = vadd.f32 %v8980, %v9068
    %9070 = vmatmul.bf16.gmra.mxu0 %v5617
    %v9071 = vpop.f32.mrf.mxu0
    %v9072 = vadd.f32 %v8983, %v9071
    %v9073 = vpop.f32.mrf.mxu0
    %v9074 = vadd.f32 %v8985, %v9073
    %9075 = vmatmul.bf16.gmra.mxu0 %v5629
    %v9076 = vpop.f32.mrf.mxu0
    %v9077 = vadd.f32 %v8988, %v9076
    %v9078 = vpop.f32.mrf.mxu0
    %v9079 = vadd.f32 %v8990, %v9078
    %9080 = vmatmul.bf16.gmra.mxu0 %v5641
    %v9081 = vpop.f32.mrf.mxu0
    %v9082 = vadd.f32 %v8993, %v9081
    %v9083 = vpop.f32.mrf.mxu0
    %v9084 = vadd.f32 %v8995, %v9083
    %9085 = vmatmul.bf16.gmra.mxu0 %v5653
    %v9086 = vpop.f32.mrf.mxu0
    %v9087 = vadd.f32 %v8998, %v9086
    %v9088 = vpop.f32.mrf.mxu0
    %v9089 = vadd.f32 %v9000, %v9088
    %9090 = vmatmul.bf16.gmra.mxu0 %v5665
    %v9091 = vpop.f32.mrf.mxu0
    %v9092 = vadd.f32 %v9003, %v9091
    %v9093 = vpop.f32.mrf.mxu0
    %v9094 = vadd.f32 %v9005, %v9093
    %9095 = vmatmul.bf16.gmra.mxu0 %v5677
    %v9096 = vpop.f32.mrf.mxu0
    %v9097 = vadd.f32 %v9008, %v9096
    %v9098 = vpop.f32.mrf.mxu0
    %v9099 = vadd.f32 %v9010, %v9098
    %9100 = vmatmul.bf16.gmra.mxu0 %v5689
    %v9101 = vpop.f32.mrf.mxu0
    %v9102 = vadd.f32 %v9013, %v9101
    %v9103 = vpop.f32.mrf.mxu0
    %v9104 = vadd.f32 %v9015, %v9103
    %9105 = vmatmul.bf16.gmra.mxu0 %v5701
    %v9106 = vpop.f32.mrf.mxu0
    %v9107 = vadd.f32 %v9018, %v9106
    %v9108 = vpop.f32.mrf.mxu0
    %v9109 = vadd.f32 %v9020, %v9108
    %9110 = vmatmul.bf16.gmra.mxu0 %v5713
    %v9111 = vpop.f32.mrf.mxu0
    %v9112 = vadd.f32 %v9023, %v9111
    %v9113 = vpop.f32.mrf.mxu0
    %v9114 = vadd.f32 %v9025, %v9113
    %9115 = vmatmul.bf16.gmra.mxu0 %v5725
    %v9116 = vpop.f32.mrf.mxu0
    %v9117 = vadd.f32 %v9028, %v9116
    %v9118 = vpop.f32.mrf.mxu0
    %v9119 = vadd.f32 %v9030, %v9118
    %9120 = vmatmul.bf16.gmra.mxu0 %v5737
    %v9121 = vpop.f32.mrf.mxu0
    %v9122 = vadd.f32 %v9033, %v9121
    %v9123 = vpop.f32.mrf.mxu0
    %v9124 = vadd.f32 %v9035, %v9123
    %9125 = vmatmul.bf16.gmra.mxu0 %v5749
    %v9126 = vpop.f32.mrf.mxu0
    %v9127 = vadd.f32 %v9038, %v9126
    %v9128 = vpop.f32.mrf.mxu0
    %v9129 = vadd.f32 %v9040, %v9128
    %9130 = vmatmul.bf16.gmra.mxu0 %v5761
    %v9131 = vpop.f32.mrf.mxu0
    %v9132 = vadd.f32 %v9043, %v9131
    %v9133 = vpop.f32.mrf.mxu0
    %v9134 = vadd.f32 %v9045, %v9133
    %9135 = vmatmul.bf16.gmra.mxu0 %v5773
    %v9136 = vpop.f32.mrf.mxu0
    %v9137 = vadd.f32 %v9048, %v9136
    %v9138 = vpop.f32.mrf.mxu0
    %v9139 = vadd.f32 %v9050, %v9138
    %9140 = vmatmul.bf16.gmra.mxu0 %v5785
    %v9141 = vpop.f32.mrf.mxu0
    %v9142 = vadd.f32 %v9053, %v9141
    %v9143 = vpop.f32.mrf.mxu0
    %v9144 = vadd.f32 %v9055, %v9143
    %9145 = vdwg.mxu0
    %9146 = vmatpush.bf16.msra.mxu0 %v7264
    %9147 = vmatpush.bf16.msra.mxu0 %v7261
    %9148 = vmatpush.bf16.msra.mxu0 %v7258
    %9149 = vmatpush.bf16.msra.mxu0 %v7255
    %9150 = vmatpush.bf16.msra.mxu0 %v7252
    %9151 = vmatpush.bf16.msra.mxu0 %v7249
    %9152 = vmatpush.bf16.msra.mxu0 %v7246
    %9153 = vmatpush.bf16.msra.mxu0 %v7243
    %9154 = vmatmul.bf16.gmra.mxu0 %v5606
    %v9155 = vpop.f32.mrf.mxu0
    %v9156 = vadd.f32 %v9067, %v9155
    %v9157 = vpop.f32.mrf.mxu0
    %v9158 = vadd.f32 %v9069, %v9157
    %9159 = vmatmul.bf16.gmra.mxu0 %v5618
    %v9160 = vpop.f32.mrf.mxu0
    %v9161 = vadd.f32 %v9072, %v9160
    %v9162 = vpop.f32.mrf.mxu0
    %v9163 = vadd.f32 %v9074, %v9162
    %9164 = vmatmul.bf16.gmra.mxu0 %v5630
    %v9165 = vpop.f32.mrf.mxu0
    %v9166 = vadd.f32 %v9077, %v9165
    %v9167 = vpop.f32.mrf.mxu0
    %v9168 = vadd.f32 %v9079, %v9167
    %9169 = vmatmul.bf16.gmra.mxu0 %v5642
    %v9170 = vpop.f32.mrf.mxu0
    %v9171 = vadd.f32 %v9082, %v9170
    %v9172 = vpop.f32.mrf.mxu0
    %v9173 = vadd.f32 %v9084, %v9172
    %9174 = vmatmul.bf16.gmra.mxu0 %v5654
    %v9175 = vpop.f32.mrf.mxu0
    %v9176 = vadd.f32 %v9087, %v9175
    %v9177 = vpop.f32.mrf.mxu0
    %v9178 = vadd.f32 %v9089, %v9177
    %9179 = vmatmul.bf16.gmra.mxu0 %v5666
    %v9180 = vpop.f32.mrf.mxu0
    %v9181 = vadd.f32 %v9092, %v9180
    %v9182 = vpop.f32.mrf.mxu0
    %v9183 = vadd.f32 %v9094, %v9182
    %9184 = vmatmul.bf16.gmra.mxu0 %v5678
    %v9185 = vpop.f32.mrf.mxu0
    %v9186 = vadd.f32 %v9097, %v9185
    %v9187 = vpop.f32.mrf.mxu0
    %v9188 = vadd.f32 %v9099, %v9187
    %9189 = vmatmul.bf16.gmra.mxu0 %v5690
    %v9190 = vpop.f32.mrf.mxu0
    %v9191 = vadd.f32 %v9102, %v9190
    %v9192 = vpop.f32.mrf.mxu0
    %v9193 = vadd.f32 %v9104, %v9192
    %9194 = vmatmul.bf16.gmra.mxu0 %v5702
    %v9195 = vpop.f32.mrf.mxu0
    %v9196 = vadd.f32 %v9107, %v9195
    %v9197 = vpop.f32.mrf.mxu0
    %v9198 = vadd.f32 %v9109, %v9197
    %9199 = vmatmul.bf16.gmra.mxu0 %v5714
    %v9200 = vpop.f32.mrf.mxu0
    %v9201 = vadd.f32 %v9112, %v9200
    %v9202 = vpop.f32.mrf.mxu0
    %v9203 = vadd.f32 %v9114, %v9202
    %9204 = vmatmul.bf16.gmra.mxu0 %v5726
    %v9205 = vpop.f32.mrf.mxu0
    %v9206 = vadd.f32 %v9117, %v9205
    %v9207 = vpop.f32.mrf.mxu0
    %v9208 = vadd.f32 %v9119, %v9207
    %9209 = vmatmul.bf16.gmra.mxu0 %v5738
    %v9210 = vpop.f32.mrf.mxu0
    %v9211 = vadd.f32 %v9122, %v9210
    %v9212 = vpop.f32.mrf.mxu0
    %v9213 = vadd.f32 %v9124, %v9212
    %9214 = vmatmul.bf16.gmra.mxu0 %v5750
    %v9215 = vpop.f32.mrf.mxu0
    %v9216 = vadd.f32 %v9127, %v9215
    %v9217 = vpop.f32.mrf.mxu0
    %v9218 = vadd.f32 %v9129, %v9217
    %9219 = vmatmul.bf16.gmra.mxu0 %v5762
    %v9220 = vpop.f32.mrf.mxu0
    %v9221 = vadd.f32 %v9132, %v9220
    %v9222 = vpop.f32.mrf.mxu0
    %v9223 = vadd.f32 %v9134, %v9222
    %9224 = vmatmul.bf16.gmra.mxu0 %v5774
    %v9225 = vpop.f32.mrf.mxu0
    %v9226 = vadd.f32 %v9137, %v9225
    %v9227 = vpop.f32.mrf.mxu0
    %v9228 = vadd.f32 %v9139, %v9227
    %9229 = vmatmul.bf16.gmra.mxu0 %v5786
    %v9230 = vpop.f32.mrf.mxu0
    %v9231 = vadd.f32 %v9142, %v9230
    %v9232 = vpop.f32.mrf.mxu0
    %v9233 = vadd.f32 %v9144, %v9232
    %9234 = vdwg.mxu0
    %9235 = vmatpush.bf16.msra.mxu0 %v7288
    %9236 = vmatpush.bf16.msra.mxu0 %v7285
    %9237 = vmatpush.bf16.msra.mxu0 %v7282
    %9238 = vmatpush.bf16.msra.mxu0 %v7279
    %9239 = vmatpush.bf16.msra.mxu0 %v7276
    %9240 = vmatpush.bf16.msra.mxu0 %v7273
    %9241 = vmatpush.bf16.msra.mxu0 %v7270
    %9242 = vmatpush.bf16.msra.mxu0 %v7267
    %9243 = vmatmul.bf16.gmra.mxu0 %v5607
    %v9244 = vpop.f32.mrf.mxu0
    %v9245 = vadd.f32 %v9156, %v9244
    %v9246 = vpop.f32.mrf.mxu0
    %v9247 = vadd.f32 %v9158, %v9246
    %9248 = vmatmul.bf16.gmra.mxu0 %v5619
    %v9249 = vpop.f32.mrf.mxu0
    %v9250 = vadd.f32 %v9161, %v9249
    %v9251 = vpop.f32.mrf.mxu0
    %v9252 = vadd.f32 %v9163, %v9251
    %9253 = vmatmul.bf16.gmra.mxu0 %v5631
    %v9254 = vpop.f32.mrf.mxu0
    %v9255 = vadd.f32 %v9166, %v9254
    %v9256 = vpop.f32.mrf.mxu0
    %v9257 = vadd.f32 %v9168, %v9256
    %9258 = vmatmul.bf16.gmra.mxu0 %v5643
    %v9259 = vpop.f32.mrf.mxu0
    %v9260 = vadd.f32 %v9171, %v9259
    %v9261 = vpop.f32.mrf.mxu0
    %v9262 = vadd.f32 %v9173, %v9261
    %9263 = vmatmul.bf16.gmra.mxu0 %v5655
    %v9264 = vpop.f32.mrf.mxu0
    %v9265 = vadd.f32 %v9176, %v9264
    %v9266 = vpop.f32.mrf.mxu0
    %v9267 = vadd.f32 %v9178, %v9266
    %9268 = vmatmul.bf16.gmra.mxu0 %v5667
    %v9269 = vpop.f32.mrf.mxu0
    %v9270 = vadd.f32 %v9181, %v9269
    %v9271 = vpop.f32.mrf.mxu0
    %v9272 = vadd.f32 %v9183, %v9271
    %9273 = vmatmul.bf16.gmra.mxu0 %v5679
    %v9274 = vpop.f32.mrf.mxu0
    %v9275 = vadd.f32 %v9186, %v9274
    %v9276 = vpop.f32.mrf.mxu0
    %v9277 = vadd.f32 %v9188, %v9276
    %9278 = vmatmul.bf16.gmra.mxu0 %v5691
    %v9279 = vpop.f32.mrf.mxu0
    %v9280 = vadd.f32 %v9191, %v9279
    %v9281 = vpop.f32.mrf.mxu0
    %v9282 = vadd.f32 %v9193, %v9281
    %9283 = vmatmul.bf16.gmra.mxu0 %v5703
    %v9284 = vpop.f32.mrf.mxu0
    %v9285 = vadd.f32 %v9196, %v9284
    %v9286 = vpop.f32.mrf.mxu0
    %v9287 = vadd.f32 %v9198, %v9286
    %9288 = vmatmul.bf16.gmra.mxu0 %v5715
    %v9289 = vpop.f32.mrf.mxu0
    %v9290 = vadd.f32 %v9201, %v9289
    %v9291 = vpop.f32.mrf.mxu0
    %v9292 = vadd.f32 %v9203, %v9291
    %9293 = vmatmul.bf16.gmra.mxu0 %v5727
    %v9294 = vpop.f32.mrf.mxu0
    %v9295 = vadd.f32 %v9206, %v9294
    %v9296 = vpop.f32.mrf.mxu0
    %v9297 = vadd.f32 %v9208, %v9296
    %9298 = vmatmul.bf16.gmra.mxu0 %v5739
    %v9299 = vpop.f32.mrf.mxu0
    %v9300 = vadd.f32 %v9211, %v9299
    %v9301 = vpop.f32.mrf.mxu0
    %v9302 = vadd.f32 %v9213, %v9301
    %9303 = vmatmul.bf16.gmra.mxu0 %v5751
    %v9304 = vpop.f32.mrf.mxu0
    %v9305 = vadd.f32 %v9216, %v9304
    %v9306 = vpop.f32.mrf.mxu0
    %v9307 = vadd.f32 %v9218, %v9306
    %9308 = vmatmul.bf16.gmra.mxu0 %v5763
    %v9309 = vpop.f32.mrf.mxu0
    %v9310 = vadd.f32 %v9221, %v9309
    %v9311 = vpop.f32.mrf.mxu0
    %v9312 = vadd.f32 %v9223, %v9311
    %9313 = vmatmul.bf16.gmra.mxu0 %v5775
    %v9314 = vpop.f32.mrf.mxu0
    %v9315 = vadd.f32 %v9226, %v9314
    %v9316 = vpop.f32.mrf.mxu0
    %v9317 = vadd.f32 %v9228, %v9316
    %9318 = vmatmul.bf16.gmra.mxu0 %v5787
    %v9319 = vpop.f32.mrf.mxu0
    %v9320 = vadd.f32 %v9231, %v9319
    %v9321 = vpop.f32.mrf.mxu0
    %v9322 = vadd.f32 %v9233, %v9321
    %9323 = vdwg.mxu0
    %9324 = vmatpush.bf16.msra.mxu0 %v7312
    %9325 = vmatpush.bf16.msra.mxu0 %v7309
    %9326 = vmatpush.bf16.msra.mxu0 %v7306
    %9327 = vmatpush.bf16.msra.mxu0 %v7303
    %9328 = vmatpush.bf16.msra.mxu0 %v7300
    %9329 = vmatpush.bf16.msra.mxu0 %v7297
    %9330 = vmatpush.bf16.msra.mxu0 %v7294
    %9331 = vmatpush.bf16.msra.mxu0 %v7291
    %9332 = vmatmul.bf16.gmra.mxu0 %v5608
    %v9333 = vpop.f32.mrf.mxu0
    %v9334 = vadd.f32 %v9245, %v9333
    %v9335 = vpop.f32.mrf.mxu0
    %v9336 = vadd.f32 %v9247, %v9335
    %9337 = vmatmul.bf16.gmra.mxu0 %v5620
    %v9338 = vpop.f32.mrf.mxu0
    %v9339 = vadd.f32 %v9250, %v9338
    %v9340 = vpop.f32.mrf.mxu0
    %v9341 = vadd.f32 %v9252, %v9340
    %9342 = vmatmul.bf16.gmra.mxu0 %v5632
    %v9343 = vpop.f32.mrf.mxu0
    %v9344 = vadd.f32 %v9255, %v9343
    %v9345 = vpop.f32.mrf.mxu0
    %v9346 = vadd.f32 %v9257, %v9345
    %9347 = vmatmul.bf16.gmra.mxu0 %v5644
    %v9348 = vpop.f32.mrf.mxu0
    %v9349 = vadd.f32 %v9260, %v9348
    %v9350 = vpop.f32.mrf.mxu0
    %v9351 = vadd.f32 %v9262, %v9350
    %9352 = vmatmul.bf16.gmra.mxu0 %v5656
    %v9353 = vpop.f32.mrf.mxu0
    %v9354 = vadd.f32 %v9265, %v9353
    %v9355 = vpop.f32.mrf.mxu0
    %v9356 = vadd.f32 %v9267, %v9355
    %9357 = vmatmul.bf16.gmra.mxu0 %v5668
    %v9358 = vpop.f32.mrf.mxu0
    %v9359 = vadd.f32 %v9270, %v9358
    %v9360 = vpop.f32.mrf.mxu0
    %v9361 = vadd.f32 %v9272, %v9360
    %9362 = vmatmul.bf16.gmra.mxu0 %v5680
    %v9363 = vpop.f32.mrf.mxu0
    %v9364 = vadd.f32 %v9275, %v9363
    %v9365 = vpop.f32.mrf.mxu0
    %v9366 = vadd.f32 %v9277, %v9365
    %9367 = vmatmul.bf16.gmra.mxu0 %v5692
    %v9368 = vpop.f32.mrf.mxu0
    %v9369 = vadd.f32 %v9280, %v9368
    %v9370 = vpop.f32.mrf.mxu0
    %v9371 = vadd.f32 %v9282, %v9370
    %9372 = vmatmul.bf16.gmra.mxu0 %v5704
    %v9373 = vpop.f32.mrf.mxu0
    %v9374 = vadd.f32 %v9285, %v9373
    %v9375 = vpop.f32.mrf.mxu0
    %v9376 = vadd.f32 %v9287, %v9375
    %9377 = vmatmul.bf16.gmra.mxu0 %v5716
    %v9378 = vpop.f32.mrf.mxu0
    %v9379 = vadd.f32 %v9290, %v9378
    %v9380 = vpop.f32.mrf.mxu0
    %v9381 = vadd.f32 %v9292, %v9380
    %9382 = vmatmul.bf16.gmra.mxu0 %v5728
    %v9383 = vpop.f32.mrf.mxu0
    %v9384 = vadd.f32 %v9295, %v9383
    %v9385 = vpop.f32.mrf.mxu0
    %v9386 = vadd.f32 %v9297, %v9385
    %9387 = vmatmul.bf16.gmra.mxu0 %v5740
    %v9388 = vpop.f32.mrf.mxu0
    %v9389 = vadd.f32 %v9300, %v9388
    %v9390 = vpop.f32.mrf.mxu0
    %v9391 = vadd.f32 %v9302, %v9390
    %9392 = vmatmul.bf16.gmra.mxu0 %v5752
    %v9393 = vpop.f32.mrf.mxu0
    %v9394 = vadd.f32 %v9305, %v9393
    %v9395 = vpop.f32.mrf.mxu0
    %v9396 = vadd.f32 %v9307, %v9395
    %9397 = vmatmul.bf16.gmra.mxu0 %v5764
    %v9398 = vpop.f32.mrf.mxu0
    %v9399 = vadd.f32 %v9310, %v9398
    %v9400 = vpop.f32.mrf.mxu0
    %v9401 = vadd.f32 %v9312, %v9400
    %9402 = vmatmul.bf16.gmra.mxu0 %v5776
    %v9403 = vpop.f32.mrf.mxu0
    %v9404 = vadd.f32 %v9315, %v9403
    %v9405 = vpop.f32.mrf.mxu0
    %v9406 = vadd.f32 %v9317, %v9405
    %9407 = vmatmul.bf16.gmra.mxu0 %v5788
    %v9408 = vpop.f32.mrf.mxu0
    %v9409 = vadd.f32 %v9320, %v9408
    %v9410 = vpop.f32.mrf.mxu0
    %v9411 = vadd.f32 %v9322, %v9410
    %9412 = vdwg.mxu0
    %9413 = vmatpush.bf16.msra.mxu0 %v7336
    %9414 = vmatpush.bf16.msra.mxu0 %v7333
    %9415 = vmatpush.bf16.msra.mxu0 %v7330
    %9416 = vmatpush.bf16.msra.mxu0 %v7327
    %9417 = vmatpush.bf16.msra.mxu0 %v7324
    %9418 = vmatpush.bf16.msra.mxu0 %v7321
    %9419 = vmatpush.bf16.msra.mxu0 %v7318
    %9420 = vmatpush.bf16.msra.mxu0 %v7315
    %9421 = vmatmul.bf16.gmra.mxu0 %v5609
    %v9422 = vpop.f32.mrf.mxu0
    %v9423 = vadd.f32 %v9334, %v9422
    %v9424 = vpop.f32.mrf.mxu0
    %v9425 = vadd.f32 %v9336, %v9424
    %9426 = vmatmul.bf16.gmra.mxu0 %v5621
    %v9427 = vpop.f32.mrf.mxu0
    %v9428 = vadd.f32 %v9339, %v9427
    %v9429 = vpop.f32.mrf.mxu0
    %v9430 = vadd.f32 %v9341, %v9429
    %9431 = vmatmul.bf16.gmra.mxu0 %v5633
    %v9432 = vpop.f32.mrf.mxu0
    %v9433 = vadd.f32 %v9344, %v9432
    %v9434 = vpop.f32.mrf.mxu0
    %v9435 = vadd.f32 %v9346, %v9434
    %9436 = vmatmul.bf16.gmra.mxu0 %v5645
    %v9437 = vpop.f32.mrf.mxu0
    %v9438 = vadd.f32 %v9349, %v9437
    %v9439 = vpop.f32.mrf.mxu0
    %v9440 = vadd.f32 %v9351, %v9439
    %9441 = vmatmul.bf16.gmra.mxu0 %v5657
    %v9442 = vpop.f32.mrf.mxu0
    %v9443 = vadd.f32 %v9354, %v9442
    %v9444 = vpop.f32.mrf.mxu0
    %v9445 = vadd.f32 %v9356, %v9444
    %9446 = vmatmul.bf16.gmra.mxu0 %v5669
    %v9447 = vpop.f32.mrf.mxu0
    %v9448 = vadd.f32 %v9359, %v9447
    %v9449 = vpop.f32.mrf.mxu0
    %v9450 = vadd.f32 %v9361, %v9449
    %9451 = vmatmul.bf16.gmra.mxu0 %v5681
    %v9452 = vpop.f32.mrf.mxu0
    %v9453 = vadd.f32 %v9364, %v9452
    %v9454 = vpop.f32.mrf.mxu0
    %v9455 = vadd.f32 %v9366, %v9454
    %9456 = vmatmul.bf16.gmra.mxu0 %v5693
    %v9457 = vpop.f32.mrf.mxu0
    %v9458 = vadd.f32 %v9369, %v9457
    %v9459 = vpop.f32.mrf.mxu0
    %v9460 = vadd.f32 %v9371, %v9459
    %9461 = vmatmul.bf16.gmra.mxu0 %v5705
    %v9462 = vpop.f32.mrf.mxu0
    %v9463 = vadd.f32 %v9374, %v9462
    %v9464 = vpop.f32.mrf.mxu0
    %v9465 = vadd.f32 %v9376, %v9464
    %9466 = vmatmul.bf16.gmra.mxu0 %v5717
    %v9467 = vpop.f32.mrf.mxu0
    %v9468 = vadd.f32 %v9379, %v9467
    %v9469 = vpop.f32.mrf.mxu0
    %v9470 = vadd.f32 %v9381, %v9469
    %9471 = vmatmul.bf16.gmra.mxu0 %v5729
    %v9472 = vpop.f32.mrf.mxu0
    %v9473 = vadd.f32 %v9384, %v9472
    %v9474 = vpop.f32.mrf.mxu0
    %v9475 = vadd.f32 %v9386, %v9474
    %9476 = vmatmul.bf16.gmra.mxu0 %v5741
    %v9477 = vpop.f32.mrf.mxu0
    %v9478 = vadd.f32 %v9389, %v9477
    %v9479 = vpop.f32.mrf.mxu0
    %v9480 = vadd.f32 %v9391, %v9479
    %9481 = vmatmul.bf16.gmra.mxu0 %v5753
    %v9482 = vpop.f32.mrf.mxu0
    %v9483 = vadd.f32 %v9394, %v9482
    %v9484 = vpop.f32.mrf.mxu0
    %v9485 = vadd.f32 %v9396, %v9484
    %9486 = vmatmul.bf16.gmra.mxu0 %v5765
    %v9487 = vpop.f32.mrf.mxu0
    %v9488 = vadd.f32 %v9399, %v9487
    %v9489 = vpop.f32.mrf.mxu0
    %v9490 = vadd.f32 %v9401, %v9489
    %9491 = vmatmul.bf16.gmra.mxu0 %v5777
    %v9492 = vpop.f32.mrf.mxu0
    %v9493 = vadd.f32 %v9404, %v9492
    %v9494 = vpop.f32.mrf.mxu0
    %v9495 = vadd.f32 %v9406, %v9494
    %9496 = vmatmul.bf16.gmra.mxu0 %v5789
    %v9497 = vpop.f32.mrf.mxu0
    %v9498 = vadd.f32 %v9409, %v9497
    %v9499 = vpop.f32.mrf.mxu0
    %v9500 = vadd.f32 %v9411, %v9499
    %9501 = vdwg.mxu0
    %9502 = vmatpush.bf16.msra.mxu0 %v7360
    %9503 = vmatpush.bf16.msra.mxu0 %v7357
    %9504 = vmatpush.bf16.msra.mxu0 %v7354
    %9505 = vmatpush.bf16.msra.mxu0 %v7351
    %9506 = vmatpush.bf16.msra.mxu0 %v7348
    %9507 = vmatpush.bf16.msra.mxu0 %v7345
    %9508 = vmatpush.bf16.msra.mxu0 %v7342
    %9509 = vmatpush.bf16.msra.mxu0 %v7339
    %9510 = vmatmul.bf16.gmra.mxu0 %v5610
    %v9511 = vpop.f32.mrf.mxu0
    %v9512 = vadd.f32 %v9423, %v9511
    %v9513 = vpop.f32.mrf.mxu0
    %v9514 = vadd.f32 %v9425, %v9513
    %9515 = vmatmul.bf16.gmra.mxu0 %v5622
    %v9516 = vpop.f32.mrf.mxu0
    %v9517 = vadd.f32 %v9428, %v9516
    %v9518 = vpop.f32.mrf.mxu0
    %v9519 = vadd.f32 %v9430, %v9518
    %9520 = vmatmul.bf16.gmra.mxu0 %v5634
    %v9521 = vpop.f32.mrf.mxu0
    %v9522 = vadd.f32 %v9433, %v9521
    %v9523 = vpop.f32.mrf.mxu0
    %v9524 = vadd.f32 %v9435, %v9523
    %9525 = vmatmul.bf16.gmra.mxu0 %v5646
    %v9526 = vpop.f32.mrf.mxu0
    %v9527 = vadd.f32 %v9438, %v9526
    %v9528 = vpop.f32.mrf.mxu0
    %v9529 = vadd.f32 %v9440, %v9528
    %9530 = vmatmul.bf16.gmra.mxu0 %v5658
    %v9531 = vpop.f32.mrf.mxu0
    %v9532 = vadd.f32 %v9443, %v9531
    %v9533 = vpop.f32.mrf.mxu0
    %v9534 = vadd.f32 %v9445, %v9533
    %9535 = vmatmul.bf16.gmra.mxu0 %v5670
    %v9536 = vpop.f32.mrf.mxu0
    %v9537 = vadd.f32 %v9448, %v9536
    %v9538 = vpop.f32.mrf.mxu0
    %v9539 = vadd.f32 %v9450, %v9538
    %9540 = vmatmul.bf16.gmra.mxu0 %v5682
    %v9541 = vpop.f32.mrf.mxu0
    %v9542 = vadd.f32 %v9453, %v9541
    %v9543 = vpop.f32.mrf.mxu0
    %v9544 = vadd.f32 %v9455, %v9543
    %9545 = vmatmul.bf16.gmra.mxu0 %v5694
    %v9546 = vpop.f32.mrf.mxu0
    %v9547 = vadd.f32 %v9458, %v9546
    %v9548 = vpop.f32.mrf.mxu0
    %v9549 = vadd.f32 %v9460, %v9548
    %9550 = vmatmul.bf16.gmra.mxu0 %v5706
    %v9551 = vpop.f32.mrf.mxu0
    %v9552 = vadd.f32 %v9463, %v9551
    %v9553 = vpop.f32.mrf.mxu0
    %v9554 = vadd.f32 %v9465, %v9553
    %9555 = vmatmul.bf16.gmra.mxu0 %v5718
    %v9556 = vpop.f32.mrf.mxu0
    %v9557 = vadd.f32 %v9468, %v9556
    %v9558 = vpop.f32.mrf.mxu0
    %v9559 = vadd.f32 %v9470, %v9558
    %9560 = vmatmul.bf16.gmra.mxu0 %v5730
    %v9561 = vpop.f32.mrf.mxu0
    %v9562 = vadd.f32 %v9473, %v9561
    %v9563 = vpop.f32.mrf.mxu0
    %v9564 = vadd.f32 %v9475, %v9563
    %9565 = vmatmul.bf16.gmra.mxu0 %v5742
    %v9566 = vpop.f32.mrf.mxu0
    %v9567 = vadd.f32 %v9478, %v9566
    %v9568 = vpop.f32.mrf.mxu0
    %v9569 = vadd.f32 %v9480, %v9568
    %9570 = vmatmul.bf16.gmra.mxu0 %v5754
    %v9571 = vpop.f32.mrf.mxu0
    %v9572 = vadd.f32 %v9483, %v9571
    %v9573 = vpop.f32.mrf.mxu0
    %v9574 = vadd.f32 %v9485, %v9573
    %9575 = vmatmul.bf16.gmra.mxu0 %v5766
    %v9576 = vpop.f32.mrf.mxu0
    %v9577 = vadd.f32 %v9488, %v9576
    %v9578 = vpop.f32.mrf.mxu0
    %v9579 = vadd.f32 %v9490, %v9578
    %9580 = vmatmul.bf16.gmra.mxu0 %v5778
    %v9581 = vpop.f32.mrf.mxu0
    %v9582 = vadd.f32 %v9493, %v9581
    %v9583 = vpop.f32.mrf.mxu0
    %v9584 = vadd.f32 %v9495, %v9583
    %9585 = vmatmul.bf16.gmra.mxu0 %v5790
    %v9586 = vpop.f32.mrf.mxu0
    %v9587 = vadd.f32 %v9498, %v9586
    %v9588 = vpop.f32.mrf.mxu0
    %v9589 = vadd.f32 %v9500, %v9588
    %9590 = vdwg.mxu0
    %9591 = vmatpush.bf16.msra.mxu0 %v7384
    %9592 = vmatpush.bf16.msra.mxu0 %v7381
    %9593 = vmatpush.bf16.msra.mxu0 %v7378
    %9594 = vmatpush.bf16.msra.mxu0 %v7375
    %9595 = vmatpush.bf16.msra.mxu0 %v7372
    %9596 = vmatpush.bf16.msra.mxu0 %v7369
    %9597 = vmatpush.bf16.msra.mxu0 %v7366
    %9598 = vmatpush.bf16.msra.mxu0 %v7363
    %9599 = vmatmul.bf16.gmra.mxu0 %v5611
    %v9600 = vpop.f32.mrf.mxu0
    %v9601 = vadd.f32 %v9512, %v9600
    %v9602 = vpop.f32.mrf.mxu0
    %v9603 = vadd.f32 %v9514, %v9602
    %9604 = vmatmul.bf16.gmra.mxu0 %v5623
    %v9605 = vpop.f32.mrf.mxu0
    %v9606 = vadd.f32 %v9517, %v9605
    %v9607 = vpop.f32.mrf.mxu0
    %v9608 = vadd.f32 %v9519, %v9607
    %9609 = vmatmul.bf16.gmra.mxu0 %v5635
    %v9610 = vpop.f32.mrf.mxu0
    %v9611 = vadd.f32 %v9522, %v9610
    %v9612 = vpop.f32.mrf.mxu0
    %v9613 = vadd.f32 %v9524, %v9612
    %9614 = vmatmul.bf16.gmra.mxu0 %v5647
    %v9615 = vpop.f32.mrf.mxu0
    %v9616 = vadd.f32 %v9527, %v9615
    %v9617 = vpop.f32.mrf.mxu0
    %v9618 = vadd.f32 %v9529, %v9617
    %9619 = vmatmul.bf16.gmra.mxu0 %v5659
    %v9620 = vpop.f32.mrf.mxu0
    %v9621 = vadd.f32 %v9532, %v9620
    %v9622 = vpop.f32.mrf.mxu0
    %v9623 = vadd.f32 %v9534, %v9622
    %9624 = vmatmul.bf16.gmra.mxu0 %v5671
    %v9625 = vpop.f32.mrf.mxu0
    %v9626 = vadd.f32 %v9537, %v9625
    %v9627 = vpop.f32.mrf.mxu0
    %v9628 = vadd.f32 %v9539, %v9627
    %9629 = vmatmul.bf16.gmra.mxu0 %v5683
    %v9630 = vpop.f32.mrf.mxu0
    %v9631 = vadd.f32 %v9542, %v9630
    %v9632 = vpop.f32.mrf.mxu0
    %v9633 = vadd.f32 %v9544, %v9632
    %9634 = vmatmul.bf16.gmra.mxu0 %v5695
    %v9635 = vpop.f32.mrf.mxu0
    %v9636 = vadd.f32 %v9547, %v9635
    %v9637 = vpop.f32.mrf.mxu0
    %v9638 = vadd.f32 %v9549, %v9637
    %9639 = vmatmul.bf16.gmra.mxu0 %v5707
    %v9640 = vpop.f32.mrf.mxu0
    %v9641 = vadd.f32 %v9552, %v9640
    %v9642 = vpop.f32.mrf.mxu0
    %v9643 = vadd.f32 %v9554, %v9642
    %9644 = vmatmul.bf16.gmra.mxu0 %v5719
    %v9645 = vpop.f32.mrf.mxu0
    %v9646 = vadd.f32 %v9557, %v9645
    %v9647 = vpop.f32.mrf.mxu0
    %v9648 = vadd.f32 %v9559, %v9647
    %9649 = vmatmul.bf16.gmra.mxu0 %v5731
    %v9650 = vpop.f32.mrf.mxu0
    %v9651 = vadd.f32 %v9562, %v9650
    %v9652 = vpop.f32.mrf.mxu0
    %v9653 = vadd.f32 %v9564, %v9652
    %9654 = vmatmul.bf16.gmra.mxu0 %v5743
    %v9655 = vpop.f32.mrf.mxu0
    %v9656 = vadd.f32 %v9567, %v9655
    %v9657 = vpop.f32.mrf.mxu0
    %v9658 = vadd.f32 %v9569, %v9657
    %9659 = vmatmul.bf16.gmra.mxu0 %v5755
    %v9660 = vpop.f32.mrf.mxu0
    %v9661 = vadd.f32 %v9572, %v9660
    %v9662 = vpop.f32.mrf.mxu0
    %v9663 = vadd.f32 %v9574, %v9662
    %9664 = vmatmul.bf16.gmra.mxu0 %v5767
    %v9665 = vpop.f32.mrf.mxu0
    %v9666 = vadd.f32 %v9577, %v9665
    %v9667 = vpop.f32.mrf.mxu0
    %v9668 = vadd.f32 %v9579, %v9667
    %9669 = vmatmul.bf16.gmra.mxu0 %v5779
    %v9670 = vpop.f32.mrf.mxu0
    %v9671 = vadd.f32 %v9582, %v9670
    %v9672 = vpop.f32.mrf.mxu0
    %v9673 = vadd.f32 %v9584, %v9672
    %9674 = vmatmul.bf16.gmra.mxu0 %v5791
    %v9675 = vpop.f32.mrf.mxu0
    %v9676 = vadd.f32 %v9587, %v9675
    %v9677 = vpop.f32.mrf.mxu0
    %v9678 = vadd.f32 %v9589, %v9677
    %9679 = vdwg.mxu0
    %9680 = vmatpush.bf16.msra.mxu0 %v7408
    %9681 = vmatpush.bf16.msra.mxu0 %v7405
    %9682 = vmatpush.bf16.msra.mxu0 %v7402
    %9683 = vmatpush.bf16.msra.mxu0 %v7399
    %9684 = vmatpush.bf16.msra.mxu0 %v7396
    %9685 = vmatpush.bf16.msra.mxu0 %v7393
    %9686 = vmatpush.bf16.msra.mxu0 %v7390
    %9687 = vmatpush.bf16.msra.mxu0 %v7387
    %9688 = vmatmul.bf16.gmra.mxu0 %v5612
    %v9689 = vpop.f32.mrf.mxu0
    %v9690 = vadd.f32 %v9601, %v9689
    %v9691 = vpop.f32.mrf.mxu0
    %v9692 = vadd.f32 %v9603, %v9691
    %9693 = vmatmul.bf16.gmra.mxu0 %v5624
    %v9694 = vpop.f32.mrf.mxu0
    %v9695 = vadd.f32 %v9606, %v9694
    %v9696 = vpop.f32.mrf.mxu0
    %v9697 = vadd.f32 %v9608, %v9696
    %9698 = vmatmul.bf16.gmra.mxu0 %v5636
    %v9699 = vpop.f32.mrf.mxu0
    %v9700 = vadd.f32 %v9611, %v9699
    %v9701 = vpop.f32.mrf.mxu0
    %v9702 = vadd.f32 %v9613, %v9701
    %9703 = vmatmul.bf16.gmra.mxu0 %v5648
    %v9704 = vpop.f32.mrf.mxu0
    %v9705 = vadd.f32 %v9616, %v9704
    %v9706 = vpop.f32.mrf.mxu0
    %v9707 = vadd.f32 %v9618, %v9706
    %9708 = vmatmul.bf16.gmra.mxu0 %v5660
    %v9709 = vpop.f32.mrf.mxu0
    %v9710 = vadd.f32 %v9621, %v9709
    %v9711 = vpop.f32.mrf.mxu0
    %v9712 = vadd.f32 %v9623, %v9711
    %9713 = vmatmul.bf16.gmra.mxu0 %v5672
    %v9714 = vpop.f32.mrf.mxu0
    %v9715 = vadd.f32 %v9626, %v9714
    %v9716 = vpop.f32.mrf.mxu0
    %v9717 = vadd.f32 %v9628, %v9716
    %9718 = vmatmul.bf16.gmra.mxu0 %v5684
    %v9719 = vpop.f32.mrf.mxu0
    %v9720 = vadd.f32 %v9631, %v9719
    %v9721 = vpop.f32.mrf.mxu0
    %v9722 = vadd.f32 %v9633, %v9721
    %9723 = vmatmul.bf16.gmra.mxu0 %v5696
    %v9724 = vpop.f32.mrf.mxu0
    %v9725 = vadd.f32 %v9636, %v9724
    %v9726 = vpop.f32.mrf.mxu0
    %v9727 = vadd.f32 %v9638, %v9726
    %9728 = vmatmul.bf16.gmra.mxu0 %v5708
    %v9729 = vpop.f32.mrf.mxu0
    %v9730 = vadd.f32 %v9641, %v9729
    %v9731 = vpop.f32.mrf.mxu0
    %v9732 = vadd.f32 %v9643, %v9731
    %9733 = vmatmul.bf16.gmra.mxu0 %v5720
    %v9734 = vpop.f32.mrf.mxu0
    %v9735 = vadd.f32 %v9646, %v9734
    %v9736 = vpop.f32.mrf.mxu0
    %v9737 = vadd.f32 %v9648, %v9736
    %9738 = vmatmul.bf16.gmra.mxu0 %v5732
    %v9739 = vpop.f32.mrf.mxu0
    %v9740 = vadd.f32 %v9651, %v9739
    %v9741 = vpop.f32.mrf.mxu0
    %v9742 = vadd.f32 %v9653, %v9741
    %9743 = vmatmul.bf16.gmra.mxu0 %v5744
    %v9744 = vpop.f32.mrf.mxu0
    %v9745 = vadd.f32 %v9656, %v9744
    %v9746 = vpop.f32.mrf.mxu0
    %v9747 = vadd.f32 %v9658, %v9746
    %9748 = vmatmul.bf16.gmra.mxu0 %v5756
    %v9749 = vpop.f32.mrf.mxu0
    %v9750 = vadd.f32 %v9661, %v9749
    %v9751 = vpop.f32.mrf.mxu0
    %v9752 = vadd.f32 %v9663, %v9751
    %9753 = vmatmul.bf16.gmra.mxu0 %v5768
    %v9754 = vpop.f32.mrf.mxu0
    %v9755 = vadd.f32 %v9666, %v9754
    %v9756 = vpop.f32.mrf.mxu0
    %v9757 = vadd.f32 %v9668, %v9756
    %9758 = vmatmul.bf16.gmra.mxu0 %v5780
    %v9759 = vpop.f32.mrf.mxu0
    %v9760 = vadd.f32 %v9671, %v9759
    %v9761 = vpop.f32.mrf.mxu0
    %v9762 = vadd.f32 %v9673, %v9761
    %9763 = vmatmul.bf16.gmra.mxu0 %v5792
    %v9764 = vpop.f32.mrf.mxu0
    %v9765 = vadd.f32 %v9676, %v9764
    %v9766 = vpop.f32.mrf.mxu0
    %v9767 = vadd.f32 %v9678, %v9766
    %9768 = vdwg.mxu0
    %9769 = vmatpush.bf16.msra.mxu0 %v7432
    %9770 = vmatpush.bf16.msra.mxu0 %v7429
    %9771 = vmatpush.bf16.msra.mxu0 %v7426
    %9772 = vmatpush.bf16.msra.mxu0 %v7423
    %9773 = vmatpush.bf16.msra.mxu0 %v7420
    %9774 = vmatpush.bf16.msra.mxu0 %v7417
    %9775 = vmatpush.bf16.msra.mxu0 %v7414
    %9776 = vmatpush.bf16.msra.mxu0 %v7411
    %9777 = vmatmul.bf16.gmra.mxu0 %v5613
    %v9778 = vpop.f32.mrf.mxu0
    %v9779 = vadd.f32 %v9690, %v9778
    %v9780 = vpop.f32.mrf.mxu0
    %v9781 = vadd.f32 %v9692, %v9780
    %9782 = vmatmul.bf16.gmra.mxu0 %v5625
    %v9783 = vpop.f32.mrf.mxu0
    %v9784 = vadd.f32 %v9695, %v9783
    %v9785 = vpop.f32.mrf.mxu0
    %v9786 = vadd.f32 %v9697, %v9785
    %9787 = vmatmul.bf16.gmra.mxu0 %v5637
    %v9788 = vpop.f32.mrf.mxu0
    %v9789 = vadd.f32 %v9700, %v9788
    %v9790 = vpop.f32.mrf.mxu0
    %v9791 = vadd.f32 %v9702, %v9790
    %9792 = vmatmul.bf16.gmra.mxu0 %v5649
    %v9793 = vpop.f32.mrf.mxu0
    %v9794 = vadd.f32 %v9705, %v9793
    %v9795 = vpop.f32.mrf.mxu0
    %v9796 = vadd.f32 %v9707, %v9795
    %9797 = vmatmul.bf16.gmra.mxu0 %v5661
    %v9798 = vpop.f32.mrf.mxu0
    %v9799 = vadd.f32 %v9710, %v9798
    %v9800 = vpop.f32.mrf.mxu0
    %v9801 = vadd.f32 %v9712, %v9800
    %9802 = vmatmul.bf16.gmra.mxu0 %v5673
    %v9803 = vpop.f32.mrf.mxu0
    %v9804 = vadd.f32 %v9715, %v9803
    %v9805 = vpop.f32.mrf.mxu0
    %v9806 = vadd.f32 %v9717, %v9805
    %9807 = vmatmul.bf16.gmra.mxu0 %v5685
    %v9808 = vpop.f32.mrf.mxu0
    %v9809 = vadd.f32 %v9720, %v9808
    %v9810 = vpop.f32.mrf.mxu0
    %v9811 = vadd.f32 %v9722, %v9810
    %9812 = vmatmul.bf16.gmra.mxu0 %v5697
    %v9813 = vpop.f32.mrf.mxu0
    %v9814 = vadd.f32 %v9725, %v9813
    %v9815 = vpop.f32.mrf.mxu0
    %v9816 = vadd.f32 %v9727, %v9815
    %9817 = vmatmul.bf16.gmra.mxu0 %v5709
    %v9818 = vpop.f32.mrf.mxu0
    %v9819 = vadd.f32 %v9730, %v9818
    %v9820 = vpop.f32.mrf.mxu0
    %v9821 = vadd.f32 %v9732, %v9820
    %9822 = vmatmul.bf16.gmra.mxu0 %v5721
    %v9823 = vpop.f32.mrf.mxu0
    %v9824 = vadd.f32 %v9735, %v9823
    %v9825 = vpop.f32.mrf.mxu0
    %v9826 = vadd.f32 %v9737, %v9825
    %9827 = vmatmul.bf16.gmra.mxu0 %v5733
    %v9828 = vpop.f32.mrf.mxu0
    %v9829 = vadd.f32 %v9740, %v9828
    %v9830 = vpop.f32.mrf.mxu0
    %v9831 = vadd.f32 %v9742, %v9830
    %9832 = vmatmul.bf16.gmra.mxu0 %v5745
    %v9833 = vpop.f32.mrf.mxu0
    %v9834 = vadd.f32 %v9745, %v9833
    %v9835 = vpop.f32.mrf.mxu0
    %v9836 = vadd.f32 %v9747, %v9835
    %9837 = vmatmul.bf16.gmra.mxu0 %v5757
    %v9838 = vpop.f32.mrf.mxu0
    %v9839 = vadd.f32 %v9750, %v9838
    %v9840 = vpop.f32.mrf.mxu0
    %v9841 = vadd.f32 %v9752, %v9840
    %9842 = vmatmul.bf16.gmra.mxu0 %v5769
    %v9843 = vpop.f32.mrf.mxu0
    %v9844 = vadd.f32 %v9755, %v9843
    %v9845 = vpop.f32.mrf.mxu0
    %v9846 = vadd.f32 %v9757, %v9845
    %9847 = vmatmul.bf16.gmra.mxu0 %v5781
    %v9848 = vpop.f32.mrf.mxu0
    %v9849 = vadd.f32 %v9760, %v9848
    %v9850 = vpop.f32.mrf.mxu0
    %v9851 = vadd.f32 %v9762, %v9850
    %9852 = vmatmul.bf16.gmra.mxu0 %v5793
    %v9853 = vpop.f32.mrf.mxu0
    %v9854 = vadd.f32 %v9765, %v9853
    %v9855 = vpop.f32.mrf.mxu0
    %v9856 = vadd.f32 %v9767, %v9855
    %9857 = vdwg.mxu0
    %9858 = vmatpush.bf16.msra.mxu0 %v7169
    %9859 = vmatpush.bf16.msra.mxu0 %v7166
    %9860 = vmatpush.bf16.msra.mxu0 %v7163
    %9861 = vmatpush.bf16.msra.mxu0 %v7160
    %9862 = vmatpush.bf16.msra.mxu0 %v7157
    %9863 = vmatpush.bf16.msra.mxu0 %v7154
    %9864 = vmatpush.bf16.msra.mxu0 %v7151
    %9865 = vmatpush.bf16.msra.mxu0 %v7148
    %9866 = vmatmul.bf16.gmra.mxu0 %v5602
    %v9867 = vpop.f32.mrf.mxu0
    %v9868 = vadd.f32 %v6182, %v9867
    %v9869 = vpop.f32.mrf.mxu0
    %v9870 = vadd.f32 %v6182, %v9869
    %9871 = vmatmul.bf16.gmra.mxu0 %v5614
    %v9872 = vpop.f32.mrf.mxu0
    %v9873 = vadd.f32 %v6182, %v9872
    %v9874 = vpop.f32.mrf.mxu0
    %v9875 = vadd.f32 %v6182, %v9874
    %9876 = vmatmul.bf16.gmra.mxu0 %v5626
    %v9877 = vpop.f32.mrf.mxu0
    %v9878 = vadd.f32 %v6182, %v9877
    %v9879 = vpop.f32.mrf.mxu0
    %v9880 = vadd.f32 %v6182, %v9879
    %9881 = vmatmul.bf16.gmra.mxu0 %v5638
    %v9882 = vpop.f32.mrf.mxu0
    %v9883 = vadd.f32 %v6182, %v9882
    %v9884 = vpop.f32.mrf.mxu0
    %v9885 = vadd.f32 %v6182, %v9884
    %9886 = vmatmul.bf16.gmra.mxu0 %v5650
    %v9887 = vpop.f32.mrf.mxu0
    %v9888 = vadd.f32 %v6182, %v9887
    %v9889 = vpop.f32.mrf.mxu0
    %v9890 = vadd.f32 %v6182, %v9889
    %9891 = vmatmul.bf16.gmra.mxu0 %v5662
    %v9892 = vpop.f32.mrf.mxu0
    %v9893 = vadd.f32 %v6182, %v9892
    %v9894 = vpop.f32.mrf.mxu0
    %v9895 = vadd.f32 %v6182, %v9894
    %9896 = vmatmul.bf16.gmra.mxu0 %v5674
    %v9897 = vpop.f32.mrf.mxu0
    %v9898 = vadd.f32 %v6182, %v9897
    %v9899 = vpop.f32.mrf.mxu0
    %v9900 = vadd.f32 %v6182, %v9899
    %9901 = vmatmul.bf16.gmra.mxu0 %v5686
    %v9902 = vpop.f32.mrf.mxu0
    %v9903 = vadd.f32 %v6182, %v9902
    %v9904 = vpop.f32.mrf.mxu0
    %v9905 = vadd.f32 %v6182, %v9904
    %9906 = vmatmul.bf16.gmra.mxu0 %v5698
    %v9907 = vpop.f32.mrf.mxu0
    %v9908 = vadd.f32 %v6182, %v9907
    %v9909 = vpop.f32.mrf.mxu0
    %v9910 = vadd.f32 %v6182, %v9909
    %9911 = vmatmul.bf16.gmra.mxu0 %v5710
    %v9912 = vpop.f32.mrf.mxu0
    %v9913 = vadd.f32 %v6182, %v9912
    %v9914 = vpop.f32.mrf.mxu0
    %v9915 = vadd.f32 %v6182, %v9914
    %9916 = vmatmul.bf16.gmra.mxu0 %v5722
    %v9917 = vpop.f32.mrf.mxu0
    %v9918 = vadd.f32 %v6182, %v9917
    %v9919 = vpop.f32.mrf.mxu0
    %v9920 = vadd.f32 %v6182, %v9919
    %9921 = vmatmul.bf16.gmra.mxu0 %v5734
    %v9922 = vpop.f32.mrf.mxu0
    %v9923 = vadd.f32 %v6182, %v9922
    %v9924 = vpop.f32.mrf.mxu0
    %v9925 = vadd.f32 %v6182, %v9924
    %9926 = vmatmul.bf16.gmra.mxu0 %v5746
    %v9927 = vpop.f32.mrf.mxu0
    %v9928 = vadd.f32 %v6182, %v9927
    %v9929 = vpop.f32.mrf.mxu0
    %v9930 = vadd.f32 %v6182, %v9929
    %9931 = vmatmul.bf16.gmra.mxu0 %v5758
    %v9932 = vpop.f32.mrf.mxu0
    %v9933 = vadd.f32 %v6182, %v9932
    %v9934 = vpop.f32.mrf.mxu0
    %v9935 = vadd.f32 %v6182, %v9934
    %9936 = vmatmul.bf16.gmra.mxu0 %v5770
    %v9937 = vpop.f32.mrf.mxu0
    %v9938 = vadd.f32 %v6182, %v9937
    %v9939 = vpop.f32.mrf.mxu0
    %v9940 = vadd.f32 %v6182, %v9939
    %9941 = vmatmul.bf16.gmra.mxu0 %v5782
    %v9942 = vpop.f32.mrf.mxu0
    %v9943 = vadd.f32 %v6182, %v9942
    %v9944 = vpop.f32.mrf.mxu0
    %v9945 = vadd.f32 %v6182, %v9944
    %9946 = vdwg.mxu0
    %9947 = vmatpush.bf16.msra.mxu0 %v7193
    %9948 = vmatpush.bf16.msra.mxu0 %v7190
    %9949 = vmatpush.bf16.msra.mxu0 %v7187
    %9950 = vmatpush.bf16.msra.mxu0 %v7184
    %9951 = vmatpush.bf16.msra.mxu0 %v7181
    %9952 = vmatpush.bf16.msra.mxu0 %v7178
    %9953 = vmatpush.bf16.msra.mxu0 %v7175
    %9954 = vmatpush.bf16.msra.mxu0 %v7172
    %9955 = vmatmul.bf16.gmra.mxu0 %v5603
    %v9956 = vpop.f32.mrf.mxu0
    %v9957 = vadd.f32 %v9868, %v9956
    %v9958 = vpop.f32.mrf.mxu0
    %v9959 = vadd.f32 %v9870, %v9958
    %9960 = vmatmul.bf16.gmra.mxu0 %v5615
    %v9961 = vpop.f32.mrf.mxu0
    %v9962 = vadd.f32 %v9873, %v9961
    %v9963 = vpop.f32.mrf.mxu0
    %v9964 = vadd.f32 %v9875, %v9963
    %9965 = vmatmul.bf16.gmra.mxu0 %v5627
    %v9966 = vpop.f32.mrf.mxu0
    %v9967 = vadd.f32 %v9878, %v9966
    %v9968 = vpop.f32.mrf.mxu0
    %v9969 = vadd.f32 %v9880, %v9968
    %9970 = vmatmul.bf16.gmra.mxu0 %v5639
    %v9971 = vpop.f32.mrf.mxu0
    %v9972 = vadd.f32 %v9883, %v9971
    %v9973 = vpop.f32.mrf.mxu0
    %v9974 = vadd.f32 %v9885, %v9973
    %9975 = vmatmul.bf16.gmra.mxu0 %v5651
    %v9976 = vpop.f32.mrf.mxu0
    %v9977 = vadd.f32 %v9888, %v9976
    %v9978 = vpop.f32.mrf.mxu0
    %v9979 = vadd.f32 %v9890, %v9978
    %9980 = vmatmul.bf16.gmra.mxu0 %v5663
    %v9981 = vpop.f32.mrf.mxu0
    %v9982 = vadd.f32 %v9893, %v9981
    %v9983 = vpop.f32.mrf.mxu0
    %v9984 = vadd.f32 %v9895, %v9983
    %9985 = vmatmul.bf16.gmra.mxu0 %v5675
    %v9986 = vpop.f32.mrf.mxu0
    %v9987 = vadd.f32 %v9898, %v9986
    %v9988 = vpop.f32.mrf.mxu0
    %v9989 = vadd.f32 %v9900, %v9988
    %9990 = vmatmul.bf16.gmra.mxu0 %v5687
    %v9991 = vpop.f32.mrf.mxu0
    %v9992 = vadd.f32 %v9903, %v9991
    %v9993 = vpop.f32.mrf.mxu0
    %v9994 = vadd.f32 %v9905, %v9993
    %9995 = vmatmul.bf16.gmra.mxu0 %v5699
    %v9996 = vpop.f32.mrf.mxu0
    %v9997 = vadd.f32 %v9908, %v9996
    %v9998 = vpop.f32.mrf.mxu0
    %v9999 = vadd.f32 %v9910, %v9998
    %10000 = vmatmul.bf16.gmra.mxu0 %v5711
    %v10001 = vpop.f32.mrf.mxu0
    %v10002 = vadd.f32 %v9913, %v10001
    %v10003 = vpop.f32.mrf.mxu0
    %v10004 = vadd.f32 %v9915, %v10003
    %10005 = vmatmul.bf16.gmra.mxu0 %v5723
    %v10006 = vpop.f32.mrf.mxu0
    %v10007 = vadd.f32 %v9918, %v10006
    %v10008 = vpop.f32.mrf.mxu0
    %v10009 = vadd.f32 %v9920, %v10008
    %10010 = vmatmul.bf16.gmra.mxu0 %v5735
    %v10011 = vpop.f32.mrf.mxu0
    %v10012 = vadd.f32 %v9923, %v10011
    %v10013 = vpop.f32.mrf.mxu0
    %v10014 = vadd.f32 %v9925, %v10013
    %10015 = vmatmul.bf16.gmra.mxu0 %v5747
    %v10016 = vpop.f32.mrf.mxu0
    %v10017 = vadd.f32 %v9928, %v10016
    %v10018 = vpop.f32.mrf.mxu0
    %v10019 = vadd.f32 %v9930, %v10018
    %10020 = vmatmul.bf16.gmra.mxu0 %v5759
    %v10021 = vpop.f32.mrf.mxu0
    %v10022 = vadd.f32 %v9933, %v10021
    %v10023 = vpop.f32.mrf.mxu0
    %v10024 = vadd.f32 %v9935, %v10023
    %10025 = vmatmul.bf16.gmra.mxu0 %v5771
    %v10026 = vpop.f32.mrf.mxu0
    %v10027 = vadd.f32 %v9938, %v10026
    %v10028 = vpop.f32.mrf.mxu0
    %v10029 = vadd.f32 %v9940, %v10028
    %10030 = vmatmul.bf16.gmra.mxu0 %v5783
    %v10031 = vpop.f32.mrf.mxu0
    %v10032 = vadd.f32 %v9943, %v10031
    %v10033 = vpop.f32.mrf.mxu0
    %v10034 = vadd.f32 %v9945, %v10033
    %10035 = vdwg.mxu0
    %10036 = vmatpush.bf16.msra.mxu0 %v7217
    %10037 = vmatpush.bf16.msra.mxu0 %v7214
    %10038 = vmatpush.bf16.msra.mxu0 %v7211
    %10039 = vmatpush.bf16.msra.mxu0 %v7208
    %10040 = vmatpush.bf16.msra.mxu0 %v7205
    %10041 = vmatpush.bf16.msra.mxu0 %v7202
    %10042 = vmatpush.bf16.msra.mxu0 %v7199
    %10043 = vmatpush.bf16.msra.mxu0 %v7196
    %10044 = vmatmul.bf16.gmra.mxu0 %v5604
    %v10045 = vpop.f32.mrf.mxu0
    %v10046 = vadd.f32 %v9957, %v10045
    %v10047 = vpop.f32.mrf.mxu0
    %v10048 = vadd.f32 %v9959, %v10047
    %10049 = vmatmul.bf16.gmra.mxu0 %v5616
    %v10050 = vpop.f32.mrf.mxu0
    %v10051 = vadd.f32 %v9962, %v10050
    %v10052 = vpop.f32.mrf.mxu0
    %v10053 = vadd.f32 %v9964, %v10052
    %10054 = vmatmul.bf16.gmra.mxu0 %v5628
    %v10055 = vpop.f32.mrf.mxu0
    %v10056 = vadd.f32 %v9967, %v10055
    %v10057 = vpop.f32.mrf.mxu0
    %v10058 = vadd.f32 %v9969, %v10057
    %10059 = vmatmul.bf16.gmra.mxu0 %v5640
    %v10060 = vpop.f32.mrf.mxu0
    %v10061 = vadd.f32 %v9972, %v10060
    %v10062 = vpop.f32.mrf.mxu0
    %v10063 = vadd.f32 %v9974, %v10062
    %10064 = vmatmul.bf16.gmra.mxu0 %v5652
    %v10065 = vpop.f32.mrf.mxu0
    %v10066 = vadd.f32 %v9977, %v10065
    %v10067 = vpop.f32.mrf.mxu0
    %v10068 = vadd.f32 %v9979, %v10067
    %10069 = vmatmul.bf16.gmra.mxu0 %v5664
    %v10070 = vpop.f32.mrf.mxu0
    %v10071 = vadd.f32 %v9982, %v10070
    %v10072 = vpop.f32.mrf.mxu0
    %v10073 = vadd.f32 %v9984, %v10072
    %10074 = vmatmul.bf16.gmra.mxu0 %v5676
    %v10075 = vpop.f32.mrf.mxu0
    %v10076 = vadd.f32 %v9987, %v10075
    %v10077 = vpop.f32.mrf.mxu0
    %v10078 = vadd.f32 %v9989, %v10077
    %10079 = vmatmul.bf16.gmra.mxu0 %v5688
    %v10080 = vpop.f32.mrf.mxu0
    %v10081 = vadd.f32 %v9992, %v10080
    %v10082 = vpop.f32.mrf.mxu0
    %v10083 = vadd.f32 %v9994, %v10082
    %10084 = vmatmul.bf16.gmra.mxu0 %v5700
    %v10085 = vpop.f32.mrf.mxu0
    %v10086 = vadd.f32 %v9997, %v10085
    %v10087 = vpop.f32.mrf.mxu0
    %v10088 = vadd.f32 %v9999, %v10087
    %10089 = vmatmul.bf16.gmra.mxu0 %v5712
    %v10090 = vpop.f32.mrf.mxu0
    %v10091 = vadd.f32 %v10002, %v10090
    %v10092 = vpop.f32.mrf.mxu0
    %v10093 = vadd.f32 %v10004, %v10092
    %10094 = vmatmul.bf16.gmra.mxu0 %v5724
    %v10095 = vpop.f32.mrf.mxu0
    %v10096 = vadd.f32 %v10007, %v10095
    %v10097 = vpop.f32.mrf.mxu0
    %v10098 = vadd.f32 %v10009, %v10097
    %10099 = vmatmul.bf16.gmra.mxu0 %v5736
    %v10100 = vpop.f32.mrf.mxu0
    %v10101 = vadd.f32 %v10012, %v10100
    %v10102 = vpop.f32.mrf.mxu0
    %v10103 = vadd.f32 %v10014, %v10102
    %10104 = vmatmul.bf16.gmra.mxu0 %v5748
    %v10105 = vpop.f32.mrf.mxu0
    %v10106 = vadd.f32 %v10017, %v10105
    %v10107 = vpop.f32.mrf.mxu0
    %v10108 = vadd.f32 %v10019, %v10107
    %10109 = vmatmul.bf16.gmra.mxu0 %v5760
    %v10110 = vpop.f32.mrf.mxu0
    %v10111 = vadd.f32 %v10022, %v10110
    %v10112 = vpop.f32.mrf.mxu0
    %v10113 = vadd.f32 %v10024, %v10112
    %10114 = vmatmul.bf16.gmra.mxu0 %v5772
    %v10115 = vpop.f32.mrf.mxu0
    %v10116 = vadd.f32 %v10027, %v10115
    %v10117 = vpop.f32.mrf.mxu0
    %v10118 = vadd.f32 %v10029, %v10117
    %10119 = vmatmul.bf16.gmra.mxu0 %v5784
    %v10120 = vpop.f32.mrf.mxu0
    %v10121 = vadd.f32 %v10032, %v10120
    %v10122 = vpop.f32.mrf.mxu0
    %v10123 = vadd.f32 %v10034, %v10122
    %10124 = vdwg.mxu0
    %10125 = vmatpush.bf16.msra.mxu0 %v7241
    %10126 = vmatpush.bf16.msra.mxu0 %v7238
    %10127 = vmatpush.bf16.msra.mxu0 %v7235
    %10128 = vmatpush.bf16.msra.mxu0 %v7232
    %10129 = vmatpush.bf16.msra.mxu0 %v7229
    %10130 = vmatpush.bf16.msra.mxu0 %v7226
    %10131 = vmatpush.bf16.msra.mxu0 %v7223
    %10132 = vmatpush.bf16.msra.mxu0 %v7220
    %10133 = vmatmul.bf16.gmra.mxu0 %v5605
    %v10134 = vpop.f32.mrf.mxu0
    %v10135 = vadd.f32 %v10046, %v10134
    %v10136 = vpop.f32.mrf.mxu0
    %v10137 = vadd.f32 %v10048, %v10136
    %10138 = vmatmul.bf16.gmra.mxu0 %v5617
    %v10139 = vpop.f32.mrf.mxu0
    %v10140 = vadd.f32 %v10051, %v10139
    %v10141 = vpop.f32.mrf.mxu0
    %v10142 = vadd.f32 %v10053, %v10141
    %10143 = vmatmul.bf16.gmra.mxu0 %v5629
    %v10144 = vpop.f32.mrf.mxu0
    %v10145 = vadd.f32 %v10056, %v10144
    %v10146 = vpop.f32.mrf.mxu0
    %v10147 = vadd.f32 %v10058, %v10146
    %10148 = vmatmul.bf16.gmra.mxu0 %v5641
    %v10149 = vpop.f32.mrf.mxu0
    %v10150 = vadd.f32 %v10061, %v10149
    %v10151 = vpop.f32.mrf.mxu0
    %v10152 = vadd.f32 %v10063, %v10151
    %10153 = vmatmul.bf16.gmra.mxu0 %v5653
    %v10154 = vpop.f32.mrf.mxu0
    %v10155 = vadd.f32 %v10066, %v10154
    %v10156 = vpop.f32.mrf.mxu0
    %v10157 = vadd.f32 %v10068, %v10156
    %10158 = vmatmul.bf16.gmra.mxu0 %v5665
    %v10159 = vpop.f32.mrf.mxu0
    %v10160 = vadd.f32 %v10071, %v10159
    %v10161 = vpop.f32.mrf.mxu0
    %v10162 = vadd.f32 %v10073, %v10161
    %10163 = vmatmul.bf16.gmra.mxu0 %v5677
    %v10164 = vpop.f32.mrf.mxu0
    %v10165 = vadd.f32 %v10076, %v10164
    %v10166 = vpop.f32.mrf.mxu0
    %v10167 = vadd.f32 %v10078, %v10166
    %10168 = vmatmul.bf16.gmra.mxu0 %v5689
    %v10169 = vpop.f32.mrf.mxu0
    %v10170 = vadd.f32 %v10081, %v10169
    %v10171 = vpop.f32.mrf.mxu0
    %v10172 = vadd.f32 %v10083, %v10171
    %10173 = vmatmul.bf16.gmra.mxu0 %v5701
    %v10174 = vpop.f32.mrf.mxu0
    %v10175 = vadd.f32 %v10086, %v10174
    %v10176 = vpop.f32.mrf.mxu0
    %v10177 = vadd.f32 %v10088, %v10176
    %10178 = vmatmul.bf16.gmra.mxu0 %v5713
    %v10179 = vpop.f32.mrf.mxu0
    %v10180 = vadd.f32 %v10091, %v10179
    %v10181 = vpop.f32.mrf.mxu0
    %v10182 = vadd.f32 %v10093, %v10181
    %10183 = vmatmul.bf16.gmra.mxu0 %v5725
    %v10184 = vpop.f32.mrf.mxu0
    %v10185 = vadd.f32 %v10096, %v10184
    %v10186 = vpop.f32.mrf.mxu0
    %v10187 = vadd.f32 %v10098, %v10186
    %10188 = vmatmul.bf16.gmra.mxu0 %v5737
    %v10189 = vpop.f32.mrf.mxu0
    %v10190 = vadd.f32 %v10101, %v10189
    %v10191 = vpop.f32.mrf.mxu0
    %v10192 = vadd.f32 %v10103, %v10191
    %10193 = vmatmul.bf16.gmra.mxu0 %v5749
    %v10194 = vpop.f32.mrf.mxu0
    %v10195 = vadd.f32 %v10106, %v10194
    %v10196 = vpop.f32.mrf.mxu0
    %v10197 = vadd.f32 %v10108, %v10196
    %10198 = vmatmul.bf16.gmra.mxu0 %v5761
    %v10199 = vpop.f32.mrf.mxu0
    %v10200 = vadd.f32 %v10111, %v10199
    %v10201 = vpop.f32.mrf.mxu0
    %v10202 = vadd.f32 %v10113, %v10201
    %10203 = vmatmul.bf16.gmra.mxu0 %v5773
    %v10204 = vpop.f32.mrf.mxu0
    %v10205 = vadd.f32 %v10116, %v10204
    %v10206 = vpop.f32.mrf.mxu0
    %v10207 = vadd.f32 %v10118, %v10206
    %10208 = vmatmul.bf16.gmra.mxu0 %v5785
    %v10209 = vpop.f32.mrf.mxu0
    %v10210 = vadd.f32 %v10121, %v10209
    %v10211 = vpop.f32.mrf.mxu0
    %v10212 = vadd.f32 %v10123, %v10211
    %10213 = vdwg.mxu0
    %10214 = vmatpush.bf16.msra.mxu0 %v7265
    %10215 = vmatpush.bf16.msra.mxu0 %v7262
    %10216 = vmatpush.bf16.msra.mxu0 %v7259
    %10217 = vmatpush.bf16.msra.mxu0 %v7256
    %10218 = vmatpush.bf16.msra.mxu0 %v7253
    %10219 = vmatpush.bf16.msra.mxu0 %v7250
    %10220 = vmatpush.bf16.msra.mxu0 %v7247
    %10221 = vmatpush.bf16.msra.mxu0 %v7244
    %10222 = vmatmul.bf16.gmra.mxu0 %v5606
    %v10223 = vpop.f32.mrf.mxu0
    %v10224 = vadd.f32 %v10135, %v10223
    %v10225 = vpop.f32.mrf.mxu0
    %v10226 = vadd.f32 %v10137, %v10225
    %10227 = vmatmul.bf16.gmra.mxu0 %v5618
    %v10228 = vpop.f32.mrf.mxu0
    %v10229 = vadd.f32 %v10140, %v10228
    %v10230 = vpop.f32.mrf.mxu0
    %v10231 = vadd.f32 %v10142, %v10230
    %10232 = vmatmul.bf16.gmra.mxu0 %v5630
    %v10233 = vpop.f32.mrf.mxu0
    %v10234 = vadd.f32 %v10145, %v10233
    %v10235 = vpop.f32.mrf.mxu0
    %v10236 = vadd.f32 %v10147, %v10235
    %10237 = vmatmul.bf16.gmra.mxu0 %v5642
    %v10238 = vpop.f32.mrf.mxu0
    %v10239 = vadd.f32 %v10150, %v10238
    %v10240 = vpop.f32.mrf.mxu0
    %v10241 = vadd.f32 %v10152, %v10240
    %10242 = vmatmul.bf16.gmra.mxu0 %v5654
    %v10243 = vpop.f32.mrf.mxu0
    %v10244 = vadd.f32 %v10155, %v10243
    %v10245 = vpop.f32.mrf.mxu0
    %v10246 = vadd.f32 %v10157, %v10245
    %10247 = vmatmul.bf16.gmra.mxu0 %v5666
    %v10248 = vpop.f32.mrf.mxu0
    %v10249 = vadd.f32 %v10160, %v10248
    %v10250 = vpop.f32.mrf.mxu0
    %v10251 = vadd.f32 %v10162, %v10250
    %10252 = vmatmul.bf16.gmra.mxu0 %v5678
    %v10253 = vpop.f32.mrf.mxu0
    %v10254 = vadd.f32 %v10165, %v10253
    %v10255 = vpop.f32.mrf.mxu0
    %v10256 = vadd.f32 %v10167, %v10255
    %10257 = vmatmul.bf16.gmra.mxu0 %v5690
    %v10258 = vpop.f32.mrf.mxu0
    %v10259 = vadd.f32 %v10170, %v10258
    %v10260 = vpop.f32.mrf.mxu0
    %v10261 = vadd.f32 %v10172, %v10260
    %10262 = vmatmul.bf16.gmra.mxu0 %v5702
    %v10263 = vpop.f32.mrf.mxu0
    %v10264 = vadd.f32 %v10175, %v10263
    %v10265 = vpop.f32.mrf.mxu0
    %v10266 = vadd.f32 %v10177, %v10265
    %10267 = vmatmul.bf16.gmra.mxu0 %v5714
    %v10268 = vpop.f32.mrf.mxu0
    %v10269 = vadd.f32 %v10180, %v10268
    %v10270 = vpop.f32.mrf.mxu0
    %v10271 = vadd.f32 %v10182, %v10270
    %10272 = vmatmul.bf16.gmra.mxu0 %v5726
    %v10273 = vpop.f32.mrf.mxu0
    %v10274 = vadd.f32 %v10185, %v10273
    %v10275 = vpop.f32.mrf.mxu0
    %v10276 = vadd.f32 %v10187, %v10275
    %10277 = vmatmul.bf16.gmra.mxu0 %v5738
    %v10278 = vpop.f32.mrf.mxu0
    %v10279 = vadd.f32 %v10190, %v10278
    %v10280 = vpop.f32.mrf.mxu0
    %v10281 = vadd.f32 %v10192, %v10280
    %10282 = vmatmul.bf16.gmra.mxu0 %v5750
    %v10283 = vpop.f32.mrf.mxu0
    %v10284 = vadd.f32 %v10195, %v10283
    %v10285 = vpop.f32.mrf.mxu0
    %v10286 = vadd.f32 %v10197, %v10285
    %10287 = vmatmul.bf16.gmra.mxu0 %v5762
    %v10288 = vpop.f32.mrf.mxu0
    %v10289 = vadd.f32 %v10200, %v10288
    %v10290 = vpop.f32.mrf.mxu0
    %v10291 = vadd.f32 %v10202, %v10290
    %10292 = vmatmul.bf16.gmra.mxu0 %v5774
    %v10293 = vpop.f32.mrf.mxu0
    %v10294 = vadd.f32 %v10205, %v10293
    %v10295 = vpop.f32.mrf.mxu0
    %v10296 = vadd.f32 %v10207, %v10295
    %10297 = vmatmul.bf16.gmra.mxu0 %v5786
    %v10298 = vpop.f32.mrf.mxu0
    %v10299 = vadd.f32 %v10210, %v10298
    %v10300 = vpop.f32.mrf.mxu0
    %v10301 = vadd.f32 %v10212, %v10300
    %10302 = vdwg.mxu0
    %10303 = vmatpush.bf16.msra.mxu0 %v7289
    %10304 = vmatpush.bf16.msra.mxu0 %v7286
    %10305 = vmatpush.bf16.msra.mxu0 %v7283
    %10306 = vmatpush.bf16.msra.mxu0 %v7280
    %10307 = vmatpush.bf16.msra.mxu0 %v7277
    %10308 = vmatpush.bf16.msra.mxu0 %v7274
    %10309 = vmatpush.bf16.msra.mxu0 %v7271
    %10310 = vmatpush.bf16.msra.mxu0 %v7268
    %10311 = vmatmul.bf16.gmra.mxu0 %v5607
    %v10312 = vpop.f32.mrf.mxu0
    %v10313 = vadd.f32 %v10224, %v10312
    %v10314 = vpop.f32.mrf.mxu0
    %v10315 = vadd.f32 %v10226, %v10314
    %10316 = vmatmul.bf16.gmra.mxu0 %v5619
    %v10317 = vpop.f32.mrf.mxu0
    %v10318 = vadd.f32 %v10229, %v10317
    %v10319 = vpop.f32.mrf.mxu0
    %v10320 = vadd.f32 %v10231, %v10319
    %10321 = vmatmul.bf16.gmra.mxu0 %v5631
    %v10322 = vpop.f32.mrf.mxu0
    %v10323 = vadd.f32 %v10234, %v10322
    %v10324 = vpop.f32.mrf.mxu0
    %v10325 = vadd.f32 %v10236, %v10324
    %10326 = vmatmul.bf16.gmra.mxu0 %v5643
    %v10327 = vpop.f32.mrf.mxu0
    %v10328 = vadd.f32 %v10239, %v10327
    %v10329 = vpop.f32.mrf.mxu0
    %v10330 = vadd.f32 %v10241, %v10329
    %10331 = vmatmul.bf16.gmra.mxu0 %v5655
    %v10332 = vpop.f32.mrf.mxu0
    %v10333 = vadd.f32 %v10244, %v10332
    %v10334 = vpop.f32.mrf.mxu0
    %v10335 = vadd.f32 %v10246, %v10334
    %10336 = vmatmul.bf16.gmra.mxu0 %v5667
    %v10337 = vpop.f32.mrf.mxu0
    %v10338 = vadd.f32 %v10249, %v10337
    %v10339 = vpop.f32.mrf.mxu0
    %v10340 = vadd.f32 %v10251, %v10339
    %10341 = vmatmul.bf16.gmra.mxu0 %v5679
    %v10342 = vpop.f32.mrf.mxu0
    %v10343 = vadd.f32 %v10254, %v10342
    %v10344 = vpop.f32.mrf.mxu0
    %v10345 = vadd.f32 %v10256, %v10344
    %10346 = vmatmul.bf16.gmra.mxu0 %v5691
    %v10347 = vpop.f32.mrf.mxu0
    %v10348 = vadd.f32 %v10259, %v10347
    %v10349 = vpop.f32.mrf.mxu0
    %v10350 = vadd.f32 %v10261, %v10349
    %10351 = vmatmul.bf16.gmra.mxu0 %v5703
    %v10352 = vpop.f32.mrf.mxu0
    %v10353 = vadd.f32 %v10264, %v10352
    %v10354 = vpop.f32.mrf.mxu0
    %v10355 = vadd.f32 %v10266, %v10354
    %10356 = vmatmul.bf16.gmra.mxu0 %v5715
    %v10357 = vpop.f32.mrf.mxu0
    %v10358 = vadd.f32 %v10269, %v10357
    %v10359 = vpop.f32.mrf.mxu0
    %v10360 = vadd.f32 %v10271, %v10359
    %10361 = vmatmul.bf16.gmra.mxu0 %v5727
    %v10362 = vpop.f32.mrf.mxu0
    %v10363 = vadd.f32 %v10274, %v10362
    %v10364 = vpop.f32.mrf.mxu0
    %v10365 = vadd.f32 %v10276, %v10364
    %10366 = vmatmul.bf16.gmra.mxu0 %v5739
    %v10367 = vpop.f32.mrf.mxu0
    %v10368 = vadd.f32 %v10279, %v10367
    %v10369 = vpop.f32.mrf.mxu0
    %v10370 = vadd.f32 %v10281, %v10369
    %10371 = vmatmul.bf16.gmra.mxu0 %v5751
    %v10372 = vpop.f32.mrf.mxu0
    %v10373 = vadd.f32 %v10284, %v10372
    %v10374 = vpop.f32.mrf.mxu0
    %v10375 = vadd.f32 %v10286, %v10374
    %10376 = vmatmul.bf16.gmra.mxu0 %v5763
    %v10377 = vpop.f32.mrf.mxu0
    %v10378 = vadd.f32 %v10289, %v10377
    %v10379 = vpop.f32.mrf.mxu0
    %v10380 = vadd.f32 %v10291, %v10379
    %10381 = vmatmul.bf16.gmra.mxu0 %v5775
    %v10382 = vpop.f32.mrf.mxu0
    %v10383 = vadd.f32 %v10294, %v10382
    %v10384 = vpop.f32.mrf.mxu0
    %v10385 = vadd.f32 %v10296, %v10384
    %10386 = vmatmul.bf16.gmra.mxu0 %v5787
    %v10387 = vpop.f32.mrf.mxu0
    %v10388 = vadd.f32 %v10299, %v10387
    %v10389 = vpop.f32.mrf.mxu0
    %v10390 = vadd.f32 %v10301, %v10389
    %10391 = vdwg.mxu0
    %10392 = vmatpush.bf16.msra.mxu0 %v7313
    %10393 = vmatpush.bf16.msra.mxu0 %v7310
    %10394 = vmatpush.bf16.msra.mxu0 %v7307
    %10395 = vmatpush.bf16.msra.mxu0 %v7304
    %10396 = vmatpush.bf16.msra.mxu0 %v7301
    %10397 = vmatpush.bf16.msra.mxu0 %v7298
    %10398 = vmatpush.bf16.msra.mxu0 %v7295
    %10399 = vmatpush.bf16.msra.mxu0 %v7292
    %10400 = vmatmul.bf16.gmra.mxu0 %v5608
    %v10401 = vpop.f32.mrf.mxu0
    %v10402 = vadd.f32 %v10313, %v10401
    %v10403 = vpop.f32.mrf.mxu0
    %v10404 = vadd.f32 %v10315, %v10403
    %10405 = vmatmul.bf16.gmra.mxu0 %v5620
    %v10406 = vpop.f32.mrf.mxu0
    %v10407 = vadd.f32 %v10318, %v10406
    %v10408 = vpop.f32.mrf.mxu0
    %v10409 = vadd.f32 %v10320, %v10408
    %10410 = vmatmul.bf16.gmra.mxu0 %v5632
    %v10411 = vpop.f32.mrf.mxu0
    %v10412 = vadd.f32 %v10323, %v10411
    %v10413 = vpop.f32.mrf.mxu0
    %v10414 = vadd.f32 %v10325, %v10413
    %10415 = vmatmul.bf16.gmra.mxu0 %v5644
    %v10416 = vpop.f32.mrf.mxu0
    %v10417 = vadd.f32 %v10328, %v10416
    %v10418 = vpop.f32.mrf.mxu0
    %v10419 = vadd.f32 %v10330, %v10418
    %10420 = vmatmul.bf16.gmra.mxu0 %v5656
    %v10421 = vpop.f32.mrf.mxu0
    %v10422 = vadd.f32 %v10333, %v10421
    %v10423 = vpop.f32.mrf.mxu0
    %v10424 = vadd.f32 %v10335, %v10423
    %10425 = vmatmul.bf16.gmra.mxu0 %v5668
    %v10426 = vpop.f32.mrf.mxu0
    %v10427 = vadd.f32 %v10338, %v10426
    %v10428 = vpop.f32.mrf.mxu0
    %v10429 = vadd.f32 %v10340, %v10428
    %10430 = vmatmul.bf16.gmra.mxu0 %v5680
    %v10431 = vpop.f32.mrf.mxu0
    %v10432 = vadd.f32 %v10343, %v10431
    %v10433 = vpop.f32.mrf.mxu0
    %v10434 = vadd.f32 %v10345, %v10433
    %10435 = vmatmul.bf16.gmra.mxu0 %v5692
    %v10436 = vpop.f32.mrf.mxu0
    %v10437 = vadd.f32 %v10348, %v10436
    %v10438 = vpop.f32.mrf.mxu0
    %v10439 = vadd.f32 %v10350, %v10438
    %10440 = vmatmul.bf16.gmra.mxu0 %v5704
    %v10441 = vpop.f32.mrf.mxu0
    %v10442 = vadd.f32 %v10353, %v10441
    %v10443 = vpop.f32.mrf.mxu0
    %v10444 = vadd.f32 %v10355, %v10443
    %10445 = vmatmul.bf16.gmra.mxu0 %v5716
    %v10446 = vpop.f32.mrf.mxu0
    %v10447 = vadd.f32 %v10358, %v10446
    %v10448 = vpop.f32.mrf.mxu0
    %v10449 = vadd.f32 %v10360, %v10448
    %10450 = vmatmul.bf16.gmra.mxu0 %v5728
    %v10451 = vpop.f32.mrf.mxu0
    %v10452 = vadd.f32 %v10363, %v10451
    %v10453 = vpop.f32.mrf.mxu0
    %v10454 = vadd.f32 %v10365, %v10453
    %10455 = vmatmul.bf16.gmra.mxu0 %v5740
    %v10456 = vpop.f32.mrf.mxu0
    %v10457 = vadd.f32 %v10368, %v10456
    %v10458 = vpop.f32.mrf.mxu0
    %v10459 = vadd.f32 %v10370, %v10458
    %10460 = vmatmul.bf16.gmra.mxu0 %v5752
    %v10461 = vpop.f32.mrf.mxu0
    %v10462 = vadd.f32 %v10373, %v10461
    %v10463 = vpop.f32.mrf.mxu0
    %v10464 = vadd.f32 %v10375, %v10463
    %10465 = vmatmul.bf16.gmra.mxu0 %v5764
    %v10466 = vpop.f32.mrf.mxu0
    %v10467 = vadd.f32 %v10378, %v10466
    %v10468 = vpop.f32.mrf.mxu0
    %v10469 = vadd.f32 %v10380, %v10468
    %10470 = vmatmul.bf16.gmra.mxu0 %v5776
    %v10471 = vpop.f32.mrf.mxu0
    %v10472 = vadd.f32 %v10383, %v10471
    %v10473 = vpop.f32.mrf.mxu0
    %v10474 = vadd.f32 %v10385, %v10473
    %10475 = vmatmul.bf16.gmra.mxu0 %v5788
    %v10476 = vpop.f32.mrf.mxu0
    %v10477 = vadd.f32 %v10388, %v10476
    %v10478 = vpop.f32.mrf.mxu0
    %v10479 = vadd.f32 %v10390, %v10478
    %10480 = vdwg.mxu0
    %10481 = vmatpush.bf16.msra.mxu0 %v7337
    %10482 = vmatpush.bf16.msra.mxu0 %v7334
    %10483 = vmatpush.bf16.msra.mxu0 %v7331
    %10484 = vmatpush.bf16.msra.mxu0 %v7328
    %10485 = vmatpush.bf16.msra.mxu0 %v7325
    %10486 = vmatpush.bf16.msra.mxu0 %v7322
    %10487 = vmatpush.bf16.msra.mxu0 %v7319
    %10488 = vmatpush.bf16.msra.mxu0 %v7316
    %10489 = vmatmul.bf16.gmra.mxu0 %v5609
    %v10490 = vpop.f32.mrf.mxu0
    %v10491 = vadd.f32 %v10402, %v10490
    %v10492 = vpop.f32.mrf.mxu0
    %v10493 = vadd.f32 %v10404, %v10492
    %10494 = vmatmul.bf16.gmra.mxu0 %v5621
    %v10495 = vpop.f32.mrf.mxu0
    %v10496 = vadd.f32 %v10407, %v10495
    %v10497 = vpop.f32.mrf.mxu0
    %v10498 = vadd.f32 %v10409, %v10497
    %10499 = vmatmul.bf16.gmra.mxu0 %v5633
    %v10500 = vpop.f32.mrf.mxu0
    %v10501 = vadd.f32 %v10412, %v10500
    %v10502 = vpop.f32.mrf.mxu0
    %v10503 = vadd.f32 %v10414, %v10502
    %10504 = vmatmul.bf16.gmra.mxu0 %v5645
    %v10505 = vpop.f32.mrf.mxu0
    %v10506 = vadd.f32 %v10417, %v10505
    %v10507 = vpop.f32.mrf.mxu0
    %v10508 = vadd.f32 %v10419, %v10507
    %10509 = vmatmul.bf16.gmra.mxu0 %v5657
    %v10510 = vpop.f32.mrf.mxu0
    %v10511 = vadd.f32 %v10422, %v10510
    %v10512 = vpop.f32.mrf.mxu0
    %v10513 = vadd.f32 %v10424, %v10512
    %10514 = vmatmul.bf16.gmra.mxu0 %v5669
    %v10515 = vpop.f32.mrf.mxu0
    %v10516 = vadd.f32 %v10427, %v10515
    %v10517 = vpop.f32.mrf.mxu0
    %v10518 = vadd.f32 %v10429, %v10517
    %10519 = vmatmul.bf16.gmra.mxu0 %v5681
    %v10520 = vpop.f32.mrf.mxu0
    %v10521 = vadd.f32 %v10432, %v10520
    %v10522 = vpop.f32.mrf.mxu0
    %v10523 = vadd.f32 %v10434, %v10522
    %10524 = vmatmul.bf16.gmra.mxu0 %v5693
    %v10525 = vpop.f32.mrf.mxu0
    %v10526 = vadd.f32 %v10437, %v10525
    %v10527 = vpop.f32.mrf.mxu0
    %v10528 = vadd.f32 %v10439, %v10527
    %10529 = vmatmul.bf16.gmra.mxu0 %v5705
    %v10530 = vpop.f32.mrf.mxu0
    %v10531 = vadd.f32 %v10442, %v10530
    %v10532 = vpop.f32.mrf.mxu0
    %v10533 = vadd.f32 %v10444, %v10532
    %10534 = vmatmul.bf16.gmra.mxu0 %v5717
    %v10535 = vpop.f32.mrf.mxu0
    %v10536 = vadd.f32 %v10447, %v10535
    %v10537 = vpop.f32.mrf.mxu0
    %v10538 = vadd.f32 %v10449, %v10537
    %10539 = vmatmul.bf16.gmra.mxu0 %v5729
    %v10540 = vpop.f32.mrf.mxu0
    %v10541 = vadd.f32 %v10452, %v10540
    %v10542 = vpop.f32.mrf.mxu0
    %v10543 = vadd.f32 %v10454, %v10542
    %10544 = vmatmul.bf16.gmra.mxu0 %v5741
    %v10545 = vpop.f32.mrf.mxu0
    %v10546 = vadd.f32 %v10457, %v10545
    %v10547 = vpop.f32.mrf.mxu0
    %v10548 = vadd.f32 %v10459, %v10547
    %10549 = vmatmul.bf16.gmra.mxu0 %v5753
    %v10550 = vpop.f32.mrf.mxu0
    %v10551 = vadd.f32 %v10462, %v10550
    %v10552 = vpop.f32.mrf.mxu0
    %v10553 = vadd.f32 %v10464, %v10552
    %10554 = vmatmul.bf16.gmra.mxu0 %v5765
    %v10555 = vpop.f32.mrf.mxu0
    %v10556 = vadd.f32 %v10467, %v10555
    %v10557 = vpop.f32.mrf.mxu0
    %v10558 = vadd.f32 %v10469, %v10557
    %10559 = vmatmul.bf16.gmra.mxu0 %v5777
    %v10560 = vpop.f32.mrf.mxu0
    %v10561 = vadd.f32 %v10472, %v10560
    %v10562 = vpop.f32.mrf.mxu0
    %v10563 = vadd.f32 %v10474, %v10562
    %10564 = vmatmul.bf16.gmra.mxu0 %v5789
    %v10565 = vpop.f32.mrf.mxu0
    %v10566 = vadd.f32 %v10477, %v10565
    %v10567 = vpop.f32.mrf.mxu0
    %v10568 = vadd.f32 %v10479, %v10567
    %10569 = vdwg.mxu0
    %10570 = vmatpush.bf16.msra.mxu0 %v7361
    %10571 = vmatpush.bf16.msra.mxu0 %v7358
    %10572 = vmatpush.bf16.msra.mxu0 %v7355
    %10573 = vmatpush.bf16.msra.mxu0 %v7352
    %10574 = vmatpush.bf16.msra.mxu0 %v7349
    %10575 = vmatpush.bf16.msra.mxu0 %v7346
    %10576 = vmatpush.bf16.msra.mxu0 %v7343
    %10577 = vmatpush.bf16.msra.mxu0 %v7340
    %10578 = vmatmul.bf16.gmra.mxu0 %v5610
    %v10579 = vpop.f32.mrf.mxu0
    %v10580 = vadd.f32 %v10491, %v10579
    %v10581 = vpop.f32.mrf.mxu0
    %v10582 = vadd.f32 %v10493, %v10581
    %10583 = vmatmul.bf16.gmra.mxu0 %v5622
    %v10584 = vpop.f32.mrf.mxu0
    %v10585 = vadd.f32 %v10496, %v10584
    %v10586 = vpop.f32.mrf.mxu0
    %v10587 = vadd.f32 %v10498, %v10586
    %10588 = vmatmul.bf16.gmra.mxu0 %v5634
    %v10589 = vpop.f32.mrf.mxu0
    %v10590 = vadd.f32 %v10501, %v10589
    %v10591 = vpop.f32.mrf.mxu0
    %v10592 = vadd.f32 %v10503, %v10591
    %10593 = vmatmul.bf16.gmra.mxu0 %v5646
    %v10594 = vpop.f32.mrf.mxu0
    %v10595 = vadd.f32 %v10506, %v10594
    %v10596 = vpop.f32.mrf.mxu0
    %v10597 = vadd.f32 %v10508, %v10596
    %10598 = vmatmul.bf16.gmra.mxu0 %v5658
    %v10599 = vpop.f32.mrf.mxu0
    %v10600 = vadd.f32 %v10511, %v10599
    %v10601 = vpop.f32.mrf.mxu0
    %v10602 = vadd.f32 %v10513, %v10601
    %10603 = vmatmul.bf16.gmra.mxu0 %v5670
    %v10604 = vpop.f32.mrf.mxu0
    %v10605 = vadd.f32 %v10516, %v10604
    %v10606 = vpop.f32.mrf.mxu0
    %v10607 = vadd.f32 %v10518, %v10606
    %10608 = vmatmul.bf16.gmra.mxu0 %v5682
    %v10609 = vpop.f32.mrf.mxu0
    %v10610 = vadd.f32 %v10521, %v10609
    %v10611 = vpop.f32.mrf.mxu0
    %v10612 = vadd.f32 %v10523, %v10611
    %10613 = vmatmul.bf16.gmra.mxu0 %v5694
    %v10614 = vpop.f32.mrf.mxu0
    %v10615 = vadd.f32 %v10526, %v10614
    %v10616 = vpop.f32.mrf.mxu0
    %v10617 = vadd.f32 %v10528, %v10616
    %10618 = vmatmul.bf16.gmra.mxu0 %v5706
    %v10619 = vpop.f32.mrf.mxu0
    %v10620 = vadd.f32 %v10531, %v10619
    %v10621 = vpop.f32.mrf.mxu0
    %v10622 = vadd.f32 %v10533, %v10621
    %10623 = vmatmul.bf16.gmra.mxu0 %v5718
    %v10624 = vpop.f32.mrf.mxu0
    %v10625 = vadd.f32 %v10536, %v10624
    %v10626 = vpop.f32.mrf.mxu0
    %v10627 = vadd.f32 %v10538, %v10626
    %10628 = vmatmul.bf16.gmra.mxu0 %v5730
    %v10629 = vpop.f32.mrf.mxu0
    %v10630 = vadd.f32 %v10541, %v10629
    %v10631 = vpop.f32.mrf.mxu0
    %v10632 = vadd.f32 %v10543, %v10631
    %10633 = vmatmul.bf16.gmra.mxu0 %v5742
    %v10634 = vpop.f32.mrf.mxu0
    %v10635 = vadd.f32 %v10546, %v10634
    %v10636 = vpop.f32.mrf.mxu0
    %v10637 = vadd.f32 %v10548, %v10636
    %10638 = vmatmul.bf16.gmra.mxu0 %v5754
    %v10639 = vpop.f32.mrf.mxu0
    %v10640 = vadd.f32 %v10551, %v10639
    %v10641 = vpop.f32.mrf.mxu0
    %v10642 = vadd.f32 %v10553, %v10641
    %10643 = vmatmul.bf16.gmra.mxu0 %v5766
    %v10644 = vpop.f32.mrf.mxu0
    %v10645 = vadd.f32 %v10556, %v10644
    %v10646 = vpop.f32.mrf.mxu0
    %v10647 = vadd.f32 %v10558, %v10646
    %10648 = vmatmul.bf16.gmra.mxu0 %v5778
    %v10649 = vpop.f32.mrf.mxu0
    %v10650 = vadd.f32 %v10561, %v10649
    %v10651 = vpop.f32.mrf.mxu0
    %v10652 = vadd.f32 %v10563, %v10651
    %10653 = vmatmul.bf16.gmra.mxu0 %v5790
    %v10654 = vpop.f32.mrf.mxu0
    %v10655 = vadd.f32 %v10566, %v10654
    %v10656 = vpop.f32.mrf.mxu0
    %v10657 = vadd.f32 %v10568, %v10656
    %10658 = vdwg.mxu0
    %10659 = vmatpush.bf16.msra.mxu0 %v7385
    %10660 = vmatpush.bf16.msra.mxu0 %v7382
    %10661 = vmatpush.bf16.msra.mxu0 %v7379
    %10662 = vmatpush.bf16.msra.mxu0 %v7376
    %10663 = vmatpush.bf16.msra.mxu0 %v7373
    %10664 = vmatpush.bf16.msra.mxu0 %v7370
    %10665 = vmatpush.bf16.msra.mxu0 %v7367
    %10666 = vmatpush.bf16.msra.mxu0 %v7364
    %10667 = vmatmul.bf16.gmra.mxu0 %v5611
    %v10668 = vpop.f32.mrf.mxu0
    %v10669 = vadd.f32 %v10580, %v10668
    %v10670 = vpop.f32.mrf.mxu0
    %v10671 = vadd.f32 %v10582, %v10670
    %10672 = vmatmul.bf16.gmra.mxu0 %v5623
    %v10673 = vpop.f32.mrf.mxu0
    %v10674 = vadd.f32 %v10585, %v10673
    %v10675 = vpop.f32.mrf.mxu0
    %v10676 = vadd.f32 %v10587, %v10675
    %10677 = vmatmul.bf16.gmra.mxu0 %v5635
    %v10678 = vpop.f32.mrf.mxu0
    %v10679 = vadd.f32 %v10590, %v10678
    %v10680 = vpop.f32.mrf.mxu0
    %v10681 = vadd.f32 %v10592, %v10680
    %10682 = vmatmul.bf16.gmra.mxu0 %v5647
    %v10683 = vpop.f32.mrf.mxu0
    %v10684 = vadd.f32 %v10595, %v10683
    %v10685 = vpop.f32.mrf.mxu0
    %v10686 = vadd.f32 %v10597, %v10685
    %10687 = vmatmul.bf16.gmra.mxu0 %v5659
    %v10688 = vpop.f32.mrf.mxu0
    %v10689 = vadd.f32 %v10600, %v10688
    %v10690 = vpop.f32.mrf.mxu0
    %v10691 = vadd.f32 %v10602, %v10690
    %10692 = vmatmul.bf16.gmra.mxu0 %v5671
    %v10693 = vpop.f32.mrf.mxu0
    %v10694 = vadd.f32 %v10605, %v10693
    %v10695 = vpop.f32.mrf.mxu0
    %v10696 = vadd.f32 %v10607, %v10695
    %10697 = vmatmul.bf16.gmra.mxu0 %v5683
    %v10698 = vpop.f32.mrf.mxu0
    %v10699 = vadd.f32 %v10610, %v10698
    %v10700 = vpop.f32.mrf.mxu0
    %v10701 = vadd.f32 %v10612, %v10700
    %10702 = vmatmul.bf16.gmra.mxu0 %v5695
    %v10703 = vpop.f32.mrf.mxu0
    %v10704 = vadd.f32 %v10615, %v10703
    %v10705 = vpop.f32.mrf.mxu0
    %v10706 = vadd.f32 %v10617, %v10705
    %10707 = vmatmul.bf16.gmra.mxu0 %v5707
    %v10708 = vpop.f32.mrf.mxu0
    %v10709 = vadd.f32 %v10620, %v10708
    %v10710 = vpop.f32.mrf.mxu0
    %v10711 = vadd.f32 %v10622, %v10710
    %10712 = vmatmul.bf16.gmra.mxu0 %v5719
    %v10713 = vpop.f32.mrf.mxu0
    %v10714 = vadd.f32 %v10625, %v10713
    %v10715 = vpop.f32.mrf.mxu0
    %v10716 = vadd.f32 %v10627, %v10715
    %10717 = vmatmul.bf16.gmra.mxu0 %v5731
    %v10718 = vpop.f32.mrf.mxu0
    %v10719 = vadd.f32 %v10630, %v10718
    %v10720 = vpop.f32.mrf.mxu0
    %v10721 = vadd.f32 %v10632, %v10720
    %10722 = vmatmul.bf16.gmra.mxu0 %v5743
    %v10723 = vpop.f32.mrf.mxu0
    %v10724 = vadd.f32 %v10635, %v10723
    %v10725 = vpop.f32.mrf.mxu0
    %v10726 = vadd.f32 %v10637, %v10725
    %10727 = vmatmul.bf16.gmra.mxu0 %v5755
    %v10728 = vpop.f32.mrf.mxu0
    %v10729 = vadd.f32 %v10640, %v10728
    %v10730 = vpop.f32.mrf.mxu0
    %v10731 = vadd.f32 %v10642, %v10730
    %10732 = vmatmul.bf16.gmra.mxu0 %v5767
    %v10733 = vpop.f32.mrf.mxu0
    %v10734 = vadd.f32 %v10645, %v10733
    %v10735 = vpop.f32.mrf.mxu0
    %v10736 = vadd.f32 %v10647, %v10735
    %10737 = vmatmul.bf16.gmra.mxu0 %v5779
    %v10738 = vpop.f32.mrf.mxu0
    %v10739 = vadd.f32 %v10650, %v10738
    %v10740 = vpop.f32.mrf.mxu0
    %v10741 = vadd.f32 %v10652, %v10740
    %10742 = vmatmul.bf16.gmra.mxu0 %v5791
    %v10743 = vpop.f32.mrf.mxu0
    %v10744 = vadd.f32 %v10655, %v10743
    %v10745 = vpop.f32.mrf.mxu0
    %v10746 = vadd.f32 %v10657, %v10745
    %10747 = vdwg.mxu0
    %10748 = vmatpush.bf16.msra.mxu0 %v7409
    %10749 = vmatpush.bf16.msra.mxu0 %v7406
    %10750 = vmatpush.bf16.msra.mxu0 %v7403
    %10751 = vmatpush.bf16.msra.mxu0 %v7400
    %10752 = vmatpush.bf16.msra.mxu0 %v7397
    %10753 = vmatpush.bf16.msra.mxu0 %v7394
    %10754 = vmatpush.bf16.msra.mxu0 %v7391
    %10755 = vmatpush.bf16.msra.mxu0 %v7388
    %10756 = vmatmul.bf16.gmra.mxu0 %v5612
    %v10757 = vpop.f32.mrf.mxu0
    %v10758 = vadd.f32 %v10669, %v10757
    %v10759 = vpop.f32.mrf.mxu0
    %v10760 = vadd.f32 %v10671, %v10759
    %10761 = vmatmul.bf16.gmra.mxu0 %v5624
    %v10762 = vpop.f32.mrf.mxu0
    %v10763 = vadd.f32 %v10674, %v10762
    %v10764 = vpop.f32.mrf.mxu0
    %v10765 = vadd.f32 %v10676, %v10764
    %10766 = vmatmul.bf16.gmra.mxu0 %v5636
    %v10767 = vpop.f32.mrf.mxu0
    %v10768 = vadd.f32 %v10679, %v10767
    %v10769 = vpop.f32.mrf.mxu0
    %v10770 = vadd.f32 %v10681, %v10769
    %10771 = vmatmul.bf16.gmra.mxu0 %v5648
    %v10772 = vpop.f32.mrf.mxu0
    %v10773 = vadd.f32 %v10684, %v10772
    %v10774 = vpop.f32.mrf.mxu0
    %v10775 = vadd.f32 %v10686, %v10774
    %10776 = vmatmul.bf16.gmra.mxu0 %v5660
    %v10777 = vpop.f32.mrf.mxu0
    %v10778 = vadd.f32 %v10689, %v10777
    %v10779 = vpop.f32.mrf.mxu0
    %v10780 = vadd.f32 %v10691, %v10779
    %10781 = vmatmul.bf16.gmra.mxu0 %v5672
    %v10782 = vpop.f32.mrf.mxu0
    %v10783 = vadd.f32 %v10694, %v10782
    %v10784 = vpop.f32.mrf.mxu0
    %v10785 = vadd.f32 %v10696, %v10784
    %10786 = vmatmul.bf16.gmra.mxu0 %v5684
    %v10787 = vpop.f32.mrf.mxu0
    %v10788 = vadd.f32 %v10699, %v10787
    %v10789 = vpop.f32.mrf.mxu0
    %v10790 = vadd.f32 %v10701, %v10789
    %10791 = vmatmul.bf16.gmra.mxu0 %v5696
    %v10792 = vpop.f32.mrf.mxu0
    %v10793 = vadd.f32 %v10704, %v10792
    %v10794 = vpop.f32.mrf.mxu0
    %v10795 = vadd.f32 %v10706, %v10794
    %10796 = vmatmul.bf16.gmra.mxu0 %v5708
    %v10797 = vpop.f32.mrf.mxu0
    %v10798 = vadd.f32 %v10709, %v10797
    %v10799 = vpop.f32.mrf.mxu0
    %v10800 = vadd.f32 %v10711, %v10799
    %10801 = vmatmul.bf16.gmra.mxu0 %v5720
    %v10802 = vpop.f32.mrf.mxu0
    %v10803 = vadd.f32 %v10714, %v10802
    %v10804 = vpop.f32.mrf.mxu0
    %v10805 = vadd.f32 %v10716, %v10804
    %10806 = vmatmul.bf16.gmra.mxu0 %v5732
    %v10807 = vpop.f32.mrf.mxu0
    %v10808 = vadd.f32 %v10719, %v10807
    %v10809 = vpop.f32.mrf.mxu0
    %v10810 = vadd.f32 %v10721, %v10809
    %10811 = vmatmul.bf16.gmra.mxu0 %v5744
    %v10812 = vpop.f32.mrf.mxu0
    %v10813 = vadd.f32 %v10724, %v10812
    %v10814 = vpop.f32.mrf.mxu0
    %v10815 = vadd.f32 %v10726, %v10814
    %10816 = vmatmul.bf16.gmra.mxu0 %v5756
    %v10817 = vpop.f32.mrf.mxu0
    %v10818 = vadd.f32 %v10729, %v10817
    %v10819 = vpop.f32.mrf.mxu0
    %v10820 = vadd.f32 %v10731, %v10819
    %10821 = vmatmul.bf16.gmra.mxu0 %v5768
    %v10822 = vpop.f32.mrf.mxu0
    %v10823 = vadd.f32 %v10734, %v10822
    %v10824 = vpop.f32.mrf.mxu0
    %v10825 = vadd.f32 %v10736, %v10824
    %10826 = vmatmul.bf16.gmra.mxu0 %v5780
    %v10827 = vpop.f32.mrf.mxu0
    %v10828 = vadd.f32 %v10739, %v10827
    %v10829 = vpop.f32.mrf.mxu0
    %v10830 = vadd.f32 %v10741, %v10829
    %10831 = vmatmul.bf16.gmra.mxu0 %v5792
    %v10832 = vpop.f32.mrf.mxu0
    %v10833 = vadd.f32 %v10744, %v10832
    %v10834 = vpop.f32.mrf.mxu0
    %v10835 = vadd.f32 %v10746, %v10834
    %10836 = vdwg.mxu0
    %10837 = vmatpush.bf16.msra.mxu0 %v7433
    %10838 = vmatpush.bf16.msra.mxu0 %v7430
    %10839 = vmatpush.bf16.msra.mxu0 %v7427
    %10840 = vmatpush.bf16.msra.mxu0 %v7424
    %10841 = vmatpush.bf16.msra.mxu0 %v7421
    %10842 = vmatpush.bf16.msra.mxu0 %v7418
    %10843 = vmatpush.bf16.msra.mxu0 %v7415
    %10844 = vmatpush.bf16.msra.mxu0 %v7412
    %10845 = vmatmul.bf16.gmra.mxu0 %v5613
    %v10846 = vpop.f32.mrf.mxu0
    %v10847 = vadd.f32 %v10758, %v10846
    %v10848 = vpop.f32.mrf.mxu0
    %v10849 = vadd.f32 %v10760, %v10848
    %10850 = vmatmul.bf16.gmra.mxu0 %v5625
    %v10851 = vpop.f32.mrf.mxu0
    %v10852 = vadd.f32 %v10763, %v10851
    %v10853 = vpop.f32.mrf.mxu0
    %v10854 = vadd.f32 %v10765, %v10853
    %10855 = vmatmul.bf16.gmra.mxu0 %v5637
    %v10856 = vpop.f32.mrf.mxu0
    %v10857 = vadd.f32 %v10768, %v10856
    %v10858 = vpop.f32.mrf.mxu0
    %v10859 = vadd.f32 %v10770, %v10858
    %10860 = vmatmul.bf16.gmra.mxu0 %v5649
    %v10861 = vpop.f32.mrf.mxu0
    %v10862 = vadd.f32 %v10773, %v10861
    %v10863 = vpop.f32.mrf.mxu0
    %v10864 = vadd.f32 %v10775, %v10863
    %10865 = vmatmul.bf16.gmra.mxu0 %v5661
    %v10866 = vpop.f32.mrf.mxu0
    %v10867 = vadd.f32 %v10778, %v10866
    %v10868 = vpop.f32.mrf.mxu0
    %v10869 = vadd.f32 %v10780, %v10868
    %10870 = vmatmul.bf16.gmra.mxu0 %v5673
    %v10871 = vpop.f32.mrf.mxu0
    %v10872 = vadd.f32 %v10783, %v10871
    %v10873 = vpop.f32.mrf.mxu0
    %v10874 = vadd.f32 %v10785, %v10873
    %10875 = vmatmul.bf16.gmra.mxu0 %v5685
    %v10876 = vpop.f32.mrf.mxu0
    %v10877 = vadd.f32 %v10788, %v10876
    %v10878 = vpop.f32.mrf.mxu0
    %v10879 = vadd.f32 %v10790, %v10878
    %10880 = vmatmul.bf16.gmra.mxu0 %v5697
    %v10881 = vpop.f32.mrf.mxu0
    %v10882 = vadd.f32 %v10793, %v10881
    %v10883 = vpop.f32.mrf.mxu0
    %v10884 = vadd.f32 %v10795, %v10883
    %10885 = vmatmul.bf16.gmra.mxu0 %v5709
    %v10886 = vpop.f32.mrf.mxu0
    %v10887 = vadd.f32 %v10798, %v10886
    %v10888 = vpop.f32.mrf.mxu0
    %v10889 = vadd.f32 %v10800, %v10888
    %10890 = vmatmul.bf16.gmra.mxu0 %v5721
    %v10891 = vpop.f32.mrf.mxu0
    %v10892 = vadd.f32 %v10803, %v10891
    %v10893 = vpop.f32.mrf.mxu0
    %v10894 = vadd.f32 %v10805, %v10893
    %10895 = vmatmul.bf16.gmra.mxu0 %v5733
    %v10896 = vpop.f32.mrf.mxu0
    %v10897 = vadd.f32 %v10808, %v10896
    %v10898 = vpop.f32.mrf.mxu0
    %v10899 = vadd.f32 %v10810, %v10898
    %10900 = vmatmul.bf16.gmra.mxu0 %v5745
    %v10901 = vpop.f32.mrf.mxu0
    %v10902 = vadd.f32 %v10813, %v10901
    %v10903 = vpop.f32.mrf.mxu0
    %v10904 = vadd.f32 %v10815, %v10903
    %10905 = vmatmul.bf16.gmra.mxu0 %v5757
    %v10906 = vpop.f32.mrf.mxu0
    %v10907 = vadd.f32 %v10818, %v10906
    %v10908 = vpop.f32.mrf.mxu0
    %v10909 = vadd.f32 %v10820, %v10908
    %10910 = vmatmul.bf16.gmra.mxu0 %v5769
    %v10911 = vpop.f32.mrf.mxu0
    %v10912 = vadd.f32 %v10823, %v10911
    %v10913 = vpop.f32.mrf.mxu0
    %v10914 = vadd.f32 %v10825, %v10913
    %10915 = vmatmul.bf16.gmra.mxu0 %v5781
    %v10916 = vpop.f32.mrf.mxu0
    %v10917 = vadd.f32 %v10828, %v10916
    %v10918 = vpop.f32.mrf.mxu0
    %v10919 = vadd.f32 %v10830, %v10918
    %10920 = vmatmul.bf16.gmra.mxu0 %v5793
    %v10921 = vpop.f32.mrf.mxu0
    %v10922 = vadd.f32 %v10833, %v10921
    %v10923 = vpop.f32.mrf.mxu0
    %v10924 = vadd.f32 %v10835, %v10923
    %10925 = vdwg.mxu0
    %v10926 = vld [vmem:[#allocation11] sm:$0xff]
    %v10927 = vld [vmem:[#allocation11 + $0x8] sm:$0xff]
    %v10928 = vld [vmem:[#allocation11 + $0x10] sm:$0xff]
    %v10929 = vld [vmem:[#allocation11 + $0x18] sm:$0xff]
    %v10930 = vld [vmem:[#allocation11 + $0x20] sm:$0xff]
    %v10931 = vld [vmem:[#allocation11 + $0x28] sm:$0xff]
    %v10932 = vld [vmem:[#allocation11 + $0x30] sm:$0xff]
    %v10933 = vld [vmem:[#allocation11 + $0x38] sm:$0xff]
    %v10934 = vld [vmem:[#allocation11 + $0x40] sm:$0xff]
    %v10935 = vld [vmem:[#allocation11 + $0x48] sm:$0xff]
    %v10936 = vld [vmem:[#allocation11 + $0x50] sm:$0xff]
    %v10937 = vld [vmem:[#allocation11 + $0x58] sm:$0xff]
    %v10938 = vld [vmem:[#allocation11 + $0x60] sm:$0xff]
    %v10939 = vld [vmem:[#allocation11 + $0x68] sm:$0xff]
    %v10940 = vld [vmem:[#allocation11 + $0x70] sm:$0xff]
    %v10941 = vld [vmem:[#allocation11 + $0x78] sm:$0xff]
    %v10942 = vld [vmem:[#allocation11 + $0x80] sm:$0xff]
    %v10943 = vld [vmem:[#allocation11 + $0x88] sm:$0xff]
    %v10944 = vld [vmem:[#allocation11 + $0x90] sm:$0xff]
    %v10945 = vld [vmem:[#allocation11 + $0x98] sm:$0xff]
    %v10946 = vld [vmem:[#allocation11 + $0xa0] sm:$0xff]
    %v10947 = vld [vmem:[#allocation11 + $0xa8] sm:$0xff]
    %v10948 = vld [vmem:[#allocation11 + $0xb0] sm:$0xff]
    %v10949 = vld [vmem:[#allocation11 + $0xb8] sm:$0xff]
    %v10950 = vld [vmem:[#allocation11 + $0xc0] sm:$0xff]
    %v10951 = vld [vmem:[#allocation11 + $0xc8] sm:$0xff]
    %v10952 = vld [vmem:[#allocation11 + $0xd0] sm:$0xff]
    %v10953 = vld [vmem:[#allocation11 + $0xd8] sm:$0xff]
    %v10954 = vld [vmem:[#allocation11 + $0xe0] sm:$0xff]
    %v10955 = vld [vmem:[#allocation11 + $0xe8] sm:$0xff]
    %v10956 = vld [vmem:[#allocation11 + $0xf0] sm:$0xff]
    %v10957 = vld [vmem:[#allocation11 + $0xf8] sm:$0xff]
    %v10958 = vld [vmem:[#allocation11 + $0x100] sm:$0xff]
    %v10959 = vld [vmem:[#allocation11 + $0x108] sm:$0xff]
    %v10960 = vld [vmem:[#allocation11 + $0x110] sm:$0xff]
    %v10961 = vld [vmem:[#allocation11 + $0x118] sm:$0xff]
    %v10962 = vld [vmem:[#allocation11 + $0x120] sm:$0xff]
    %v10963 = vld [vmem:[#allocation11 + $0x128] sm:$0xff]
    %v10964 = vld [vmem:[#allocation11 + $0x130] sm:$0xff]
    %v10965 = vld [vmem:[#allocation11 + $0x138] sm:$0xff]
    %v10966 = vld [vmem:[#allocation11 + $0x140] sm:$0xff]
    %v10967 = vld [vmem:[#allocation11 + $0x148] sm:$0xff]
    %v10968 = vld [vmem:[#allocation11 + $0x150] sm:$0xff]
    %v10969 = vld [vmem:[#allocation11 + $0x158] sm:$0xff]
    %v10970 = vld [vmem:[#allocation11 + $0x160] sm:$0xff]
    %v10971 = vld [vmem:[#allocation11 + $0x168] sm:$0xff]
    %v10972 = vld [vmem:[#allocation11 + $0x170] sm:$0xff]
    %v10973 = vld [vmem:[#allocation11 + $0x178] sm:$0xff]
    %v10974 = vld [vmem:[#allocation11 + $0x180] sm:$0xff]
    %v10975 = vld [vmem:[#allocation11 + $0x188] sm:$0xff]
    %v10976 = vld [vmem:[#allocation11 + $0x190] sm:$0xff]
    %v10977 = vld [vmem:[#allocation11 + $0x198] sm:$0xff]
    %v10978 = vld [vmem:[#allocation11 + $0x1a0] sm:$0xff]
    %v10979 = vld [vmem:[#allocation11 + $0x1a8] sm:$0xff]
    %v10980 = vld [vmem:[#allocation11 + $0x1b0] sm:$0xff]
    %v10981 = vld [vmem:[#allocation11 + $0x1b8] sm:$0xff]
    %v10982 = vld [vmem:[#allocation11 + $0x1c0] sm:$0xff]
    %v10983 = vld [vmem:[#allocation11 + $0x1c8] sm:$0xff]
    %v10984 = vld [vmem:[#allocation11 + $0x1d0] sm:$0xff]
    %v10985 = vld [vmem:[#allocation11 + $0x1d8] sm:$0xff]
    %v10986 = vld [vmem:[#allocation11 + $0x1e0] sm:$0xff]
    %v10987 = vld [vmem:[#allocation11 + $0x1e8] sm:$0xff]
    %v10988 = vld [vmem:[#allocation11 + $0x1f0] sm:$0xff]
    %v10989 = vld [vmem:[#allocation11 + $0x1f8] sm:$0xff]
    %v10990 = vld [vmem:[#allocation11 + $0x200] sm:$0xff]
    %v10991 = vld [vmem:[#allocation11 + $0x208] sm:$0xff]
    %v10992 = vld [vmem:[#allocation11 + $0x210] sm:$0xff]
    %v10993 = vld [vmem:[#allocation11 + $0x218] sm:$0xff]
    %v10994 = vld [vmem:[#allocation11 + $0x220] sm:$0xff]
    %v10995 = vld [vmem:[#allocation11 + $0x228] sm:$0xff]
    %v10996 = vld [vmem:[#allocation11 + $0x230] sm:$0xff]
    %v10997 = vld [vmem:[#allocation11 + $0x238] sm:$0xff]
    %v10998 = vld [vmem:[#allocation11 + $0x240] sm:$0xff]
    %v10999 = vld [vmem:[#allocation11 + $0x248] sm:$0xff]
    %v11000 = vld [vmem:[#allocation11 + $0x250] sm:$0xff]
    %v11001 = vld [vmem:[#allocation11 + $0x258] sm:$0xff]
    %v11002 = vld [vmem:[#allocation11 + $0x260] sm:$0xff]
    %v11003 = vld [vmem:[#allocation11 + $0x268] sm:$0xff]
    %v11004 = vld [vmem:[#allocation11 + $0x270] sm:$0xff]
    %v11005 = vld [vmem:[#allocation11 + $0x278] sm:$0xff]
    %v11006 = vld [vmem:[#allocation11 + $0x280] sm:$0xff]
    %v11007 = vld [vmem:[#allocation11 + $0x288] sm:$0xff]
    %v11008 = vld [vmem:[#allocation11 + $0x290] sm:$0xff]
    %v11009 = vld [vmem:[#allocation11 + $0x298] sm:$0xff]
    %v11010 = vld [vmem:[#allocation11 + $0x2a0] sm:$0xff]
    %v11011 = vld [vmem:[#allocation11 + $0x2a8] sm:$0xff]
    %v11012 = vld [vmem:[#allocation11 + $0x2b0] sm:$0xff]
    %v11013 = vld [vmem:[#allocation11 + $0x2b8] sm:$0xff]
    %v11014 = vld [vmem:[#allocation11 + $0x2c0] sm:$0xff]
    %v11015 = vld [vmem:[#allocation11 + $0x2c8] sm:$0xff]
    %v11016 = vld [vmem:[#allocation11 + $0x2d0] sm:$0xff]
    %v11017 = vld [vmem:[#allocation11 + $0x2d8] sm:$0xff]
    %v11018 = vld [vmem:[#allocation11 + $0x2e0] sm:$0xff]
    %v11019 = vld [vmem:[#allocation11 + $0x2e8] sm:$0xff]
    %v11020 = vld [vmem:[#allocation11 + $0x2f0] sm:$0xff]
    %v11021 = vld [vmem:[#allocation11 + $0x2f8] sm:$0xff]
    %v11022 = vadd.s32 %v10926, 2147483648
    %vm11024 = vcmp.ge.s32.totalorder %v11022, 3006477107
    %v11025 = vadd.s32 %v10927, 2147483648
    %vm11027 = vcmp.ge.s32.totalorder %v11025, 3006477107
    %v11028 = vadd.s32 %v10928, 2147483648
    %vm11030 = vcmp.ge.s32.totalorder %v11028, 3006477107
    %v11031 = vadd.s32 %v10929, 2147483648
    %vm11033 = vcmp.ge.s32.totalorder %v11031, 3006477107
    %v11034 = vadd.s32 %v10930, 2147483648
    %vm11036 = vcmp.ge.s32.totalorder %v11034, 3006477107
    %v11037 = vadd.s32 %v10931, 2147483648
    %vm11039 = vcmp.ge.s32.totalorder %v11037, 3006477107
    %v11040 = vadd.s32 %v10932, 2147483648
    %vm11042 = vcmp.ge.s32.totalorder %v11040, 3006477107
    %v11043 = vadd.s32 %v10933, 2147483648
    %vm11045 = vcmp.ge.s32.totalorder %v11043, 3006477107
    %v11046 = vadd.s32 %v10934, 2147483648
    %vm11048 = vcmp.ge.s32.totalorder %v11046, 3006477107
    %v11049 = vadd.s32 %v10935, 2147483648
    %vm11051 = vcmp.ge.s32.totalorder %v11049, 3006477107
    %v11052 = vadd.s32 %v10936, 2147483648
    %vm11054 = vcmp.ge.s32.totalorder %v11052, 3006477107
    %v11055 = vadd.s32 %v10937, 2147483648
    %vm11057 = vcmp.ge.s32.totalorder %v11055, 3006477107
    %v11058 = vadd.s32 %v10938, 2147483648
    %vm11060 = vcmp.ge.s32.totalorder %v11058, 3006477107
    %v11061 = vadd.s32 %v10939, 2147483648
    %vm11063 = vcmp.ge.s32.totalorder %v11061, 3006477107
    %v11064 = vadd.s32 %v10940, 2147483648
    %vm11066 = vcmp.ge.s32.totalorder %v11064, 3006477107
    %v11067 = vadd.s32 %v10941, 2147483648
    %vm11069 = vcmp.ge.s32.totalorder %v11067, 3006477107
    %v11070 = vadd.s32 %v10942, 2147483648
    %vm11072 = vcmp.ge.s32.totalorder %v11070, 3006477107
    %v11073 = vadd.s32 %v10943, 2147483648
    %vm11075 = vcmp.ge.s32.totalorder %v11073, 3006477107
    %v11076 = vadd.s32 %v10944, 2147483648
    %vm11078 = vcmp.ge.s32.totalorder %v11076, 3006477107
    %v11079 = vadd.s32 %v10945, 2147483648
    %vm11081 = vcmp.ge.s32.totalorder %v11079, 3006477107
    %v11082 = vadd.s32 %v10946, 2147483648
    %vm11084 = vcmp.ge.s32.totalorder %v11082, 3006477107
    %v11085 = vadd.s32 %v10947, 2147483648
    %vm11087 = vcmp.ge.s32.totalorder %v11085, 3006477107
    %v11088 = vadd.s32 %v10948, 2147483648
    %vm11090 = vcmp.ge.s32.totalorder %v11088, 3006477107
    %v11091 = vadd.s32 %v10949, 2147483648
    %vm11093 = vcmp.ge.s32.totalorder %v11091, 3006477107
    %v11094 = vadd.s32 %v10950, 2147483648
    %vm11096 = vcmp.ge.s32.totalorder %v11094, 3006477107
    %v11097 = vadd.s32 %v10951, 2147483648
    %vm11099 = vcmp.ge.s32.totalorder %v11097, 3006477107
    %v11100 = vadd.s32 %v10952, 2147483648
    %vm11102 = vcmp.ge.s32.totalorder %v11100, 3006477107
    %v11103 = vadd.s32 %v10953, 2147483648
    %vm11105 = vcmp.ge.s32.totalorder %v11103, 3006477107
    %v11106 = vadd.s32 %v10954, 2147483648
    %vm11108 = vcmp.ge.s32.totalorder %v11106, 3006477107
    %v11109 = vadd.s32 %v10955, 2147483648
    %vm11111 = vcmp.ge.s32.totalorder %v11109, 3006477107
    %v11112 = vadd.s32 %v10956, 2147483648
    %vm11114 = vcmp.ge.s32.totalorder %v11112, 3006477107
    %v11115 = vadd.s32 %v10957, 2147483648
    %vm11117 = vcmp.ge.s32.totalorder %v11115, 3006477107
    %v11118 = vadd.s32 %v10958, 2147483648
    %vm11120 = vcmp.ge.s32.totalorder %v11118, 3006477107
    %v11121 = vadd.s32 %v10959, 2147483648
    %vm11123 = vcmp.ge.s32.totalorder %v11121, 3006477107
    %v11124 = vadd.s32 %v10960, 2147483648
    %vm11126 = vcmp.ge.s32.totalorder %v11124, 3006477107
    %v11127 = vadd.s32 %v10961, 2147483648
    %vm11129 = vcmp.ge.s32.totalorder %v11127, 3006477107
    %v11130 = vadd.s32 %v10962, 2147483648
    %vm11132 = vcmp.ge.s32.totalorder %v11130, 3006477107
    %v11133 = vadd.s32 %v10963, 2147483648
    %vm11135 = vcmp.ge.s32.totalorder %v11133, 3006477107
    %v11136 = vadd.s32 %v10964, 2147483648
    %vm11138 = vcmp.ge.s32.totalorder %v11136, 3006477107
    %v11139 = vadd.s32 %v10965, 2147483648
    %vm11141 = vcmp.ge.s32.totalorder %v11139, 3006477107
    %v11142 = vadd.s32 %v10966, 2147483648
    %vm11144 = vcmp.ge.s32.totalorder %v11142, 3006477107
    %v11145 = vadd.s32 %v10967, 2147483648
    %vm11147 = vcmp.ge.s32.totalorder %v11145, 3006477107
    %v11148 = vadd.s32 %v10968, 2147483648
    %vm11150 = vcmp.ge.s32.totalorder %v11148, 3006477107
    %v11151 = vadd.s32 %v10969, 2147483648
    %vm11153 = vcmp.ge.s32.totalorder %v11151, 3006477107
    %v11154 = vadd.s32 %v10970, 2147483648
    %vm11156 = vcmp.ge.s32.totalorder %v11154, 3006477107
    %v11157 = vadd.s32 %v10971, 2147483648
    %vm11159 = vcmp.ge.s32.totalorder %v11157, 3006477107
    %v11160 = vadd.s32 %v10972, 2147483648
    %vm11162 = vcmp.ge.s32.totalorder %v11160, 3006477107
    %v11163 = vadd.s32 %v10973, 2147483648
    %vm11165 = vcmp.ge.s32.totalorder %v11163, 3006477107
    %v11166 = vadd.s32 %v10974, 2147483648
    %vm11168 = vcmp.ge.s32.totalorder %v11166, 3006477107
    %v11169 = vadd.s32 %v10975, 2147483648
    %vm11171 = vcmp.ge.s32.totalorder %v11169, 3006477107
    %v11172 = vadd.s32 %v10976, 2147483648
    %vm11174 = vcmp.ge.s32.totalorder %v11172, 3006477107
    %v11175 = vadd.s32 %v10977, 2147483648
    %vm11177 = vcmp.ge.s32.totalorder %v11175, 3006477107
    %v11178 = vadd.s32 %v10978, 2147483648
    %vm11180 = vcmp.ge.s32.totalorder %v11178, 3006477107
    %v11181 = vadd.s32 %v10979, 2147483648
    %vm11183 = vcmp.ge.s32.totalorder %v11181, 3006477107
    %v11184 = vadd.s32 %v10980, 2147483648
    %vm11186 = vcmp.ge.s32.totalorder %v11184, 3006477107
    %v11187 = vadd.s32 %v10981, 2147483648
    %vm11189 = vcmp.ge.s32.totalorder %v11187, 3006477107
    %v11190 = vadd.s32 %v10982, 2147483648
    %vm11192 = vcmp.ge.s32.totalorder %v11190, 3006477107
    %v11193 = vadd.s32 %v10983, 2147483648
    %vm11195 = vcmp.ge.s32.totalorder %v11193, 3006477107
    %v11196 = vadd.s32 %v10984, 2147483648
    %vm11198 = vcmp.ge.s32.totalorder %v11196, 3006477107
    %v11199 = vadd.s32 %v10985, 2147483648
    %vm11201 = vcmp.ge.s32.totalorder %v11199, 3006477107
    %v11202 = vadd.s32 %v10986, 2147483648
    %vm11204 = vcmp.ge.s32.totalorder %v11202, 3006477107
    %v11205 = vadd.s32 %v10987, 2147483648
    %vm11207 = vcmp.ge.s32.totalorder %v11205, 3006477107
    %v11208 = vadd.s32 %v10988, 2147483648
    %vm11210 = vcmp.ge.s32.totalorder %v11208, 3006477107
    %v11211 = vadd.s32 %v10989, 2147483648
    %vm11213 = vcmp.ge.s32.totalorder %v11211, 3006477107
    %v11214 = vadd.s32 %v10990, 2147483648
    %vm11216 = vcmp.ge.s32.totalorder %v11214, 3006477107
    %v11217 = vadd.s32 %v10991, 2147483648
    %vm11219 = vcmp.ge.s32.totalorder %v11217, 3006477107
    %v11220 = vadd.s32 %v10992, 2147483648
    %vm11222 = vcmp.ge.s32.totalorder %v11220, 3006477107
    %v11223 = vadd.s32 %v10993, 2147483648
    %vm11225 = vcmp.ge.s32.totalorder %v11223, 3006477107
    %v11226 = vadd.s32 %v10994, 2147483648
    %vm11228 = vcmp.ge.s32.totalorder %v11226, 3006477107
    %v11229 = vadd.s32 %v10995, 2147483648
    %vm11231 = vcmp.ge.s32.totalorder %v11229, 3006477107
    %v11232 = vadd.s32 %v10996, 2147483648
    %vm11234 = vcmp.ge.s32.totalorder %v11232, 3006477107
    %v11235 = vadd.s32 %v10997, 2147483648
    %vm11237 = vcmp.ge.s32.totalorder %v11235, 3006477107
    %v11238 = vadd.s32 %v10998, 2147483648
    %vm11240 = vcmp.ge.s32.totalorder %v11238, 3006477107
    %v11241 = vadd.s32 %v10999, 2147483648
    %vm11243 = vcmp.ge.s32.totalorder %v11241, 3006477107
    %v11244 = vadd.s32 %v11000, 2147483648
    %vm11246 = vcmp.ge.s32.totalorder %v11244, 3006477107
    %v11247 = vadd.s32 %v11001, 2147483648
    %vm11249 = vcmp.ge.s32.totalorder %v11247, 3006477107
    %v11250 = vadd.s32 %v11002, 2147483648
    %vm11252 = vcmp.ge.s32.totalorder %v11250, 3006477107
    %v11253 = vadd.s32 %v11003, 2147483648
    %vm11255 = vcmp.ge.s32.totalorder %v11253, 3006477107
    %v11256 = vadd.s32 %v11004, 2147483648
    %vm11258 = vcmp.ge.s32.totalorder %v11256, 3006477107
    %v11259 = vadd.s32 %v11005, 2147483648
    %vm11261 = vcmp.ge.s32.totalorder %v11259, 3006477107
    %v11262 = vadd.s32 %v11006, 2147483648
    %vm11264 = vcmp.ge.s32.totalorder %v11262, 3006477107
    %v11265 = vadd.s32 %v11007, 2147483648
    %vm11267 = vcmp.ge.s32.totalorder %v11265, 3006477107
    %v11268 = vadd.s32 %v11008, 2147483648
    %vm11270 = vcmp.ge.s32.totalorder %v11268, 3006477107
    %v11271 = vadd.s32 %v11009, 2147483648
    %vm11273 = vcmp.ge.s32.totalorder %v11271, 3006477107
    %v11274 = vadd.s32 %v11010, 2147483648
    %vm11276 = vcmp.ge.s32.totalorder %v11274, 3006477107
    %v11277 = vadd.s32 %v11011, 2147483648
    %vm11279 = vcmp.ge.s32.totalorder %v11277, 3006477107
    %v11280 = vadd.s32 %v11012, 2147483648
    %vm11282 = vcmp.ge.s32.totalorder %v11280, 3006477107
    %v11283 = vadd.s32 %v11013, 2147483648
    %vm11285 = vcmp.ge.s32.totalorder %v11283, 3006477107
    %v11286 = vadd.s32 %v11014, 2147483648
    %vm11288 = vcmp.ge.s32.totalorder %v11286, 3006477107
    %v11289 = vadd.s32 %v11015, 2147483648
    %vm11291 = vcmp.ge.s32.totalorder %v11289, 3006477107
    %v11292 = vadd.s32 %v11016, 2147483648
    %vm11294 = vcmp.ge.s32.totalorder %v11292, 3006477107
    %v11295 = vadd.s32 %v11017, 2147483648
    %vm11297 = vcmp.ge.s32.totalorder %v11295, 3006477107
    %v11298 = vadd.s32 %v11018, 2147483648
    %vm11300 = vcmp.ge.s32.totalorder %v11298, 3006477107
    %v11301 = vadd.s32 %v11019, 2147483648
    %vm11303 = vcmp.ge.s32.totalorder %v11301, 3006477107
    %v11304 = vadd.s32 %v11020, 2147483648
    %vm11306 = vcmp.ge.s32.totalorder %v11304, 3006477107
    %v11307 = vadd.s32 %v11021, 2147483648
    %vm11309 = vcmp.ge.s32.totalorder %v11307, 3006477107
    %v11310 = vmul.f32 %v8711, 1.25
    %v11311 = vmul.f32 %v9779, 1.25
    %v11312 = vmul.f32 %v10847, 1.25
    %v11313 = vmul.f32 %v8713, 1.25
    %v11314 = vmul.f32 %v9781, 1.25
    %v11315 = vmul.f32 %v10849, 1.25
    %v11316 = vmul.f32 %v8716, 1.25
    %v11317 = vmul.f32 %v9784, 1.25
    %v11318 = vmul.f32 %v10852, 1.25
    %v11319 = vmul.f32 %v8718, 1.25
    %v11320 = vmul.f32 %v9786, 1.25
    %v11321 = vmul.f32 %v10854, 1.25
    %v11322 = vmul.f32 %v8721, 1.25
    %v11323 = vmul.f32 %v9789, 1.25
    %v11324 = vmul.f32 %v10857, 1.25
    %v11325 = vmul.f32 %v8723, 1.25
    %v11326 = vmul.f32 %v9791, 1.25
    %v11327 = vmul.f32 %v10859, 1.25
    %v11328 = vmul.f32 %v8726, 1.25
    %v11329 = vmul.f32 %v9794, 1.25
    %v11330 = vmul.f32 %v10862, 1.25
    %v11331 = vmul.f32 %v8728, 1.25
    %v11332 = vmul.f32 %v9796, 1.25
    %v11333 = vmul.f32 %v10864, 1.25
    %v11334 = vmul.f32 %v8731, 1.25
    %v11335 = vmul.f32 %v9799, 1.25
    %v11336 = vmul.f32 %v10867, 1.25
    %v11337 = vmul.f32 %v8733, 1.25
    %v11338 = vmul.f32 %v9801, 1.25
    %v11339 = vmul.f32 %v10869, 1.25
    %v11340 = vmul.f32 %v8736, 1.25
    %v11341 = vmul.f32 %v9804, 1.25
    %v11342 = vmul.f32 %v10872, 1.25
    %v11343 = vmul.f32 %v8738, 1.25
    %v11344 = vmul.f32 %v9806, 1.25
    %v11345 = vmul.f32 %v10874, 1.25
    %v11346 = vmul.f32 %v8741, 1.25
    %v11347 = vmul.f32 %v9809, 1.25
    %v11348 = vmul.f32 %v10877, 1.25
    %v11349 = vmul.f32 %v8743, 1.25
    %v11350 = vmul.f32 %v9811, 1.25
    %v11351 = vmul.f32 %v10879, 1.25
    %v11352 = vmul.f32 %v8746, 1.25
    %v11353 = vmul.f32 %v9814, 1.25
    %v11354 = vmul.f32 %v10882, 1.25
    %v11355 = vmul.f32 %v8748, 1.25
    %v11356 = vmul.f32 %v9816, 1.25
    %v11357 = vmul.f32 %v10884, 1.25
    %v11358 = vmul.f32 %v8751, 1.25
    %v11359 = vmul.f32 %v9819, 1.25
    %v11360 = vmul.f32 %v10887, 1.25
    %v11361 = vmul.f32 %v8753, 1.25
    %v11362 = vmul.f32 %v9821, 1.25
    %v11363 = vmul.f32 %v10889, 1.25
    %v11364 = vmul.f32 %v8756, 1.25
    %v11365 = vmul.f32 %v9824, 1.25
    %v11366 = vmul.f32 %v10892, 1.25
    %v11367 = vmul.f32 %v8758, 1.25
    %v11368 = vmul.f32 %v9826, 1.25
    %v11369 = vmul.f32 %v10894, 1.25
    %v11370 = vmul.f32 %v8761, 1.25
    %v11371 = vmul.f32 %v9829, 1.25
    %v11372 = vmul.f32 %v10897, 1.25
    %v11373 = vmul.f32 %v8763, 1.25
    %v11374 = vmul.f32 %v9831, 1.25
    %v11375 = vmul.f32 %v10899, 1.25
    %v11376 = vmul.f32 %v8766, 1.25
    %v11377 = vmul.f32 %v9834, 1.25
    %v11378 = vmul.f32 %v10902, 1.25
    %v11379 = vmul.f32 %v8768, 1.25
    %v11380 = vmul.f32 %v9836, 1.25
    %v11381 = vmul.f32 %v10904, 1.25
    %v11382 = vmul.f32 %v8771, 1.25
    %v11383 = vmul.f32 %v9839, 1.25
    %v11384 = vmul.f32 %v10907, 1.25
    %v11385 = vmul.f32 %v8773, 1.25
    %v11386 = vmul.f32 %v9841, 1.25
    %v11387 = vmul.f32 %v10909, 1.25
    %v11388 = vmul.f32 %v8776, 1.25
    %v11389 = vmul.f32 %v9844, 1.25
    %v11390 = vmul.f32 %v10912, 1.25
    %v11391 = vmul.f32 %v8778, 1.25
    %v11392 = vmul.f32 %v9846, 1.25
    %v11393 = vmul.f32 %v10914, 1.25
    %v11394 = vmul.f32 %v8781, 1.25
    %v11395 = vmul.f32 %v9849, 1.25
    %v11396 = vmul.f32 %v10917, 1.25
    %v11397 = vmul.f32 %v8783, 1.25
    %v11398 = vmul.f32 %v9851, 1.25
    %v11399 = vmul.f32 %v10919, 1.25
    %v11400 = vmul.f32 %v8786, 1.25
    %v11401 = vmul.f32 %v9854, 1.25
    %v11402 = vmul.f32 %v10922, 1.25
    %v11403 = vmul.f32 %v8788, 1.25
    %v11404 = vmul.f32 %v9856, 1.25
    %v11405 = vmul.f32 %v10924, 1.25
    %v11406 = vsel %vm11024, %v11310, 0.0
    %v11407 = vsel %vm11027, %v11311, 0.0
    %v11408 = vsel %vm11030, %v11312, 0.0
    %v11409 = vsel %vm11033, %v11313, 0.0
    %v11410 = vsel %vm11036, %v11314, 0.0
    %v11411 = vsel %vm11039, %v11315, 0.0
    %v11412 = vsel %vm11042, %v11316, 0.0
    %v11413 = vsel %vm11045, %v11317, 0.0
    %v11414 = vsel %vm11048, %v11318, 0.0
    %v11415 = vsel %vm11051, %v11319, 0.0
    %v11416 = vsel %vm11054, %v11320, 0.0
    %v11417 = vsel %vm11057, %v11321, 0.0
    %v11418 = vsel %vm11060, %v11322, 0.0
    %v11419 = vsel %vm11063, %v11323, 0.0
    %v11420 = vsel %vm11066, %v11324, 0.0
    %v11421 = vsel %vm11069, %v11325, 0.0
    %v11422 = vsel %vm11072, %v11326, 0.0
    %v11423 = vsel %vm11075, %v11327, 0.0
    %v11424 = vsel %vm11078, %v11328, 0.0
    %v11425 = vsel %vm11081, %v11329, 0.0
    %v11426 = vsel %vm11084, %v11330, 0.0
    %v11427 = vsel %vm11087, %v11331, 0.0
    %v11428 = vsel %vm11090, %v11332, 0.0
    %v11429 = vsel %vm11093, %v11333, 0.0
    %v11430 = vsel %vm11096, %v11334, 0.0
    %v11431 = vsel %vm11099, %v11335, 0.0
    %v11432 = vsel %vm11102, %v11336, 0.0
    %v11433 = vsel %vm11105, %v11337, 0.0
    %v11434 = vsel %vm11108, %v11338, 0.0
    %v11435 = vsel %vm11111, %v11339, 0.0
    %v11436 = vsel %vm11114, %v11340, 0.0
    %v11437 = vsel %vm11117, %v11341, 0.0
    %v11438 = vsel %vm11120, %v11342, 0.0
    %v11439 = vsel %vm11123, %v11343, 0.0
    %v11440 = vsel %vm11126, %v11344, 0.0
    %v11441 = vsel %vm11129, %v11345, 0.0
    %v11442 = vsel %vm11132, %v11346, 0.0
    %v11443 = vsel %vm11135, %v11347, 0.0
    %v11444 = vsel %vm11138, %v11348, 0.0
    %v11445 = vsel %vm11141, %v11349, 0.0
    %v11446 = vsel %vm11144, %v11350, 0.0
    %v11447 = vsel %vm11147, %v11351, 0.0
    %v11448 = vsel %vm11150, %v11352, 0.0
    %v11449 = vsel %vm11153, %v11353, 0.0
    %v11450 = vsel %vm11156, %v11354, 0.0
    %v11451 = vsel %vm11159, %v11355, 0.0
    %v11452 = vsel %vm11162, %v11356, 0.0
    %v11453 = vsel %vm11165, %v11357, 0.0
    %v11454 = vsel %vm11168, %v11358, 0.0
    %v11455 = vsel %vm11171, %v11359, 0.0
    %v11456 = vsel %vm11174, %v11360, 0.0
    %v11457 = vsel %vm11177, %v11361, 0.0
    %v11458 = vsel %vm11180, %v11362, 0.0
    %v11459 = vsel %vm11183, %v11363, 0.0
    %v11460 = vsel %vm11186, %v11364, 0.0
    %v11461 = vsel %vm11189, %v11365, 0.0
    %v11462 = vsel %vm11192, %v11366, 0.0
    %v11463 = vsel %vm11195, %v11367, 0.0
    %v11464 = vsel %vm11198, %v11368, 0.0
    %v11465 = vsel %vm11201, %v11369, 0.0
    %v11466 = vsel %vm11204, %v11370, 0.0
    %v11467 = vsel %vm11207, %v11371, 0.0
    %v11468 = vsel %vm11210, %v11372, 0.0
    %v11469 = vsel %vm11213, %v11373, 0.0
    %v11470 = vsel %vm11216, %v11374, 0.0
    %v11471 = vsel %vm11219, %v11375, 0.0
    %v11472 = vsel %vm11222, %v11376, 0.0
    %v11473 = vsel %vm11225, %v11377, 0.0
    %v11474 = vsel %vm11228, %v11378, 0.0
    %v11475 = vsel %vm11231, %v11379, 0.0
    %v11476 = vsel %vm11234, %v11380, 0.0
    %v11477 = vsel %vm11237, %v11381, 0.0
    %v11478 = vsel %vm11240, %v11382, 0.0
    %v11479 = vsel %vm11243, %v11383, 0.0
    %v11480 = vsel %vm11246, %v11384, 0.0
    %v11481 = vsel %vm11249, %v11385, 0.0
    %v11482 = vsel %vm11252, %v11386, 0.0
    %v11483 = vsel %vm11255, %v11387, 0.0
    %v11484 = vsel %vm11258, %v11388, 0.0
    %v11485 = vsel %vm11261, %v11389, 0.0
    %v11486 = vsel %vm11264, %v11390, 0.0
    %v11487 = vsel %vm11267, %v11391, 0.0
    %v11488 = vsel %vm11270, %v11392, 0.0
    %v11489 = vsel %vm11273, %v11393, 0.0
    %v11490 = vsel %vm11276, %v11394, 0.0
    %v11491 = vsel %vm11279, %v11395, 0.0
    %v11492 = vsel %vm11282, %v11396, 0.0
    %v11493 = vsel %vm11285, %v11397, 0.0
    %v11494 = vsel %vm11288, %v11398, 0.0
    %v11495 = vsel %vm11291, %v11399, 0.0
    %v11496 = vsel %vm11294, %v11400, 0.0
    %v11497 = vsel %vm11297, %v11401, 0.0
    %v11498 = vsel %vm11300, %v11402, 0.0
    %v11499 = vsel %vm11303, %v11403, 0.0
    %v11500 = vsel %vm11306, %v11404, 0.0
    %v11501 = vsel %vm11309, %v11405, 0.0
    %11502 = vst [vmem:[#allocation13] sm:$0xff] %v11406
    %11503 = vst [vmem:[#allocation13 + $0x8] sm:$0xff] %v11407
    %11504 = vst [vmem:[#allocation13 + $0x10] sm:$0xff] %v11408
    %11505 = vst [vmem:[#allocation13 + $0x18] sm:$0xff] %v11409
    %11506 = vst [vmem:[#allocation13 + $0x20] sm:$0xff] %v11410
    %11507 = vst [vmem:[#allocation13 + $0x28] sm:$0xff] %v11411
    %11508 = vst [vmem:[#allocation13 + $0x30] sm:$0xff] %v11412
    %11509 = vst [vmem:[#allocation13 + $0x38] sm:$0xff] %v11413
    %11510 = vst [vmem:[#allocation13 + $0x40] sm:$0xff] %v11414
    %11511 = vst [vmem:[#allocation13 + $0x48] sm:$0xff] %v11415
    %11512 = vst [vmem:[#allocation13 + $0x50] sm:$0xff] %v11416
    %11513 = vst [vmem:[#allocation13 + $0x58] sm:$0xff] %v11417
    %11514 = vst [vmem:[#allocation13 + $0x60] sm:$0xff] %v11418
    %11515 = vst [vmem:[#allocation13 + $0x68] sm:$0xff] %v11419
    %11516 = vst [vmem:[#allocation13 + $0x70] sm:$0xff] %v11420
    %11517 = vst [vmem:[#allocation13 + $0x78] sm:$0xff] %v11421
    %11518 = vst [vmem:[#allocation13 + $0x80] sm:$0xff] %v11422
    %11519 = vst [vmem:[#allocation13 + $0x88] sm:$0xff] %v11423
    %11520 = vst [vmem:[#allocation13 + $0x90] sm:$0xff] %v11424
    %11521 = vst [vmem:[#allocation13 + $0x98] sm:$0xff] %v11425
    %11522 = vst [vmem:[#allocation13 + $0xa0] sm:$0xff] %v11426
    %11523 = vst [vmem:[#allocation13 + $0xa8] sm:$0xff] %v11427
    %11524 = vst [vmem:[#allocation13 + $0xb0] sm:$0xff] %v11428
    %11525 = vst [vmem:[#allocation13 + $0xb8] sm:$0xff] %v11429
    %11526 = vst [vmem:[#allocation13 + $0xc0] sm:$0xff] %v11430
    %11527 = vst [vmem:[#allocation13 + $0xc8] sm:$0xff] %v11431
    %11528 = vst [vmem:[#allocation13 + $0xd0] sm:$0xff] %v11432
    %11529 = vst [vmem:[#allocation13 + $0xd8] sm:$0xff] %v11433
    %11530 = vst [vmem:[#allocation13 + $0xe0] sm:$0xff] %v11434
    %11531 = vst [vmem:[#allocation13 + $0xe8] sm:$0xff] %v11435
    %11532 = vst [vmem:[#allocation13 + $0xf0] sm:$0xff] %v11436
    %11533 = vst [vmem:[#allocation13 + $0xf8] sm:$0xff] %v11437
    %11534 = vst [vmem:[#allocation13 + $0x100] sm:$0xff] %v11438
    %11535 = vst [vmem:[#allocation13 + $0x108] sm:$0xff] %v11439
    %11536 = vst [vmem:[#allocation13 + $0x110] sm:$0xff] %v11440
    %11537 = vst [vmem:[#allocation13 + $0x118] sm:$0xff] %v11441
    %11538 = vst [vmem:[#allocation13 + $0x120] sm:$0xff] %v11442
    %11539 = vst [vmem:[#allocation13 + $0x128] sm:$0xff] %v11443
    %11540 = vst [vmem:[#allocation13 + $0x130] sm:$0xff] %v11444
    %11541 = vst [vmem:[#allocation13 + $0x138] sm:$0xff] %v11445
    %11542 = vst [vmem:[#allocation13 + $0x140] sm:$0xff] %v11446
    %11543 = vst [vmem:[#allocation13 + $0x148] sm:$0xff] %v11447
    %11544 = vst [vmem:[#allocation13 + $0x150] sm:$0xff] %v11448
    %11545 = vst [vmem:[#allocation13 + $0x158] sm:$0xff] %v11449
    %11546 = vst [vmem:[#allocation13 + $0x160] sm:$0xff] %v11450
    %11547 = vst [vmem:[#allocation13 + $0x168] sm:$0xff] %v11451
    %11548 = vst [vmem:[#allocation13 + $0x170] sm:$0xff] %v11452
    %11549 = vst [vmem:[#allocation13 + $0x178] sm:$0xff] %v11453
    %11550 = vst [vmem:[#allocation13 + $0x180] sm:$0xff] %v11454
    %11551 = vst [vmem:[#allocation13 + $0x188] sm:$0xff] %v11455
    %11552 = vst [vmem:[#allocation13 + $0x190] sm:$0xff] %v11456
    %11553 = vst [vmem:[#allocation13 + $0x198] sm:$0xff] %v11457
    %11554 = vst [vmem:[#allocation13 + $0x1a0] sm:$0xff] %v11458
    %11555 = vst [vmem:[#allocation13 + $0x1a8] sm:$0xff] %v11459
    %11556 = vst [vmem:[#allocation13 + $0x1b0] sm:$0xff] %v11460
    %11557 = vst [vmem:[#allocation13 + $0x1b8] sm:$0xff] %v11461
    %11558 = vst [vmem:[#allocation13 + $0x1c0] sm:$0xff] %v11462
    %11559 = vst [vmem:[#allocation13 + $0x1c8] sm:$0xff] %v11463
    %11560 = vst [vmem:[#allocation13 + $0x1d0] sm:$0xff] %v11464
    %11561 = vst [vmem:[#allocation13 + $0x1d8] sm:$0xff] %v11465
    %11562 = vst [vmem:[#allocation13 + $0x1e0] sm:$0xff] %v11466
    %11563 = vst [vmem:[#allocation13 + $0x1e8] sm:$0xff] %v11467
    %11564 = vst [vmem:[#allocation13 + $0x1f0] sm:$0xff] %v11468
    %11565 = vst [vmem:[#allocation13 + $0x1f8] sm:$0xff] %v11469
    %11566 = vst [vmem:[#allocation13 + $0x200] sm:$0xff] %v11470
    %11567 = vst [vmem:[#allocation13 + $0x208] sm:$0xff] %v11471
    %11568 = vst [vmem:[#allocation13 + $0x210] sm:$0xff] %v11472
    %11569 = vst [vmem:[#allocation13 + $0x218] sm:$0xff] %v11473
    %11570 = vst [vmem:[#allocation13 + $0x220] sm:$0xff] %v11474
    %11571 = vst [vmem:[#allocation13 + $0x228] sm:$0xff] %v11475
    %11572 = vst [vmem:[#allocation13 + $0x230] sm:$0xff] %v11476
    %11573 = vst [vmem:[#allocation13 + $0x238] sm:$0xff] %v11477
    %11574 = vst [vmem:[#allocation13 + $0x240] sm:$0xff] %v11478
    %11575 = vst [vmem:[#allocation13 + $0x248] sm:$0xff] %v11479
    %11576 = vst [vmem:[#allocation13 + $0x250] sm:$0xff] %v11480
    %11577 = vst [vmem:[#allocation13 + $0x258] sm:$0xff] %v11481
    %11578 = vst [vmem:[#allocation13 + $0x260] sm:$0xff] %v11482
    %11579 = vst [vmem:[#allocation13 + $0x268] sm:$0xff] %v11483
    %11580 = vst [vmem:[#allocation13 + $0x270] sm:$0xff] %v11484
    %11581 = vst [vmem:[#allocation13 + $0x278] sm:$0xff] %v11485
    %11582 = vst [vmem:[#allocation13 + $0x280] sm:$0xff] %v11486
    %11583 = vst [vmem:[#allocation13 + $0x288] sm:$0xff] %v11487
    %11584 = vst [vmem:[#allocation13 + $0x290] sm:$0xff] %v11488
    %11585 = vst [vmem:[#allocation13 + $0x298] sm:$0xff] %v11489
    %11586 = vst [vmem:[#allocation13 + $0x2a0] sm:$0xff] %v11490
    %11587 = vst [vmem:[#allocation13 + $0x2a8] sm:$0xff] %v11491
    %11588 = vst [vmem:[#allocation13 + $0x2b0] sm:$0xff] %v11492
    %11589 = vst [vmem:[#allocation13 + $0x2b8] sm:$0xff] %v11493
    %11590 = vst [vmem:[#allocation13 + $0x2c0] sm:$0xff] %v11494
    %11591 = vst [vmem:[#allocation13 + $0x2c8] sm:$0xff] %v11495
    %11592 = vst [vmem:[#allocation13 + $0x2d0] sm:$0xff] %v11496
    %11593 = vst [vmem:[#allocation13 + $0x2d8] sm:$0xff] %v11497
    %11594 = vst [vmem:[#allocation13 + $0x2e0] sm:$0xff] %v11498
    %11595 = vst [vmem:[#allocation13 + $0x2e8] sm:$0xff] %v11499
    %11596 = vst [vmem:[#allocation13 + $0x2f0] sm:$0xff] %v11500
    %11597 = vst [vmem:[#allocation13 + $0x2f8] sm:$0xff] %v11501
    // Predicated region
    $region50: #{tpu_custom_call.1} parent=1 // pred_check
      _
    $region51: #{tpu_custom_call.1} parent=1 // pred_check_branch
      %11599 = sbr.rel (0) target = $region53
    $region52: #{tpu_custom_call.1} parent=1 // pred_region
      %11601 = vsyncadd [#allocation4], 0
      %s11602 = sshll.u32 [#allocation13], 4
      %s11603 = int_to_ptr.vmem [resolvable:$true] %s11602
      %s11604 = sshll.u32 %s6, 4
      %s11605 = int_to_ptr.hbm [resolvable:$true] %s11604
      %11610 = dma.vmem_to_hbm [thread:$0]  %s11603, 12288, %s11605, [#allocation4], 384, 384, 24
    $region53: #{tpu_custom_call.1} parent=1 // pred_fallthru
      _
    // Predicated region
    $region54: #{tpu_custom_call.1} parent=1 // pred_check
      _
    $region55: #{tpu_custom_call.1} parent=1 // pred_check_branch
      %11612 = sbr.rel (0) target = $region57
    $region56: #{tpu_custom_call.1} parent=1 // pred_region
      %11614 = dma.done [#allocation4], 12288
    $region57: #{tpu_custom_call.1} parent=1 // pred_fallthru
      _
    %11615 = vsyncpa [#allocation3], 1
    %11616 = vsyncpa [#allocation6], 1
    %11617 = vsyncpa [#allocation9], 1
    %11618 = vsyncpa [#allocation12], 1
    %11619 = vsyncpa [#allocation4], 1

</llo_original>
